<compile_context>
chip_gen: v5e
topology: v5e:2x2
jax: 0.10.0
libtpu: 0.0.40
codegen_flags: <defaults>
</compile_context>

<pallas_src>
import numpy as np
import jax
import jax.numpy as jnp
from jax import lax
from jax.experimental import pallas as pl
from jax.experimental.pallas import tpu as pltpu


# Module hyper-parameters (PyTorch defaults of FMNIST_VAE_Decoder).
CODE_LEN = 32
IN_CH = 64
IN_H = IN_W = 7            # input_shape
C1, C2, C3 = 64, 32, 1     # deconv output channels
H1 = W1 = 7                # after deconv1 (stride 1)
H2 = W2 = 14               # after deconv2 (stride 2, output_padding 1)
H3 = W3 = 28               # after deconv3
BN_EPS = 1e-5

# Phase-plane geometry for the stride-2 layers.
L2_PLANE_ROWS = 56                     # 7*7=49 padded to a multiple of 8
L3_IN_ROWS = 4 * L2_PLANE_ROWS         # 224: layer-3 input rows (phase-major, padded)
L3_PLANE_ROWS = (H3 // 2) * (W3 // 2)  # 196: one 14x14 output phase plane


# ----------------------------------------------------------------------------
# Static (batch-independent) scatter structure, built once at import time.
# ----------------------------------------------------------------------------
def make_tap_scatters(h_in, w_in, h_out, w_out, stride, padding,
                      plane_rows, n_in_cols, in_col):
    """Per-tap ConvTranspose2d scatter matrices in phase-reduced form.

    For stride s, output (oy,ox) belongs to phase p=(oy%s)*s+(ox%s); every tap
    (ky,kx) only ever writes one phase.  scats[k][r, in_col(iy,ix)] = 1 iff tap
    k routes input (iy,ix) to within-phase position r=(oy//s)*(w_out//s)+ox//s,
    with oy = iy*s - padding + ky (PyTorch ConvTranspose2d definition).
    Returns (scats[9, plane_rows, n_in_cols], phase_of_tap[9])."""
    wp = w_out // stride
    scats = np.zeros((9, plane_rows, n_in_cols), np.float32)
    phases = [0] * 9
    for ky in range(3):
        for kx in range(3):
            k = ky * 3 + kx
            seen = set()
            for iy in range(h_in):
                for ix in range(w_in):
                    oy = iy * stride - padding + ky
                    ox = ix * stride - padding + kx
                    if not (0 <= oy < h_out and 0 <= ox < w_out):
                        continue
                    seen.add((oy % stride) * stride + (ox % stride))
                    r = (oy // stride) * wp + (ox // stride)
                    scats[k, r, in_col(iy, ix)] = 1.0
            assert len(seen) <= 1          # each tap hits exactly one phase
            if seen:
                phases[k] = seen.pop()
    return scats, tuple(phases)


def _rowmajor(width):
    return lambda iy, ix: iy * width + ix


def _l3_in_col(y, x):
    # Layer-3 input row ordering = layer-2 output layout:
    # phase-major, each 7x7 phase plane padded to 56 rows.
    return ((y % 2) * 2 + (x % 2)) * L2_PLANE_ROWS + (y // 2) * 7 + (x // 2)


_S1_NP, PHASE1 = make_tap_scatters(IN_H, IN_W, H1, W1, 1, 1,
                                   plane_rows=H1 * W1, n_in_cols=IN_H * IN_W,
                                   in_col=_rowmajor(IN_W))
_S2_NP, PHASE2 = make_tap_scatters(H1, W1, H2, W2, 2, 1,
                                   plane_rows=L2_PLANE_ROWS, n_in_cols=H1 * W1,
                                   in_col=_rowmajor(W1))
_S3_NP, PHASE3 = make_tap_scatters(H2, W2, H3, W3, 2, 1,
                                   plane_rows=L3_PLANE_ROWS, n_in_cols=L3_IN_ROWS,
                                   in_col=_l3_in_col)


# ----------------------------------------------------------------------------
# Pallas kernel: the entire decoder, whole batch, single invocation.
# ----------------------------------------------------------------------------
def decoder_kernel(z_ref, wd_ref, dbias_ref, ep_ref,
                   s1_ref, w1_ref, s2_ref, w2_ref, s3_ref, w3_ref, out_ref):
    n_batch = z_ref.shape[0]
    code = z_ref.shape[1]

    # ---- dense layer: z @ Wd.T + b, produced directly in (H*W, N*C) layout ----
    cols = []
    for n in range(n_batch):
        acc = dbias_ref[...]                          # (49, 64) f32
        for j in range(code):
            acc = acc + z_ref[n, j] * wd_ref[j]       # SMEM scalar * (49, 64)
        cols.append(acc)
    x = cols[0] if n_batch == 1 else jnp.concatenate(cols, axis=1)  # (49, N*64)

    # ---- fused ConvTranspose2d + bias + PReLU + BN(eval) [+ sigmoid] block ----
    def deconv_block(x, s_ref, w_ref, layer, phases, n_planes, apply_sigmoid):
        nc = w_ref.shape[1] // 9                      # N*Cout
        plane_rows = s_ref.shape[1]
        xb = x.astype(jnp.bfloat16)
        # One wide MXU matmul does all 9 taps' channel mixing (lane dense).
        y_all = jnp.dot(xb, w_ref[...], preferred_element_type=jnp.float32)
        yb = y_all.astype(jnp.bfloat16)
        accs = [jnp.zeros((plane_rows, nc), jnp.float32) for _ in range(n_planes)]
        for k in range(9):                            # 9 kernel taps (static loop)
            yk = yb[:, k * nc:(k + 1) * nc]           # per-tap lane slice
            accs[phases[k]] = accs[phases[k]] + jnp.dot(
                s_ref[k], yk, preferred_element_type=jnp.float32)   # 0/1 scatter
        ep = ep_ref[layer]
        bias, alpha = ep[0:1, :nc], ep[1:2, :nc]
        scale, shift = ep[2:3, :nc], ep[3:4, :nc]
        outs = []
        for acc in accs:
            v = acc + bias
            v = jnp.where(v > 0, v, v * alpha)        # PReLU (alpha=1 -> identity)
            v = v * scale + shift                     # BN eval (1,0 -> identity)
            if apply_sigmoid:
                v = 1.0 / (1.0 + jnp.exp(-v))
            outs.append(v)
        return outs

    x = deconv_block(x, s1_ref, w1_ref, 0, PHASE1, 1, False)[0]   # (49, N*64)
    planes2 = deconv_block(x, s2_ref, w2_ref, 1, PHASE2, 4, False)  # 4 x (56, N*32)
    x = jnp.concatenate(planes2, axis=0)                          # (224, N*32)
    planes3 = deconv_block(x, s3_ref, w3_ref, 2, PHASE3, 4, True)   # 4 x (196, N)
    for p in range(4):
        out_ref[p] = planes3[p]


def fmnist_vae_decoder_pallas(z, kin):
    n_batch = z.shape[0]
    vmem = pl.BlockSpec(memory_space=pltpu.MemorySpace.VMEM)
    planes = pl.pallas_call(
        decoder_kernel,
        out_shape=jax.ShapeDtypeStruct((4, L3_PLANE_ROWS, n_batch), jnp.float32),
        in_specs=[pl.BlockSpec(memory_space=pltpu.MemorySpace.SMEM)] + [vmem] * 9,
        out_specs=vmem,
        compiler_params=pltpu.CompilerParams(vmem_limit_bytes=32 * 1024 * 1024),
    )(z, kin["wd"], kin["dbias"], kin["ep"],
      kin["s1"], kin["w1"], kin["s2"], kin["w2"], kin["s3"], kin["w3"])
    # planes[py*2+px, a*14+b, n] -> image[n, 0, 2a+py, 2b+px]   (6 KB reshuffle)
    t = planes.reshape(2, 2, H3 // 2, W3 // 2, n_batch)
    return t.transpose(4, 2, 0, 3, 1).reshape(n_batch, 1, H3, W3)


# ----------------------------------------------------------------------------
# Wrapper-side constant preparation (numpy, trace-time only).
# ----------------------------------------------------------------------------
def make_blockdiag_wcat(w_t, n_batch):
    """(Cin,Cout,3,3) ConvTranspose2d weight -> (N*Cin, 9*N*Cout) concatenated
    per-tap block-diagonal channel-mixing matrix (batch folded into lanes,
    tap index major along the output columns)."""
    w = np.asarray(w_t, np.float32)
    cin, cout = w.shape[:2]
    cat = np.zeros((n_batch * cin, 9 * n_batch * cout), np.float32)
    for ky in range(3):
        for kx in range(3):
            k = ky * 3 + kx
            for n in range(n_batch):
                cat[n * cin:(n + 1) * cin,
                    k * n_batch * cout + n * cout:
                    k * n_batch * cout + (n + 1) * cout] = w[:, :, ky, kx]
    return cat


def prepare_kernel_inputs(params, n_batch):
    hw0 = IN_H * IN_W
    # Dense weight rearranged so scalar-accumulation lands in (H*W, C) NHWC-flat
    # layout: wd[j, i, c] = W[c*49 + i, j]   (PyTorch Linear weight is (out,in)).
    wd = np.asarray(params["dense_w"], np.float32)
    wd = wd.reshape(IN_CH, hw0, CODE_LEN).transpose(2, 1, 0)           # (32,49,64)
    dbias = np.asarray(params["dense_b"], np.float32).reshape(IN_CH, hw0).T  # (49,64)

    # Packed per-layer epilogue table: rows = (bias, prelu_alpha, bn_scale, bn_shift).
    ep = np.zeros((3, 4, n_batch * C1), np.float32)

    def fill(layer, bias, alpha, gamma=None, beta=None, mean=None, var=None):
        c = np.asarray(bias).shape[0]
        ep[layer, 0, :n_batch * c] = np.tile(np.asarray(bias, np.float32), n_batch)
        ep[layer, 1, :n_batch * c] = float(alpha)
        if gamma is None:
            ep[layer, 2, :n_batch * c] = 1.0            # shift row stays 0
        else:
            sc = np.asarray(gamma, np.float32) / np.sqrt(np.asarray(var, np.float32) + BN_EPS)
            sh = np.asarray(beta, np.float32) - np.asarray(mean, np.float32) * sc
            ep[layer, 2, :n_batch * c] = np.tile(sc, n_batch)
            ep[layer, 3, :n_batch * c] = np.tile(sh, n_batch)

    fill(0, params["b1"], params["alpha1"],
         params["g1"], params["be1"], params["m1"], params["v1"])
    fill(1, params["b2"], params["alpha2"],
         params["g2"], params["be2"], params["m2"], params["v2"])
    fill(2, params["b3"], 1.0)   # layer 3: bias only, sigmoid applied in-kernel

    bf = jnp.bfloat16
    return dict(
        wd=jnp.asarray(wd), dbias=jnp.asarray(dbias), ep=jnp.asarray(ep),
        s1=jnp.asarray(_S1_NP, bf), w1=jnp.asarray(make_blockdiag_wcat(params["w1"], n_batch), bf),
        s2=jnp.asarray(_S2_NP, bf), w2=jnp.asarray(make_blockdiag_wcat(params["w2"], n_batch), bf),
        s3=jnp.asarray(_S3_NP, bf), w3=jnp.asarray(make_blockdiag_wcat(params["w3"], n_batch), bf),
    )


# ----------------------------------------------------------------------------
# Deterministic parameter init (PyTorch-like shapes; eval-mode BN stats).
# ----------------------------------------------------------------------------
def init_params(key):
    ks = jax.random.split(key, 16)

    def u(k, shape, fan_in):
        b = 1.0 / np.sqrt(fan_in)
        return jax.random.uniform(k, shape, jnp.float32, -b, b)

    p = {}
    p["dense_w"] = u(ks[0], (IN_CH * IN_H * IN_W, CODE_LEN), CODE_LEN)  # (3136,32)
    p["dense_b"] = u(ks[1], (IN_CH * IN_H * IN_W,), CODE_LEN)
    # ConvTranspose2d weights have shape (in_ch, out_ch, kH, kW).
    p["w1"] = u(ks[2], (IN_CH, C1, 3, 3), IN_CH * 9)
    p["b1"] = u(ks[3], (C1,), IN_CH * 9)
    p["alpha1"] = jnp.float32(0.25)
    p["g1"] = 1.0 + 0.1 * jax.random.normal(ks[4], (C1,), jnp.float32)
    p["be1"] = 0.1 * jax.random.normal(ks[5], (C1,), jnp.float32)
    p["m1"] = 0.1 * jax.random.normal(ks[6], (C1,), jnp.float32)
    p["v1"] = jax.random.uniform(ks[7], (C1,), jnp.float32, 0.5, 1.5)
    p["w2"] = u(ks[8], (C1, C2, 3, 3), C1 * 9)
    p["b2"] = u(ks[9], (C2,), C1 * 9)
    p["alpha2"] = jnp.float32(0.2)
    p["g2"] = 1.0 + 0.1 * jax.random.normal(ks[10], (C2,), jnp.float32)
    p["be2"] = 0.1 * jax.random.normal(ks[11], (C2,), jnp.float32)
    p["m2"] = 0.1 * jax.random.normal(ks[12], (C2,), jnp.float32)
    p["v2"] = jax.random.uniform(ks[13], (C2,), jnp.float32, 0.5, 1.5)
    p["w3"] = u(ks[14], (C2, C3, 3, 3), C2 * 9)
    p["b3"] = u(ks[15], (C3,), C2 * 9)
    return p


# ----------------------------------------------------------------------------
# Pure-JAX reference mirroring PyTorch (eval-mode) semantics.
# ----------------------------------------------------------------------------
def conv_transpose_ref(x, w_t, b, stride, padding, output_padding):
    k = w_t.shape[-1]
    w = jnp.flip(w_t, (-2, -1)).transpose(1, 0, 2, 3)   # -> OIHW regular-conv kernel
    lo = k - 1 - padding
    hi = k - 1 - padding + output_padding
    y = lax.conv_general_dilated(
        x, w, window_strides=(1, 1), padding=((lo, hi), (lo, hi)),
        lhs_dilation=(stride, stride),
        dimension_numbers=("NCHW", "OIHW", "NCHW"),
        precision=lax.Precision.HIGHEST)
    return y + b[None, :, None, None]


def fmnist_vae_decoder_ref(z, p):
    x = jnp.dot(z, p["dense_w"].T, precision=lax.Precision.HIGHEST) + p["dense_b"]
    n = x.shape[0]
    x = x.reshape(n, IN_CH, IN_H, IN_W)

    def prelu(v, a):
        return jnp.where(v > 0, v, a * v)

    def bn(v, g, b_, m, var):
        sc = g / jnp.sqrt(var + BN_EPS)
        return v * sc[None, :, None, None] + (b_ - m * sc)[None, :, None, None]

    x = conv_transpose_ref(x, p["w1"], p["b1"], 1, 1, 0)
    x = prelu(x, p["alpha1"])
    x = bn(x, p["g1"], p["be1"], p["m1"], p["v1"])
    x = conv_transpose_ref(x, p["w2"], p["b2"], 2, 1, 1)
    x = prelu(x, p["alpha2"])
    x = bn(x, p["g2"], p["be2"], p["m2"], p["v2"])
    x = conv_transpose_ref(x, p["w3"], p["b3"], 2, 1, 1)
    return jax.nn.sigmoid(x)


if __name__ == "__main__":
    key = jax.random.PRNGKey(0)
    kz, kp = jax.random.split(key)

    n_batch = 2
    z = jax.random.normal(kz, (n_batch, CODE_LEN), jnp.float32)

    params = init_params(kp)
    kin = prepare_kernel_inputs(params, n_batch)

    out = jax.jit(fmnist_vae_decoder_pallas)(z, kin)
    out = jax.block_until_ready(out)
    assert out.shape == (n_batch, 1, H3, W3), out.shape

    ref = jax.block_until_ready(fmnist_vae_decoder_ref(z, params))
    err = float(jnp.max(jnp.abs(out - ref)))
    # bf16 MXU inputs with f32 accumulation: typical error ~1e-3 on (0,1) outputs.
    assert err < 3e-2, f"max abs err {err}"

    print("KERNEL_OK")
</pallas_src>

<mosaic_0001>
module attributes {stable_mosaic.version = 11 : i64} {
  func.func @decoder_kernel(%arg0: memref<2x32xf32, #tpu.memory_space<smem>>, %arg1: memref<32x49x64xf32, #tpu.memory_space<vmem>>, %arg2: memref<49x64xf32, #tpu.memory_space<vmem>>, %arg3: memref<3x4x128xf32, #tpu.memory_space<vmem>>, %arg4: memref<9x49x49xbf16, #tpu.memory_space<vmem>>, %arg5: memref<128x1152xbf16, #tpu.memory_space<vmem>>, %arg6: memref<9x56x49xbf16, #tpu.memory_space<vmem>>, %arg7: memref<128x576xbf16, #tpu.memory_space<vmem>>, %arg8: memref<9x196x224xbf16, #tpu.memory_space<vmem>>, %arg9: memref<64x18xbf16, #tpu.memory_space<vmem>>, %arg10: memref<4x196x2xf32, #tpu.memory_space<vmem>>) attributes {dimension_semantics = [], scalar_prefetch = 0 : i64, scratch_operands = 0 : i64, tpu.core_type = #tpu.core_type<tc>} {
    %c0 = arith.constant 0 : index
    %c0_0 = arith.constant 0 : index
    %0 = vector.load %arg2[%c0, %c0_0] : memref<49x64xf32, #tpu.memory_space<vmem>>, vector<49x64xf32>
    %c0_1 = arith.constant 0 : index
    %c0_2 = arith.constant 0 : index
    %1 = memref.load %arg0[%c0_1, %c0_2] : memref<2x32xf32, #tpu.memory_space<smem>>
    %c0_3 = arith.constant 0 : index
    %c0_4 = arith.constant 0 : index
    %c0_5 = arith.constant 0 : index
    %2 = vector.load %arg1[%c0_3, %c0_4, %c0_5] : memref<32x49x64xf32, #tpu.memory_space<vmem>>, vector<1x49x64xf32>
    %3 = vector.shape_cast %2 : vector<1x49x64xf32> to vector<49x64xf32>
    %4 = vector.broadcast %1 : f32 to vector<49x64xf32>
    %5 = arith.mulf %4, %3 : vector<49x64xf32>
    %6 = arith.addf %0, %5 : vector<49x64xf32>
    %c0_6 = arith.constant 0 : index
    %c1 = arith.constant 1 : index
    %7 = memref.load %arg0[%c0_6, %c1] : memref<2x32xf32, #tpu.memory_space<smem>>
    %c1_7 = arith.constant 1 : index
    %c0_8 = arith.constant 0 : index
    %c0_9 = arith.constant 0 : index
    %8 = vector.load %arg1[%c1_7, %c0_8, %c0_9] : memref<32x49x64xf32, #tpu.memory_space<vmem>>, vector<1x49x64xf32>
    %9 = vector.shape_cast %8 : vector<1x49x64xf32> to vector<49x64xf32>
    %10 = vector.broadcast %7 : f32 to vector<49x64xf32>
    %11 = arith.mulf %10, %9 : vector<49x64xf32>
    %12 = arith.addf %6, %11 : vector<49x64xf32>
    %c0_10 = arith.constant 0 : index
    %c2 = arith.constant 2 : index
    %13 = memref.load %arg0[%c0_10, %c2] : memref<2x32xf32, #tpu.memory_space<smem>>
    %c2_11 = arith.constant 2 : index
    %c0_12 = arith.constant 0 : index
    %c0_13 = arith.constant 0 : index
    %14 = vector.load %arg1[%c2_11, %c0_12, %c0_13] : memref<32x49x64xf32, #tpu.memory_space<vmem>>, vector<1x49x64xf32>
    %15 = vector.shape_cast %14 : vector<1x49x64xf32> to vector<49x64xf32>
    %16 = vector.broadcast %13 : f32 to vector<49x64xf32>
    %17 = arith.mulf %16, %15 : vector<49x64xf32>
    %18 = arith.addf %12, %17 : vector<49x64xf32>
    %c0_14 = arith.constant 0 : index
    %c3 = arith.constant 3 : index
    %19 = memref.load %arg0[%c0_14, %c3] : memref<2x32xf32, #tpu.memory_space<smem>>
    %c3_15 = arith.constant 3 : index
    %c0_16 = arith.constant 0 : index
    %c0_17 = arith.constant 0 : index
    %20 = vector.load %arg1[%c3_15, %c0_16, %c0_17] : memref<32x49x64xf32, #tpu.memory_space<vmem>>, vector<1x49x64xf32>
    %21 = vector.shape_cast %20 : vector<1x49x64xf32> to vector<49x64xf32>
    %22 = vector.broadcast %19 : f32 to vector<49x64xf32>
    %23 = arith.mulf %22, %21 : vector<49x64xf32>
    %24 = arith.addf %18, %23 : vector<49x64xf32>
    %c0_18 = arith.constant 0 : index
    %c4 = arith.constant 4 : index
    %25 = memref.load %arg0[%c0_18, %c4] : memref<2x32xf32, #tpu.memory_space<smem>>
    %c4_19 = arith.constant 4 : index
    %c0_20 = arith.constant 0 : index
    %c0_21 = arith.constant 0 : index
    %26 = vector.load %arg1[%c4_19, %c0_20, %c0_21] : memref<32x49x64xf32, #tpu.memory_space<vmem>>, vector<1x49x64xf32>
    %27 = vector.shape_cast %26 : vector<1x49x64xf32> to vector<49x64xf32>
    %28 = vector.broadcast %25 : f32 to vector<49x64xf32>
    %29 = arith.mulf %28, %27 : vector<49x64xf32>
    %30 = arith.addf %24, %29 : vector<49x64xf32>
    %c0_22 = arith.constant 0 : index
    %c5 = arith.constant 5 : index
    %31 = memref.load %arg0[%c0_22, %c5] : memref<2x32xf32, #tpu.memory_space<smem>>
    %c5_23 = arith.constant 5 : index
    %c0_24 = arith.constant 0 : index
    %c0_25 = arith.constant 0 : index
    %32 = vector.load %arg1[%c5_23, %c0_24, %c0_25] : memref<32x49x64xf32, #tpu.memory_space<vmem>>, vector<1x49x64xf32>
    %33 = vector.shape_cast %32 : vector<1x49x64xf32> to vector<49x64xf32>
    %34 = vector.broadcast %31 : f32 to vector<49x64xf32>
    %35 = arith.mulf %34, %33 : vector<49x64xf32>
    %36 = arith.addf %30, %35 : vector<49x64xf32>
    %c0_26 = arith.constant 0 : index
    %c6 = arith.constant 6 : index
    %37 = memref.load %arg0[%c0_26, %c6] : memref<2x32xf32, #tpu.memory_space<smem>>
    %c6_27 = arith.constant 6 : index
    %c0_28 = arith.constant 0 : index
    %c0_29 = arith.constant 0 : index
    %38 = vector.load %arg1[%c6_27, %c0_28, %c0_29] : memref<32x49x64xf32, #tpu.memory_space<vmem>>, vector<1x49x64xf32>
    %39 = vector.shape_cast %38 : vector<1x49x64xf32> to vector<49x64xf32>
    %40 = vector.broadcast %37 : f32 to vector<49x64xf32>
    %41 = arith.mulf %40, %39 : vector<49x64xf32>
    %42 = arith.addf %36, %41 : vector<49x64xf32>
    %c0_30 = arith.constant 0 : index
    %c7 = arith.constant 7 : index
    %43 = memref.load %arg0[%c0_30, %c7] : memref<2x32xf32, #tpu.memory_space<smem>>
    %c7_31 = arith.constant 7 : index
    %c0_32 = arith.constant 0 : index
    %c0_33 = arith.constant 0 : index
    %44 = vector.load %arg1[%c7_31, %c0_32, %c0_33] : memref<32x49x64xf32, #tpu.memory_space<vmem>>, vector<1x49x64xf32>
    %45 = vector.shape_cast %44 : vector<1x49x64xf32> to vector<49x64xf32>
    %46 = vector.broadcast %43 : f32 to vector<49x64xf32>
    %47 = arith.mulf %46, %45 : vector<49x64xf32>
    %48 = arith.addf %42, %47 : vector<49x64xf32>
    %c0_34 = arith.constant 0 : index
    %c8 = arith.constant 8 : index
    %49 = memref.load %arg0[%c0_34, %c8] : memref<2x32xf32, #tpu.memory_space<smem>>
    %c8_35 = arith.constant 8 : index
    %c0_36 = arith.constant 0 : index
    %c0_37 = arith.constant 0 : index
    %50 = vector.load %arg1[%c8_35, %c0_36, %c0_37] : memref<32x49x64xf32, #tpu.memory_space<vmem>>, vector<1x49x64xf32>
    %51 = vector.shape_cast %50 : vector<1x49x64xf32> to vector<49x64xf32>
    %52 = vector.broadcast %49 : f32 to vector<49x64xf32>
    %53 = arith.mulf %52, %51 : vector<49x64xf32>
    %54 = arith.addf %48, %53 : vector<49x64xf32>
    %c0_38 = arith.constant 0 : index
    %c9 = arith.constant 9 : index
    %55 = memref.load %arg0[%c0_38, %c9] : memref<2x32xf32, #tpu.memory_space<smem>>
    %c9_39 = arith.constant 9 : index
    %c0_40 = arith.constant 0 : index
    %c0_41 = arith.constant 0 : index
    %56 = vector.load %arg1[%c9_39, %c0_40, %c0_41] : memref<32x49x64xf32, #tpu.memory_space<vmem>>, vector<1x49x64xf32>
    %57 = vector.shape_cast %56 : vector<1x49x64xf32> to vector<49x64xf32>
    %58 = vector.broadcast %55 : f32 to vector<49x64xf32>
    %59 = arith.mulf %58, %57 : vector<49x64xf32>
    %60 = arith.addf %54, %59 : vector<49x64xf32>
    %c0_42 = arith.constant 0 : index
    %c10 = arith.constant 10 : index
    %61 = memref.load %arg0[%c0_42, %c10] : memref<2x32xf32, #tpu.memory_space<smem>>
    %c10_43 = arith.constant 10 : index
    %c0_44 = arith.constant 0 : index
    %c0_45 = arith.constant 0 : index
    %62 = vector.load %arg1[%c10_43, %c0_44, %c0_45] : memref<32x49x64xf32, #tpu.memory_space<vmem>>, vector<1x49x64xf32>
    %63 = vector.shape_cast %62 : vector<1x49x64xf32> to vector<49x64xf32>
    %64 = vector.broadcast %61 : f32 to vector<49x64xf32>
    %65 = arith.mulf %64, %63 : vector<49x64xf32>
    %66 = arith.addf %60, %65 : vector<49x64xf32>
    %c0_46 = arith.constant 0 : index
    %c11 = arith.constant 11 : index
    %67 = memref.load %arg0[%c0_46, %c11] : memref<2x32xf32, #tpu.memory_space<smem>>
    %c11_47 = arith.constant 11 : index
    %c0_48 = arith.constant 0 : index
    %c0_49 = arith.constant 0 : index
    %68 = vector.load %arg1[%c11_47, %c0_48, %c0_49] : memref<32x49x64xf32, #tpu.memory_space<vmem>>, vector<1x49x64xf32>
    %69 = vector.shape_cast %68 : vector<1x49x64xf32> to vector<49x64xf32>
    %70 = vector.broadcast %67 : f32 to vector<49x64xf32>
    %71 = arith.mulf %70, %69 : vector<49x64xf32>
    %72 = arith.addf %66, %71 : vector<49x64xf32>
    %c0_50 = arith.constant 0 : index
    %c12 = arith.constant 12 : index
    %73 = memref.load %arg0[%c0_50, %c12] : memref<2x32xf32, #tpu.memory_space<smem>>
    %c12_51 = arith.constant 12 : index
    %c0_52 = arith.constant 0 : index
    %c0_53 = arith.constant 0 : index
    %74 = vector.load %arg1[%c12_51, %c0_52, %c0_53] : memref<32x49x64xf32, #tpu.memory_space<vmem>>, vector<1x49x64xf32>
    %75 = vector.shape_cast %74 : vector<1x49x64xf32> to vector<49x64xf32>
    %76 = vector.broadcast %73 : f32 to vector<49x64xf32>
    %77 = arith.mulf %76, %75 : vector<49x64xf32>
    %78 = arith.addf %72, %77 : vector<49x64xf32>
    %c0_54 = arith.constant 0 : index
    %c13 = arith.constant 13 : index
    %79 = memref.load %arg0[%c0_54, %c13] : memref<2x32xf32, #tpu.memory_space<smem>>
    %c13_55 = arith.constant 13 : index
    %c0_56 = arith.constant 0 : index
    %c0_57 = arith.constant 0 : index
    %80 = vector.load %arg1[%c13_55, %c0_56, %c0_57] : memref<32x49x64xf32, #tpu.memory_space<vmem>>, vector<1x49x64xf32>
    %81 = vector.shape_cast %80 : vector<1x49x64xf32> to vector<49x64xf32>
    %82 = vector.broadcast %79 : f32 to vector<49x64xf32>
    %83 = arith.mulf %82, %81 : vector<49x64xf32>
    %84 = arith.addf %78, %83 : vector<49x64xf32>
    %c0_58 = arith.constant 0 : index
    %c14 = arith.constant 14 : index
    %85 = memref.load %arg0[%c0_58, %c14] : memref<2x32xf32, #tpu.memory_space<smem>>
    %c14_59 = arith.constant 14 : index
    %c0_60 = arith.constant 0 : index
    %c0_61 = arith.constant 0 : index
    %86 = vector.load %arg1[%c14_59, %c0_60, %c0_61] : memref<32x49x64xf32, #tpu.memory_space<vmem>>, vector<1x49x64xf32>
    %87 = vector.shape_cast %86 : vector<1x49x64xf32> to vector<49x64xf32>
    %88 = vector.broadcast %85 : f32 to vector<49x64xf32>
    %89 = arith.mulf %88, %87 : vector<49x64xf32>
    %90 = arith.addf %84, %89 : vector<49x64xf32>
    %c0_62 = arith.constant 0 : index
    %c15 = arith.constant 15 : index
    %91 = memref.load %arg0[%c0_62, %c15] : memref<2x32xf32, #tpu.memory_space<smem>>
    %c15_63 = arith.constant 15 : index
    %c0_64 = arith.constant 0 : index
    %c0_65 = arith.constant 0 : index
    %92 = vector.load %arg1[%c15_63, %c0_64, %c0_65] : memref<32x49x64xf32, #tpu.memory_space<vmem>>, vector<1x49x64xf32>
    %93 = vector.shape_cast %92 : vector<1x49x64xf32> to vector<49x64xf32>
    %94 = vector.broadcast %91 : f32 to vector<49x64xf32>
    %95 = arith.mulf %94, %93 : vector<49x64xf32>
    %96 = arith.addf %90, %95 : vector<49x64xf32>
    %c0_66 = arith.constant 0 : index
    %c16 = arith.constant 16 : index
    %97 = memref.load %arg0[%c0_66, %c16] : memref<2x32xf32, #tpu.memory_space<smem>>
    %c16_67 = arith.constant 16 : index
    %c0_68 = arith.constant 0 : index
    %c0_69 = arith.constant 0 : index
    %98 = vector.load %arg1[%c16_67, %c0_68, %c0_69] : memref<32x49x64xf32, #tpu.memory_space<vmem>>, vector<1x49x64xf32>
    %99 = vector.shape_cast %98 : vector<1x49x64xf32> to vector<49x64xf32>
    %100 = vector.broadcast %97 : f32 to vector<49x64xf32>
    %101 = arith.mulf %100, %99 : vector<49x64xf32>
    %102 = arith.addf %96, %101 : vector<49x64xf32>
    %c0_70 = arith.constant 0 : index
    %c17 = arith.constant 17 : index
    %103 = memref.load %arg0[%c0_70, %c17] : memref<2x32xf32, #tpu.memory_space<smem>>
    %c17_71 = arith.constant 17 : index
    %c0_72 = arith.constant 0 : index
    %c0_73 = arith.constant 0 : index
    %104 = vector.load %arg1[%c17_71, %c0_72, %c0_73] : memref<32x49x64xf32, #tpu.memory_space<vmem>>, vector<1x49x64xf32>
    %105 = vector.shape_cast %104 : vector<1x49x64xf32> to vector<49x64xf32>
    %106 = vector.broadcast %103 : f32 to vector<49x64xf32>
    %107 = arith.mulf %106, %105 : vector<49x64xf32>
    %108 = arith.addf %102, %107 : vector<49x64xf32>
    %c0_74 = arith.constant 0 : index
    %c18 = arith.constant 18 : index
    %109 = memref.load %arg0[%c0_74, %c18] : memref<2x32xf32, #tpu.memory_space<smem>>
    %c18_75 = arith.constant 18 : index
    %c0_76 = arith.constant 0 : index
    %c0_77 = arith.constant 0 : index
    %110 = vector.load %arg1[%c18_75, %c0_76, %c0_77] : memref<32x49x64xf32, #tpu.memory_space<vmem>>, vector<1x49x64xf32>
    %111 = vector.shape_cast %110 : vector<1x49x64xf32> to vector<49x64xf32>
    %112 = vector.broadcast %109 : f32 to vector<49x64xf32>
    %113 = arith.mulf %112, %111 : vector<49x64xf32>
    %114 = arith.addf %108, %113 : vector<49x64xf32>
    %c0_78 = arith.constant 0 : index
    %c19 = arith.constant 19 : index
    %115 = memref.load %arg0[%c0_78, %c19] : memref<2x32xf32, #tpu.memory_space<smem>>
    %c19_79 = arith.constant 19 : index
    %c0_80 = arith.constant 0 : index
    %c0_81 = arith.constant 0 : index
    %116 = vector.load %arg1[%c19_79, %c0_80, %c0_81] : memref<32x49x64xf32, #tpu.memory_space<vmem>>, vector<1x49x64xf32>
    %117 = vector.shape_cast %116 : vector<1x49x64xf32> to vector<49x64xf32>
    %118 = vector.broadcast %115 : f32 to vector<49x64xf32>
    %119 = arith.mulf %118, %117 : vector<49x64xf32>
    %120 = arith.addf %114, %119 : vector<49x64xf32>
    %c0_82 = arith.constant 0 : index
    %c20 = arith.constant 20 : index
    %121 = memref.load %arg0[%c0_82, %c20] : memref<2x32xf32, #tpu.memory_space<smem>>
    %c20_83 = arith.constant 20 : index
    %c0_84 = arith.constant 0 : index
    %c0_85 = arith.constant 0 : index
    %122 = vector.load %arg1[%c20_83, %c0_84, %c0_85] : memref<32x49x64xf32, #tpu.memory_space<vmem>>, vector<1x49x64xf32>
    %123 = vector.shape_cast %122 : vector<1x49x64xf32> to vector<49x64xf32>
    %124 = vector.broadcast %121 : f32 to vector<49x64xf32>
    %125 = arith.mulf %124, %123 : vector<49x64xf32>
    %126 = arith.addf %120, %125 : vector<49x64xf32>
    %c0_86 = arith.constant 0 : index
    %c21 = arith.constant 21 : index
    %127 = memref.load %arg0[%c0_86, %c21] : memref<2x32xf32, #tpu.memory_space<smem>>
    %c21_87 = arith.constant 21 : index
    %c0_88 = arith.constant 0 : index
    %c0_89 = arith.constant 0 : index
    %128 = vector.load %arg1[%c21_87, %c0_88, %c0_89] : memref<32x49x64xf32, #tpu.memory_space<vmem>>, vector<1x49x64xf32>
    %129 = vector.shape_cast %128 : vector<1x49x64xf32> to vector<49x64xf32>
    %130 = vector.broadcast %127 : f32 to vector<49x64xf32>
    %131 = arith.mulf %130, %129 : vector<49x64xf32>
    %132 = arith.addf %126, %131 : vector<49x64xf32>
    %c0_90 = arith.constant 0 : index
    %c22 = arith.constant 22 : index
    %133 = memref.load %arg0[%c0_90, %c22] : memref<2x32xf32, #tpu.memory_space<smem>>
    %c22_91 = arith.constant 22 : index
    %c0_92 = arith.constant 0 : index
    %c0_93 = arith.constant 0 : index
    %134 = vector.load %arg1[%c22_91, %c0_92, %c0_93] : memref<32x49x64xf32, #tpu.memory_space<vmem>>, vector<1x49x64xf32>
    %135 = vector.shape_cast %134 : vector<1x49x64xf32> to vector<49x64xf32>
    %136 = vector.broadcast %133 : f32 to vector<49x64xf32>
    %137 = arith.mulf %136, %135 : vector<49x64xf32>
    %138 = arith.addf %132, %137 : vector<49x64xf32>
    %c0_94 = arith.constant 0 : index
    %c23 = arith.constant 23 : index
    %139 = memref.load %arg0[%c0_94, %c23] : memref<2x32xf32, #tpu.memory_space<smem>>
    %c23_95 = arith.constant 23 : index
    %c0_96 = arith.constant 0 : index
    %c0_97 = arith.constant 0 : index
    %140 = vector.load %arg1[%c23_95, %c0_96, %c0_97] : memref<32x49x64xf32, #tpu.memory_space<vmem>>, vector<1x49x64xf32>
    %141 = vector.shape_cast %140 : vector<1x49x64xf32> to vector<49x64xf32>
    %142 = vector.broadcast %139 : f32 to vector<49x64xf32>
    %143 = arith.mulf %142, %141 : vector<49x64xf32>
    %144 = arith.addf %138, %143 : vector<49x64xf32>
    %c0_98 = arith.constant 0 : index
    %c24 = arith.constant 24 : index
    %145 = memref.load %arg0[%c0_98, %c24] : memref<2x32xf32, #tpu.memory_space<smem>>
    %c24_99 = arith.constant 24 : index
    %c0_100 = arith.constant 0 : index
    %c0_101 = arith.constant 0 : index
    %146 = vector.load %arg1[%c24_99, %c0_100, %c0_101] : memref<32x49x64xf32, #tpu.memory_space<vmem>>, vector<1x49x64xf32>
    %147 = vector.shape_cast %146 : vector<1x49x64xf32> to vector<49x64xf32>
    %148 = vector.broadcast %145 : f32 to vector<49x64xf32>
    %149 = arith.mulf %148, %147 : vector<49x64xf32>
    %150 = arith.addf %144, %149 : vector<49x64xf32>
    %c0_102 = arith.constant 0 : index
    %c25 = arith.constant 25 : index
    %151 = memref.load %arg0[%c0_102, %c25] : memref<2x32xf32, #tpu.memory_space<smem>>
    %c25_103 = arith.constant 25 : index
    %c0_104 = arith.constant 0 : index
    %c0_105 = arith.constant 0 : index
    %152 = vector.load %arg1[%c25_103, %c0_104, %c0_105] : memref<32x49x64xf32, #tpu.memory_space<vmem>>, vector<1x49x64xf32>
    %153 = vector.shape_cast %152 : vector<1x49x64xf32> to vector<49x64xf32>
    %154 = vector.broadcast %151 : f32 to vector<49x64xf32>
    %155 = arith.mulf %154, %153 : vector<49x64xf32>
    %156 = arith.addf %150, %155 : vector<49x64xf32>
    %c0_106 = arith.constant 0 : index
    %c26 = arith.constant 26 : index
    %157 = memref.load %arg0[%c0_106, %c26] : memref<2x32xf32, #tpu.memory_space<smem>>
    %c26_107 = arith.constant 26 : index
    %c0_108 = arith.constant 0 : index
    %c0_109 = arith.constant 0 : index
    %158 = vector.load %arg1[%c26_107, %c0_108, %c0_109] : memref<32x49x64xf32, #tpu.memory_space<vmem>>, vector<1x49x64xf32>
    %159 = vector.shape_cast %158 : vector<1x49x64xf32> to vector<49x64xf32>
    %160 = vector.broadcast %157 : f32 to vector<49x64xf32>
    %161 = arith.mulf %160, %159 : vector<49x64xf32>
    %162 = arith.addf %156, %161 : vector<49x64xf32>
    %c0_110 = arith.constant 0 : index
    %c27 = arith.constant 27 : index
    %163 = memref.load %arg0[%c0_110, %c27] : memref<2x32xf32, #tpu.memory_space<smem>>
    %c27_111 = arith.constant 27 : index
    %c0_112 = arith.constant 0 : index
    %c0_113 = arith.constant 0 : index
    %164 = vector.load %arg1[%c27_111, %c0_112, %c0_113] : memref<32x49x64xf32, #tpu.memory_space<vmem>>, vector<1x49x64xf32>
    %165 = vector.shape_cast %164 : vector<1x49x64xf32> to vector<49x64xf32>
    %166 = vector.broadcast %163 : f32 to vector<49x64xf32>
    %167 = arith.mulf %166, %165 : vector<49x64xf32>
    %168 = arith.addf %162, %167 : vector<49x64xf32>
    %c0_114 = arith.constant 0 : index
    %c28 = arith.constant 28 : index
    %169 = memref.load %arg0[%c0_114, %c28] : memref<2x32xf32, #tpu.memory_space<smem>>
    %c28_115 = arith.constant 28 : index
    %c0_116 = arith.constant 0 : index
    %c0_117 = arith.constant 0 : index
    %170 = vector.load %arg1[%c28_115, %c0_116, %c0_117] : memref<32x49x64xf32, #tpu.memory_space<vmem>>, vector<1x49x64xf32>
    %171 = vector.shape_cast %170 : vector<1x49x64xf32> to vector<49x64xf32>
    %172 = vector.broadcast %169 : f32 to vector<49x64xf32>
    %173 = arith.mulf %172, %171 : vector<49x64xf32>
    %174 = arith.addf %168, %173 : vector<49x64xf32>
    %c0_118 = arith.constant 0 : index
    %c29 = arith.constant 29 : index
    %175 = memref.load %arg0[%c0_118, %c29] : memref<2x32xf32, #tpu.memory_space<smem>>
    %c29_119 = arith.constant 29 : index
    %c0_120 = arith.constant 0 : index
    %c0_121 = arith.constant 0 : index
    %176 = vector.load %arg1[%c29_119, %c0_120, %c0_121] : memref<32x49x64xf32, #tpu.memory_space<vmem>>, vector<1x49x64xf32>
    %177 = vector.shape_cast %176 : vector<1x49x64xf32> to vector<49x64xf32>
    %178 = vector.broadcast %175 : f32 to vector<49x64xf32>
    %179 = arith.mulf %178, %177 : vector<49x64xf32>
    %180 = arith.addf %174, %179 : vector<49x64xf32>
    %c0_122 = arith.constant 0 : index
    %c30 = arith.constant 30 : index
    %181 = memref.load %arg0[%c0_122, %c30] : memref<2x32xf32, #tpu.memory_space<smem>>
    %c30_123 = arith.constant 30 : index
    %c0_124 = arith.constant 0 : index
    %c0_125 = arith.constant 0 : index
    %182 = vector.load %arg1[%c30_123, %c0_124, %c0_125] : memref<32x49x64xf32, #tpu.memory_space<vmem>>, vector<1x49x64xf32>
    %183 = vector.shape_cast %182 : vector<1x49x64xf32> to vector<49x64xf32>
    %184 = vector.broadcast %181 : f32 to vector<49x64xf32>
    %185 = arith.mulf %184, %183 : vector<49x64xf32>
    %186 = arith.addf %180, %185 : vector<49x64xf32>
    %c0_126 = arith.constant 0 : index
    %c31 = arith.constant 31 : index
    %187 = memref.load %arg0[%c0_126, %c31] : memref<2x32xf32, #tpu.memory_space<smem>>
    %c31_127 = arith.constant 31 : index
    %c0_128 = arith.constant 0 : index
    %c0_129 = arith.constant 0 : index
    %188 = vector.load %arg1[%c31_127, %c0_128, %c0_129] : memref<32x49x64xf32, #tpu.memory_space<vmem>>, vector<1x49x64xf32>
    %189 = vector.shape_cast %188 : vector<1x49x64xf32> to vector<49x64xf32>
    %190 = vector.broadcast %187 : f32 to vector<49x64xf32>
    %191 = arith.mulf %190, %189 : vector<49x64xf32>
    %192 = arith.addf %186, %191 : vector<49x64xf32>
    %c0_130 = arith.constant 0 : index
    %c0_131 = arith.constant 0 : index
    %193 = vector.load %arg2[%c0_130, %c0_131] : memref<49x64xf32, #tpu.memory_space<vmem>>, vector<49x64xf32>
    %c1_132 = arith.constant 1 : index
    %c0_133 = arith.constant 0 : index
    %194 = memref.load %arg0[%c1_132, %c0_133] : memref<2x32xf32, #tpu.memory_space<smem>>
    %c0_134 = arith.constant 0 : index
    %c0_135 = arith.constant 0 : index
    %c0_136 = arith.constant 0 : index
    %195 = vector.load %arg1[%c0_134, %c0_135, %c0_136] : memref<32x49x64xf32, #tpu.memory_space<vmem>>, vector<1x49x64xf32>
    %196 = vector.shape_cast %195 : vector<1x49x64xf32> to vector<49x64xf32>
    %197 = vector.broadcast %194 : f32 to vector<49x64xf32>
    %198 = arith.mulf %197, %196 : vector<49x64xf32>
    %199 = arith.addf %193, %198 : vector<49x64xf32>
    %c1_137 = arith.constant 1 : index
    %c1_138 = arith.constant 1 : index
    %200 = memref.load %arg0[%c1_137, %c1_138] : memref<2x32xf32, #tpu.memory_space<smem>>
    %c1_139 = arith.constant 1 : index
    %c0_140 = arith.constant 0 : index
    %c0_141 = arith.constant 0 : index
    %201 = vector.load %arg1[%c1_139, %c0_140, %c0_141] : memref<32x49x64xf32, #tpu.memory_space<vmem>>, vector<1x49x64xf32>
    %202 = vector.shape_cast %201 : vector<1x49x64xf32> to vector<49x64xf32>
    %203 = vector.broadcast %200 : f32 to vector<49x64xf32>
    %204 = arith.mulf %203, %202 : vector<49x64xf32>
    %205 = arith.addf %199, %204 : vector<49x64xf32>
    %c1_142 = arith.constant 1 : index
    %c2_143 = arith.constant 2 : index
    %206 = memref.load %arg0[%c1_142, %c2_143] : memref<2x32xf32, #tpu.memory_space<smem>>
    %c2_144 = arith.constant 2 : index
    %c0_145 = arith.constant 0 : index
    %c0_146 = arith.constant 0 : index
    %207 = vector.load %arg1[%c2_144, %c0_145, %c0_146] : memref<32x49x64xf32, #tpu.memory_space<vmem>>, vector<1x49x64xf32>
    %208 = vector.shape_cast %207 : vector<1x49x64xf32> to vector<49x64xf32>
    %209 = vector.broadcast %206 : f32 to vector<49x64xf32>
    %210 = arith.mulf %209, %208 : vector<49x64xf32>
    %211 = arith.addf %205, %210 : vector<49x64xf32>
    %c1_147 = arith.constant 1 : index
    %c3_148 = arith.constant 3 : index
    %212 = memref.load %arg0[%c1_147, %c3_148] : memref<2x32xf32, #tpu.memory_space<smem>>
    %c3_149 = arith.constant 3 : index
    %c0_150 = arith.constant 0 : index
    %c0_151 = arith.constant 0 : index
    %213 = vector.load %arg1[%c3_149, %c0_150, %c0_151] : memref<32x49x64xf32, #tpu.memory_space<vmem>>, vector<1x49x64xf32>
    %214 = vector.shape_cast %213 : vector<1x49x64xf32> to vector<49x64xf32>
    %215 = vector.broadcast %212 : f32 to vector<49x64xf32>
    %216 = arith.mulf %215, %214 : vector<49x64xf32>
    %217 = arith.addf %211, %216 : vector<49x64xf32>
    %c1_152 = arith.constant 1 : index
    %c4_153 = arith.constant 4 : index
    %218 = memref.load %arg0[%c1_152, %c4_153] : memref<2x32xf32, #tpu.memory_space<smem>>
    %c4_154 = arith.constant 4 : index
    %c0_155 = arith.constant 0 : index
    %c0_156 = arith.constant 0 : index
    %219 = vector.load %arg1[%c4_154, %c0_155, %c0_156] : memref<32x49x64xf32, #tpu.memory_space<vmem>>, vector<1x49x64xf32>
    %220 = vector.shape_cast %219 : vector<1x49x64xf32> to vector<49x64xf32>
    %221 = vector.broadcast %218 : f32 to vector<49x64xf32>
    %222 = arith.mulf %221, %220 : vector<49x64xf32>
    %223 = arith.addf %217, %222 : vector<49x64xf32>
    %c1_157 = arith.constant 1 : index
    %c5_158 = arith.constant 5 : index
    %224 = memref.load %arg0[%c1_157, %c5_158] : memref<2x32xf32, #tpu.memory_space<smem>>
    %c5_159 = arith.constant 5 : index
    %c0_160 = arith.constant 0 : index
    %c0_161 = arith.constant 0 : index
    %225 = vector.load %arg1[%c5_159, %c0_160, %c0_161] : memref<32x49x64xf32, #tpu.memory_space<vmem>>, vector<1x49x64xf32>
    %226 = vector.shape_cast %225 : vector<1x49x64xf32> to vector<49x64xf32>
    %227 = vector.broadcast %224 : f32 to vector<49x64xf32>
    %228 = arith.mulf %227, %226 : vector<49x64xf32>
    %229 = arith.addf %223, %228 : vector<49x64xf32>
    %c1_162 = arith.constant 1 : index
    %c6_163 = arith.constant 6 : index
    %230 = memref.load %arg0[%c1_162, %c6_163] : memref<2x32xf32, #tpu.memory_space<smem>>
    %c6_164 = arith.constant 6 : index
    %c0_165 = arith.constant 0 : index
    %c0_166 = arith.constant 0 : index
    %231 = vector.load %arg1[%c6_164, %c0_165, %c0_166] : memref<32x49x64xf32, #tpu.memory_space<vmem>>, vector<1x49x64xf32>
    %232 = vector.shape_cast %231 : vector<1x49x64xf32> to vector<49x64xf32>
    %233 = vector.broadcast %230 : f32 to vector<49x64xf32>
    %234 = arith.mulf %233, %232 : vector<49x64xf32>
    %235 = arith.addf %229, %234 : vector<49x64xf32>
    %c1_167 = arith.constant 1 : index
    %c7_168 = arith.constant 7 : index
    %236 = memref.load %arg0[%c1_167, %c7_168] : memref<2x32xf32, #tpu.memory_space<smem>>
    %c7_169 = arith.constant 7 : index
    %c0_170 = arith.constant 0 : index
    %c0_171 = arith.constant 0 : index
    %237 = vector.load %arg1[%c7_169, %c0_170, %c0_171] : memref<32x49x64xf32, #tpu.memory_space<vmem>>, vector<1x49x64xf32>
    %238 = vector.shape_cast %237 : vector<1x49x64xf32> to vector<49x64xf32>
    %239 = vector.broadcast %236 : f32 to vector<49x64xf32>
    %240 = arith.mulf %239, %238 : vector<49x64xf32>
    %241 = arith.addf %235, %240 : vector<49x64xf32>
    %c1_172 = arith.constant 1 : index
    %c8_173 = arith.constant 8 : index
    %242 = memref.load %arg0[%c1_172, %c8_173] : memref<2x32xf32, #tpu.memory_space<smem>>
    %c8_174 = arith.constant 8 : index
    %c0_175 = arith.constant 0 : index
    %c0_176 = arith.constant 0 : index
    %243 = vector.load %arg1[%c8_174, %c0_175, %c0_176] : memref<32x49x64xf32, #tpu.memory_space<vmem>>, vector<1x49x64xf32>
    %244 = vector.shape_cast %243 : vector<1x49x64xf32> to vector<49x64xf32>
    %245 = vector.broadcast %242 : f32 to vector<49x64xf32>
    %246 = arith.mulf %245, %244 : vector<49x64xf32>
    %247 = arith.addf %241, %246 : vector<49x64xf32>
    %c1_177 = arith.constant 1 : index
    %c9_178 = arith.constant 9 : index
    %248 = memref.load %arg0[%c1_177, %c9_178] : memref<2x32xf32, #tpu.memory_space<smem>>
    %c9_179 = arith.constant 9 : index
    %c0_180 = arith.constant 0 : index
    %c0_181 = arith.constant 0 : index
    %249 = vector.load %arg1[%c9_179, %c0_180, %c0_181] : memref<32x49x64xf32, #tpu.memory_space<vmem>>, vector<1x49x64xf32>
    %250 = vector.shape_cast %249 : vector<1x49x64xf32> to vector<49x64xf32>
    %251 = vector.broadcast %248 : f32 to vector<49x64xf32>
    %252 = arith.mulf %251, %250 : vector<49x64xf32>
    %253 = arith.addf %247, %252 : vector<49x64xf32>
    %c1_182 = arith.constant 1 : index
    %c10_183 = arith.constant 10 : index
    %254 = memref.load %arg0[%c1_182, %c10_183] : memref<2x32xf32, #tpu.memory_space<smem>>
    %c10_184 = arith.constant 10 : index
    %c0_185 = arith.constant 0 : index
    %c0_186 = arith.constant 0 : index
    %255 = vector.load %arg1[%c10_184, %c0_185, %c0_186] : memref<32x49x64xf32, #tpu.memory_space<vmem>>, vector<1x49x64xf32>
    %256 = vector.shape_cast %255 : vector<1x49x64xf32> to vector<49x64xf32>
    %257 = vector.broadcast %254 : f32 to vector<49x64xf32>
    %258 = arith.mulf %257, %256 : vector<49x64xf32>
    %259 = arith.addf %253, %258 : vector<49x64xf32>
    %c1_187 = arith.constant 1 : index
    %c11_188 = arith.constant 11 : index
    %260 = memref.load %arg0[%c1_187, %c11_188] : memref<2x32xf32, #tpu.memory_space<smem>>
    %c11_189 = arith.constant 11 : index
    %c0_190 = arith.constant 0 : index
    %c0_191 = arith.constant 0 : index
    %261 = vector.load %arg1[%c11_189, %c0_190, %c0_191] : memref<32x49x64xf32, #tpu.memory_space<vmem>>, vector<1x49x64xf32>
    %262 = vector.shape_cast %261 : vector<1x49x64xf32> to vector<49x64xf32>
    %263 = vector.broadcast %260 : f32 to vector<49x64xf32>
    %264 = arith.mulf %263, %262 : vector<49x64xf32>
    %265 = arith.addf %259, %264 : vector<49x64xf32>
    %c1_192 = arith.constant 1 : index
    %c12_193 = arith.constant 12 : index
    %266 = memref.load %arg0[%c1_192, %c12_193] : memref<2x32xf32, #tpu.memory_space<smem>>
    %c12_194 = arith.constant 12 : index
    %c0_195 = arith.constant 0 : index
    %c0_196 = arith.constant 0 : index
    %267 = vector.load %arg1[%c12_194, %c0_195, %c0_196] : memref<32x49x64xf32, #tpu.memory_space<vmem>>, vector<1x49x64xf32>
    %268 = vector.shape_cast %267 : vector<1x49x64xf32> to vector<49x64xf32>
    %269 = vector.broadcast %266 : f32 to vector<49x64xf32>
    %270 = arith.mulf %269, %268 : vector<49x64xf32>
    %271 = arith.addf %265, %270 : vector<49x64xf32>
    %c1_197 = arith.constant 1 : index
    %c13_198 = arith.constant 13 : index
    %272 = memref.load %arg0[%c1_197, %c13_198] : memref<2x32xf32, #tpu.memory_space<smem>>
    %c13_199 = arith.constant 13 : index
    %c0_200 = arith.constant 0 : index
    %c0_201 = arith.constant 0 : index
    %273 = vector.load %arg1[%c13_199, %c0_200, %c0_201] : memref<32x49x64xf32, #tpu.memory_space<vmem>>, vector<1x49x64xf32>
    %274 = vector.shape_cast %273 : vector<1x49x64xf32> to vector<49x64xf32>
    %275 = vector.broadcast %272 : f32 to vector<49x64xf32>
    %276 = arith.mulf %275, %274 : vector<49x64xf32>
    %277 = arith.addf %271, %276 : vector<49x64xf32>
    %c1_202 = arith.constant 1 : index
    %c14_203 = arith.constant 14 : index
    %278 = memref.load %arg0[%c1_202, %c14_203] : memref<2x32xf32, #tpu.memory_space<smem>>
    %c14_204 = arith.constant 14 : index
    %c0_205 = arith.constant 0 : index
    %c0_206 = arith.constant 0 : index
    %279 = vector.load %arg1[%c14_204, %c0_205, %c0_206] : memref<32x49x64xf32, #tpu.memory_space<vmem>>, vector<1x49x64xf32>
    %280 = vector.shape_cast %279 : vector<1x49x64xf32> to vector<49x64xf32>
    %281 = vector.broadcast %278 : f32 to vector<49x64xf32>
    %282 = arith.mulf %281, %280 : vector<49x64xf32>
    %283 = arith.addf %277, %282 : vector<49x64xf32>
    %c1_207 = arith.constant 1 : index
    %c15_208 = arith.constant 15 : index
    %284 = memref.load %arg0[%c1_207, %c15_208] : memref<2x32xf32, #tpu.memory_space<smem>>
    %c15_209 = arith.constant 15 : index
    %c0_210 = arith.constant 0 : index
    %c0_211 = arith.constant 0 : index
    %285 = vector.load %arg1[%c15_209, %c0_210, %c0_211] : memref<32x49x64xf32, #tpu.memory_space<vmem>>, vector<1x49x64xf32>
    %286 = vector.shape_cast %285 : vector<1x49x64xf32> to vector<49x64xf32>
    %287 = vector.broadcast %284 : f32 to vector<49x64xf32>
    %288 = arith.mulf %287, %286 : vector<49x64xf32>
    %289 = arith.addf %283, %288 : vector<49x64xf32>
    %c1_212 = arith.constant 1 : index
    %c16_213 = arith.constant 16 : index
    %290 = memref.load %arg0[%c1_212, %c16_213] : memref<2x32xf32, #tpu.memory_space<smem>>
    %c16_214 = arith.constant 16 : index
    %c0_215 = arith.constant 0 : index
    %c0_216 = arith.constant 0 : index
    %291 = vector.load %arg1[%c16_214, %c0_215, %c0_216] : memref<32x49x64xf32, #tpu.memory_space<vmem>>, vector<1x49x64xf32>
    %292 = vector.shape_cast %291 : vector<1x49x64xf32> to vector<49x64xf32>
    %293 = vector.broadcast %290 : f32 to vector<49x64xf32>
    %294 = arith.mulf %293, %292 : vector<49x64xf32>
    %295 = arith.addf %289, %294 : vector<49x64xf32>
    %c1_217 = arith.constant 1 : index
    %c17_218 = arith.constant 17 : index
    %296 = memref.load %arg0[%c1_217, %c17_218] : memref<2x32xf32, #tpu.memory_space<smem>>
    %c17_219 = arith.constant 17 : index
    %c0_220 = arith.constant 0 : index
    %c0_221 = arith.constant 0 : index
    %297 = vector.load %arg1[%c17_219, %c0_220, %c0_221] : memref<32x49x64xf32, #tpu.memory_space<vmem>>, vector<1x49x64xf32>
    %298 = vector.shape_cast %297 : vector<1x49x64xf32> to vector<49x64xf32>
    %299 = vector.broadcast %296 : f32 to vector<49x64xf32>
    %300 = arith.mulf %299, %298 : vector<49x64xf32>
    %301 = arith.addf %295, %300 : vector<49x64xf32>
    %c1_222 = arith.constant 1 : index
    %c18_223 = arith.constant 18 : index
    %302 = memref.load %arg0[%c1_222, %c18_223] : memref<2x32xf32, #tpu.memory_space<smem>>
    %c18_224 = arith.constant 18 : index
    %c0_225 = arith.constant 0 : index
    %c0_226 = arith.constant 0 : index
    %303 = vector.load %arg1[%c18_224, %c0_225, %c0_226] : memref<32x49x64xf32, #tpu.memory_space<vmem>>, vector<1x49x64xf32>
    %304 = vector.shape_cast %303 : vector<1x49x64xf32> to vector<49x64xf32>
    %305 = vector.broadcast %302 : f32 to vector<49x64xf32>
    %306 = arith.mulf %305, %304 : vector<49x64xf32>
    %307 = arith.addf %301, %306 : vector<49x64xf32>
    %c1_227 = arith.constant 1 : index
    %c19_228 = arith.constant 19 : index
    %308 = memref.load %arg0[%c1_227, %c19_228] : memref<2x32xf32, #tpu.memory_space<smem>>
    %c19_229 = arith.constant 19 : index
    %c0_230 = arith.constant 0 : index
    %c0_231 = arith.constant 0 : index
    %309 = vector.load %arg1[%c19_229, %c0_230, %c0_231] : memref<32x49x64xf32, #tpu.memory_space<vmem>>, vector<1x49x64xf32>
    %310 = vector.shape_cast %309 : vector<1x49x64xf32> to vector<49x64xf32>
    %311 = vector.broadcast %308 : f32 to vector<49x64xf32>
    %312 = arith.mulf %311, %310 : vector<49x64xf32>
    %313 = arith.addf %307, %312 : vector<49x64xf32>
    %c1_232 = arith.constant 1 : index
    %c20_233 = arith.constant 20 : index
    %314 = memref.load %arg0[%c1_232, %c20_233] : memref<2x32xf32, #tpu.memory_space<smem>>
    %c20_234 = arith.constant 20 : index
    %c0_235 = arith.constant 0 : index
    %c0_236 = arith.constant 0 : index
    %315 = vector.load %arg1[%c20_234, %c0_235, %c0_236] : memref<32x49x64xf32, #tpu.memory_space<vmem>>, vector<1x49x64xf32>
    %316 = vector.shape_cast %315 : vector<1x49x64xf32> to vector<49x64xf32>
    %317 = vector.broadcast %314 : f32 to vector<49x64xf32>
    %318 = arith.mulf %317, %316 : vector<49x64xf32>
    %319 = arith.addf %313, %318 : vector<49x64xf32>
    %c1_237 = arith.constant 1 : index
    %c21_238 = arith.constant 21 : index
    %320 = memref.load %arg0[%c1_237, %c21_238] : memref<2x32xf32, #tpu.memory_space<smem>>
    %c21_239 = arith.constant 21 : index
    %c0_240 = arith.constant 0 : index
    %c0_241 = arith.constant 0 : index
    %321 = vector.load %arg1[%c21_239, %c0_240, %c0_241] : memref<32x49x64xf32, #tpu.memory_space<vmem>>, vector<1x49x64xf32>
    %322 = vector.shape_cast %321 : vector<1x49x64xf32> to vector<49x64xf32>
    %323 = vector.broadcast %320 : f32 to vector<49x64xf32>
    %324 = arith.mulf %323, %322 : vector<49x64xf32>
    %325 = arith.addf %319, %324 : vector<49x64xf32>
    %c1_242 = arith.constant 1 : index
    %c22_243 = arith.constant 22 : index
    %326 = memref.load %arg0[%c1_242, %c22_243] : memref<2x32xf32, #tpu.memory_space<smem>>
    %c22_244 = arith.constant 22 : index
    %c0_245 = arith.constant 0 : index
    %c0_246 = arith.constant 0 : index
    %327 = vector.load %arg1[%c22_244, %c0_245, %c0_246] : memref<32x49x64xf32, #tpu.memory_space<vmem>>, vector<1x49x64xf32>
    %328 = vector.shape_cast %327 : vector<1x49x64xf32> to vector<49x64xf32>
    %329 = vector.broadcast %326 : f32 to vector<49x64xf32>
    %330 = arith.mulf %329, %328 : vector<49x64xf32>
    %331 = arith.addf %325, %330 : vector<49x64xf32>
    %c1_247 = arith.constant 1 : index
    %c23_248 = arith.constant 23 : index
    %332 = memref.load %arg0[%c1_247, %c23_248] : memref<2x32xf32, #tpu.memory_space<smem>>
    %c23_249 = arith.constant 23 : index
    %c0_250 = arith.constant 0 : index
    %c0_251 = arith.constant 0 : index
    %333 = vector.load %arg1[%c23_249, %c0_250, %c0_251] : memref<32x49x64xf32, #tpu.memory_space<vmem>>, vector<1x49x64xf32>
    %334 = vector.shape_cast %333 : vector<1x49x64xf32> to vector<49x64xf32>
    %335 = vector.broadcast %332 : f32 to vector<49x64xf32>
    %336 = arith.mulf %335, %334 : vector<49x64xf32>
    %337 = arith.addf %331, %336 : vector<49x64xf32>
    %c1_252 = arith.constant 1 : index
    %c24_253 = arith.constant 24 : index
    %338 = memref.load %arg0[%c1_252, %c24_253] : memref<2x32xf32, #tpu.memory_space<smem>>
    %c24_254 = arith.constant 24 : index
    %c0_255 = arith.constant 0 : index
    %c0_256 = arith.constant 0 : index
    %339 = vector.load %arg1[%c24_254, %c0_255, %c0_256] : memref<32x49x64xf32, #tpu.memory_space<vmem>>, vector<1x49x64xf32>
    %340 = vector.shape_cast %339 : vector<1x49x64xf32> to vector<49x64xf32>
    %341 = vector.broadcast %338 : f32 to vector<49x64xf32>
    %342 = arith.mulf %341, %340 : vector<49x64xf32>
    %343 = arith.addf %337, %342 : vector<49x64xf32>
    %c1_257 = arith.constant 1 : index
    %c25_258 = arith.constant 25 : index
    %344 = memref.load %arg0[%c1_257, %c25_258] : memref<2x32xf32, #tpu.memory_space<smem>>
    %c25_259 = arith.constant 25 : index
    %c0_260 = arith.constant 0 : index
    %c0_261 = arith.constant 0 : index
    %345 = vector.load %arg1[%c25_259, %c0_260, %c0_261] : memref<32x49x64xf32, #tpu.memory_space<vmem>>, vector<1x49x64xf32>
    %346 = vector.shape_cast %345 : vector<1x49x64xf32> to vector<49x64xf32>
    %347 = vector.broadcast %344 : f32 to vector<49x64xf32>
    %348 = arith.mulf %347, %346 : vector<49x64xf32>
    %349 = arith.addf %343, %348 : vector<49x64xf32>
    %c1_262 = arith.constant 1 : index
    %c26_263 = arith.constant 26 : index
    %350 = memref.load %arg0[%c1_262, %c26_263] : memref<2x32xf32, #tpu.memory_space<smem>>
    %c26_264 = arith.constant 26 : index
    %c0_265 = arith.constant 0 : index
    %c0_266 = arith.constant 0 : index
    %351 = vector.load %arg1[%c26_264, %c0_265, %c0_266] : memref<32x49x64xf32, #tpu.memory_space<vmem>>, vector<1x49x64xf32>
    %352 = vector.shape_cast %351 : vector<1x49x64xf32> to vector<49x64xf32>
    %353 = vector.broadcast %350 : f32 to vector<49x64xf32>
    %354 = arith.mulf %353, %352 : vector<49x64xf32>
    %355 = arith.addf %349, %354 : vector<49x64xf32>
    %c1_267 = arith.constant 1 : index
    %c27_268 = arith.constant 27 : index
    %356 = memref.load %arg0[%c1_267, %c27_268] : memref<2x32xf32, #tpu.memory_space<smem>>
    %c27_269 = arith.constant 27 : index
    %c0_270 = arith.constant 0 : index
    %c0_271 = arith.constant 0 : index
    %357 = vector.load %arg1[%c27_269, %c0_270, %c0_271] : memref<32x49x64xf32, #tpu.memory_space<vmem>>, vector<1x49x64xf32>
    %358 = vector.shape_cast %357 : vector<1x49x64xf32> to vector<49x64xf32>
    %359 = vector.broadcast %356 : f32 to vector<49x64xf32>
    %360 = arith.mulf %359, %358 : vector<49x64xf32>
    %361 = arith.addf %355, %360 : vector<49x64xf32>
    %c1_272 = arith.constant 1 : index
    %c28_273 = arith.constant 28 : index
    %362 = memref.load %arg0[%c1_272, %c28_273] : memref<2x32xf32, #tpu.memory_space<smem>>
    %c28_274 = arith.constant 28 : index
    %c0_275 = arith.constant 0 : index
    %c0_276 = arith.constant 0 : index
    %363 = vector.load %arg1[%c28_274, %c0_275, %c0_276] : memref<32x49x64xf32, #tpu.memory_space<vmem>>, vector<1x49x64xf32>
    %364 = vector.shape_cast %363 : vector<1x49x64xf32> to vector<49x64xf32>
    %365 = vector.broadcast %362 : f32 to vector<49x64xf32>
    %366 = arith.mulf %365, %364 : vector<49x64xf32>
    %367 = arith.addf %361, %366 : vector<49x64xf32>
    %c1_277 = arith.constant 1 : index
    %c29_278 = arith.constant 29 : index
    %368 = memref.load %arg0[%c1_277, %c29_278] : memref<2x32xf32, #tpu.memory_space<smem>>
    %c29_279 = arith.constant 29 : index
    %c0_280 = arith.constant 0 : index
    %c0_281 = arith.constant 0 : index
    %369 = vector.load %arg1[%c29_279, %c0_280, %c0_281] : memref<32x49x64xf32, #tpu.memory_space<vmem>>, vector<1x49x64xf32>
    %370 = vector.shape_cast %369 : vector<1x49x64xf32> to vector<49x64xf32>
    %371 = vector.broadcast %368 : f32 to vector<49x64xf32>
    %372 = arith.mulf %371, %370 : vector<49x64xf32>
    %373 = arith.addf %367, %372 : vector<49x64xf32>
    %c1_282 = arith.constant 1 : index
    %c30_283 = arith.constant 30 : index
    %374 = memref.load %arg0[%c1_282, %c30_283] : memref<2x32xf32, #tpu.memory_space<smem>>
    %c30_284 = arith.constant 30 : index
    %c0_285 = arith.constant 0 : index
    %c0_286 = arith.constant 0 : index
    %375 = vector.load %arg1[%c30_284, %c0_285, %c0_286] : memref<32x49x64xf32, #tpu.memory_space<vmem>>, vector<1x49x64xf32>
    %376 = vector.shape_cast %375 : vector<1x49x64xf32> to vector<49x64xf32>
    %377 = vector.broadcast %374 : f32 to vector<49x64xf32>
    %378 = arith.mulf %377, %376 : vector<49x64xf32>
    %379 = arith.addf %373, %378 : vector<49x64xf32>
    %c1_287 = arith.constant 1 : index
    %c31_288 = arith.constant 31 : index
    %380 = memref.load %arg0[%c1_287, %c31_288] : memref<2x32xf32, #tpu.memory_space<smem>>
    %c31_289 = arith.constant 31 : index
    %c0_290 = arith.constant 0 : index
    %c0_291 = arith.constant 0 : index
    %381 = vector.load %arg1[%c31_289, %c0_290, %c0_291] : memref<32x49x64xf32, #tpu.memory_space<vmem>>, vector<1x49x64xf32>
    %382 = vector.shape_cast %381 : vector<1x49x64xf32> to vector<49x64xf32>
    %383 = vector.broadcast %380 : f32 to vector<49x64xf32>
    %384 = arith.mulf %383, %382 : vector<49x64xf32>
    %385 = arith.addf %379, %384 : vector<49x64xf32>
    %386 = tpu.concatenate %192, %385 in 1 : vector<49x64xf32>, vector<49x64xf32> -> vector<49x128xf32>
    %387 = arith.truncf %386 : vector<49x128xf32> to vector<49x128xbf16>
    %c0_292 = arith.constant 0 : index
    %c0_293 = arith.constant 0 : index
    %388 = vector.load %arg5[%c0_292, %c0_293] : memref<128x1152xbf16, #tpu.memory_space<vmem>>, vector<128x1152xbf16>
    %cst = arith.constant dense<0.000000e+00> : vector<49x1152xf32>
    %389 = tpu.matmul %387, %388, %cst {dimension_numbers = #tpu.dot_dimension_numbers<[1], [0], [0], [1], [0, 0, 1, 1], [], []>} : vector<49x128xbf16>, vector<128x1152xbf16>, vector<49x1152xf32> -> vector<49x1152xf32>
    %390 = arith.truncf %389 : vector<49x1152xf32> to vector<49x1152xbf16>
    %cst_294 = arith.constant 0.000000e+00 : f32
    %391 = vector.broadcast %cst_294 : f32 to vector<49x128xf32>
    %392 = vector.extract_strided_slice %390 {offsets = [0, 0], sizes = [49, 128], strides = [1, 1]} : vector<49x1152xbf16> to vector<49x128xbf16>
    %c0_295 = arith.constant 0 : index
    %c0_296 = arith.constant 0 : index
    %c0_297 = arith.constant 0 : index
    %393 = vector.load %arg4[%c0_295, %c0_296, %c0_297] : memref<9x49x49xbf16, #tpu.memory_space<vmem>>, vector<1x49x49xbf16>
    %394 = vector.shape_cast %393 : vector<1x49x49xbf16> to vector<49x49xbf16>
    %cst_298 = arith.constant dense<0.000000e+00> : vector<49x128xf32>
    %395 = tpu.matmul %394, %392, %cst_298 {dimension_numbers = #tpu.dot_dimension_numbers<[1], [0], [0], [1], [0, 0, 1, 1], [], []>} : vector<49x49xbf16>, vector<49x128xbf16>, vector<49x128xf32> -> vector<49x128xf32>
    %396 = arith.addf %391, %395 : vector<49x128xf32>
    %397 = vector.extract_strided_slice %390 {offsets = [0, 128], sizes = [49, 128], strides = [1, 1]} : vector<49x1152xbf16> to vector<49x128xbf16>
    %c1_299 = arith.constant 1 : index
    %c0_300 = arith.constant 0 : index
    %c0_301 = arith.constant 0 : index
    %398 = vector.load %arg4[%c1_299, %c0_300, %c0_301] : memref<9x49x49xbf16, #tpu.memory_space<vmem>>, vector<1x49x49xbf16>
    %399 = vector.shape_cast %398 : vector<1x49x49xbf16> to vector<49x49xbf16>
    %cst_302 = arith.constant dense<0.000000e+00> : vector<49x128xf32>
    %400 = tpu.matmul %399, %397, %cst_302 {dimension_numbers = #tpu.dot_dimension_numbers<[1], [0], [0], [1], [0, 0, 1, 1], [], []>} : vector<49x49xbf16>, vector<49x128xbf16>, vector<49x128xf32> -> vector<49x128xf32>
    %401 = arith.addf %396, %400 : vector<49x128xf32>
    %402 = vector.extract_strided_slice %390 {offsets = [0, 256], sizes = [49, 128], strides = [1, 1]} : vector<49x1152xbf16> to vector<49x128xbf16>
    %c2_303 = arith.constant 2 : index
    %c0_304 = arith.constant 0 : index
    %c0_305 = arith.constant 0 : index
    %403 = vector.load %arg4[%c2_303, %c0_304, %c0_305] : memref<9x49x49xbf16, #tpu.memory_space<vmem>>, vector<1x49x49xbf16>
    %404 = vector.shape_cast %403 : vector<1x49x49xbf16> to vector<49x49xbf16>
    %cst_306 = arith.constant dense<0.000000e+00> : vector<49x128xf32>
    %405 = tpu.matmul %404, %402, %cst_306 {dimension_numbers = #tpu.dot_dimension_numbers<[1], [0], [0], [1], [0, 0, 1, 1], [], []>} : vector<49x49xbf16>, vector<49x128xbf16>, vector<49x128xf32> -> vector<49x128xf32>
    %406 = arith.addf %401, %405 : vector<49x128xf32>
    %407 = vector.extract_strided_slice %390 {offsets = [0, 384], sizes = [49, 128], strides = [1, 1]} : vector<49x1152xbf16> to vector<49x128xbf16>
    %c3_307 = arith.constant 3 : index
    %c0_308 = arith.constant 0 : index
    %c0_309 = arith.constant 0 : index
    %408 = vector.load %arg4[%c3_307, %c0_308, %c0_309] : memref<9x49x49xbf16, #tpu.memory_space<vmem>>, vector<1x49x49xbf16>
    %409 = vector.shape_cast %408 : vector<1x49x49xbf16> to vector<49x49xbf16>
    %cst_310 = arith.constant dense<0.000000e+00> : vector<49x128xf32>
    %410 = tpu.matmul %409, %407, %cst_310 {dimension_numbers = #tpu.dot_dimension_numbers<[1], [0], [0], [1], [0, 0, 1, 1], [], []>} : vector<49x49xbf16>, vector<49x128xbf16>, vector<49x128xf32> -> vector<49x128xf32>
    %411 = arith.addf %406, %410 : vector<49x128xf32>
    %412 = vector.extract_strided_slice %390 {offsets = [0, 512], sizes = [49, 128], strides = [1, 1]} : vector<49x1152xbf16> to vector<49x128xbf16>
    %c4_311 = arith.constant 4 : index
    %c0_312 = arith.constant 0 : index
    %c0_313 = arith.constant 0 : index
    %413 = vector.load %arg4[%c4_311, %c0_312, %c0_313] : memref<9x49x49xbf16, #tpu.memory_space<vmem>>, vector<1x49x49xbf16>
    %414 = vector.shape_cast %413 : vector<1x49x49xbf16> to vector<49x49xbf16>
    %cst_314 = arith.constant dense<0.000000e+00> : vector<49x128xf32>
    %415 = tpu.matmul %414, %412, %cst_314 {dimension_numbers = #tpu.dot_dimension_numbers<[1], [0], [0], [1], [0, 0, 1, 1], [], []>} : vector<49x49xbf16>, vector<49x128xbf16>, vector<49x128xf32> -> vector<49x128xf32>
    %416 = arith.addf %411, %415 : vector<49x128xf32>
    %417 = vector.extract_strided_slice %390 {offsets = [0, 640], sizes = [49, 128], strides = [1, 1]} : vector<49x1152xbf16> to vector<49x128xbf16>
    %c5_315 = arith.constant 5 : index
    %c0_316 = arith.constant 0 : index
    %c0_317 = arith.constant 0 : index
    %418 = vector.load %arg4[%c5_315, %c0_316, %c0_317] : memref<9x49x49xbf16, #tpu.memory_space<vmem>>, vector<1x49x49xbf16>
    %419 = vector.shape_cast %418 : vector<1x49x49xbf16> to vector<49x49xbf16>
    %cst_318 = arith.constant dense<0.000000e+00> : vector<49x128xf32>
    %420 = tpu.matmul %419, %417, %cst_318 {dimension_numbers = #tpu.dot_dimension_numbers<[1], [0], [0], [1], [0, 0, 1, 1], [], []>} : vector<49x49xbf16>, vector<49x128xbf16>, vector<49x128xf32> -> vector<49x128xf32>
    %421 = arith.addf %416, %420 : vector<49x128xf32>
    %422 = vector.extract_strided_slice %390 {offsets = [0, 768], sizes = [49, 128], strides = [1, 1]} : vector<49x1152xbf16> to vector<49x128xbf16>
    %c6_319 = arith.constant 6 : index
    %c0_320 = arith.constant 0 : index
    %c0_321 = arith.constant 0 : index
    %423 = vector.load %arg4[%c6_319, %c0_320, %c0_321] : memref<9x49x49xbf16, #tpu.memory_space<vmem>>, vector<1x49x49xbf16>
    %424 = vector.shape_cast %423 : vector<1x49x49xbf16> to vector<49x49xbf16>
    %cst_322 = arith.constant dense<0.000000e+00> : vector<49x128xf32>
    %425 = tpu.matmul %424, %422, %cst_322 {dimension_numbers = #tpu.dot_dimension_numbers<[1], [0], [0], [1], [0, 0, 1, 1], [], []>} : vector<49x49xbf16>, vector<49x128xbf16>, vector<49x128xf32> -> vector<49x128xf32>
    %426 = arith.addf %421, %425 : vector<49x128xf32>
    %427 = vector.extract_strided_slice %390 {offsets = [0, 896], sizes = [49, 128], strides = [1, 1]} : vector<49x1152xbf16> to vector<49x128xbf16>
    %c7_323 = arith.constant 7 : index
    %c0_324 = arith.constant 0 : index
    %c0_325 = arith.constant 0 : index
    %428 = vector.load %arg4[%c7_323, %c0_324, %c0_325] : memref<9x49x49xbf16, #tpu.memory_space<vmem>>, vector<1x49x49xbf16>
    %429 = vector.shape_cast %428 : vector<1x49x49xbf16> to vector<49x49xbf16>
    %cst_326 = arith.constant dense<0.000000e+00> : vector<49x128xf32>
    %430 = tpu.matmul %429, %427, %cst_326 {dimension_numbers = #tpu.dot_dimension_numbers<[1], [0], [0], [1], [0, 0, 1, 1], [], []>} : vector<49x49xbf16>, vector<49x128xbf16>, vector<49x128xf32> -> vector<49x128xf32>
    %431 = arith.addf %426, %430 : vector<49x128xf32>
    %432 = vector.extract_strided_slice %390 {offsets = [0, 1024], sizes = [49, 128], strides = [1, 1]} : vector<49x1152xbf16> to vector<49x128xbf16>
    %c8_327 = arith.constant 8 : index
    %c0_328 = arith.constant 0 : index
    %c0_329 = arith.constant 0 : index
    %433 = vector.load %arg4[%c8_327, %c0_328, %c0_329] : memref<9x49x49xbf16, #tpu.memory_space<vmem>>, vector<1x49x49xbf16>
    %434 = vector.shape_cast %433 : vector<1x49x49xbf16> to vector<49x49xbf16>
    %cst_330 = arith.constant dense<0.000000e+00> : vector<49x128xf32>
    %435 = tpu.matmul %434, %432, %cst_330 {dimension_numbers = #tpu.dot_dimension_numbers<[1], [0], [0], [1], [0, 0, 1, 1], [], []>} : vector<49x49xbf16>, vector<49x128xbf16>, vector<49x128xf32> -> vector<49x128xf32>
    %436 = arith.addf %431, %435 : vector<49x128xf32>
    %c0_331 = arith.constant 0 : index
    %c0_332 = arith.constant 0 : index
    %c0_333 = arith.constant 0 : index
    %437 = vector.load %arg3[%c0_331, %c0_332, %c0_333] : memref<3x4x128xf32, #tpu.memory_space<vmem>>, vector<1x4x128xf32>
    %438 = vector.shape_cast %437 : vector<1x4x128xf32> to vector<4x128xf32>
    %439 = vector.extract_strided_slice %438 {offsets = [0, 0], sizes = [1, 128], strides = [1, 1]} : vector<4x128xf32> to vector<1x128xf32>
    %440 = vector.extract_strided_slice %438 {offsets = [1, 0], sizes = [1, 128], strides = [1, 1]} : vector<4x128xf32> to vector<1x128xf32>
    %441 = vector.extract_strided_slice %438 {offsets = [2, 0], sizes = [1, 128], strides = [1, 1]} : vector<4x128xf32> to vector<1x128xf32>
    %442 = vector.extract_strided_slice %438 {offsets = [3, 0], sizes = [1, 128], strides = [1, 1]} : vector<4x128xf32> to vector<1x128xf32>
    %443 = vector.broadcast %439 : vector<1x128xf32> to vector<49x128xf32>
    %444 = arith.addf %436, %443 : vector<49x128xf32>
    %cst_334 = arith.constant 0.000000e+00 : f32
    %445 = vector.broadcast %cst_334 : f32 to vector<49x128xf32>
    %446 = arith.cmpf ogt, %444, %445 : vector<49x128xf32>
    %447 = vector.broadcast %440 : vector<1x128xf32> to vector<49x128xf32>
    %448 = arith.mulf %444, %447 : vector<49x128xf32>
    %449 = arith.select %446, %444, %448 : vector<49x128xi1>, vector<49x128xf32>
    %450 = vector.broadcast %441 : vector<1x128xf32> to vector<49x128xf32>
    %451 = arith.mulf %449, %450 : vector<49x128xf32>
    %452 = vector.broadcast %442 : vector<1x128xf32> to vector<49x128xf32>
    %453 = arith.addf %451, %452 : vector<49x128xf32>
    %454 = arith.truncf %453 : vector<49x128xf32> to vector<49x128xbf16>
    %c0_335 = arith.constant 0 : index
    %c0_336 = arith.constant 0 : index
    %455 = vector.load %arg7[%c0_335, %c0_336] : memref<128x576xbf16, #tpu.memory_space<vmem>>, vector<128x576xbf16>
    %cst_337 = arith.constant dense<0.000000e+00> : vector<49x576xf32>
    %456 = tpu.matmul %454, %455, %cst_337 {dimension_numbers = #tpu.dot_dimension_numbers<[1], [0], [0], [1], [0, 0, 1, 1], [], []>} : vector<49x128xbf16>, vector<128x576xbf16>, vector<49x576xf32> -> vector<49x576xf32>
    %457 = arith.truncf %456 : vector<49x576xf32> to vector<49x576xbf16>
    %cst_338 = arith.constant 0.000000e+00 : f32
    %458 = vector.broadcast %cst_338 : f32 to vector<56x64xf32>
    %cst_339 = arith.constant 0.000000e+00 : f32
    %459 = vector.broadcast %cst_339 : f32 to vector<56x64xf32>
    %cst_340 = arith.constant 0.000000e+00 : f32
    %460 = vector.broadcast %cst_340 : f32 to vector<56x64xf32>
    %cst_341 = arith.constant 0.000000e+00 : f32
    %461 = vector.broadcast %cst_341 : f32 to vector<56x64xf32>
    %462 = vector.extract_strided_slice %457 {offsets = [0, 0], sizes = [49, 64], strides = [1, 1]} : vector<49x576xbf16> to vector<49x64xbf16>
    %c0_342 = arith.constant 0 : index
    %c0_343 = arith.constant 0 : index
    %c0_344 = arith.constant 0 : index
    %463 = vector.load %arg6[%c0_342, %c0_343, %c0_344] : memref<9x56x49xbf16, #tpu.memory_space<vmem>>, vector<1x56x49xbf16>
    %464 = vector.shape_cast %463 : vector<1x56x49xbf16> to vector<56x49xbf16>
    %cst_345 = arith.constant dense<0.000000e+00> : vector<56x64xf32>
    %465 = tpu.matmul %464, %462, %cst_345 {dimension_numbers = #tpu.dot_dimension_numbers<[1], [0], [0], [1], [0, 0, 1, 1], [], []>} : vector<56x49xbf16>, vector<49x64xbf16>, vector<56x64xf32> -> vector<56x64xf32>
    %466 = arith.addf %461, %465 : vector<56x64xf32>
    %467 = vector.extract_strided_slice %457 {offsets = [0, 64], sizes = [49, 64], strides = [1, 1]} : vector<49x576xbf16> to vector<49x64xbf16>
    %c1_346 = arith.constant 1 : index
    %c0_347 = arith.constant 0 : index
    %c0_348 = arith.constant 0 : index
    %468 = vector.load %arg6[%c1_346, %c0_347, %c0_348] : memref<9x56x49xbf16, #tpu.memory_space<vmem>>, vector<1x56x49xbf16>
    %469 = vector.shape_cast %468 : vector<1x56x49xbf16> to vector<56x49xbf16>
    %cst_349 = arith.constant dense<0.000000e+00> : vector<56x64xf32>
    %470 = tpu.matmul %469, %467, %cst_349 {dimension_numbers = #tpu.dot_dimension_numbers<[1], [0], [0], [1], [0, 0, 1, 1], [], []>} : vector<56x49xbf16>, vector<49x64xbf16>, vector<56x64xf32> -> vector<56x64xf32>
    %471 = arith.addf %460, %470 : vector<56x64xf32>
    %472 = vector.extract_strided_slice %457 {offsets = [0, 128], sizes = [49, 64], strides = [1, 1]} : vector<49x576xbf16> to vector<49x64xbf16>
    %c2_350 = arith.constant 2 : index
    %c0_351 = arith.constant 0 : index
    %c0_352 = arith.constant 0 : index
    %473 = vector.load %arg6[%c2_350, %c0_351, %c0_352] : memref<9x56x49xbf16, #tpu.memory_space<vmem>>, vector<1x56x49xbf16>
    %474 = vector.shape_cast %473 : vector<1x56x49xbf16> to vector<56x49xbf16>
    %cst_353 = arith.constant dense<0.000000e+00> : vector<56x64xf32>
    %475 = tpu.matmul %474, %472, %cst_353 {dimension_numbers = #tpu.dot_dimension_numbers<[1], [0], [0], [1], [0, 0, 1, 1], [], []>} : vector<56x49xbf16>, vector<49x64xbf16>, vector<56x64xf32> -> vector<56x64xf32>
    %476 = arith.addf %466, %475 : vector<56x64xf32>
    %477 = vector.extract_strided_slice %457 {offsets = [0, 192], sizes = [49, 64], strides = [1, 1]} : vector<49x576xbf16> to vector<49x64xbf16>
    %c3_354 = arith.constant 3 : index
    %c0_355 = arith.constant 0 : index
    %c0_356 = arith.constant 0 : index
    %478 = vector.load %arg6[%c3_354, %c0_355, %c0_356] : memref<9x56x49xbf16, #tpu.memory_space<vmem>>, vector<1x56x49xbf16>
    %479 = vector.shape_cast %478 : vector<1x56x49xbf16> to vector<56x49xbf16>
    %cst_357 = arith.constant dense<0.000000e+00> : vector<56x64xf32>
    %480 = tpu.matmul %479, %477, %cst_357 {dimension_numbers = #tpu.dot_dimension_numbers<[1], [0], [0], [1], [0, 0, 1, 1], [], []>} : vector<56x49xbf16>, vector<49x64xbf16>, vector<56x64xf32> -> vector<56x64xf32>
    %481 = arith.addf %459, %480 : vector<56x64xf32>
    %482 = vector.extract_strided_slice %457 {offsets = [0, 256], sizes = [49, 64], strides = [1, 1]} : vector<49x576xbf16> to vector<49x64xbf16>
    %c4_358 = arith.constant 4 : index
    %c0_359 = arith.constant 0 : index
    %c0_360 = arith.constant 0 : index
    %483 = vector.load %arg6[%c4_358, %c0_359, %c0_360] : memref<9x56x49xbf16, #tpu.memory_space<vmem>>, vector<1x56x49xbf16>
    %484 = vector.shape_cast %483 : vector<1x56x49xbf16> to vector<56x49xbf16>
    %cst_361 = arith.constant dense<0.000000e+00> : vector<56x64xf32>
    %485 = tpu.matmul %484, %482, %cst_361 {dimension_numbers = #tpu.dot_dimension_numbers<[1], [0], [0], [1], [0, 0, 1, 1], [], []>} : vector<56x49xbf16>, vector<49x64xbf16>, vector<56x64xf32> -> vector<56x64xf32>
    %486 = arith.addf %458, %485 : vector<56x64xf32>
    %487 = vector.extract_strided_slice %457 {offsets = [0, 320], sizes = [49, 64], strides = [1, 1]} : vector<49x576xbf16> to vector<49x64xbf16>
    %c5_362 = arith.constant 5 : index
    %c0_363 = arith.constant 0 : index
    %c0_364 = arith.constant 0 : index
    %488 = vector.load %arg6[%c5_362, %c0_363, %c0_364] : memref<9x56x49xbf16, #tpu.memory_space<vmem>>, vector<1x56x49xbf16>
    %489 = vector.shape_cast %488 : vector<1x56x49xbf16> to vector<56x49xbf16>
    %cst_365 = arith.constant dense<0.000000e+00> : vector<56x64xf32>
    %490 = tpu.matmul %489, %487, %cst_365 {dimension_numbers = #tpu.dot_dimension_numbers<[1], [0], [0], [1], [0, 0, 1, 1], [], []>} : vector<56x49xbf16>, vector<49x64xbf16>, vector<56x64xf32> -> vector<56x64xf32>
    %491 = arith.addf %481, %490 : vector<56x64xf32>
    %492 = vector.extract_strided_slice %457 {offsets = [0, 384], sizes = [49, 64], strides = [1, 1]} : vector<49x576xbf16> to vector<49x64xbf16>
    %c6_366 = arith.constant 6 : index
    %c0_367 = arith.constant 0 : index
    %c0_368 = arith.constant 0 : index
    %493 = vector.load %arg6[%c6_366, %c0_367, %c0_368] : memref<9x56x49xbf16, #tpu.memory_space<vmem>>, vector<1x56x49xbf16>
    %494 = vector.shape_cast %493 : vector<1x56x49xbf16> to vector<56x49xbf16>
    %cst_369 = arith.constant dense<0.000000e+00> : vector<56x64xf32>
    %495 = tpu.matmul %494, %492, %cst_369 {dimension_numbers = #tpu.dot_dimension_numbers<[1], [0], [0], [1], [0, 0, 1, 1], [], []>} : vector<56x49xbf16>, vector<49x64xbf16>, vector<56x64xf32> -> vector<56x64xf32>
    %496 = arith.addf %476, %495 : vector<56x64xf32>
    %497 = vector.extract_strided_slice %457 {offsets = [0, 448], sizes = [49, 64], strides = [1, 1]} : vector<49x576xbf16> to vector<49x64xbf16>
    %c7_370 = arith.constant 7 : index
    %c0_371 = arith.constant 0 : index
    %c0_372 = arith.constant 0 : index
    %498 = vector.load %arg6[%c7_370, %c0_371, %c0_372] : memref<9x56x49xbf16, #tpu.memory_space<vmem>>, vector<1x56x49xbf16>
    %499 = vector.shape_cast %498 : vector<1x56x49xbf16> to vector<56x49xbf16>
    %cst_373 = arith.constant dense<0.000000e+00> : vector<56x64xf32>
    %500 = tpu.matmul %499, %497, %cst_373 {dimension_numbers = #tpu.dot_dimension_numbers<[1], [0], [0], [1], [0, 0, 1, 1], [], []>} : vector<56x49xbf16>, vector<49x64xbf16>, vector<56x64xf32> -> vector<56x64xf32>
    %501 = arith.addf %471, %500 : vector<56x64xf32>
    %502 = vector.extract_strided_slice %457 {offsets = [0, 512], sizes = [49, 64], strides = [1, 1]} : vector<49x576xbf16> to vector<49x64xbf16>
    %c8_374 = arith.constant 8 : index
    %c0_375 = arith.constant 0 : index
    %c0_376 = arith.constant 0 : index
    %503 = vector.load %arg6[%c8_374, %c0_375, %c0_376] : memref<9x56x49xbf16, #tpu.memory_space<vmem>>, vector<1x56x49xbf16>
    %504 = vector.shape_cast %503 : vector<1x56x49xbf16> to vector<56x49xbf16>
    %cst_377 = arith.constant dense<0.000000e+00> : vector<56x64xf32>
    %505 = tpu.matmul %504, %502, %cst_377 {dimension_numbers = #tpu.dot_dimension_numbers<[1], [0], [0], [1], [0, 0, 1, 1], [], []>} : vector<56x49xbf16>, vector<49x64xbf16>, vector<56x64xf32> -> vector<56x64xf32>
    %506 = arith.addf %496, %505 : vector<56x64xf32>
    %c1_378 = arith.constant 1 : index
    %c0_379 = arith.constant 0 : index
    %c0_380 = arith.constant 0 : index
    %507 = vector.load %arg3[%c1_378, %c0_379, %c0_380] : memref<3x4x128xf32, #tpu.memory_space<vmem>>, vector<1x4x128xf32>
    %508 = vector.shape_cast %507 : vector<1x4x128xf32> to vector<4x128xf32>
    %509 = vector.extract_strided_slice %508 {offsets = [0, 0], sizes = [1, 64], strides = [1, 1]} : vector<4x128xf32> to vector<1x64xf32>
    %510 = vector.extract_strided_slice %508 {offsets = [1, 0], sizes = [1, 64], strides = [1, 1]} : vector<4x128xf32> to vector<1x64xf32>
    %511 = vector.extract_strided_slice %508 {offsets = [2, 0], sizes = [1, 64], strides = [1, 1]} : vector<4x128xf32> to vector<1x64xf32>
    %512 = vector.extract_strided_slice %508 {offsets = [3, 0], sizes = [1, 64], strides = [1, 1]} : vector<4x128xf32> to vector<1x64xf32>
    %513 = vector.broadcast %509 : vector<1x64xf32> to vector<56x64xf32>
    %514 = arith.addf %486, %513 : vector<56x64xf32>
    %cst_381 = arith.constant 0.000000e+00 : f32
    %515 = vector.broadcast %cst_381 : f32 to vector<56x64xf32>
    %516 = arith.cmpf ogt, %514, %515 : vector<56x64xf32>
    %517 = vector.broadcast %510 : vector<1x64xf32> to vector<56x64xf32>
    %518 = arith.mulf %514, %517 : vector<56x64xf32>
    %519 = arith.select %516, %514, %518 : vector<56x64xi1>, vector<56x64xf32>
    %520 = vector.broadcast %511 : vector<1x64xf32> to vector<56x64xf32>
    %521 = arith.mulf %519, %520 : vector<56x64xf32>
    %522 = vector.broadcast %512 : vector<1x64xf32> to vector<56x64xf32>
    %523 = arith.addf %521, %522 : vector<56x64xf32>
    %524 = vector.broadcast %509 : vector<1x64xf32> to vector<56x64xf32>
    %525 = arith.addf %491, %524 : vector<56x64xf32>
    %cst_382 = arith.constant 0.000000e+00 : f32
    %526 = vector.broadcast %cst_382 : f32 to vector<56x64xf32>
    %527 = arith.cmpf ogt, %525, %526 : vector<56x64xf32>
    %528 = vector.broadcast %510 : vector<1x64xf32> to vector<56x64xf32>
    %529 = arith.mulf %525, %528 : vector<56x64xf32>
    %530 = arith.select %527, %525, %529 : vector<56x64xi1>, vector<56x64xf32>
    %531 = vector.broadcast %511 : vector<1x64xf32> to vector<56x64xf32>
    %532 = arith.mulf %530, %531 : vector<56x64xf32>
    %533 = vector.broadcast %512 : vector<1x64xf32> to vector<56x64xf32>
    %534 = arith.addf %532, %533 : vector<56x64xf32>
    %535 = vector.broadcast %509 : vector<1x64xf32> to vector<56x64xf32>
    %536 = arith.addf %501, %535 : vector<56x64xf32>
    %cst_383 = arith.constant 0.000000e+00 : f32
    %537 = vector.broadcast %cst_383 : f32 to vector<56x64xf32>
    %538 = arith.cmpf ogt, %536, %537 : vector<56x64xf32>
    %539 = vector.broadcast %510 : vector<1x64xf32> to vector<56x64xf32>
    %540 = arith.mulf %536, %539 : vector<56x64xf32>
    %541 = arith.select %538, %536, %540 : vector<56x64xi1>, vector<56x64xf32>
    %542 = vector.broadcast %511 : vector<1x64xf32> to vector<56x64xf32>
    %543 = arith.mulf %541, %542 : vector<56x64xf32>
    %544 = vector.broadcast %512 : vector<1x64xf32> to vector<56x64xf32>
    %545 = arith.addf %543, %544 : vector<56x64xf32>
    %546 = vector.broadcast %509 : vector<1x64xf32> to vector<56x64xf32>
    %547 = arith.addf %506, %546 : vector<56x64xf32>
    %cst_384 = arith.constant 0.000000e+00 : f32
    %548 = vector.broadcast %cst_384 : f32 to vector<56x64xf32>
    %549 = arith.cmpf ogt, %547, %548 : vector<56x64xf32>
    %550 = vector.broadcast %510 : vector<1x64xf32> to vector<56x64xf32>
    %551 = arith.mulf %547, %550 : vector<56x64xf32>
    %552 = arith.select %549, %547, %551 : vector<56x64xi1>, vector<56x64xf32>
    %553 = vector.broadcast %511 : vector<1x64xf32> to vector<56x64xf32>
    %554 = arith.mulf %552, %553 : vector<56x64xf32>
    %555 = vector.broadcast %512 : vector<1x64xf32> to vector<56x64xf32>
    %556 = arith.addf %554, %555 : vector<56x64xf32>
    %557 = tpu.concatenate %523, %534, %545, %556 in 0 : vector<56x64xf32>, vector<56x64xf32>, vector<56x64xf32>, vector<56x64xf32> -> vector<224x64xf32>
    %558 = arith.truncf %557 : vector<224x64xf32> to vector<224x64xbf16>
    %c0_385 = arith.constant 0 : index
    %c0_386 = arith.constant 0 : index
    %559 = vector.load %arg9[%c0_385, %c0_386] : memref<64x18xbf16, #tpu.memory_space<vmem>>, vector<64x18xbf16>
    %cst_387 = arith.constant dense<0.000000e+00> : vector<224x18xf32>
    %560 = tpu.matmul %558, %559, %cst_387 {dimension_numbers = #tpu.dot_dimension_numbers<[1], [0], [0], [1], [0, 0, 1, 1], [], []>} : vector<224x64xbf16>, vector<64x18xbf16>, vector<224x18xf32> -> vector<224x18xf32>
    %561 = arith.truncf %560 : vector<224x18xf32> to vector<224x18xbf16>
    %cst_388 = arith.constant 0.000000e+00 : f32
    %562 = vector.broadcast %cst_388 : f32 to vector<196x2xf32>
    %cst_389 = arith.constant 0.000000e+00 : f32
    %563 = vector.broadcast %cst_389 : f32 to vector<196x2xf32>
    %cst_390 = arith.constant 0.000000e+00 : f32
    %564 = vector.broadcast %cst_390 : f32 to vector<196x2xf32>
    %cst_391 = arith.constant 0.000000e+00 : f32
    %565 = vector.broadcast %cst_391 : f32 to vector<196x2xf32>
    %566 = vector.extract_strided_slice %561 {offsets = [0, 0], sizes = [224, 2], strides = [1, 1]} : vector<224x18xbf16> to vector<224x2xbf16>
    %c0_392 = arith.constant 0 : index
    %c0_393 = arith.constant 0 : index
    %c0_394 = arith.constant 0 : index
    %567 = vector.load %arg8[%c0_392, %c0_393, %c0_394] : memref<9x196x224xbf16, #tpu.memory_space<vmem>>, vector<1x196x224xbf16>
    %568 = vector.shape_cast %567 : vector<1x196x224xbf16> to vector<196x224xbf16>
    %cst_395 = arith.constant dense<0.000000e+00> : vector<196x2xf32>
    %569 = tpu.matmul %568, %566, %cst_395 {dimension_numbers = #tpu.dot_dimension_numbers<[1], [0], [0], [1], [0, 0, 1, 1], [], []>} : vector<196x224xbf16>, vector<224x2xbf16>, vector<196x2xf32> -> vector<196x2xf32>
    %570 = arith.addf %565, %569 : vector<196x2xf32>
    %571 = vector.extract_strided_slice %561 {offsets = [0, 2], sizes = [224, 2], strides = [1, 1]} : vector<224x18xbf16> to vector<224x2xbf16>
    %c1_396 = arith.constant 1 : index
    %c0_397 = arith.constant 0 : index
    %c0_398 = arith.constant 0 : index
    %572 = vector.load %arg8[%c1_396, %c0_397, %c0_398] : memref<9x196x224xbf16, #tpu.memory_space<vmem>>, vector<1x196x224xbf16>
    %573 = vector.shape_cast %572 : vector<1x196x224xbf16> to vector<196x224xbf16>
    %cst_399 = arith.constant dense<0.000000e+00> : vector<196x2xf32>
    %574 = tpu.matmul %573, %571, %cst_399 {dimension_numbers = #tpu.dot_dimension_numbers<[1], [0], [0], [1], [0, 0, 1, 1], [], []>} : vector<196x224xbf16>, vector<224x2xbf16>, vector<196x2xf32> -> vector<196x2xf32>
    %575 = arith.addf %564, %574 : vector<196x2xf32>
    %576 = vector.extract_strided_slice %561 {offsets = [0, 4], sizes = [224, 2], strides = [1, 1]} : vector<224x18xbf16> to vector<224x2xbf16>
    %c2_400 = arith.constant 2 : index
    %c0_401 = arith.constant 0 : index
    %c0_402 = arith.constant 0 : index
    %577 = vector.load %arg8[%c2_400, %c0_401, %c0_402] : memref<9x196x224xbf16, #tpu.memory_space<vmem>>, vector<1x196x224xbf16>
    %578 = vector.shape_cast %577 : vector<1x196x224xbf16> to vector<196x224xbf16>
    %cst_403 = arith.constant dense<0.000000e+00> : vector<196x2xf32>
    %579 = tpu.matmul %578, %576, %cst_403 {dimension_numbers = #tpu.dot_dimension_numbers<[1], [0], [0], [1], [0, 0, 1, 1], [], []>} : vector<196x224xbf16>, vector<224x2xbf16>, vector<196x2xf32> -> vector<196x2xf32>
    %580 = arith.addf %570, %579 : vector<196x2xf32>
    %581 = vector.extract_strided_slice %561 {offsets = [0, 6], sizes = [224, 2], strides = [1, 1]} : vector<224x18xbf16> to vector<224x2xbf16>
    %c3_404 = arith.constant 3 : index
    %c0_405 = arith.constant 0 : index
    %c0_406 = arith.constant 0 : index
    %582 = vector.load %arg8[%c3_404, %c0_405, %c0_406] : memref<9x196x224xbf16, #tpu.memory_space<vmem>>, vector<1x196x224xbf16>
    %583 = vector.shape_cast %582 : vector<1x196x224xbf16> to vector<196x224xbf16>
    %cst_407 = arith.constant dense<0.000000e+00> : vector<196x2xf32>
    %584 = tpu.matmul %583, %581, %cst_407 {dimension_numbers = #tpu.dot_dimension_numbers<[1], [0], [0], [1], [0, 0, 1, 1], [], []>} : vector<196x224xbf16>, vector<224x2xbf16>, vector<196x2xf32> -> vector<196x2xf32>
    %585 = arith.addf %563, %584 : vector<196x2xf32>
    %586 = vector.extract_strided_slice %561 {offsets = [0, 8], sizes = [224, 2], strides = [1, 1]} : vector<224x18xbf16> to vector<224x2xbf16>
    %c4_408 = arith.constant 4 : index
    %c0_409 = arith.constant 0 : index
    %c0_410 = arith.constant 0 : index
    %587 = vector.load %arg8[%c4_408, %c0_409, %c0_410] : memref<9x196x224xbf16, #tpu.memory_space<vmem>>, vector<1x196x224xbf16>
    %588 = vector.shape_cast %587 : vector<1x196x224xbf16> to vector<196x224xbf16>
    %cst_411 = arith.constant dense<0.000000e+00> : vector<196x2xf32>
    %589 = tpu.matmul %588, %586, %cst_411 {dimension_numbers = #tpu.dot_dimension_numbers<[1], [0], [0], [1], [0, 0, 1, 1], [], []>} : vector<196x224xbf16>, vector<224x2xbf16>, vector<196x2xf32> -> vector<196x2xf32>
    %590 = arith.addf %562, %589 : vector<196x2xf32>
    %591 = vector.extract_strided_slice %561 {offsets = [0, 10], sizes = [224, 2], strides = [1, 1]} : vector<224x18xbf16> to vector<224x2xbf16>
    %c5_412 = arith.constant 5 : index
    %c0_413 = arith.constant 0 : index
    %c0_414 = arith.constant 0 : index
    %592 = vector.load %arg8[%c5_412, %c0_413, %c0_414] : memref<9x196x224xbf16, #tpu.memory_space<vmem>>, vector<1x196x224xbf16>
    %593 = vector.shape_cast %592 : vector<1x196x224xbf16> to vector<196x224xbf16>
    %cst_415 = arith.constant dense<0.000000e+00> : vector<196x2xf32>
    %594 = tpu.matmul %593, %591, %cst_415 {dimension_numbers = #tpu.dot_dimension_numbers<[1], [0], [0], [1], [0, 0, 1, 1], [], []>} : vector<196x224xbf16>, vector<224x2xbf16>, vector<196x2xf32> -> vector<196x2xf32>
    %595 = arith.addf %585, %594 : vector<196x2xf32>
    %596 = vector.extract_strided_slice %561 {offsets = [0, 12], sizes = [224, 2], strides = [1, 1]} : vector<224x18xbf16> to vector<224x2xbf16>
    %c6_416 = arith.constant 6 : index
    %c0_417 = arith.constant 0 : index
    %c0_418 = arith.constant 0 : index
    %597 = vector.load %arg8[%c6_416, %c0_417, %c0_418] : memref<9x196x224xbf16, #tpu.memory_space<vmem>>, vector<1x196x224xbf16>
    %598 = vector.shape_cast %597 : vector<1x196x224xbf16> to vector<196x224xbf16>
    %cst_419 = arith.constant dense<0.000000e+00> : vector<196x2xf32>
    %599 = tpu.matmul %598, %596, %cst_419 {dimension_numbers = #tpu.dot_dimension_numbers<[1], [0], [0], [1], [0, 0, 1, 1], [], []>} : vector<196x224xbf16>, vector<224x2xbf16>, vector<196x2xf32> -> vector<196x2xf32>
    %600 = arith.addf %580, %599 : vector<196x2xf32>
    %601 = vector.extract_strided_slice %561 {offsets = [0, 14], sizes = [224, 2], strides = [1, 1]} : vector<224x18xbf16> to vector<224x2xbf16>
    %c7_420 = arith.constant 7 : index
    %c0_421 = arith.constant 0 : index
    %c0_422 = arith.constant 0 : index
    %602 = vector.load %arg8[%c7_420, %c0_421, %c0_422] : memref<9x196x224xbf16, #tpu.memory_space<vmem>>, vector<1x196x224xbf16>
    %603 = vector.shape_cast %602 : vector<1x196x224xbf16> to vector<196x224xbf16>
    %cst_423 = arith.constant dense<0.000000e+00> : vector<196x2xf32>
    %604 = tpu.matmul %603, %601, %cst_423 {dimension_numbers = #tpu.dot_dimension_numbers<[1], [0], [0], [1], [0, 0, 1, 1], [], []>} : vector<196x224xbf16>, vector<224x2xbf16>, vector<196x2xf32> -> vector<196x2xf32>
    %605 = arith.addf %575, %604 : vector<196x2xf32>
    %606 = vector.extract_strided_slice %561 {offsets = [0, 16], sizes = [224, 2], strides = [1, 1]} : vector<224x18xbf16> to vector<224x2xbf16>
    %c8_424 = arith.constant 8 : index
    %c0_425 = arith.constant 0 : index
    %c0_426 = arith.constant 0 : index
    %607 = vector.load %arg8[%c8_424, %c0_425, %c0_426] : memref<9x196x224xbf16, #tpu.memory_space<vmem>>, vector<1x196x224xbf16>
    %608 = vector.shape_cast %607 : vector<1x196x224xbf16> to vector<196x224xbf16>
    %cst_427 = arith.constant dense<0.000000e+00> : vector<196x2xf32>
    %609 = tpu.matmul %608, %606, %cst_427 {dimension_numbers = #tpu.dot_dimension_numbers<[1], [0], [0], [1], [0, 0, 1, 1], [], []>} : vector<196x224xbf16>, vector<224x2xbf16>, vector<196x2xf32> -> vector<196x2xf32>
    %610 = arith.addf %600, %609 : vector<196x2xf32>
    %c2_428 = arith.constant 2 : index
    %c0_429 = arith.constant 0 : index
    %c0_430 = arith.constant 0 : index
    %611 = vector.load %arg3[%c2_428, %c0_429, %c0_430] : memref<3x4x128xf32, #tpu.memory_space<vmem>>, vector<1x4x128xf32>
    %612 = vector.shape_cast %611 : vector<1x4x128xf32> to vector<4x128xf32>
    %613 = vector.extract_strided_slice %612 {offsets = [0, 0], sizes = [1, 2], strides = [1, 1]} : vector<4x128xf32> to vector<1x2xf32>
    %614 = vector.extract_strided_slice %612 {offsets = [1, 0], sizes = [1, 2], strides = [1, 1]} : vector<4x128xf32> to vector<1x2xf32>
    %615 = vector.extract_strided_slice %612 {offsets = [2, 0], sizes = [1, 2], strides = [1, 1]} : vector<4x128xf32> to vector<1x2xf32>
    %616 = vector.extract_strided_slice %612 {offsets = [3, 0], sizes = [1, 2], strides = [1, 1]} : vector<4x128xf32> to vector<1x2xf32>
    %617 = vector.broadcast %613 : vector<1x2xf32> to vector<196x2xf32>
    %618 = arith.addf %590, %617 : vector<196x2xf32>
    %cst_431 = arith.constant 0.000000e+00 : f32
    %619 = vector.broadcast %cst_431 : f32 to vector<196x2xf32>
    %620 = arith.cmpf ogt, %618, %619 : vector<196x2xf32>
    %621 = vector.broadcast %614 : vector<1x2xf32> to vector<196x2xf32>
    %622 = arith.mulf %618, %621 : vector<196x2xf32>
    %623 = arith.select %620, %618, %622 : vector<196x2xi1>, vector<196x2xf32>
    %624 = vector.broadcast %615 : vector<1x2xf32> to vector<196x2xf32>
    %625 = arith.mulf %623, %624 : vector<196x2xf32>
    %626 = vector.broadcast %616 : vector<1x2xf32> to vector<196x2xf32>
    %627 = arith.addf %625, %626 : vector<196x2xf32>
    %cst_432 = arith.constant 0.000000e+00 : f32
    %628 = vector.broadcast %cst_432 : f32 to vector<196x2xf32>
    %629 = arith.subf %628, %627 : vector<196x2xf32>
    %630 = math.exp %629 : vector<196x2xf32>
    %cst_433 = arith.constant 1.000000e+00 : f32
    %631 = vector.broadcast %cst_433 : f32 to vector<196x2xf32>
    %632 = arith.addf %631, %630 : vector<196x2xf32>
    %cst_434 = arith.constant 1.000000e+00 : f32
    %633 = vector.broadcast %cst_434 : f32 to vector<196x2xf32>
    %634 = arith.divf %633, %632 : vector<196x2xf32>
    %635 = vector.broadcast %613 : vector<1x2xf32> to vector<196x2xf32>
    %636 = arith.addf %595, %635 : vector<196x2xf32>
    %cst_435 = arith.constant 0.000000e+00 : f32
    %637 = vector.broadcast %cst_435 : f32 to vector<196x2xf32>
    %638 = arith.cmpf ogt, %636, %637 : vector<196x2xf32>
    %639 = vector.broadcast %614 : vector<1x2xf32> to vector<196x2xf32>
    %640 = arith.mulf %636, %639 : vector<196x2xf32>
    %641 = arith.select %638, %636, %640 : vector<196x2xi1>, vector<196x2xf32>
    %642 = vector.broadcast %615 : vector<1x2xf32> to vector<196x2xf32>
    %643 = arith.mulf %641, %642 : vector<196x2xf32>
    %644 = vector.broadcast %616 : vector<1x2xf32> to vector<196x2xf32>
    %645 = arith.addf %643, %644 : vector<196x2xf32>
    %cst_436 = arith.constant 0.000000e+00 : f32
    %646 = vector.broadcast %cst_436 : f32 to vector<196x2xf32>
    %647 = arith.subf %646, %645 : vector<196x2xf32>
    %648 = math.exp %647 : vector<196x2xf32>
    %cst_437 = arith.constant 1.000000e+00 : f32
    %649 = vector.broadcast %cst_437 : f32 to vector<196x2xf32>
    %650 = arith.addf %649, %648 : vector<196x2xf32>
    %cst_438 = arith.constant 1.000000e+00 : f32
    %651 = vector.broadcast %cst_438 : f32 to vector<196x2xf32>
    %652 = arith.divf %651, %650 : vector<196x2xf32>
    %653 = vector.broadcast %613 : vector<1x2xf32> to vector<196x2xf32>
    %654 = arith.addf %605, %653 : vector<196x2xf32>
    %cst_439 = arith.constant 0.000000e+00 : f32
    %655 = vector.broadcast %cst_439 : f32 to vector<196x2xf32>
    %656 = arith.cmpf ogt, %654, %655 : vector<196x2xf32>
    %657 = vector.broadcast %614 : vector<1x2xf32> to vector<196x2xf32>
    %658 = arith.mulf %654, %657 : vector<196x2xf32>
    %659 = arith.select %656, %654, %658 : vector<196x2xi1>, vector<196x2xf32>
    %660 = vector.broadcast %615 : vector<1x2xf32> to vector<196x2xf32>
    %661 = arith.mulf %659, %660 : vector<196x2xf32>
    %662 = vector.broadcast %616 : vector<1x2xf32> to vector<196x2xf32>
    %663 = arith.addf %661, %662 : vector<196x2xf32>
    %cst_440 = arith.constant 0.000000e+00 : f32
    %664 = vector.broadcast %cst_440 : f32 to vector<196x2xf32>
    %665 = arith.subf %664, %663 : vector<196x2xf32>
    %666 = math.exp %665 : vector<196x2xf32>
    %cst_441 = arith.constant 1.000000e+00 : f32
    %667 = vector.broadcast %cst_441 : f32 to vector<196x2xf32>
    %668 = arith.addf %667, %666 : vector<196x2xf32>
    %cst_442 = arith.constant 1.000000e+00 : f32
    %669 = vector.broadcast %cst_442 : f32 to vector<196x2xf32>
    %670 = arith.divf %669, %668 : vector<196x2xf32>
    %671 = vector.broadcast %613 : vector<1x2xf32> to vector<196x2xf32>
    %672 = arith.addf %610, %671 : vector<196x2xf32>
    %cst_443 = arith.constant 0.000000e+00 : f32
    %673 = vector.broadcast %cst_443 : f32 to vector<196x2xf32>
    %674 = arith.cmpf ogt, %672, %673 : vector<196x2xf32>
    %675 = vector.broadcast %614 : vector<1x2xf32> to vector<196x2xf32>
    %676 = arith.mulf %672, %675 : vector<196x2xf32>
    %677 = arith.select %674, %672, %676 : vector<196x2xi1>, vector<196x2xf32>
    %678 = vector.broadcast %615 : vector<1x2xf32> to vector<196x2xf32>
    %679 = arith.mulf %677, %678 : vector<196x2xf32>
    %680 = vector.broadcast %616 : vector<1x2xf32> to vector<196x2xf32>
    %681 = arith.addf %679, %680 : vector<196x2xf32>
    %cst_444 = arith.constant 0.000000e+00 : f32
    %682 = vector.broadcast %cst_444 : f32 to vector<196x2xf32>
    %683 = arith.subf %682, %681 : vector<196x2xf32>
    %684 = math.exp %683 : vector<196x2xf32>
    %cst_445 = arith.constant 1.000000e+00 : f32
    %685 = vector.broadcast %cst_445 : f32 to vector<196x2xf32>
    %686 = arith.addf %685, %684 : vector<196x2xf32>
    %cst_446 = arith.constant 1.000000e+00 : f32
    %687 = vector.broadcast %cst_446 : f32 to vector<196x2xf32>
    %688 = arith.divf %687, %686 : vector<196x2xf32>
    %c0_447 = arith.constant 0 : index
    %c0_448 = arith.constant 0 : index
    %c0_449 = arith.constant 0 : index
    %689 = vector.load %arg10[%c0_447, %c0_448, %c0_449] : memref<4x196x2xf32, #tpu.memory_space<vmem>>, vector<1x196x2xf32>
    %690 = vector.shape_cast %689 : vector<1x196x2xf32> to vector<196x2xf32>
    %691 = vector.shape_cast %634 : vector<196x2xf32> to vector<1x196x2xf32>
    tpu.vector_store %arg10[%c0_447, %c0_448, %c0_449], %691 {strides = array<i32>} : memref<4x196x2xf32, #tpu.memory_space<vmem>>, vector<1x196x2xf32>,
    %c1_450 = arith.constant 1 : index
    %c0_451 = arith.constant 0 : index
    %c0_452 = arith.constant 0 : index
    %692 = vector.load %arg10[%c1_450, %c0_451, %c0_452] : memref<4x196x2xf32, #tpu.memory_space<vmem>>, vector<1x196x2xf32>
    %693 = vector.shape_cast %692 : vector<1x196x2xf32> to vector<196x2xf32>
    %694 = vector.shape_cast %652 : vector<196x2xf32> to vector<1x196x2xf32>
    tpu.vector_store %arg10[%c1_450, %c0_451, %c0_452], %694 {strides = array<i32>} : memref<4x196x2xf32, #tpu.memory_space<vmem>>, vector<1x196x2xf32>,
    %c2_453 = arith.constant 2 : index
    %c0_454 = arith.constant 0 : index
    %c0_455 = arith.constant 0 : index
    %695 = vector.load %arg10[%c2_453, %c0_454, %c0_455] : memref<4x196x2xf32, #tpu.memory_space<vmem>>, vector<1x196x2xf32>
    %696 = vector.shape_cast %695 : vector<1x196x2xf32> to vector<196x2xf32>
    %697 = vector.shape_cast %670 : vector<196x2xf32> to vector<1x196x2xf32>
    tpu.vector_store %arg10[%c2_453, %c0_454, %c0_455], %697 {strides = array<i32>} : memref<4x196x2xf32, #tpu.memory_space<vmem>>, vector<1x196x2xf32>,
    %c3_456 = arith.constant 3 : index
    %c0_457 = arith.constant 0 : index
    %c0_458 = arith.constant 0 : index
    %698 = vector.load %arg10[%c3_456, %c0_457, %c0_458] : memref<4x196x2xf32, #tpu.memory_space<vmem>>, vector<1x196x2xf32>
    %699 = vector.shape_cast %698 : vector<1x196x2xf32> to vector<196x2xf32>
    %700 = vector.shape_cast %688 : vector<196x2xf32> to vector<1x196x2xf32>
    tpu.vector_store %arg10[%c3_456, %c0_457, %c0_458], %700 {strides = array<i32>} : memref<4x196x2xf32, #tpu.memory_space<vmem>>, vector<1x196x2xf32>,
    return
  }
}

</mosaic_0001>

<llo_original>
// kernel: fmnist_vae_decoder_pallas.1
$region0: #{fmnist_vae_decoder_pallas.1}
  #allocation0 [shape = 'u32[]', space=smem, size = 0x4, offset = 0x4, fixed_abs, tag = 'smem constant byte address 0x4 - core index']
  #allocation1 [shape = 'u32[72,128]{1,0:T(1,128)}', space=vmem, size = 0x9000, scoped, tag = 'internal scratch']
  %s0 = inlined_call_operand.vmem [shape: f32[2,32], index: 0, kind: input, shape index: {}]
  %s1 = inlined_call_operand.vmem [shape: f32[32,49,64], index: 1, kind: input, shape index: {}]
  %s2 = inlined_call_operand.vmem [shape: f32[49,64], index: 2, kind: input, shape index: {}]
  %s3 = inlined_call_operand.vmem [shape: f32[3,4,128], index: 3, kind: input, shape index: {}]
  %s4 = inlined_call_operand.vmem [shape: bf16[9,49,49], index: 4, kind: input, shape index: {}]
  %s5 = inlined_call_operand.vmem [shape: bf16[128,1152], index: 5, kind: input, shape index: {}]
  %s6 = inlined_call_operand.vmem [shape: bf16[9,56,49], index: 6, kind: input, shape index: {}]
  %s7 = inlined_call_operand.vmem [shape: bf16[128,576], index: 7, kind: input, shape index: {}]
  %s8 = inlined_call_operand.vmem [shape: bf16[9,196,224], index: 8, kind: input, shape index: {}]
  %s9 = inlined_call_operand.vmem [shape: bf16[64,18], index: 9, kind: input, shape index: {}]
  %s10 = inlined_call_operand.vmem [shape: f32[4,196,2], index: 10, kind: output, shape index: {}]
  %s11 = sld [smem:[#allocation0]]
  $region54: #{fmnist_vae_decoder_pallas.1} parent=0
    _
  %s13 = ssub.s32 1, %s11
  %s14 = scalar_select 0, %s13, %s11
  $region1: #{fmnist_vae_decoder_pallas.1} parent=0
    #allocation2 [shape = 'u8[1024]{0}', space=smem, size = 0x400, scoped, tag = 'input window, operand 0, single buffered']
    #allocation3 [shape = 's32[1]{0}', space=sflag, size = 0x4, scoped, tag = 'scoped memory for fmnist_vae_decoder_pallas.1']
    %15 = vsyncpa [#allocation3], 0
    // Predicated region
    $region2: #{fmnist_vae_decoder_pallas.1} parent=1 // pred_check
      _
    $region3: #{fmnist_vae_decoder_pallas.1} parent=1 // pred_check_branch
      %17 = sbr.rel (0) target = $region5
    $region4: #{fmnist_vae_decoder_pallas.1} parent=1 // pred_region
      %19 = vsyncadd [#allocation3], 0
      %s21 = sshll.u32 %s0, 4
      %s22 = int_to_ptr.vmem [resolvable:$true] %s21
      %24 = dma.vmem_to_smem %s22, 32, [#allocation2], [#allocation3]
    $region5: #{fmnist_vae_decoder_pallas.1} parent=1 // pred_fallthru
      _
    // Predicated region
    $region6: #{fmnist_vae_decoder_pallas.1} parent=1 // pred_check
      _
    $region7: #{fmnist_vae_decoder_pallas.1} parent=1 // pred_check_branch
      %26 = sbr.rel (0) target = $region9
    $region8: #{fmnist_vae_decoder_pallas.1} parent=1 // pred_region
      _
    $region9: #{fmnist_vae_decoder_pallas.1} parent=1 // pred_fallthru
      _
    // Predicated region
    $region10: #{fmnist_vae_decoder_pallas.1} parent=1 // pred_check
      _
    $region11: #{fmnist_vae_decoder_pallas.1} parent=1 // pred_check_branch
      %28 = sbr.rel (0) target = $region13
    $region12: #{fmnist_vae_decoder_pallas.1} parent=1 // pred_region
      _
    $region13: #{fmnist_vae_decoder_pallas.1} parent=1 // pred_fallthru
      _
    // Predicated region
    $region14: #{fmnist_vae_decoder_pallas.1} parent=1 // pred_check
      _
    $region15: #{fmnist_vae_decoder_pallas.1} parent=1 // pred_check_branch
      %30 = sbr.rel (0) target = $region17
    $region16: #{fmnist_vae_decoder_pallas.1} parent=1 // pred_region
      _
    $region17: #{fmnist_vae_decoder_pallas.1} parent=1 // pred_fallthru
      _
    // Predicated region
    $region18: #{fmnist_vae_decoder_pallas.1} parent=1 // pred_check
      _
    $region19: #{fmnist_vae_decoder_pallas.1} parent=1 // pred_check_branch
      %32 = sbr.rel (0) target = $region21
    $region20: #{fmnist_vae_decoder_pallas.1} parent=1 // pred_region
      _
    $region21: #{fmnist_vae_decoder_pallas.1} parent=1 // pred_fallthru
      _
    // Predicated region
    $region22: #{fmnist_vae_decoder_pallas.1} parent=1 // pred_check
      _
    $region23: #{fmnist_vae_decoder_pallas.1} parent=1 // pred_check_branch
      %34 = sbr.rel (0) target = $region25
    $region24: #{fmnist_vae_decoder_pallas.1} parent=1 // pred_region
      _
    $region25: #{fmnist_vae_decoder_pallas.1} parent=1 // pred_fallthru
      _
    // Predicated region
    $region26: #{fmnist_vae_decoder_pallas.1} parent=1 // pred_check
      _
    $region27: #{fmnist_vae_decoder_pallas.1} parent=1 // pred_check_branch
      %36 = sbr.rel (0) target = $region29
    $region28: #{fmnist_vae_decoder_pallas.1} parent=1 // pred_region
      _
    $region29: #{fmnist_vae_decoder_pallas.1} parent=1 // pred_fallthru
      _
    // Predicated region
    $region30: #{fmnist_vae_decoder_pallas.1} parent=1 // pred_check
      _
    $region31: #{fmnist_vae_decoder_pallas.1} parent=1 // pred_check_branch
      %38 = sbr.rel (0) target = $region33
    $region32: #{fmnist_vae_decoder_pallas.1} parent=1 // pred_region
      _
    $region33: #{fmnist_vae_decoder_pallas.1} parent=1 // pred_fallthru
      _
    // Predicated region
    $region34: #{fmnist_vae_decoder_pallas.1} parent=1 // pred_check
      _
    $region35: #{fmnist_vae_decoder_pallas.1} parent=1 // pred_check_branch
      %40 = sbr.rel (0) target = $region37
    $region36: #{fmnist_vae_decoder_pallas.1} parent=1 // pred_region
      _
    $region37: #{fmnist_vae_decoder_pallas.1} parent=1 // pred_fallthru
      _
    // Predicated region
    $region38: #{fmnist_vae_decoder_pallas.1} parent=1 // pred_check
      _
    $region39: #{fmnist_vae_decoder_pallas.1} parent=1 // pred_check_branch
      %42 = sbr.rel (0) target = $region41
    $region40: #{fmnist_vae_decoder_pallas.1} parent=1 // pred_region
      _
    $region41: #{fmnist_vae_decoder_pallas.1} parent=1 // pred_fallthru
      _
    // Predicated region
    $region42: #{fmnist_vae_decoder_pallas.1} parent=1 // pred_check
      _
    $region43: #{fmnist_vae_decoder_pallas.1} parent=1 // pred_check_branch
      %44 = sbr.rel (0) target = $region45
    $region44: #{fmnist_vae_decoder_pallas.1} parent=1 // pred_region
      %46 = dma.done [#allocation3], 32
    $region45: #{fmnist_vae_decoder_pallas.1} parent=1 // pred_fallthru
      _
    %47 = sfence
    %v49 = vld [vmem:[%s2] sm:$0xff]
    %v50 = vld [vmem:[%s2 + $0x8] sm:$0xff]
    %v51 = vld [vmem:[%s2 + $0x10] sm:$0xff]
    %v52 = vld [vmem:[%s2 + $0x18] sm:$0xff]
    %v53 = vld [vmem:[%s2 + $0x20] sm:$0xff]
    %v54 = vld [vmem:[%s2 + $0x28] sm:$0xff]
    %v55 = vld [vmem:[%s2 + $0x30] sm:$0x1]
    %s56 = sld [smem:[#allocation2]]
    %v57 = vld [vmem:[%s1] sm:$0xff]
    %v58 = vld [vmem:[%s1 + $0x8] sm:$0xff]
    %v59 = vld [vmem:[%s1 + $0x10] sm:$0xff]
    %v60 = vld [vmem:[%s1 + $0x18] sm:$0xff]
    %v61 = vld [vmem:[%s1 + $0x20] sm:$0xff]
    %v62 = vld [vmem:[%s1 + $0x28] sm:$0xff]
    %v63 = vld [vmem:[%s1 + $0x30] sm:$0x1]
    %v64 = vstv %s56
    %v65 = vmul.f32 %v64, %v57
    %v66 = vmul.f32 %v64, %v58
    %v67 = vmul.f32 %v64, %v59
    %v68 = vmul.f32 %v64, %v60
    %v69 = vmul.f32 %v64, %v61
    %v70 = vmul.f32 %v64, %v62
    %v71 = vmul.f32 %v64, %v63
    %v72 = vadd.f32 %v49, %v65
    %v73 = vadd.f32 %v50, %v66
    %v74 = vadd.f32 %v51, %v67
    %v75 = vadd.f32 %v52, %v68
    %v76 = vadd.f32 %v53, %v69
    %v77 = vadd.f32 %v54, %v70
    %v78 = vadd.f32 %v55, %v71
    %s79 = sld [smem:[#allocation2 + $0x1]]
    %s80 = scalar_lea.vmem %s1, 56
    %v81 = vld [vmem:[%s80] sm:$0xff]
    %v82 = vld [vmem:[%s80 + $0x8] sm:$0xff]
    %v83 = vld [vmem:[%s80 + $0x10] sm:$0xff]
    %v84 = vld [vmem:[%s80 + $0x18] sm:$0xff]
    %v85 = vld [vmem:[%s80 + $0x20] sm:$0xff]
    %v86 = vld [vmem:[%s80 + $0x28] sm:$0xff]
    %v87 = vld [vmem:[%s80 + $0x30] sm:$0x1]
    %v88 = vstv %s79
    %v89 = vmul.f32 %v88, %v81
    %v90 = vmul.f32 %v88, %v82
    %v91 = vmul.f32 %v88, %v83
    %v92 = vmul.f32 %v88, %v84
    %v93 = vmul.f32 %v88, %v85
    %v94 = vmul.f32 %v88, %v86
    %v95 = vmul.f32 %v88, %v87
    %v96 = vadd.f32 %v72, %v89
    %v97 = vadd.f32 %v73, %v90
    %v98 = vadd.f32 %v74, %v91
    %v99 = vadd.f32 %v75, %v92
    %v100 = vadd.f32 %v76, %v93
    %v101 = vadd.f32 %v77, %v94
    %v102 = vadd.f32 %v78, %v95
    %s103 = sld [smem:[#allocation2 + $0x2]]
    %s104 = scalar_lea.vmem %s1, 112
    %v105 = vld [vmem:[%s104] sm:$0xff]
    %v106 = vld [vmem:[%s104 + $0x8] sm:$0xff]
    %v107 = vld [vmem:[%s104 + $0x10] sm:$0xff]
    %v108 = vld [vmem:[%s104 + $0x18] sm:$0xff]
    %v109 = vld [vmem:[%s104 + $0x20] sm:$0xff]
    %v110 = vld [vmem:[%s104 + $0x28] sm:$0xff]
    %v111 = vld [vmem:[%s104 + $0x30] sm:$0x1]
    %v112 = vstv %s103
    %v113 = vmul.f32 %v112, %v105
    %v114 = vmul.f32 %v112, %v106
    %v115 = vmul.f32 %v112, %v107
    %v116 = vmul.f32 %v112, %v108
    %v117 = vmul.f32 %v112, %v109
    %v118 = vmul.f32 %v112, %v110
    %v119 = vmul.f32 %v112, %v111
    %v120 = vadd.f32 %v96, %v113
    %v121 = vadd.f32 %v97, %v114
    %v122 = vadd.f32 %v98, %v115
    %v123 = vadd.f32 %v99, %v116
    %v124 = vadd.f32 %v100, %v117
    %v125 = vadd.f32 %v101, %v118
    %v126 = vadd.f32 %v102, %v119
    %s127 = sld [smem:[#allocation2 + $0x3]]
    %s128 = scalar_lea.vmem %s1, 168
    %v129 = vld [vmem:[%s128] sm:$0xff]
    %v130 = vld [vmem:[%s128 + $0x8] sm:$0xff]
    %v131 = vld [vmem:[%s128 + $0x10] sm:$0xff]
    %v132 = vld [vmem:[%s128 + $0x18] sm:$0xff]
    %v133 = vld [vmem:[%s128 + $0x20] sm:$0xff]
    %v134 = vld [vmem:[%s128 + $0x28] sm:$0xff]
    %v135 = vld [vmem:[%s128 + $0x30] sm:$0x1]
    %v136 = vstv %s127
    %v137 = vmul.f32 %v136, %v129
    %v138 = vmul.f32 %v136, %v130
    %v139 = vmul.f32 %v136, %v131
    %v140 = vmul.f32 %v136, %v132
    %v141 = vmul.f32 %v136, %v133
    %v142 = vmul.f32 %v136, %v134
    %v143 = vmul.f32 %v136, %v135
    %v144 = vadd.f32 %v120, %v137
    %v145 = vadd.f32 %v121, %v138
    %v146 = vadd.f32 %v122, %v139
    %v147 = vadd.f32 %v123, %v140
    %v148 = vadd.f32 %v124, %v141
    %v149 = vadd.f32 %v125, %v142
    %v150 = vadd.f32 %v126, %v143
    %s151 = sld [smem:[#allocation2 + $0x4]]
    %s152 = scalar_lea.vmem %s1, 224
    %v153 = vld [vmem:[%s152] sm:$0xff]
    %v154 = vld [vmem:[%s152 + $0x8] sm:$0xff]
    %v155 = vld [vmem:[%s152 + $0x10] sm:$0xff]
    %v156 = vld [vmem:[%s152 + $0x18] sm:$0xff]
    %v157 = vld [vmem:[%s152 + $0x20] sm:$0xff]
    %v158 = vld [vmem:[%s152 + $0x28] sm:$0xff]
    %v159 = vld [vmem:[%s152 + $0x30] sm:$0x1]
    %v160 = vstv %s151
    %v161 = vmul.f32 %v160, %v153
    %v162 = vmul.f32 %v160, %v154
    %v163 = vmul.f32 %v160, %v155
    %v164 = vmul.f32 %v160, %v156
    %v165 = vmul.f32 %v160, %v157
    %v166 = vmul.f32 %v160, %v158
    %v167 = vmul.f32 %v160, %v159
    %v168 = vadd.f32 %v144, %v161
    %v169 = vadd.f32 %v145, %v162
    %v170 = vadd.f32 %v146, %v163
    %v171 = vadd.f32 %v147, %v164
    %v172 = vadd.f32 %v148, %v165
    %v173 = vadd.f32 %v149, %v166
    %v174 = vadd.f32 %v150, %v167
    %s175 = sld [smem:[#allocation2 + $0x5]]
    %s176 = scalar_lea.vmem %s1, 280
    %v177 = vld [vmem:[%s176] sm:$0xff]
    %v178 = vld [vmem:[%s176 + $0x8] sm:$0xff]
    %v179 = vld [vmem:[%s176 + $0x10] sm:$0xff]
    %v180 = vld [vmem:[%s176 + $0x18] sm:$0xff]
    %v181 = vld [vmem:[%s176 + $0x20] sm:$0xff]
    %v182 = vld [vmem:[%s176 + $0x28] sm:$0xff]
    %v183 = vld [vmem:[%s176 + $0x30] sm:$0x1]
    %v184 = vstv %s175
    %v185 = vmul.f32 %v184, %v177
    %v186 = vmul.f32 %v184, %v178
    %v187 = vmul.f32 %v184, %v179
    %v188 = vmul.f32 %v184, %v180
    %v189 = vmul.f32 %v184, %v181
    %v190 = vmul.f32 %v184, %v182
    %v191 = vmul.f32 %v184, %v183
    %v192 = vadd.f32 %v168, %v185
    %v193 = vadd.f32 %v169, %v186
    %v194 = vadd.f32 %v170, %v187
    %v195 = vadd.f32 %v171, %v188
    %v196 = vadd.f32 %v172, %v189
    %v197 = vadd.f32 %v173, %v190
    %v198 = vadd.f32 %v174, %v191
    %s199 = sld [smem:[#allocation2 + $0x6]]
    %s200 = scalar_lea.vmem %s1, 336
    %v201 = vld [vmem:[%s200] sm:$0xff]
    %v202 = vld [vmem:[%s200 + $0x8] sm:$0xff]
    %v203 = vld [vmem:[%s200 + $0x10] sm:$0xff]
    %v204 = vld [vmem:[%s200 + $0x18] sm:$0xff]
    %v205 = vld [vmem:[%s200 + $0x20] sm:$0xff]
    %v206 = vld [vmem:[%s200 + $0x28] sm:$0xff]
    %v207 = vld [vmem:[%s200 + $0x30] sm:$0x1]
    %v208 = vstv %s199
    %v209 = vmul.f32 %v208, %v201
    %v210 = vmul.f32 %v208, %v202
    %v211 = vmul.f32 %v208, %v203
    %v212 = vmul.f32 %v208, %v204
    %v213 = vmul.f32 %v208, %v205
    %v214 = vmul.f32 %v208, %v206
    %v215 = vmul.f32 %v208, %v207
    %v216 = vadd.f32 %v192, %v209
    %v217 = vadd.f32 %v193, %v210
    %v218 = vadd.f32 %v194, %v211
    %v219 = vadd.f32 %v195, %v212
    %v220 = vadd.f32 %v196, %v213
    %v221 = vadd.f32 %v197, %v214
    %v222 = vadd.f32 %v198, %v215
    %s223 = sld [smem:[#allocation2 + $0x7]]
    %s224 = scalar_lea.vmem %s1, 392
    %v225 = vld [vmem:[%s224] sm:$0xff]
    %v226 = vld [vmem:[%s224 + $0x8] sm:$0xff]
    %v227 = vld [vmem:[%s224 + $0x10] sm:$0xff]
    %v228 = vld [vmem:[%s224 + $0x18] sm:$0xff]
    %v229 = vld [vmem:[%s224 + $0x20] sm:$0xff]
    %v230 = vld [vmem:[%s224 + $0x28] sm:$0xff]
    %v231 = vld [vmem:[%s224 + $0x30] sm:$0x1]
    %v232 = vstv %s223
    %v233 = vmul.f32 %v232, %v225
    %v234 = vmul.f32 %v232, %v226
    %v235 = vmul.f32 %v232, %v227
    %v236 = vmul.f32 %v232, %v228
    %v237 = vmul.f32 %v232, %v229
    %v238 = vmul.f32 %v232, %v230
    %v239 = vmul.f32 %v232, %v231
    %v240 = vadd.f32 %v216, %v233
    %v241 = vadd.f32 %v217, %v234
    %v242 = vadd.f32 %v218, %v235
    %v243 = vadd.f32 %v219, %v236
    %v244 = vadd.f32 %v220, %v237
    %v245 = vadd.f32 %v221, %v238
    %v246 = vadd.f32 %v222, %v239
    %s247 = sld [smem:[#allocation2 + $0x8]]
    %s248 = scalar_lea.vmem %s1, 448
    %v249 = vld [vmem:[%s248] sm:$0xff]
    %v250 = vld [vmem:[%s248 + $0x8] sm:$0xff]
    %v251 = vld [vmem:[%s248 + $0x10] sm:$0xff]
    %v252 = vld [vmem:[%s248 + $0x18] sm:$0xff]
    %v253 = vld [vmem:[%s248 + $0x20] sm:$0xff]
    %v254 = vld [vmem:[%s248 + $0x28] sm:$0xff]
    %v255 = vld [vmem:[%s248 + $0x30] sm:$0x1]
    %v256 = vstv %s247
    %v257 = vmul.f32 %v256, %v249
    %v258 = vmul.f32 %v256, %v250
    %v259 = vmul.f32 %v256, %v251
    %v260 = vmul.f32 %v256, %v252
    %v261 = vmul.f32 %v256, %v253
    %v262 = vmul.f32 %v256, %v254
    %v263 = vmul.f32 %v256, %v255
    %v264 = vadd.f32 %v240, %v257
    %v265 = vadd.f32 %v241, %v258
    %v266 = vadd.f32 %v242, %v259
    %v267 = vadd.f32 %v243, %v260
    %v268 = vadd.f32 %v244, %v261
    %v269 = vadd.f32 %v245, %v262
    %v270 = vadd.f32 %v246, %v263
    %s271 = sld [smem:[#allocation2 + $0x9]]
    %s272 = scalar_lea.vmem %s1, 504
    %v273 = vld [vmem:[%s272] sm:$0xff]
    %v274 = vld [vmem:[%s272 + $0x8] sm:$0xff]
    %v275 = vld [vmem:[%s272 + $0x10] sm:$0xff]
    %v276 = vld [vmem:[%s272 + $0x18] sm:$0xff]
    %v277 = vld [vmem:[%s272 + $0x20] sm:$0xff]
    %v278 = vld [vmem:[%s272 + $0x28] sm:$0xff]
    %v279 = vld [vmem:[%s272 + $0x30] sm:$0x1]
    %v280 = vstv %s271
    %v281 = vmul.f32 %v280, %v273
    %v282 = vmul.f32 %v280, %v274
    %v283 = vmul.f32 %v280, %v275
    %v284 = vmul.f32 %v280, %v276
    %v285 = vmul.f32 %v280, %v277
    %v286 = vmul.f32 %v280, %v278
    %v287 = vmul.f32 %v280, %v279
    %v288 = vadd.f32 %v264, %v281
    %v289 = vadd.f32 %v265, %v282
    %v290 = vadd.f32 %v266, %v283
    %v291 = vadd.f32 %v267, %v284
    %v292 = vadd.f32 %v268, %v285
    %v293 = vadd.f32 %v269, %v286
    %v294 = vadd.f32 %v270, %v287
    %s295 = sld [smem:[#allocation2 + $0xa]]
    %s296 = scalar_lea.vmem %s1, 560
    %v297 = vld [vmem:[%s296] sm:$0xff]
    %v298 = vld [vmem:[%s296 + $0x8] sm:$0xff]
    %v299 = vld [vmem:[%s296 + $0x10] sm:$0xff]
    %v300 = vld [vmem:[%s296 + $0x18] sm:$0xff]
    %v301 = vld [vmem:[%s296 + $0x20] sm:$0xff]
    %v302 = vld [vmem:[%s296 + $0x28] sm:$0xff]
    %v303 = vld [vmem:[%s296 + $0x30] sm:$0x1]
    %v304 = vstv %s295
    %v305 = vmul.f32 %v304, %v297
    %v306 = vmul.f32 %v304, %v298
    %v307 = vmul.f32 %v304, %v299
    %v308 = vmul.f32 %v304, %v300
    %v309 = vmul.f32 %v304, %v301
    %v310 = vmul.f32 %v304, %v302
    %v311 = vmul.f32 %v304, %v303
    %v312 = vadd.f32 %v288, %v305
    %v313 = vadd.f32 %v289, %v306
    %v314 = vadd.f32 %v290, %v307
    %v315 = vadd.f32 %v291, %v308
    %v316 = vadd.f32 %v292, %v309
    %v317 = vadd.f32 %v293, %v310
    %v318 = vadd.f32 %v294, %v311
    %s319 = sld [smem:[#allocation2 + $0xb]]
    %s320 = scalar_lea.vmem %s1, 616
    %v321 = vld [vmem:[%s320] sm:$0xff]
    %v322 = vld [vmem:[%s320 + $0x8] sm:$0xff]
    %v323 = vld [vmem:[%s320 + $0x10] sm:$0xff]
    %v324 = vld [vmem:[%s320 + $0x18] sm:$0xff]
    %v325 = vld [vmem:[%s320 + $0x20] sm:$0xff]
    %v326 = vld [vmem:[%s320 + $0x28] sm:$0xff]
    %v327 = vld [vmem:[%s320 + $0x30] sm:$0x1]
    %v328 = vstv %s319
    %v329 = vmul.f32 %v328, %v321
    %v330 = vmul.f32 %v328, %v322
    %v331 = vmul.f32 %v328, %v323
    %v332 = vmul.f32 %v328, %v324
    %v333 = vmul.f32 %v328, %v325
    %v334 = vmul.f32 %v328, %v326
    %v335 = vmul.f32 %v328, %v327
    %v336 = vadd.f32 %v312, %v329
    %v337 = vadd.f32 %v313, %v330
    %v338 = vadd.f32 %v314, %v331
    %v339 = vadd.f32 %v315, %v332
    %v340 = vadd.f32 %v316, %v333
    %v341 = vadd.f32 %v317, %v334
    %v342 = vadd.f32 %v318, %v335
    %s343 = sld [smem:[#allocation2 + $0xc]]
    %s344 = scalar_lea.vmem %s1, 672
    %v345 = vld [vmem:[%s344] sm:$0xff]
    %v346 = vld [vmem:[%s344 + $0x8] sm:$0xff]
    %v347 = vld [vmem:[%s344 + $0x10] sm:$0xff]
    %v348 = vld [vmem:[%s344 + $0x18] sm:$0xff]
    %v349 = vld [vmem:[%s344 + $0x20] sm:$0xff]
    %v350 = vld [vmem:[%s344 + $0x28] sm:$0xff]
    %v351 = vld [vmem:[%s344 + $0x30] sm:$0x1]
    %v352 = vstv %s343
    %v353 = vmul.f32 %v352, %v345
    %v354 = vmul.f32 %v352, %v346
    %v355 = vmul.f32 %v352, %v347
    %v356 = vmul.f32 %v352, %v348
    %v357 = vmul.f32 %v352, %v349
    %v358 = vmul.f32 %v352, %v350
    %v359 = vmul.f32 %v352, %v351
    %v360 = vadd.f32 %v336, %v353
    %v361 = vadd.f32 %v337, %v354
    %v362 = vadd.f32 %v338, %v355
    %v363 = vadd.f32 %v339, %v356
    %v364 = vadd.f32 %v340, %v357
    %v365 = vadd.f32 %v341, %v358
    %v366 = vadd.f32 %v342, %v359
    %s367 = sld [smem:[#allocation2 + $0xd]]
    %s368 = scalar_lea.vmem %s1, 728
    %v369 = vld [vmem:[%s368] sm:$0xff]
    %v370 = vld [vmem:[%s368 + $0x8] sm:$0xff]
    %v371 = vld [vmem:[%s368 + $0x10] sm:$0xff]
    %v372 = vld [vmem:[%s368 + $0x18] sm:$0xff]
    %v373 = vld [vmem:[%s368 + $0x20] sm:$0xff]
    %v374 = vld [vmem:[%s368 + $0x28] sm:$0xff]
    %v375 = vld [vmem:[%s368 + $0x30] sm:$0x1]
    %v376 = vstv %s367
    %v377 = vmul.f32 %v376, %v369
    %v378 = vmul.f32 %v376, %v370
    %v379 = vmul.f32 %v376, %v371
    %v380 = vmul.f32 %v376, %v372
    %v381 = vmul.f32 %v376, %v373
    %v382 = vmul.f32 %v376, %v374
    %v383 = vmul.f32 %v376, %v375
    %v384 = vadd.f32 %v360, %v377
    %v385 = vadd.f32 %v361, %v378
    %v386 = vadd.f32 %v362, %v379
    %v387 = vadd.f32 %v363, %v380
    %v388 = vadd.f32 %v364, %v381
    %v389 = vadd.f32 %v365, %v382
    %v390 = vadd.f32 %v366, %v383
    %s391 = sld [smem:[#allocation2 + $0xe]]
    %s392 = scalar_lea.vmem %s1, 784
    %v393 = vld [vmem:[%s392] sm:$0xff]
    %v394 = vld [vmem:[%s392 + $0x8] sm:$0xff]
    %v395 = vld [vmem:[%s392 + $0x10] sm:$0xff]
    %v396 = vld [vmem:[%s392 + $0x18] sm:$0xff]
    %v397 = vld [vmem:[%s392 + $0x20] sm:$0xff]
    %v398 = vld [vmem:[%s392 + $0x28] sm:$0xff]
    %v399 = vld [vmem:[%s392 + $0x30] sm:$0x1]
    %v400 = vstv %s391
    %v401 = vmul.f32 %v400, %v393
    %v402 = vmul.f32 %v400, %v394
    %v403 = vmul.f32 %v400, %v395
    %v404 = vmul.f32 %v400, %v396
    %v405 = vmul.f32 %v400, %v397
    %v406 = vmul.f32 %v400, %v398
    %v407 = vmul.f32 %v400, %v399
    %v408 = vadd.f32 %v384, %v401
    %v409 = vadd.f32 %v385, %v402
    %v410 = vadd.f32 %v386, %v403
    %v411 = vadd.f32 %v387, %v404
    %v412 = vadd.f32 %v388, %v405
    %v413 = vadd.f32 %v389, %v406
    %v414 = vadd.f32 %v390, %v407
    %s415 = sld [smem:[#allocation2 + $0xf]]
    %s416 = scalar_lea.vmem %s1, 840
    %v417 = vld [vmem:[%s416] sm:$0xff]
    %v418 = vld [vmem:[%s416 + $0x8] sm:$0xff]
    %v419 = vld [vmem:[%s416 + $0x10] sm:$0xff]
    %v420 = vld [vmem:[%s416 + $0x18] sm:$0xff]
    %v421 = vld [vmem:[%s416 + $0x20] sm:$0xff]
    %v422 = vld [vmem:[%s416 + $0x28] sm:$0xff]
    %v423 = vld [vmem:[%s416 + $0x30] sm:$0x1]
    %v424 = vstv %s415
    %v425 = vmul.f32 %v424, %v417
    %v426 = vmul.f32 %v424, %v418
    %v427 = vmul.f32 %v424, %v419
    %v428 = vmul.f32 %v424, %v420
    %v429 = vmul.f32 %v424, %v421
    %v430 = vmul.f32 %v424, %v422
    %v431 = vmul.f32 %v424, %v423
    %v432 = vadd.f32 %v408, %v425
    %v433 = vadd.f32 %v409, %v426
    %v434 = vadd.f32 %v410, %v427
    %v435 = vadd.f32 %v411, %v428
    %v436 = vadd.f32 %v412, %v429
    %v437 = vadd.f32 %v413, %v430
    %v438 = vadd.f32 %v414, %v431
    %s439 = sld [smem:[#allocation2 + $0x10]]
    %s440 = scalar_lea.vmem %s1, 896
    %v441 = vld [vmem:[%s440] sm:$0xff]
    %v442 = vld [vmem:[%s440 + $0x8] sm:$0xff]
    %v443 = vld [vmem:[%s440 + $0x10] sm:$0xff]
    %v444 = vld [vmem:[%s440 + $0x18] sm:$0xff]
    %v445 = vld [vmem:[%s440 + $0x20] sm:$0xff]
    %v446 = vld [vmem:[%s440 + $0x28] sm:$0xff]
    %v447 = vld [vmem:[%s440 + $0x30] sm:$0x1]
    %v448 = vstv %s439
    %v449 = vmul.f32 %v448, %v441
    %v450 = vmul.f32 %v448, %v442
    %v451 = vmul.f32 %v448, %v443
    %v452 = vmul.f32 %v448, %v444
    %v453 = vmul.f32 %v448, %v445
    %v454 = vmul.f32 %v448, %v446
    %v455 = vmul.f32 %v448, %v447
    %v456 = vadd.f32 %v432, %v449
    %v457 = vadd.f32 %v433, %v450
    %v458 = vadd.f32 %v434, %v451
    %v459 = vadd.f32 %v435, %v452
    %v460 = vadd.f32 %v436, %v453
    %v461 = vadd.f32 %v437, %v454
    %v462 = vadd.f32 %v438, %v455
    %s463 = sld [smem:[#allocation2 + $0x11]]
    %s464 = scalar_lea.vmem %s1, 952
    %v465 = vld [vmem:[%s464] sm:$0xff]
    %v466 = vld [vmem:[%s464 + $0x8] sm:$0xff]
    %v467 = vld [vmem:[%s464 + $0x10] sm:$0xff]
    %v468 = vld [vmem:[%s464 + $0x18] sm:$0xff]
    %v469 = vld [vmem:[%s464 + $0x20] sm:$0xff]
    %v470 = vld [vmem:[%s464 + $0x28] sm:$0xff]
    %v471 = vld [vmem:[%s464 + $0x30] sm:$0x1]
    %v472 = vstv %s463
    %v473 = vmul.f32 %v472, %v465
    %v474 = vmul.f32 %v472, %v466
    %v475 = vmul.f32 %v472, %v467
    %v476 = vmul.f32 %v472, %v468
    %v477 = vmul.f32 %v472, %v469
    %v478 = vmul.f32 %v472, %v470
    %v479 = vmul.f32 %v472, %v471
    %v480 = vadd.f32 %v456, %v473
    %v481 = vadd.f32 %v457, %v474
    %v482 = vadd.f32 %v458, %v475
    %v483 = vadd.f32 %v459, %v476
    %v484 = vadd.f32 %v460, %v477
    %v485 = vadd.f32 %v461, %v478
    %v486 = vadd.f32 %v462, %v479
    %s487 = sld [smem:[#allocation2 + $0x12]]
    %s488 = scalar_lea.vmem %s1, 1008
    %v489 = vld [vmem:[%s488] sm:$0xff]
    %v490 = vld [vmem:[%s488 + $0x8] sm:$0xff]
    %v491 = vld [vmem:[%s488 + $0x10] sm:$0xff]
    %v492 = vld [vmem:[%s488 + $0x18] sm:$0xff]
    %v493 = vld [vmem:[%s488 + $0x20] sm:$0xff]
    %v494 = vld [vmem:[%s488 + $0x28] sm:$0xff]
    %v495 = vld [vmem:[%s488 + $0x30] sm:$0x1]
    %v496 = vstv %s487
    %v497 = vmul.f32 %v496, %v489
    %v498 = vmul.f32 %v496, %v490
    %v499 = vmul.f32 %v496, %v491
    %v500 = vmul.f32 %v496, %v492
    %v501 = vmul.f32 %v496, %v493
    %v502 = vmul.f32 %v496, %v494
    %v503 = vmul.f32 %v496, %v495
    %v504 = vadd.f32 %v480, %v497
    %v505 = vadd.f32 %v481, %v498
    %v506 = vadd.f32 %v482, %v499
    %v507 = vadd.f32 %v483, %v500
    %v508 = vadd.f32 %v484, %v501
    %v509 = vadd.f32 %v485, %v502
    %v510 = vadd.f32 %v486, %v503
    %s511 = sld [smem:[#allocation2 + $0x13]]
    %s512 = scalar_lea.vmem %s1, 1064
    %v513 = vld [vmem:[%s512] sm:$0xff]
    %v514 = vld [vmem:[%s512 + $0x8] sm:$0xff]
    %v515 = vld [vmem:[%s512 + $0x10] sm:$0xff]
    %v516 = vld [vmem:[%s512 + $0x18] sm:$0xff]
    %v517 = vld [vmem:[%s512 + $0x20] sm:$0xff]
    %v518 = vld [vmem:[%s512 + $0x28] sm:$0xff]
    %v519 = vld [vmem:[%s512 + $0x30] sm:$0x1]
    %v520 = vstv %s511
    %v521 = vmul.f32 %v520, %v513
    %v522 = vmul.f32 %v520, %v514
    %v523 = vmul.f32 %v520, %v515
    %v524 = vmul.f32 %v520, %v516
    %v525 = vmul.f32 %v520, %v517
    %v526 = vmul.f32 %v520, %v518
    %v527 = vmul.f32 %v520, %v519
    %v528 = vadd.f32 %v504, %v521
    %v529 = vadd.f32 %v505, %v522
    %v530 = vadd.f32 %v506, %v523
    %v531 = vadd.f32 %v507, %v524
    %v532 = vadd.f32 %v508, %v525
    %v533 = vadd.f32 %v509, %v526
    %v534 = vadd.f32 %v510, %v527
    %s535 = sld [smem:[#allocation2 + $0x14]]
    %s536 = scalar_lea.vmem %s1, 1120
    %v537 = vld [vmem:[%s536] sm:$0xff]
    %v538 = vld [vmem:[%s536 + $0x8] sm:$0xff]
    %v539 = vld [vmem:[%s536 + $0x10] sm:$0xff]
    %v540 = vld [vmem:[%s536 + $0x18] sm:$0xff]
    %v541 = vld [vmem:[%s536 + $0x20] sm:$0xff]
    %v542 = vld [vmem:[%s536 + $0x28] sm:$0xff]
    %v543 = vld [vmem:[%s536 + $0x30] sm:$0x1]
    %v544 = vstv %s535
    %v545 = vmul.f32 %v544, %v537
    %v546 = vmul.f32 %v544, %v538
    %v547 = vmul.f32 %v544, %v539
    %v548 = vmul.f32 %v544, %v540
    %v549 = vmul.f32 %v544, %v541
    %v550 = vmul.f32 %v544, %v542
    %v551 = vmul.f32 %v544, %v543
    %v552 = vadd.f32 %v528, %v545
    %v553 = vadd.f32 %v529, %v546
    %v554 = vadd.f32 %v530, %v547
    %v555 = vadd.f32 %v531, %v548
    %v556 = vadd.f32 %v532, %v549
    %v557 = vadd.f32 %v533, %v550
    %v558 = vadd.f32 %v534, %v551
    %s559 = sld [smem:[#allocation2 + $0x15]]
    %s560 = scalar_lea.vmem %s1, 1176
    %v561 = vld [vmem:[%s560] sm:$0xff]
    %v562 = vld [vmem:[%s560 + $0x8] sm:$0xff]
    %v563 = vld [vmem:[%s560 + $0x10] sm:$0xff]
    %v564 = vld [vmem:[%s560 + $0x18] sm:$0xff]
    %v565 = vld [vmem:[%s560 + $0x20] sm:$0xff]
    %v566 = vld [vmem:[%s560 + $0x28] sm:$0xff]
    %v567 = vld [vmem:[%s560 + $0x30] sm:$0x1]
    %v568 = vstv %s559
    %v569 = vmul.f32 %v568, %v561
    %v570 = vmul.f32 %v568, %v562
    %v571 = vmul.f32 %v568, %v563
    %v572 = vmul.f32 %v568, %v564
    %v573 = vmul.f32 %v568, %v565
    %v574 = vmul.f32 %v568, %v566
    %v575 = vmul.f32 %v568, %v567
    %v576 = vadd.f32 %v552, %v569
    %v577 = vadd.f32 %v553, %v570
    %v578 = vadd.f32 %v554, %v571
    %v579 = vadd.f32 %v555, %v572
    %v580 = vadd.f32 %v556, %v573
    %v581 = vadd.f32 %v557, %v574
    %v582 = vadd.f32 %v558, %v575
    %s583 = sld [smem:[#allocation2 + $0x16]]
    %s584 = scalar_lea.vmem %s1, 1232
    %v585 = vld [vmem:[%s584] sm:$0xff]
    %v586 = vld [vmem:[%s584 + $0x8] sm:$0xff]
    %v587 = vld [vmem:[%s584 + $0x10] sm:$0xff]
    %v588 = vld [vmem:[%s584 + $0x18] sm:$0xff]
    %v589 = vld [vmem:[%s584 + $0x20] sm:$0xff]
    %v590 = vld [vmem:[%s584 + $0x28] sm:$0xff]
    %v591 = vld [vmem:[%s584 + $0x30] sm:$0x1]
    %v592 = vstv %s583
    %v593 = vmul.f32 %v592, %v585
    %v594 = vmul.f32 %v592, %v586
    %v595 = vmul.f32 %v592, %v587
    %v596 = vmul.f32 %v592, %v588
    %v597 = vmul.f32 %v592, %v589
    %v598 = vmul.f32 %v592, %v590
    %v599 = vmul.f32 %v592, %v591
    %v600 = vadd.f32 %v576, %v593
    %v601 = vadd.f32 %v577, %v594
    %v602 = vadd.f32 %v578, %v595
    %v603 = vadd.f32 %v579, %v596
    %v604 = vadd.f32 %v580, %v597
    %v605 = vadd.f32 %v581, %v598
    %v606 = vadd.f32 %v582, %v599
    %s607 = sld [smem:[#allocation2 + $0x17]]
    %s608 = scalar_lea.vmem %s1, 1288
    %v609 = vld [vmem:[%s608] sm:$0xff]
    %v610 = vld [vmem:[%s608 + $0x8] sm:$0xff]
    %v611 = vld [vmem:[%s608 + $0x10] sm:$0xff]
    %v612 = vld [vmem:[%s608 + $0x18] sm:$0xff]
    %v613 = vld [vmem:[%s608 + $0x20] sm:$0xff]
    %v614 = vld [vmem:[%s608 + $0x28] sm:$0xff]
    %v615 = vld [vmem:[%s608 + $0x30] sm:$0x1]
    %v616 = vstv %s607
    %v617 = vmul.f32 %v616, %v609
    %v618 = vmul.f32 %v616, %v610
    %v619 = vmul.f32 %v616, %v611
    %v620 = vmul.f32 %v616, %v612
    %v621 = vmul.f32 %v616, %v613
    %v622 = vmul.f32 %v616, %v614
    %v623 = vmul.f32 %v616, %v615
    %v624 = vadd.f32 %v600, %v617
    %v625 = vadd.f32 %v601, %v618
    %v626 = vadd.f32 %v602, %v619
    %v627 = vadd.f32 %v603, %v620
    %v628 = vadd.f32 %v604, %v621
    %v629 = vadd.f32 %v605, %v622
    %v630 = vadd.f32 %v606, %v623
    %s631 = sld [smem:[#allocation2 + $0x18]]
    %s632 = scalar_lea.vmem %s1, 1344
    %v633 = vld [vmem:[%s632] sm:$0xff]
    %v634 = vld [vmem:[%s632 + $0x8] sm:$0xff]
    %v635 = vld [vmem:[%s632 + $0x10] sm:$0xff]
    %v636 = vld [vmem:[%s632 + $0x18] sm:$0xff]
    %v637 = vld [vmem:[%s632 + $0x20] sm:$0xff]
    %v638 = vld [vmem:[%s632 + $0x28] sm:$0xff]
    %v639 = vld [vmem:[%s632 + $0x30] sm:$0x1]
    %v640 = vstv %s631
    %v641 = vmul.f32 %v640, %v633
    %v642 = vmul.f32 %v640, %v634
    %v643 = vmul.f32 %v640, %v635
    %v644 = vmul.f32 %v640, %v636
    %v645 = vmul.f32 %v640, %v637
    %v646 = vmul.f32 %v640, %v638
    %v647 = vmul.f32 %v640, %v639
    %v648 = vadd.f32 %v624, %v641
    %v649 = vadd.f32 %v625, %v642
    %v650 = vadd.f32 %v626, %v643
    %v651 = vadd.f32 %v627, %v644
    %v652 = vadd.f32 %v628, %v645
    %v653 = vadd.f32 %v629, %v646
    %v654 = vadd.f32 %v630, %v647
    %s655 = sld [smem:[#allocation2 + $0x19]]
    %s656 = scalar_lea.vmem %s1, 1400
    %v657 = vld [vmem:[%s656] sm:$0xff]
    %v658 = vld [vmem:[%s656 + $0x8] sm:$0xff]
    %v659 = vld [vmem:[%s656 + $0x10] sm:$0xff]
    %v660 = vld [vmem:[%s656 + $0x18] sm:$0xff]
    %v661 = vld [vmem:[%s656 + $0x20] sm:$0xff]
    %v662 = vld [vmem:[%s656 + $0x28] sm:$0xff]
    %v663 = vld [vmem:[%s656 + $0x30] sm:$0x1]
    %v664 = vstv %s655
    %v665 = vmul.f32 %v664, %v657
    %v666 = vmul.f32 %v664, %v658
    %v667 = vmul.f32 %v664, %v659
    %v668 = vmul.f32 %v664, %v660
    %v669 = vmul.f32 %v664, %v661
    %v670 = vmul.f32 %v664, %v662
    %v671 = vmul.f32 %v664, %v663
    %v672 = vadd.f32 %v648, %v665
    %v673 = vadd.f32 %v649, %v666
    %v674 = vadd.f32 %v650, %v667
    %v675 = vadd.f32 %v651, %v668
    %v676 = vadd.f32 %v652, %v669
    %v677 = vadd.f32 %v653, %v670
    %v678 = vadd.f32 %v654, %v671
    %s679 = sld [smem:[#allocation2 + $0x1a]]
    %s680 = scalar_lea.vmem %s1, 1456
    %v681 = vld [vmem:[%s680] sm:$0xff]
    %v682 = vld [vmem:[%s680 + $0x8] sm:$0xff]
    %v683 = vld [vmem:[%s680 + $0x10] sm:$0xff]
    %v684 = vld [vmem:[%s680 + $0x18] sm:$0xff]
    %v685 = vld [vmem:[%s680 + $0x20] sm:$0xff]
    %v686 = vld [vmem:[%s680 + $0x28] sm:$0xff]
    %v687 = vld [vmem:[%s680 + $0x30] sm:$0x1]
    %v688 = vstv %s679
    %v689 = vmul.f32 %v688, %v681
    %v690 = vmul.f32 %v688, %v682
    %v691 = vmul.f32 %v688, %v683
    %v692 = vmul.f32 %v688, %v684
    %v693 = vmul.f32 %v688, %v685
    %v694 = vmul.f32 %v688, %v686
    %v695 = vmul.f32 %v688, %v687
    %v696 = vadd.f32 %v672, %v689
    %v697 = vadd.f32 %v673, %v690
    %v698 = vadd.f32 %v674, %v691
    %v699 = vadd.f32 %v675, %v692
    %v700 = vadd.f32 %v676, %v693
    %v701 = vadd.f32 %v677, %v694
    %v702 = vadd.f32 %v678, %v695
    %s703 = sld [smem:[#allocation2 + $0x1b]]
    %s704 = scalar_lea.vmem %s1, 1512
    %v705 = vld [vmem:[%s704] sm:$0xff]
    %v706 = vld [vmem:[%s704 + $0x8] sm:$0xff]
    %v707 = vld [vmem:[%s704 + $0x10] sm:$0xff]
    %v708 = vld [vmem:[%s704 + $0x18] sm:$0xff]
    %v709 = vld [vmem:[%s704 + $0x20] sm:$0xff]
    %v710 = vld [vmem:[%s704 + $0x28] sm:$0xff]
    %v711 = vld [vmem:[%s704 + $0x30] sm:$0x1]
    %v712 = vstv %s703
    %v713 = vmul.f32 %v712, %v705
    %v714 = vmul.f32 %v712, %v706
    %v715 = vmul.f32 %v712, %v707
    %v716 = vmul.f32 %v712, %v708
    %v717 = vmul.f32 %v712, %v709
    %v718 = vmul.f32 %v712, %v710
    %v719 = vmul.f32 %v712, %v711
    %v720 = vadd.f32 %v696, %v713
    %v721 = vadd.f32 %v697, %v714
    %v722 = vadd.f32 %v698, %v715
    %v723 = vadd.f32 %v699, %v716
    %v724 = vadd.f32 %v700, %v717
    %v725 = vadd.f32 %v701, %v718
    %v726 = vadd.f32 %v702, %v719
    %s727 = sld [smem:[#allocation2 + $0x1c]]
    %s728 = scalar_lea.vmem %s1, 1568
    %v729 = vld [vmem:[%s728] sm:$0xff]
    %v730 = vld [vmem:[%s728 + $0x8] sm:$0xff]
    %v731 = vld [vmem:[%s728 + $0x10] sm:$0xff]
    %v732 = vld [vmem:[%s728 + $0x18] sm:$0xff]
    %v733 = vld [vmem:[%s728 + $0x20] sm:$0xff]
    %v734 = vld [vmem:[%s728 + $0x28] sm:$0xff]
    %v735 = vld [vmem:[%s728 + $0x30] sm:$0x1]
    %v736 = vstv %s727
    %v737 = vmul.f32 %v736, %v729
    %v738 = vmul.f32 %v736, %v730
    %v739 = vmul.f32 %v736, %v731
    %v740 = vmul.f32 %v736, %v732
    %v741 = vmul.f32 %v736, %v733
    %v742 = vmul.f32 %v736, %v734
    %v743 = vmul.f32 %v736, %v735
    %v744 = vadd.f32 %v720, %v737
    %v745 = vadd.f32 %v721, %v738
    %v746 = vadd.f32 %v722, %v739
    %v747 = vadd.f32 %v723, %v740
    %v748 = vadd.f32 %v724, %v741
    %v749 = vadd.f32 %v725, %v742
    %v750 = vadd.f32 %v726, %v743
    %s751 = sld [smem:[#allocation2 + $0x1d]]
    %s752 = scalar_lea.vmem %s1, 1624
    %v753 = vld [vmem:[%s752] sm:$0xff]
    %v754 = vld [vmem:[%s752 + $0x8] sm:$0xff]
    %v755 = vld [vmem:[%s752 + $0x10] sm:$0xff]
    %v756 = vld [vmem:[%s752 + $0x18] sm:$0xff]
    %v757 = vld [vmem:[%s752 + $0x20] sm:$0xff]
    %v758 = vld [vmem:[%s752 + $0x28] sm:$0xff]
    %v759 = vld [vmem:[%s752 + $0x30] sm:$0x1]
    %v760 = vstv %s751
    %v761 = vmul.f32 %v760, %v753
    %v762 = vmul.f32 %v760, %v754
    %v763 = vmul.f32 %v760, %v755
    %v764 = vmul.f32 %v760, %v756
    %v765 = vmul.f32 %v760, %v757
    %v766 = vmul.f32 %v760, %v758
    %v767 = vmul.f32 %v760, %v759
    %v768 = vadd.f32 %v744, %v761
    %v769 = vadd.f32 %v745, %v762
    %v770 = vadd.f32 %v746, %v763
    %v771 = vadd.f32 %v747, %v764
    %v772 = vadd.f32 %v748, %v765
    %v773 = vadd.f32 %v749, %v766
    %v774 = vadd.f32 %v750, %v767
    %s775 = sld [smem:[#allocation2 + $0x1e]]
    %s776 = scalar_lea.vmem %s1, 1680
    %v777 = vld [vmem:[%s776] sm:$0xff]
    %v778 = vld [vmem:[%s776 + $0x8] sm:$0xff]
    %v779 = vld [vmem:[%s776 + $0x10] sm:$0xff]
    %v780 = vld [vmem:[%s776 + $0x18] sm:$0xff]
    %v781 = vld [vmem:[%s776 + $0x20] sm:$0xff]
    %v782 = vld [vmem:[%s776 + $0x28] sm:$0xff]
    %v783 = vld [vmem:[%s776 + $0x30] sm:$0x1]
    %v784 = vstv %s775
    %v785 = vmul.f32 %v784, %v777
    %v786 = vmul.f32 %v784, %v778
    %v787 = vmul.f32 %v784, %v779
    %v788 = vmul.f32 %v784, %v780
    %v789 = vmul.f32 %v784, %v781
    %v790 = vmul.f32 %v784, %v782
    %v791 = vmul.f32 %v784, %v783
    %v792 = vadd.f32 %v768, %v785
    %v793 = vadd.f32 %v769, %v786
    %v794 = vadd.f32 %v770, %v787
    %v795 = vadd.f32 %v771, %v788
    %v796 = vadd.f32 %v772, %v789
    %v797 = vadd.f32 %v773, %v790
    %v798 = vadd.f32 %v774, %v791
    %s799 = sld [smem:[#allocation2 + $0x1f]]
    %s800 = scalar_lea.vmem %s1, 1736
    %v801 = vld [vmem:[%s800] sm:$0xff]
    %v802 = vld [vmem:[%s800 + $0x8] sm:$0xff]
    %v803 = vld [vmem:[%s800 + $0x10] sm:$0xff]
    %v804 = vld [vmem:[%s800 + $0x18] sm:$0xff]
    %v805 = vld [vmem:[%s800 + $0x20] sm:$0xff]
    %v806 = vld [vmem:[%s800 + $0x28] sm:$0xff]
    %v807 = vld [vmem:[%s800 + $0x30] sm:$0x1]
    %v808 = vstv %s799
    %v809 = vmul.f32 %v808, %v801
    %v810 = vmul.f32 %v808, %v802
    %v811 = vmul.f32 %v808, %v803
    %v812 = vmul.f32 %v808, %v804
    %v813 = vmul.f32 %v808, %v805
    %v814 = vmul.f32 %v808, %v806
    %v815 = vmul.f32 %v808, %v807
    %v816 = vadd.f32 %v792, %v809
    %v817 = vadd.f32 %v793, %v810
    %v818 = vadd.f32 %v794, %v811
    %v819 = vadd.f32 %v795, %v812
    %v820 = vadd.f32 %v796, %v813
    %v821 = vadd.f32 %v797, %v814
    %v822 = vadd.f32 %v798, %v815
    %s823 = sld [smem:[#allocation2 + $0x80]]
    %v824 = vstv %s823
    %v825 = vmul.f32 %v824, %v57
    %v826 = vmul.f32 %v824, %v58
    %v827 = vmul.f32 %v824, %v59
    %v828 = vmul.f32 %v824, %v60
    %v829 = vmul.f32 %v824, %v61
    %v830 = vmul.f32 %v824, %v62
    %v831 = vmul.f32 %v824, %v63
    %v832 = vadd.f32 %v49, %v825
    %v833 = vadd.f32 %v50, %v826
    %v834 = vadd.f32 %v51, %v827
    %v835 = vadd.f32 %v52, %v828
    %v836 = vadd.f32 %v53, %v829
    %v837 = vadd.f32 %v54, %v830
    %v838 = vadd.f32 %v55, %v831
    %s839 = sld [smem:[#allocation2 + $0x81]]
    %v840 = vstv %s839
    %v841 = vmul.f32 %v840, %v81
    %v842 = vmul.f32 %v840, %v82
    %v843 = vmul.f32 %v840, %v83
    %v844 = vmul.f32 %v840, %v84
    %v845 = vmul.f32 %v840, %v85
    %v846 = vmul.f32 %v840, %v86
    %v847 = vmul.f32 %v840, %v87
    %v848 = vadd.f32 %v832, %v841
    %v849 = vadd.f32 %v833, %v842
    %v850 = vadd.f32 %v834, %v843
    %v851 = vadd.f32 %v835, %v844
    %v852 = vadd.f32 %v836, %v845
    %v853 = vadd.f32 %v837, %v846
    %v854 = vadd.f32 %v838, %v847
    %s855 = sld [smem:[#allocation2 + $0x82]]
    %v856 = vstv %s855
    %v857 = vmul.f32 %v856, %v105
    %v858 = vmul.f32 %v856, %v106
    %v859 = vmul.f32 %v856, %v107
    %v860 = vmul.f32 %v856, %v108
    %v861 = vmul.f32 %v856, %v109
    %v862 = vmul.f32 %v856, %v110
    %v863 = vmul.f32 %v856, %v111
    %v864 = vadd.f32 %v848, %v857
    %v865 = vadd.f32 %v849, %v858
    %v866 = vadd.f32 %v850, %v859
    %v867 = vadd.f32 %v851, %v860
    %v868 = vadd.f32 %v852, %v861
    %v869 = vadd.f32 %v853, %v862
    %v870 = vadd.f32 %v854, %v863
    %s871 = sld [smem:[#allocation2 + $0x83]]
    %v872 = vstv %s871
    %v873 = vmul.f32 %v872, %v129
    %v874 = vmul.f32 %v872, %v130
    %v875 = vmul.f32 %v872, %v131
    %v876 = vmul.f32 %v872, %v132
    %v877 = vmul.f32 %v872, %v133
    %v878 = vmul.f32 %v872, %v134
    %v879 = vmul.f32 %v872, %v135
    %v880 = vadd.f32 %v864, %v873
    %v881 = vadd.f32 %v865, %v874
    %v882 = vadd.f32 %v866, %v875
    %v883 = vadd.f32 %v867, %v876
    %v884 = vadd.f32 %v868, %v877
    %v885 = vadd.f32 %v869, %v878
    %v886 = vadd.f32 %v870, %v879
    %s887 = sld [smem:[#allocation2 + $0x84]]
    %v888 = vstv %s887
    %v889 = vmul.f32 %v888, %v153
    %v890 = vmul.f32 %v888, %v154
    %v891 = vmul.f32 %v888, %v155
    %v892 = vmul.f32 %v888, %v156
    %v893 = vmul.f32 %v888, %v157
    %v894 = vmul.f32 %v888, %v158
    %v895 = vmul.f32 %v888, %v159
    %v896 = vadd.f32 %v880, %v889
    %v897 = vadd.f32 %v881, %v890
    %v898 = vadd.f32 %v882, %v891
    %v899 = vadd.f32 %v883, %v892
    %v900 = vadd.f32 %v884, %v893
    %v901 = vadd.f32 %v885, %v894
    %v902 = vadd.f32 %v886, %v895
    %s903 = sld [smem:[#allocation2 + $0x85]]
    %v904 = vstv %s903
    %v905 = vmul.f32 %v904, %v177
    %v906 = vmul.f32 %v904, %v178
    %v907 = vmul.f32 %v904, %v179
    %v908 = vmul.f32 %v904, %v180
    %v909 = vmul.f32 %v904, %v181
    %v910 = vmul.f32 %v904, %v182
    %v911 = vmul.f32 %v904, %v183
    %v912 = vadd.f32 %v896, %v905
    %v913 = vadd.f32 %v897, %v906
    %v914 = vadd.f32 %v898, %v907
    %v915 = vadd.f32 %v899, %v908
    %v916 = vadd.f32 %v900, %v909
    %v917 = vadd.f32 %v901, %v910
    %v918 = vadd.f32 %v902, %v911
    %s919 = sld [smem:[#allocation2 + $0x86]]
    %v920 = vstv %s919
    %v921 = vmul.f32 %v920, %v201
    %v922 = vmul.f32 %v920, %v202
    %v923 = vmul.f32 %v920, %v203
    %v924 = vmul.f32 %v920, %v204
    %v925 = vmul.f32 %v920, %v205
    %v926 = vmul.f32 %v920, %v206
    %v927 = vmul.f32 %v920, %v207
    %v928 = vadd.f32 %v912, %v921
    %v929 = vadd.f32 %v913, %v922
    %v930 = vadd.f32 %v914, %v923
    %v931 = vadd.f32 %v915, %v924
    %v932 = vadd.f32 %v916, %v925
    %v933 = vadd.f32 %v917, %v926
    %v934 = vadd.f32 %v918, %v927
    %s935 = sld [smem:[#allocation2 + $0x87]]
    %v936 = vstv %s935
    %v937 = vmul.f32 %v936, %v225
    %v938 = vmul.f32 %v936, %v226
    %v939 = vmul.f32 %v936, %v227
    %v940 = vmul.f32 %v936, %v228
    %v941 = vmul.f32 %v936, %v229
    %v942 = vmul.f32 %v936, %v230
    %v943 = vmul.f32 %v936, %v231
    %v944 = vadd.f32 %v928, %v937
    %v945 = vadd.f32 %v929, %v938
    %v946 = vadd.f32 %v930, %v939
    %v947 = vadd.f32 %v931, %v940
    %v948 = vadd.f32 %v932, %v941
    %v949 = vadd.f32 %v933, %v942
    %v950 = vadd.f32 %v934, %v943
    %s951 = sld [smem:[#allocation2 + $0x88]]
    %v952 = vstv %s951
    %v953 = vmul.f32 %v952, %v249
    %v954 = vmul.f32 %v952, %v250
    %v955 = vmul.f32 %v952, %v251
    %v956 = vmul.f32 %v952, %v252
    %v957 = vmul.f32 %v952, %v253
    %v958 = vmul.f32 %v952, %v254
    %v959 = vmul.f32 %v952, %v255
    %v960 = vadd.f32 %v944, %v953
    %v961 = vadd.f32 %v945, %v954
    %v962 = vadd.f32 %v946, %v955
    %v963 = vadd.f32 %v947, %v956
    %v964 = vadd.f32 %v948, %v957
    %v965 = vadd.f32 %v949, %v958
    %v966 = vadd.f32 %v950, %v959
    %s967 = sld [smem:[#allocation2 + $0x89]]
    %v968 = vstv %s967
    %v969 = vmul.f32 %v968, %v273
    %v970 = vmul.f32 %v968, %v274
    %v971 = vmul.f32 %v968, %v275
    %v972 = vmul.f32 %v968, %v276
    %v973 = vmul.f32 %v968, %v277
    %v974 = vmul.f32 %v968, %v278
    %v975 = vmul.f32 %v968, %v279
    %v976 = vadd.f32 %v960, %v969
    %v977 = vadd.f32 %v961, %v970
    %v978 = vadd.f32 %v962, %v971
    %v979 = vadd.f32 %v963, %v972
    %v980 = vadd.f32 %v964, %v973
    %v981 = vadd.f32 %v965, %v974
    %v982 = vadd.f32 %v966, %v975
    %s983 = sld [smem:[#allocation2 + $0x8a]]
    %v984 = vstv %s983
    %v985 = vmul.f32 %v984, %v297
    %v986 = vmul.f32 %v984, %v298
    %v987 = vmul.f32 %v984, %v299
    %v988 = vmul.f32 %v984, %v300
    %v989 = vmul.f32 %v984, %v301
    %v990 = vmul.f32 %v984, %v302
    %v991 = vmul.f32 %v984, %v303
    %v992 = vadd.f32 %v976, %v985
    %v993 = vadd.f32 %v977, %v986
    %v994 = vadd.f32 %v978, %v987
    %v995 = vadd.f32 %v979, %v988
    %v996 = vadd.f32 %v980, %v989
    %v997 = vadd.f32 %v981, %v990
    %v998 = vadd.f32 %v982, %v991
    %s999 = sld [smem:[#allocation2 + $0x8b]]
    %v1000 = vstv %s999
    %v1001 = vmul.f32 %v1000, %v321
    %v1002 = vmul.f32 %v1000, %v322
    %v1003 = vmul.f32 %v1000, %v323
    %v1004 = vmul.f32 %v1000, %v324
    %v1005 = vmul.f32 %v1000, %v325
    %v1006 = vmul.f32 %v1000, %v326
    %v1007 = vmul.f32 %v1000, %v327
    %v1008 = vadd.f32 %v992, %v1001
    %v1009 = vadd.f32 %v993, %v1002
    %v1010 = vadd.f32 %v994, %v1003
    %v1011 = vadd.f32 %v995, %v1004
    %v1012 = vadd.f32 %v996, %v1005
    %v1013 = vadd.f32 %v997, %v1006
    %v1014 = vadd.f32 %v998, %v1007
    %s1015 = sld [smem:[#allocation2 + $0x8c]]
    %v1016 = vstv %s1015
    %v1017 = vmul.f32 %v1016, %v345
    %v1018 = vmul.f32 %v1016, %v346
    %v1019 = vmul.f32 %v1016, %v347
    %v1020 = vmul.f32 %v1016, %v348
    %v1021 = vmul.f32 %v1016, %v349
    %v1022 = vmul.f32 %v1016, %v350
    %v1023 = vmul.f32 %v1016, %v351
    %v1024 = vadd.f32 %v1008, %v1017
    %v1025 = vadd.f32 %v1009, %v1018
    %v1026 = vadd.f32 %v1010, %v1019
    %v1027 = vadd.f32 %v1011, %v1020
    %v1028 = vadd.f32 %v1012, %v1021
    %v1029 = vadd.f32 %v1013, %v1022
    %v1030 = vadd.f32 %v1014, %v1023
    %s1031 = sld [smem:[#allocation2 + $0x8d]]
    %v1032 = vstv %s1031
    %v1033 = vmul.f32 %v1032, %v369
    %v1034 = vmul.f32 %v1032, %v370
    %v1035 = vmul.f32 %v1032, %v371
    %v1036 = vmul.f32 %v1032, %v372
    %v1037 = vmul.f32 %v1032, %v373
    %v1038 = vmul.f32 %v1032, %v374
    %v1039 = vmul.f32 %v1032, %v375
    %v1040 = vadd.f32 %v1024, %v1033
    %v1041 = vadd.f32 %v1025, %v1034
    %v1042 = vadd.f32 %v1026, %v1035
    %v1043 = vadd.f32 %v1027, %v1036
    %v1044 = vadd.f32 %v1028, %v1037
    %v1045 = vadd.f32 %v1029, %v1038
    %v1046 = vadd.f32 %v1030, %v1039
    %s1047 = sld [smem:[#allocation2 + $0x8e]]
    %v1048 = vstv %s1047
    %v1049 = vmul.f32 %v1048, %v393
    %v1050 = vmul.f32 %v1048, %v394
    %v1051 = vmul.f32 %v1048, %v395
    %v1052 = vmul.f32 %v1048, %v396
    %v1053 = vmul.f32 %v1048, %v397
    %v1054 = vmul.f32 %v1048, %v398
    %v1055 = vmul.f32 %v1048, %v399
    %v1056 = vadd.f32 %v1040, %v1049
    %v1057 = vadd.f32 %v1041, %v1050
    %v1058 = vadd.f32 %v1042, %v1051
    %v1059 = vadd.f32 %v1043, %v1052
    %v1060 = vadd.f32 %v1044, %v1053
    %v1061 = vadd.f32 %v1045, %v1054
    %v1062 = vadd.f32 %v1046, %v1055
    %s1063 = sld [smem:[#allocation2 + $0x8f]]
    %v1064 = vstv %s1063
    %v1065 = vmul.f32 %v1064, %v417
    %v1066 = vmul.f32 %v1064, %v418
    %v1067 = vmul.f32 %v1064, %v419
    %v1068 = vmul.f32 %v1064, %v420
    %v1069 = vmul.f32 %v1064, %v421
    %v1070 = vmul.f32 %v1064, %v422
    %v1071 = vmul.f32 %v1064, %v423
    %v1072 = vadd.f32 %v1056, %v1065
    %v1073 = vadd.f32 %v1057, %v1066
    %v1074 = vadd.f32 %v1058, %v1067
    %v1075 = vadd.f32 %v1059, %v1068
    %v1076 = vadd.f32 %v1060, %v1069
    %v1077 = vadd.f32 %v1061, %v1070
    %v1078 = vadd.f32 %v1062, %v1071
    %s1079 = sld [smem:[#allocation2 + $0x90]]
    %v1080 = vstv %s1079
    %v1081 = vmul.f32 %v1080, %v441
    %v1082 = vmul.f32 %v1080, %v442
    %v1083 = vmul.f32 %v1080, %v443
    %v1084 = vmul.f32 %v1080, %v444
    %v1085 = vmul.f32 %v1080, %v445
    %v1086 = vmul.f32 %v1080, %v446
    %v1087 = vmul.f32 %v1080, %v447
    %v1088 = vadd.f32 %v1072, %v1081
    %v1089 = vadd.f32 %v1073, %v1082
    %v1090 = vadd.f32 %v1074, %v1083
    %v1091 = vadd.f32 %v1075, %v1084
    %v1092 = vadd.f32 %v1076, %v1085
    %v1093 = vadd.f32 %v1077, %v1086
    %v1094 = vadd.f32 %v1078, %v1087
    %s1095 = sld [smem:[#allocation2 + $0x91]]
    %v1096 = vstv %s1095
    %v1097 = vmul.f32 %v1096, %v465
    %v1098 = vmul.f32 %v1096, %v466
    %v1099 = vmul.f32 %v1096, %v467
    %v1100 = vmul.f32 %v1096, %v468
    %v1101 = vmul.f32 %v1096, %v469
    %v1102 = vmul.f32 %v1096, %v470
    %v1103 = vmul.f32 %v1096, %v471
    %v1104 = vadd.f32 %v1088, %v1097
    %v1105 = vadd.f32 %v1089, %v1098
    %v1106 = vadd.f32 %v1090, %v1099
    %v1107 = vadd.f32 %v1091, %v1100
    %v1108 = vadd.f32 %v1092, %v1101
    %v1109 = vadd.f32 %v1093, %v1102
    %v1110 = vadd.f32 %v1094, %v1103
    %s1111 = sld [smem:[#allocation2 + $0x92]]
    %v1112 = vstv %s1111
    %v1113 = vmul.f32 %v1112, %v489
    %v1114 = vmul.f32 %v1112, %v490
    %v1115 = vmul.f32 %v1112, %v491
    %v1116 = vmul.f32 %v1112, %v492
    %v1117 = vmul.f32 %v1112, %v493
    %v1118 = vmul.f32 %v1112, %v494
    %v1119 = vmul.f32 %v1112, %v495
    %v1120 = vadd.f32 %v1104, %v1113
    %v1121 = vadd.f32 %v1105, %v1114
    %v1122 = vadd.f32 %v1106, %v1115
    %v1123 = vadd.f32 %v1107, %v1116
    %v1124 = vadd.f32 %v1108, %v1117
    %v1125 = vadd.f32 %v1109, %v1118
    %v1126 = vadd.f32 %v1110, %v1119
    %s1127 = sld [smem:[#allocation2 + $0x93]]
    %v1128 = vstv %s1127
    %v1129 = vmul.f32 %v1128, %v513
    %v1130 = vmul.f32 %v1128, %v514
    %v1131 = vmul.f32 %v1128, %v515
    %v1132 = vmul.f32 %v1128, %v516
    %v1133 = vmul.f32 %v1128, %v517
    %v1134 = vmul.f32 %v1128, %v518
    %v1135 = vmul.f32 %v1128, %v519
    %v1136 = vadd.f32 %v1120, %v1129
    %v1137 = vadd.f32 %v1121, %v1130
    %v1138 = vadd.f32 %v1122, %v1131
    %v1139 = vadd.f32 %v1123, %v1132
    %v1140 = vadd.f32 %v1124, %v1133
    %v1141 = vadd.f32 %v1125, %v1134
    %v1142 = vadd.f32 %v1126, %v1135
    %s1143 = sld [smem:[#allocation2 + $0x94]]
    %v1144 = vstv %s1143
    %v1145 = vmul.f32 %v1144, %v537
    %v1146 = vmul.f32 %v1144, %v538
    %v1147 = vmul.f32 %v1144, %v539
    %v1148 = vmul.f32 %v1144, %v540
    %v1149 = vmul.f32 %v1144, %v541
    %v1150 = vmul.f32 %v1144, %v542
    %v1151 = vmul.f32 %v1144, %v543
    %v1152 = vadd.f32 %v1136, %v1145
    %v1153 = vadd.f32 %v1137, %v1146
    %v1154 = vadd.f32 %v1138, %v1147
    %v1155 = vadd.f32 %v1139, %v1148
    %v1156 = vadd.f32 %v1140, %v1149
    %v1157 = vadd.f32 %v1141, %v1150
    %v1158 = vadd.f32 %v1142, %v1151
    %s1159 = sld [smem:[#allocation2 + $0x95]]
    %v1160 = vstv %s1159
    %v1161 = vmul.f32 %v1160, %v561
    %v1162 = vmul.f32 %v1160, %v562
    %v1163 = vmul.f32 %v1160, %v563
    %v1164 = vmul.f32 %v1160, %v564
    %v1165 = vmul.f32 %v1160, %v565
    %v1166 = vmul.f32 %v1160, %v566
    %v1167 = vmul.f32 %v1160, %v567
    %v1168 = vadd.f32 %v1152, %v1161
    %v1169 = vadd.f32 %v1153, %v1162
    %v1170 = vadd.f32 %v1154, %v1163
    %v1171 = vadd.f32 %v1155, %v1164
    %v1172 = vadd.f32 %v1156, %v1165
    %v1173 = vadd.f32 %v1157, %v1166
    %v1174 = vadd.f32 %v1158, %v1167
    %s1175 = sld [smem:[#allocation2 + $0x96]]
    %v1176 = vstv %s1175
    %v1177 = vmul.f32 %v1176, %v585
    %v1178 = vmul.f32 %v1176, %v586
    %v1179 = vmul.f32 %v1176, %v587
    %v1180 = vmul.f32 %v1176, %v588
    %v1181 = vmul.f32 %v1176, %v589
    %v1182 = vmul.f32 %v1176, %v590
    %v1183 = vmul.f32 %v1176, %v591
    %v1184 = vadd.f32 %v1168, %v1177
    %v1185 = vadd.f32 %v1169, %v1178
    %v1186 = vadd.f32 %v1170, %v1179
    %v1187 = vadd.f32 %v1171, %v1180
    %v1188 = vadd.f32 %v1172, %v1181
    %v1189 = vadd.f32 %v1173, %v1182
    %v1190 = vadd.f32 %v1174, %v1183
    %s1191 = sld [smem:[#allocation2 + $0x97]]
    %v1192 = vstv %s1191
    %v1193 = vmul.f32 %v1192, %v609
    %v1194 = vmul.f32 %v1192, %v610
    %v1195 = vmul.f32 %v1192, %v611
    %v1196 = vmul.f32 %v1192, %v612
    %v1197 = vmul.f32 %v1192, %v613
    %v1198 = vmul.f32 %v1192, %v614
    %v1199 = vmul.f32 %v1192, %v615
    %v1200 = vadd.f32 %v1184, %v1193
    %v1201 = vadd.f32 %v1185, %v1194
    %v1202 = vadd.f32 %v1186, %v1195
    %v1203 = vadd.f32 %v1187, %v1196
    %v1204 = vadd.f32 %v1188, %v1197
    %v1205 = vadd.f32 %v1189, %v1198
    %v1206 = vadd.f32 %v1190, %v1199
    %s1207 = sld [smem:[#allocation2 + $0x98]]
    %v1208 = vstv %s1207
    %v1209 = vmul.f32 %v1208, %v633
    %v1210 = vmul.f32 %v1208, %v634
    %v1211 = vmul.f32 %v1208, %v635
    %v1212 = vmul.f32 %v1208, %v636
    %v1213 = vmul.f32 %v1208, %v637
    %v1214 = vmul.f32 %v1208, %v638
    %v1215 = vmul.f32 %v1208, %v639
    %v1216 = vadd.f32 %v1200, %v1209
    %v1217 = vadd.f32 %v1201, %v1210
    %v1218 = vadd.f32 %v1202, %v1211
    %v1219 = vadd.f32 %v1203, %v1212
    %v1220 = vadd.f32 %v1204, %v1213
    %v1221 = vadd.f32 %v1205, %v1214
    %v1222 = vadd.f32 %v1206, %v1215
    %s1223 = sld [smem:[#allocation2 + $0x99]]
    %v1224 = vstv %s1223
    %v1225 = vmul.f32 %v1224, %v657
    %v1226 = vmul.f32 %v1224, %v658
    %v1227 = vmul.f32 %v1224, %v659
    %v1228 = vmul.f32 %v1224, %v660
    %v1229 = vmul.f32 %v1224, %v661
    %v1230 = vmul.f32 %v1224, %v662
    %v1231 = vmul.f32 %v1224, %v663
    %v1232 = vadd.f32 %v1216, %v1225
    %v1233 = vadd.f32 %v1217, %v1226
    %v1234 = vadd.f32 %v1218, %v1227
    %v1235 = vadd.f32 %v1219, %v1228
    %v1236 = vadd.f32 %v1220, %v1229
    %v1237 = vadd.f32 %v1221, %v1230
    %v1238 = vadd.f32 %v1222, %v1231
    %s1239 = sld [smem:[#allocation2 + $0x9a]]
    %v1240 = vstv %s1239
    %v1241 = vmul.f32 %v1240, %v681
    %v1242 = vmul.f32 %v1240, %v682
    %v1243 = vmul.f32 %v1240, %v683
    %v1244 = vmul.f32 %v1240, %v684
    %v1245 = vmul.f32 %v1240, %v685
    %v1246 = vmul.f32 %v1240, %v686
    %v1247 = vmul.f32 %v1240, %v687
    %v1248 = vadd.f32 %v1232, %v1241
    %v1249 = vadd.f32 %v1233, %v1242
    %v1250 = vadd.f32 %v1234, %v1243
    %v1251 = vadd.f32 %v1235, %v1244
    %v1252 = vadd.f32 %v1236, %v1245
    %v1253 = vadd.f32 %v1237, %v1246
    %v1254 = vadd.f32 %v1238, %v1247
    %s1255 = sld [smem:[#allocation2 + $0x9b]]
    %v1256 = vstv %s1255
    %v1257 = vmul.f32 %v1256, %v705
    %v1258 = vmul.f32 %v1256, %v706
    %v1259 = vmul.f32 %v1256, %v707
    %v1260 = vmul.f32 %v1256, %v708
    %v1261 = vmul.f32 %v1256, %v709
    %v1262 = vmul.f32 %v1256, %v710
    %v1263 = vmul.f32 %v1256, %v711
    %v1264 = vadd.f32 %v1248, %v1257
    %v1265 = vadd.f32 %v1249, %v1258
    %v1266 = vadd.f32 %v1250, %v1259
    %v1267 = vadd.f32 %v1251, %v1260
    %v1268 = vadd.f32 %v1252, %v1261
    %v1269 = vadd.f32 %v1253, %v1262
    %v1270 = vadd.f32 %v1254, %v1263
    %s1271 = sld [smem:[#allocation2 + $0x9c]]
    %v1272 = vstv %s1271
    %v1273 = vmul.f32 %v1272, %v729
    %v1274 = vmul.f32 %v1272, %v730
    %v1275 = vmul.f32 %v1272, %v731
    %v1276 = vmul.f32 %v1272, %v732
    %v1277 = vmul.f32 %v1272, %v733
    %v1278 = vmul.f32 %v1272, %v734
    %v1279 = vmul.f32 %v1272, %v735
    %v1280 = vadd.f32 %v1264, %v1273
    %v1281 = vadd.f32 %v1265, %v1274
    %v1282 = vadd.f32 %v1266, %v1275
    %v1283 = vadd.f32 %v1267, %v1276
    %v1284 = vadd.f32 %v1268, %v1277
    %v1285 = vadd.f32 %v1269, %v1278
    %v1286 = vadd.f32 %v1270, %v1279
    %s1287 = sld [smem:[#allocation2 + $0x9d]]
    %v1288 = vstv %s1287
    %v1289 = vmul.f32 %v1288, %v753
    %v1290 = vmul.f32 %v1288, %v754
    %v1291 = vmul.f32 %v1288, %v755
    %v1292 = vmul.f32 %v1288, %v756
    %v1293 = vmul.f32 %v1288, %v757
    %v1294 = vmul.f32 %v1288, %v758
    %v1295 = vmul.f32 %v1288, %v759
    %v1296 = vadd.f32 %v1280, %v1289
    %v1297 = vadd.f32 %v1281, %v1290
    %v1298 = vadd.f32 %v1282, %v1291
    %v1299 = vadd.f32 %v1283, %v1292
    %v1300 = vadd.f32 %v1284, %v1293
    %v1301 = vadd.f32 %v1285, %v1294
    %v1302 = vadd.f32 %v1286, %v1295
    %s1303 = sld [smem:[#allocation2 + $0x9e]]
    %v1304 = vstv %s1303
    %v1305 = vmul.f32 %v1304, %v777
    %v1306 = vmul.f32 %v1304, %v778
    %v1307 = vmul.f32 %v1304, %v779
    %v1308 = vmul.f32 %v1304, %v780
    %v1309 = vmul.f32 %v1304, %v781
    %v1310 = vmul.f32 %v1304, %v782
    %v1311 = vmul.f32 %v1304, %v783
    %v1312 = vadd.f32 %v1296, %v1305
    %v1313 = vadd.f32 %v1297, %v1306
    %v1314 = vadd.f32 %v1298, %v1307
    %v1315 = vadd.f32 %v1299, %v1308
    %v1316 = vadd.f32 %v1300, %v1309
    %v1317 = vadd.f32 %v1301, %v1310
    %v1318 = vadd.f32 %v1302, %v1311
    %s1319 = sld [smem:[#allocation2 + $0x9f]]
    %v1320 = vstv %s1319
    %v1321 = vmul.f32 %v1320, %v801
    %v1322 = vmul.f32 %v1320, %v802
    %v1323 = vmul.f32 %v1320, %v803
    %v1324 = vmul.f32 %v1320, %v804
    %v1325 = vmul.f32 %v1320, %v805
    %v1326 = vmul.f32 %v1320, %v806
    %v1327 = vmul.f32 %v1320, %v807
    %v1328 = vadd.f32 %v1312, %v1321
    %v1329 = vadd.f32 %v1313, %v1322
    %v1330 = vadd.f32 %v1314, %v1323
    %v1331 = vadd.f32 %v1315, %v1324
    %v1332 = vadd.f32 %v1316, %v1325
    %v1333 = vadd.f32 %v1317, %v1326
    %v1334 = vadd.f32 %v1318, %v1327
    %1342 = vrot.lane.b32.xlu0 %v1328, 64
    %v1343 = vpop.permute.xlu0 %1342
    %1344 = vrot.lane.b32.xlu0 %v1329, 64
    %v1345 = vpop.permute.xlu0 %1344
    %1346 = vrot.lane.b32.xlu0 %v1330, 64
    %v1347 = vpop.permute.xlu0 %1346
    %1348 = vrot.lane.b32.xlu0 %v1331, 64
    %v1349 = vpop.permute.xlu0 %1348
    %1350 = vrot.lane.b32.xlu0 %v1332, 64
    %v1351 = vpop.permute.xlu0 %1350
    %1352 = vrot.lane.b32.xlu0 %v1333, 64
    %v1353 = vpop.permute.xlu0 %1352
    %1354 = vrot.lane.b32.xlu0 %v1334, 64
    %v1355 = vpop.permute.xlu0 %1354
    %vm1363 = vcmask 523264
    %v1364 = vsel %vm1363, %v816, %v1343
    %v1365 = vsel %vm1363, %v817, %v1345
    %v1366 = vsel %vm1363, %v818, %v1347
    %v1367 = vsel %vm1363, %v819, %v1349
    %v1368 = vsel %vm1363, %v820, %v1351
    %v1369 = vsel %vm1363, %v821, %v1353
    %v1370 = vsel %vm1363, %v822, %v1355
    %v1371 = vpack.c.bf16 %v1365, %v1364
    %v1372 = vpack.c.bf16 %v1367, %v1366
    %v1373 = vpack.c.bf16 %v1369, %v1368
    %v1374 = vpack.c.bf16 %v1370, %v1370
    %v1375 = vld [vmem:[%s5] sm:$0xff]
    %v1376 = vld [vmem:[%s5 + $0x8] sm:$0xff]
    %v1377 = vld [vmem:[%s5 + $0x10] sm:$0xff]
    %v1378 = vld [vmem:[%s5 + $0x18] sm:$0xff]
    %v1379 = vld [vmem:[%s5 + $0x20] sm:$0xf]
    %v1380 = vld [vmem:[%s5 + $0x24] sm:$0xff]
    %v1381 = vld [vmem:[%s5 + $0x2c] sm:$0xff]
    %v1382 = vld [vmem:[%s5 + $0x34] sm:$0xff]
    %v1383 = vld [vmem:[%s5 + $0x3c] sm:$0xff]
    %v1384 = vld [vmem:[%s5 + $0x44] sm:$0xf]
    %v1385 = vld [vmem:[%s5 + $0x48] sm:$0xff]
    %v1386 = vld [vmem:[%s5 + $0x50] sm:$0xff]
    %v1387 = vld [vmem:[%s5 + $0x58] sm:$0xff]
    %v1388 = vld [vmem:[%s5 + $0x60] sm:$0xff]
    %v1389 = vld [vmem:[%s5 + $0x68] sm:$0xf]
    %v1390 = vld [vmem:[%s5 + $0x6c] sm:$0xff]
    %v1391 = vld [vmem:[%s5 + $0x74] sm:$0xff]
    %v1392 = vld [vmem:[%s5 + $0x7c] sm:$0xff]
    %v1393 = vld [vmem:[%s5 + $0x84] sm:$0xff]
    %v1394 = vld [vmem:[%s5 + $0x8c] sm:$0xf]
    %v1395 = vld [vmem:[%s5 + $0x90] sm:$0xff]
    %v1396 = vld [vmem:[%s5 + $0x98] sm:$0xff]
    %v1397 = vld [vmem:[%s5 + $0xa0] sm:$0xff]
    %v1398 = vld [vmem:[%s5 + $0xa8] sm:$0xff]
    %v1399 = vld [vmem:[%s5 + $0xb0] sm:$0xf]
    %v1400 = vld [vmem:[%s5 + $0xb4] sm:$0xff]
    %v1401 = vld [vmem:[%s5 + $0xbc] sm:$0xff]
    %v1402 = vld [vmem:[%s5 + $0xc4] sm:$0xff]
    %v1403 = vld [vmem:[%s5 + $0xcc] sm:$0xff]
    %v1404 = vld [vmem:[%s5 + $0xd4] sm:$0xf]
    %v1405 = vld [vmem:[%s5 + $0xd8] sm:$0xff]
    %v1406 = vld [vmem:[%s5 + $0xe0] sm:$0xff]
    %v1407 = vld [vmem:[%s5 + $0xe8] sm:$0xff]
    %v1408 = vld [vmem:[%s5 + $0xf0] sm:$0xff]
    %v1409 = vld [vmem:[%s5 + $0xf8] sm:$0xf]
    %v1410 = vld [vmem:[%s5 + $0xfc] sm:$0xff]
    %v1411 = vld [vmem:[%s5 + $0x104] sm:$0xff]
    %v1412 = vld [vmem:[%s5 + $0x10c] sm:$0xff]
    %v1413 = vld [vmem:[%s5 + $0x114] sm:$0xff]
    %v1414 = vld [vmem:[%s5 + $0x11c] sm:$0xf]
    %v1415 = vld [vmem:[%s5 + $0x120] sm:$0xff]
    %v1416 = vld [vmem:[%s5 + $0x128] sm:$0xff]
    %v1417 = vld [vmem:[%s5 + $0x130] sm:$0xff]
    %v1418 = vld [vmem:[%s5 + $0x138] sm:$0xff]
    %v1419 = vld [vmem:[%s5 + $0x140] sm:$0xf]
    %v1420 = vld [vmem:[%s5 + $0x144] sm:$0xff]
    %v1421 = vld [vmem:[%s5 + $0x14c] sm:$0xff]
    %v1422 = vld [vmem:[%s5 + $0x154] sm:$0xff]
    %v1423 = vld [vmem:[%s5 + $0x15c] sm:$0xff]
    %v1424 = vld [vmem:[%s5 + $0x164] sm:$0xf]
    %v1425 = vld [vmem:[%s5 + $0x168] sm:$0xff]
    %v1426 = vld [vmem:[%s5 + $0x170] sm:$0xff]
    %v1427 = vld [vmem:[%s5 + $0x178] sm:$0xff]
    %v1428 = vld [vmem:[%s5 + $0x180] sm:$0xff]
    %v1429 = vld [vmem:[%s5 + $0x188] sm:$0xf]
    %v1430 = vld [vmem:[%s5 + $0x18c] sm:$0xff]
    %v1431 = vld [vmem:[%s5 + $0x194] sm:$0xff]
    %v1432 = vld [vmem:[%s5 + $0x19c] sm:$0xff]
    %v1433 = vld [vmem:[%s5 + $0x1a4] sm:$0xff]
    %v1434 = vld [vmem:[%s5 + $0x1ac] sm:$0xf]
    %v1435 = vld [vmem:[%s5 + $0x1b0] sm:$0xff]
    %v1436 = vld [vmem:[%s5 + $0x1b8] sm:$0xff]
    %v1437 = vld [vmem:[%s5 + $0x1c0] sm:$0xff]
    %v1438 = vld [vmem:[%s5 + $0x1c8] sm:$0xff]
    %v1439 = vld [vmem:[%s5 + $0x1d0] sm:$0xf]
    %v1440 = vld [vmem:[%s5 + $0x1d4] sm:$0xff]
    %v1441 = vld [vmem:[%s5 + $0x1dc] sm:$0xff]
    %v1442 = vld [vmem:[%s5 + $0x1e4] sm:$0xff]
    %v1443 = vld [vmem:[%s5 + $0x1ec] sm:$0xff]
    %v1444 = vld [vmem:[%s5 + $0x1f4] sm:$0xf]
    %v1445 = vld [vmem:[%s5 + $0x1f8] sm:$0xff]
    %v1446 = vld [vmem:[%s5 + $0x200] sm:$0xff]
    %v1447 = vld [vmem:[%s5 + $0x208] sm:$0xff]
    %v1448 = vld [vmem:[%s5 + $0x210] sm:$0xff]
    %v1449 = vld [vmem:[%s5 + $0x218] sm:$0xf]
    %v1450 = vld [vmem:[%s5 + $0x21c] sm:$0xff]
    %v1451 = vld [vmem:[%s5 + $0x224] sm:$0xff]
    %v1452 = vld [vmem:[%s5 + $0x22c] sm:$0xff]
    %v1453 = vld [vmem:[%s5 + $0x234] sm:$0xff]
    %v1454 = vld [vmem:[%s5 + $0x23c] sm:$0xf]
    %v1535 = vunpack.c.l.b16 %v1375
    %v1536 = vunpack.c.h.b16 %v1375
    %v1537 = vunpack.c.l.b16 %v1376
    %v1538 = vunpack.c.h.b16 %v1376
    %v1539 = vunpack.c.l.b16 %v1377
    %v1540 = vunpack.c.h.b16 %v1377
    %v1541 = vunpack.c.l.b16 %v1378
    %v1542 = vunpack.c.h.b16 %v1378
    %v1543 = vunpack.c.l.b16 %v1379
    %v1544 = vunpack.c.l.b16 %v1380
    %v1545 = vunpack.c.h.b16 %v1380
    %v1546 = vunpack.c.l.b16 %v1381
    %v1547 = vunpack.c.h.b16 %v1381
    %v1548 = vunpack.c.l.b16 %v1382
    %v1549 = vunpack.c.h.b16 %v1382
    %v1550 = vunpack.c.l.b16 %v1383
    %v1551 = vunpack.c.h.b16 %v1383
    %v1552 = vunpack.c.l.b16 %v1384
    %v1553 = vunpack.c.l.b16 %v1385
    %v1554 = vunpack.c.h.b16 %v1385
    %v1555 = vunpack.c.l.b16 %v1386
    %v1556 = vunpack.c.h.b16 %v1386
    %v1557 = vunpack.c.l.b16 %v1387
    %v1558 = vunpack.c.h.b16 %v1387
    %v1559 = vunpack.c.l.b16 %v1388
    %v1560 = vunpack.c.h.b16 %v1388
    %v1561 = vunpack.c.l.b16 %v1389
    %v1562 = vunpack.c.l.b16 %v1390
    %v1563 = vunpack.c.h.b16 %v1390
    %v1564 = vunpack.c.l.b16 %v1391
    %v1565 = vunpack.c.h.b16 %v1391
    %v1566 = vunpack.c.l.b16 %v1392
    %v1567 = vunpack.c.h.b16 %v1392
    %v1568 = vunpack.c.l.b16 %v1393
    %v1569 = vunpack.c.h.b16 %v1393
    %v1570 = vunpack.c.l.b16 %v1394
    %v1571 = vunpack.c.l.b16 %v1395
    %v1572 = vunpack.c.h.b16 %v1395
    %v1573 = vunpack.c.l.b16 %v1396
    %v1574 = vunpack.c.h.b16 %v1396
    %v1575 = vunpack.c.l.b16 %v1397
    %v1576 = vunpack.c.h.b16 %v1397
    %v1577 = vunpack.c.l.b16 %v1398
    %v1578 = vunpack.c.h.b16 %v1398
    %v1579 = vunpack.c.l.b16 %v1399
    %v1580 = vunpack.c.l.b16 %v1400
    %v1581 = vunpack.c.h.b16 %v1400
    %v1582 = vunpack.c.l.b16 %v1401
    %v1583 = vunpack.c.h.b16 %v1401
    %v1584 = vunpack.c.l.b16 %v1402
    %v1585 = vunpack.c.h.b16 %v1402
    %v1586 = vunpack.c.l.b16 %v1403
    %v1587 = vunpack.c.h.b16 %v1403
    %v1588 = vunpack.c.l.b16 %v1404
    %v1589 = vunpack.c.l.b16 %v1405
    %v1590 = vunpack.c.h.b16 %v1405
    %v1591 = vunpack.c.l.b16 %v1406
    %v1592 = vunpack.c.h.b16 %v1406
    %v1593 = vunpack.c.l.b16 %v1407
    %v1594 = vunpack.c.h.b16 %v1407
    %v1595 = vunpack.c.l.b16 %v1408
    %v1596 = vunpack.c.h.b16 %v1408
    %v1597 = vunpack.c.l.b16 %v1409
    %v1598 = vunpack.c.l.b16 %v1410
    %v1599 = vunpack.c.h.b16 %v1410
    %v1600 = vunpack.c.l.b16 %v1411
    %v1601 = vunpack.c.h.b16 %v1411
    %v1602 = vunpack.c.l.b16 %v1412
    %v1603 = vunpack.c.h.b16 %v1412
    %v1604 = vunpack.c.l.b16 %v1413
    %v1605 = vunpack.c.h.b16 %v1413
    %v1606 = vunpack.c.l.b16 %v1414
    %v1607 = vunpack.c.l.b16 %v1415
    %v1608 = vunpack.c.h.b16 %v1415
    %v1609 = vunpack.c.l.b16 %v1416
    %v1610 = vunpack.c.h.b16 %v1416
    %v1611 = vunpack.c.l.b16 %v1417
    %v1612 = vunpack.c.h.b16 %v1417
    %v1613 = vunpack.c.l.b16 %v1418
    %v1614 = vunpack.c.h.b16 %v1418
    %v1615 = vunpack.c.l.b16 %v1419
    %v1616 = vunpack.c.l.b16 %v1420
    %v1617 = vunpack.c.h.b16 %v1420
    %v1618 = vunpack.c.l.b16 %v1421
    %v1619 = vunpack.c.h.b16 %v1421
    %v1620 = vunpack.c.l.b16 %v1422
    %v1621 = vunpack.c.h.b16 %v1422
    %v1622 = vunpack.c.l.b16 %v1423
    %v1623 = vunpack.c.h.b16 %v1423
    %v1624 = vunpack.c.l.b16 %v1424
    %v1625 = vunpack.c.l.b16 %v1425
    %v1626 = vunpack.c.h.b16 %v1425
    %v1627 = vunpack.c.l.b16 %v1426
    %v1628 = vunpack.c.h.b16 %v1426
    %v1629 = vunpack.c.l.b16 %v1427
    %v1630 = vunpack.c.h.b16 %v1427
    %v1631 = vunpack.c.l.b16 %v1428
    %v1632 = vunpack.c.h.b16 %v1428
    %v1633 = vunpack.c.l.b16 %v1429
    %v1634 = vunpack.c.l.b16 %v1430
    %v1635 = vunpack.c.h.b16 %v1430
    %v1636 = vunpack.c.l.b16 %v1431
    %v1637 = vunpack.c.h.b16 %v1431
    %v1638 = vunpack.c.l.b16 %v1432
    %v1639 = vunpack.c.h.b16 %v1432
    %v1640 = vunpack.c.l.b16 %v1433
    %v1641 = vunpack.c.h.b16 %v1433
    %v1642 = vunpack.c.l.b16 %v1434
    %v1643 = vunpack.c.l.b16 %v1435
    %v1644 = vunpack.c.h.b16 %v1435
    %v1645 = vunpack.c.l.b16 %v1436
    %v1646 = vunpack.c.h.b16 %v1436
    %v1647 = vunpack.c.l.b16 %v1437
    %v1648 = vunpack.c.h.b16 %v1437
    %v1649 = vunpack.c.l.b16 %v1438
    %v1650 = vunpack.c.h.b16 %v1438
    %v1651 = vunpack.c.l.b16 %v1439
    %v1652 = vunpack.c.l.b16 %v1440
    %v1653 = vunpack.c.h.b16 %v1440
    %v1654 = vunpack.c.l.b16 %v1441
    %v1655 = vunpack.c.h.b16 %v1441
    %v1656 = vunpack.c.l.b16 %v1442
    %v1657 = vunpack.c.h.b16 %v1442
    %v1658 = vunpack.c.l.b16 %v1443
    %v1659 = vunpack.c.h.b16 %v1443
    %v1660 = vunpack.c.l.b16 %v1444
    %v1661 = vunpack.c.l.b16 %v1445
    %v1662 = vunpack.c.h.b16 %v1445
    %v1663 = vunpack.c.l.b16 %v1446
    %v1664 = vunpack.c.h.b16 %v1446
    %v1665 = vunpack.c.l.b16 %v1447
    %v1666 = vunpack.c.h.b16 %v1447
    %v1667 = vunpack.c.l.b16 %v1448
    %v1668 = vunpack.c.h.b16 %v1448
    %v1669 = vunpack.c.l.b16 %v1449
    %v1670 = vunpack.c.l.b16 %v1450
    %v1671 = vunpack.c.h.b16 %v1450
    %v1672 = vunpack.c.l.b16 %v1451
    %v1673 = vunpack.c.h.b16 %v1451
    %v1674 = vunpack.c.l.b16 %v1452
    %v1675 = vunpack.c.h.b16 %v1452
    %v1676 = vunpack.c.l.b16 %v1453
    %v1677 = vunpack.c.h.b16 %v1453
    %v1678 = vunpack.c.l.b16 %v1454
    %v1679 = vpack.c.b16 %v1544, %v1535
    %v1680 = vpack.c.b16 %v1545, %v1536
    %v1681 = vpack.c.b16 %v1546, %v1537
    %v1682 = vpack.c.b16 %v1547, %v1538
    %v1683 = vpack.c.b16 %v1548, %v1539
    %v1684 = vpack.c.b16 %v1549, %v1540
    %v1685 = vpack.c.b16 %v1550, %v1541
    %v1686 = vpack.c.b16 %v1551, %v1542
    %v1687 = vpack.c.b16 %v1552, %v1543
    %v1688 = vpack.c.b16 %v1562, %v1553
    %v1689 = vpack.c.b16 %v1563, %v1554
    %v1690 = vpack.c.b16 %v1564, %v1555
    %v1691 = vpack.c.b16 %v1565, %v1556
    %v1692 = vpack.c.b16 %v1566, %v1557
    %v1693 = vpack.c.b16 %v1567, %v1558
    %v1694 = vpack.c.b16 %v1568, %v1559
    %v1695 = vpack.c.b16 %v1569, %v1560
    %v1696 = vpack.c.b16 %v1570, %v1561
    %v1697 = vpack.c.b16 %v1580, %v1571
    %v1698 = vpack.c.b16 %v1581, %v1572
    %v1699 = vpack.c.b16 %v1582, %v1573
    %v1700 = vpack.c.b16 %v1583, %v1574
    %v1701 = vpack.c.b16 %v1584, %v1575
    %v1702 = vpack.c.b16 %v1585, %v1576
    %v1703 = vpack.c.b16 %v1586, %v1577
    %v1704 = vpack.c.b16 %v1587, %v1578
    %v1705 = vpack.c.b16 %v1588, %v1579
    %v1706 = vpack.c.b16 %v1598, %v1589
    %v1707 = vpack.c.b16 %v1599, %v1590
    %v1708 = vpack.c.b16 %v1600, %v1591
    %v1709 = vpack.c.b16 %v1601, %v1592
    %v1710 = vpack.c.b16 %v1602, %v1593
    %v1711 = vpack.c.b16 %v1603, %v1594
    %v1712 = vpack.c.b16 %v1604, %v1595
    %v1713 = vpack.c.b16 %v1605, %v1596
    %v1714 = vpack.c.b16 %v1606, %v1597
    %v1715 = vpack.c.b16 %v1616, %v1607
    %v1716 = vpack.c.b16 %v1617, %v1608
    %v1717 = vpack.c.b16 %v1618, %v1609
    %v1718 = vpack.c.b16 %v1619, %v1610
    %v1719 = vpack.c.b16 %v1620, %v1611
    %v1720 = vpack.c.b16 %v1621, %v1612
    %v1721 = vpack.c.b16 %v1622, %v1613
    %v1722 = vpack.c.b16 %v1623, %v1614
    %v1723 = vpack.c.b16 %v1624, %v1615
    %v1724 = vpack.c.b16 %v1634, %v1625
    %v1725 = vpack.c.b16 %v1635, %v1626
    %v1726 = vpack.c.b16 %v1636, %v1627
    %v1727 = vpack.c.b16 %v1637, %v1628
    %v1728 = vpack.c.b16 %v1638, %v1629
    %v1729 = vpack.c.b16 %v1639, %v1630
    %v1730 = vpack.c.b16 %v1640, %v1631
    %v1731 = vpack.c.b16 %v1641, %v1632
    %v1732 = vpack.c.b16 %v1642, %v1633
    %v1733 = vpack.c.b16 %v1652, %v1643
    %v1734 = vpack.c.b16 %v1653, %v1644
    %v1735 = vpack.c.b16 %v1654, %v1645
    %v1736 = vpack.c.b16 %v1655, %v1646
    %v1737 = vpack.c.b16 %v1656, %v1647
    %v1738 = vpack.c.b16 %v1657, %v1648
    %v1739 = vpack.c.b16 %v1658, %v1649
    %v1740 = vpack.c.b16 %v1659, %v1650
    %v1741 = vpack.c.b16 %v1660, %v1651
    %v1742 = vpack.c.b16 %v1670, %v1661
    %v1743 = vpack.c.b16 %v1671, %v1662
    %v1744 = vpack.c.b16 %v1672, %v1663
    %v1745 = vpack.c.b16 %v1673, %v1664
    %v1746 = vpack.c.b16 %v1674, %v1665
    %v1747 = vpack.c.b16 %v1675, %v1666
    %v1748 = vpack.c.b16 %v1676, %v1667
    %v1749 = vpack.c.b16 %v1677, %v1668
    %v1750 = vpack.c.b16 %v1678, %v1669
    %1823 = vmatpush.bf16.msra.mxu0 %v1742
    %1824 = vmatpush.bf16.msra.mxu0 %v1733
    %1825 = vmatpush.bf16.msra.mxu0 %v1724
    %1826 = vmatpush.bf16.msra.mxu0 %v1715
    %1827 = vmatpush.bf16.msra.mxu0 %v1706
    %1828 = vmatpush.bf16.msra.mxu0 %v1697
    %1829 = vmatpush.bf16.msra.mxu0 %v1688
    %1830 = vmatpush.bf16.msra.mxu0 %v1679
    %1831 = vmatmul.bf16.gmra.mxu0 %v1371
    %v1832 = vpop.f32.mrf.mxu0
    %v1833 = vadd.f32 0.0, %v1832
    %v1834 = vpop.f32.mrf.mxu0
    %v1835 = vadd.f32 0.0, %v1834
    %1836 = vmatmul.bf16.gmra.mxu0 %v1372
    %v1837 = vpop.f32.mrf.mxu0
    %v1838 = vadd.f32 0.0, %v1837
    %v1839 = vpop.f32.mrf.mxu0
    %v1840 = vadd.f32 0.0, %v1839
    %1841 = vmatmul.bf16.gmra.mxu0 %v1373
    %v1842 = vpop.f32.mrf.mxu0
    %v1843 = vadd.f32 0.0, %v1842
    %v1844 = vpop.f32.mrf.mxu0
    %v1845 = vadd.f32 0.0, %v1844
    %1846 = vmatmul.bf16.gmra.mxu0 %v1374
    %v1847 = vpop.f32.mrf.mxu0
    %v1848 = vadd.f32 0.0, %v1847
    %v1849 = vpop.f32.mrf.mxu0
    %1850 = vdwg.mxu0
    %1851 = vmatpush.bf16.msra.mxu0 %v1743
    %1852 = vmatpush.bf16.msra.mxu0 %v1734
    %1853 = vmatpush.bf16.msra.mxu0 %v1725
    %1854 = vmatpush.bf16.msra.mxu0 %v1716
    %1855 = vmatpush.bf16.msra.mxu0 %v1707
    %1856 = vmatpush.bf16.msra.mxu0 %v1698
    %1857 = vmatpush.bf16.msra.mxu0 %v1689
    %1858 = vmatpush.bf16.msra.mxu0 %v1680
    %1859 = vmatmul.bf16.gmra.mxu0 %v1371
    %v1860 = vpop.f32.mrf.mxu0
    %v1861 = vadd.f32 0.0, %v1860
    %v1862 = vpop.f32.mrf.mxu0
    %v1863 = vadd.f32 0.0, %v1862
    %1864 = vmatmul.bf16.gmra.mxu0 %v1372
    %v1865 = vpop.f32.mrf.mxu0
    %v1866 = vadd.f32 0.0, %v1865
    %v1867 = vpop.f32.mrf.mxu0
    %v1868 = vadd.f32 0.0, %v1867
    %1869 = vmatmul.bf16.gmra.mxu0 %v1373
    %v1870 = vpop.f32.mrf.mxu0
    %v1871 = vadd.f32 0.0, %v1870
    %v1872 = vpop.f32.mrf.mxu0
    %v1873 = vadd.f32 0.0, %v1872
    %1874 = vmatmul.bf16.gmra.mxu0 %v1374
    %v1875 = vpop.f32.mrf.mxu0
    %v1876 = vadd.f32 0.0, %v1875
    %v1877 = vpop.f32.mrf.mxu0
    %1878 = vdwg.mxu0
    %1879 = vmatpush.bf16.msra.mxu0 %v1744
    %1880 = vmatpush.bf16.msra.mxu0 %v1735
    %1881 = vmatpush.bf16.msra.mxu0 %v1726
    %1882 = vmatpush.bf16.msra.mxu0 %v1717
    %1883 = vmatpush.bf16.msra.mxu0 %v1708
    %1884 = vmatpush.bf16.msra.mxu0 %v1699
    %1885 = vmatpush.bf16.msra.mxu0 %v1690
    %1886 = vmatpush.bf16.msra.mxu0 %v1681
    %1887 = vmatmul.bf16.gmra.mxu0 %v1371
    %v1888 = vpop.f32.mrf.mxu0
    %v1889 = vadd.f32 0.0, %v1888
    %v1890 = vpop.f32.mrf.mxu0
    %v1891 = vadd.f32 0.0, %v1890
    %1892 = vmatmul.bf16.gmra.mxu0 %v1372
    %v1893 = vpop.f32.mrf.mxu0
    %v1894 = vadd.f32 0.0, %v1893
    %v1895 = vpop.f32.mrf.mxu0
    %v1896 = vadd.f32 0.0, %v1895
    %1897 = vmatmul.bf16.gmra.mxu0 %v1373
    %v1898 = vpop.f32.mrf.mxu0
    %v1899 = vadd.f32 0.0, %v1898
    %v1900 = vpop.f32.mrf.mxu0
    %v1901 = vadd.f32 0.0, %v1900
    %1902 = vmatmul.bf16.gmra.mxu0 %v1374
    %v1903 = vpop.f32.mrf.mxu0
    %v1904 = vadd.f32 0.0, %v1903
    %v1905 = vpop.f32.mrf.mxu0
    %1906 = vdwg.mxu0
    %1907 = vmatpush.bf16.msra.mxu0 %v1745
    %1908 = vmatpush.bf16.msra.mxu0 %v1736
    %1909 = vmatpush.bf16.msra.mxu0 %v1727
    %1910 = vmatpush.bf16.msra.mxu0 %v1718
    %1911 = vmatpush.bf16.msra.mxu0 %v1709
    %1912 = vmatpush.bf16.msra.mxu0 %v1700
    %1913 = vmatpush.bf16.msra.mxu0 %v1691
    %1914 = vmatpush.bf16.msra.mxu0 %v1682
    %1915 = vmatmul.bf16.gmra.mxu0 %v1371
    %v1916 = vpop.f32.mrf.mxu0
    %v1917 = vadd.f32 0.0, %v1916
    %v1918 = vpop.f32.mrf.mxu0
    %v1919 = vadd.f32 0.0, %v1918
    %1920 = vmatmul.bf16.gmra.mxu0 %v1372
    %v1921 = vpop.f32.mrf.mxu0
    %v1922 = vadd.f32 0.0, %v1921
    %v1923 = vpop.f32.mrf.mxu0
    %v1924 = vadd.f32 0.0, %v1923
    %1925 = vmatmul.bf16.gmra.mxu0 %v1373
    %v1926 = vpop.f32.mrf.mxu0
    %v1927 = vadd.f32 0.0, %v1926
    %v1928 = vpop.f32.mrf.mxu0
    %v1929 = vadd.f32 0.0, %v1928
    %1930 = vmatmul.bf16.gmra.mxu0 %v1374
    %v1931 = vpop.f32.mrf.mxu0
    %v1932 = vadd.f32 0.0, %v1931
    %v1933 = vpop.f32.mrf.mxu0
    %1934 = vdwg.mxu0
    %1935 = vmatpush.bf16.msra.mxu0 %v1746
    %1936 = vmatpush.bf16.msra.mxu0 %v1737
    %1937 = vmatpush.bf16.msra.mxu0 %v1728
    %1938 = vmatpush.bf16.msra.mxu0 %v1719
    %1939 = vmatpush.bf16.msra.mxu0 %v1710
    %1940 = vmatpush.bf16.msra.mxu0 %v1701
    %1941 = vmatpush.bf16.msra.mxu0 %v1692
    %1942 = vmatpush.bf16.msra.mxu0 %v1683
    %1943 = vmatmul.bf16.gmra.mxu0 %v1371
    %v1944 = vpop.f32.mrf.mxu0
    %v1945 = vadd.f32 0.0, %v1944
    %v1946 = vpop.f32.mrf.mxu0
    %v1947 = vadd.f32 0.0, %v1946
    %1948 = vmatmul.bf16.gmra.mxu0 %v1372
    %v1949 = vpop.f32.mrf.mxu0
    %v1950 = vadd.f32 0.0, %v1949
    %v1951 = vpop.f32.mrf.mxu0
    %v1952 = vadd.f32 0.0, %v1951
    %1953 = vmatmul.bf16.gmra.mxu0 %v1373
    %v1954 = vpop.f32.mrf.mxu0
    %v1955 = vadd.f32 0.0, %v1954
    %v1956 = vpop.f32.mrf.mxu0
    %v1957 = vadd.f32 0.0, %v1956
    %1958 = vmatmul.bf16.gmra.mxu0 %v1374
    %v1959 = vpop.f32.mrf.mxu0
    %v1960 = vadd.f32 0.0, %v1959
    %v1961 = vpop.f32.mrf.mxu0
    %1962 = vdwg.mxu0
    %1963 = vmatpush.bf16.msra.mxu0 %v1747
    %1964 = vmatpush.bf16.msra.mxu0 %v1738
    %1965 = vmatpush.bf16.msra.mxu0 %v1729
    %1966 = vmatpush.bf16.msra.mxu0 %v1720
    %1967 = vmatpush.bf16.msra.mxu0 %v1711
    %1968 = vmatpush.bf16.msra.mxu0 %v1702
    %1969 = vmatpush.bf16.msra.mxu0 %v1693
    %1970 = vmatpush.bf16.msra.mxu0 %v1684
    %1971 = vmatmul.bf16.gmra.mxu0 %v1371
    %v1972 = vpop.f32.mrf.mxu0
    %v1973 = vadd.f32 0.0, %v1972
    %v1974 = vpop.f32.mrf.mxu0
    %v1975 = vadd.f32 0.0, %v1974
    %1976 = vmatmul.bf16.gmra.mxu0 %v1372
    %v1977 = vpop.f32.mrf.mxu0
    %v1978 = vadd.f32 0.0, %v1977
    %v1979 = vpop.f32.mrf.mxu0
    %v1980 = vadd.f32 0.0, %v1979
    %1981 = vmatmul.bf16.gmra.mxu0 %v1373
    %v1982 = vpop.f32.mrf.mxu0
    %v1983 = vadd.f32 0.0, %v1982
    %v1984 = vpop.f32.mrf.mxu0
    %v1985 = vadd.f32 0.0, %v1984
    %1986 = vmatmul.bf16.gmra.mxu0 %v1374
    %v1987 = vpop.f32.mrf.mxu0
    %v1988 = vadd.f32 0.0, %v1987
    %v1989 = vpop.f32.mrf.mxu0
    %1990 = vdwg.mxu0
    %1991 = vmatpush.bf16.msra.mxu0 %v1748
    %1992 = vmatpush.bf16.msra.mxu0 %v1739
    %1993 = vmatpush.bf16.msra.mxu0 %v1730
    %1994 = vmatpush.bf16.msra.mxu0 %v1721
    %1995 = vmatpush.bf16.msra.mxu0 %v1712
    %1996 = vmatpush.bf16.msra.mxu0 %v1703
    %1997 = vmatpush.bf16.msra.mxu0 %v1694
    %1998 = vmatpush.bf16.msra.mxu0 %v1685
    %1999 = vmatmul.bf16.gmra.mxu0 %v1371
    %v2000 = vpop.f32.mrf.mxu0
    %v2001 = vadd.f32 0.0, %v2000
    %v2002 = vpop.f32.mrf.mxu0
    %v2003 = vadd.f32 0.0, %v2002
    %2004 = vmatmul.bf16.gmra.mxu0 %v1372
    %v2005 = vpop.f32.mrf.mxu0
    %v2006 = vadd.f32 0.0, %v2005
    %v2007 = vpop.f32.mrf.mxu0
    %v2008 = vadd.f32 0.0, %v2007
    %2009 = vmatmul.bf16.gmra.mxu0 %v1373
    %v2010 = vpop.f32.mrf.mxu0
    %v2011 = vadd.f32 0.0, %v2010
    %v2012 = vpop.f32.mrf.mxu0
    %v2013 = vadd.f32 0.0, %v2012
    %2014 = vmatmul.bf16.gmra.mxu0 %v1374
    %v2015 = vpop.f32.mrf.mxu0
    %v2016 = vadd.f32 0.0, %v2015
    %v2017 = vpop.f32.mrf.mxu0
    %2018 = vdwg.mxu0
    %2019 = vmatpush.bf16.msra.mxu0 %v1749
    %2020 = vmatpush.bf16.msra.mxu0 %v1740
    %2021 = vmatpush.bf16.msra.mxu0 %v1731
    %2022 = vmatpush.bf16.msra.mxu0 %v1722
    %2023 = vmatpush.bf16.msra.mxu0 %v1713
    %2024 = vmatpush.bf16.msra.mxu0 %v1704
    %2025 = vmatpush.bf16.msra.mxu0 %v1695
    %2026 = vmatpush.bf16.msra.mxu0 %v1686
    %2027 = vmatmul.bf16.gmra.mxu0 %v1371
    %v2028 = vpop.f32.mrf.mxu0
    %v2029 = vadd.f32 0.0, %v2028
    %v2030 = vpop.f32.mrf.mxu0
    %v2031 = vadd.f32 0.0, %v2030
    %2032 = vmatmul.bf16.gmra.mxu0 %v1372
    %v2033 = vpop.f32.mrf.mxu0
    %v2034 = vadd.f32 0.0, %v2033
    %v2035 = vpop.f32.mrf.mxu0
    %v2036 = vadd.f32 0.0, %v2035
    %2037 = vmatmul.bf16.gmra.mxu0 %v1373
    %v2038 = vpop.f32.mrf.mxu0
    %v2039 = vadd.f32 0.0, %v2038
    %v2040 = vpop.f32.mrf.mxu0
    %v2041 = vadd.f32 0.0, %v2040
    %2042 = vmatmul.bf16.gmra.mxu0 %v1374
    %v2043 = vpop.f32.mrf.mxu0
    %v2044 = vadd.f32 0.0, %v2043
    %v2045 = vpop.f32.mrf.mxu0
    %2046 = vdwg.mxu0
    %2047 = vmatpush.bf16.msra.mxu0 %v1750
    %2048 = vmatpush.bf16.msra.mxu0 %v1741
    %2049 = vmatpush.bf16.msra.mxu0 %v1732
    %2050 = vmatpush.bf16.msra.mxu0 %v1723
    %2051 = vmatpush.bf16.msra.mxu0 %v1714
    %2052 = vmatpush.bf16.msra.mxu0 %v1705
    %2053 = vmatpush.bf16.msra.mxu0 %v1696
    %2054 = vmatpush.bf16.msra.mxu0 %v1687
    %2055 = vmatmul.bf16.gmra.mxu0 %v1371
    %v2056 = vpop.f32.mrf.mxu0
    %v2057 = vadd.f32 0.0, %v2056
    %v2058 = vpop.f32.mrf.mxu0
    %v2059 = vadd.f32 0.0, %v2058
    %2060 = vmatmul.bf16.gmra.mxu0 %v1372
    %v2061 = vpop.f32.mrf.mxu0
    %v2062 = vadd.f32 0.0, %v2061
    %v2063 = vpop.f32.mrf.mxu0
    %v2064 = vadd.f32 0.0, %v2063
    %2065 = vmatmul.bf16.gmra.mxu0 %v1373
    %v2066 = vpop.f32.mrf.mxu0
    %v2067 = vadd.f32 0.0, %v2066
    %v2068 = vpop.f32.mrf.mxu0
    %v2069 = vadd.f32 0.0, %v2068
    %2070 = vmatmul.bf16.gmra.mxu0 %v1374
    %v2071 = vpop.f32.mrf.mxu0
    %v2072 = vadd.f32 0.0, %v2071
    %v2073 = vpop.f32.mrf.mxu0
    %2074 = vdwg.mxu0
    %v2075 = vpack.c.bf16 %v1861, %v1833
    %v2076 = vpack.c.bf16 %v1917, %v1889
    %v2077 = vpack.c.bf16 %v1973, %v1945
    %v2078 = vpack.c.bf16 %v2029, %v2001
    %v2079 = vpack.c.bf16 %v2057, %v2057
    %v2080 = vpack.c.bf16 %v1863, %v1835
    %v2081 = vpack.c.bf16 %v1919, %v1891
    %v2082 = vpack.c.bf16 %v1975, %v1947
    %v2083 = vpack.c.bf16 %v2031, %v2003
    %v2084 = vpack.c.bf16 %v2059, %v2059
    %v2085 = vpack.c.bf16 %v1866, %v1838
    %v2086 = vpack.c.bf16 %v1922, %v1894
    %v2087 = vpack.c.bf16 %v1978, %v1950
    %v2088 = vpack.c.bf16 %v2034, %v2006
    %v2089 = vpack.c.bf16 %v2062, %v2062
    %v2090 = vpack.c.bf16 %v1868, %v1840
    %v2091 = vpack.c.bf16 %v1924, %v1896
    %v2092 = vpack.c.bf16 %v1980, %v1952
    %v2093 = vpack.c.bf16 %v2036, %v2008
    %v2094 = vpack.c.bf16 %v2064, %v2064
    %v2095 = vpack.c.bf16 %v1871, %v1843
    %v2096 = vpack.c.bf16 %v1927, %v1899
    %v2097 = vpack.c.bf16 %v1983, %v1955
    %v2098 = vpack.c.bf16 %v2039, %v2011
    %v2099 = vpack.c.bf16 %v2067, %v2067
    %v2100 = vpack.c.bf16 %v1873, %v1845
    %v2101 = vpack.c.bf16 %v1929, %v1901
    %v2102 = vpack.c.bf16 %v1985, %v1957
    %v2103 = vpack.c.bf16 %v2041, %v2013
    %v2104 = vpack.c.bf16 %v2069, %v2069
    %v2105 = vpack.c.bf16 %v1876, %v1848
    %v2106 = vpack.c.bf16 %v1932, %v1904
    %v2107 = vpack.c.bf16 %v1988, %v1960
    %v2108 = vpack.c.bf16 %v2044, %v2016
    %v2109 = vpack.c.bf16 %v2072, %v2072
    %v2110 = vld [vmem:[%s4] sm:$0xf]
    %v2111 = vld [vmem:[%s4 + $0x4] sm:$0xf]
    %v2112 = vld [vmem:[%s4 + $0x8] sm:$0xf]
    %v2113 = vld [vmem:[%s4 + $0xc] sm:$0xf]
    %v2114 = vld [vmem:[%s4 + $0x10] sm:$0xf]
    %v2115 = vld [vmem:[%s4 + $0x14] sm:$0xf]
    %v2116 = vld [vmem:[%s4 + $0x18] sm:$0x1]
    %s2117 = scalar_lea.vmem %s4, 28
    %v2118 = vld [vmem:[%s2117] sm:$0xf]
    %v2119 = vld [vmem:[%s2117 + $0x4] sm:$0xf]
    %v2120 = vld [vmem:[%s2117 + $0x8] sm:$0xf]
    %v2121 = vld [vmem:[%s2117 + $0xc] sm:$0xf]
    %v2122 = vld [vmem:[%s2117 + $0x10] sm:$0xf]
    %v2123 = vld [vmem:[%s2117 + $0x14] sm:$0xf]
    %v2124 = vld [vmem:[%s2117 + $0x18] sm:$0x1]
    %v2132 = vunpack.c.l.b16 %v2118
    %v2133 = vunpack.c.l.b16 %v2119
    %v2134 = vunpack.c.l.b16 %v2120
    %v2135 = vunpack.c.l.b16 %v2121
    %v2136 = vunpack.c.l.b16 %v2122
    %v2137 = vunpack.c.l.b16 %v2123
    %v2138 = vunpack.c.l.b16 %v2124
    %v2139 = vpack.c.b16 %v2133, %v2132
    %v2140 = vpack.c.b16 %v2135, %v2134
    %v2141 = vpack.c.b16 %v2137, %v2136
    %v2142 = vpack.c.b16 %v2138, %v2138
    %v2150 = vunpack.c.h.b16 %v2075
    %v2151 = vunpack.c.h.b16 %v2080
    %v2152 = vunpack.c.h.b16 %v2085
    %v2153 = vunpack.c.h.b16 %v2090
    %v2154 = vunpack.c.h.b16 %v2095
    %v2155 = vunpack.c.h.b16 %v2100
    %v2156 = vunpack.c.h.b16 %v2105
    %v2157 = vpack.c.b16 %v2151, %v2150
    %v2158 = vpack.c.b16 %v2153, %v2152
    %v2159 = vpack.c.b16 %v2155, %v2154
    %v2160 = vpack.c.b16 %v2156, %v2156
    %vm2164 = vcmask 400384
    %v2166 = vsel %vm2164, %v2139, 0
    %v2169 = vsel %vm2164, %v2140, 0
    %v2172 = vsel %vm2164, %v2141, 0
    %v2175 = vsel %vm2164, %v2142, 0
    %vm2177 = vcmask 1040384
    %v2178 = vsel 0, 4294967295, 65535
    %v2179 = vsel %vm2177, %v2178, 0
    %v2181 = vand.u32 %v2160, %v2179
    %2183 = vmatpush.bf16.msra.mxu0 0
    %2184 = vmatpush.bf16.msra.mxu0 0
    %2185 = vmatpush.bf16.msra.mxu0 0
    %2186 = vmatpush.bf16.msra.mxu0 0
    %2187 = vmatpush.bf16.msra.mxu0 %v2181
    %2188 = vmatpush.bf16.msra.mxu0 %v2159
    %2189 = vmatpush.bf16.msra.mxu0 %v2158
    %2190 = vmatpush.bf16.msra.mxu0 %v2157
    %2191 = vmatmul.bf16.gmra.mxu0 %v2166
    %v2192 = vpop.f32.mrf.mxu0
    %v2193 = vadd.f32 0.0, %v2192
    %v2194 = vpop.f32.mrf.mxu0
    %v2195 = vadd.f32 0.0, %v2194
    %2196 = vmatmul.bf16.gmra.mxu0 %v2169
    %v2197 = vpop.f32.mrf.mxu0
    %v2198 = vadd.f32 0.0, %v2197
    %v2199 = vpop.f32.mrf.mxu0
    %v2200 = vadd.f32 0.0, %v2199
    %2201 = vmatmul.bf16.gmra.mxu0 %v2172
    %v2202 = vpop.f32.mrf.mxu0
    %v2203 = vadd.f32 0.0, %v2202
    %v2204 = vpop.f32.mrf.mxu0
    %v2205 = vadd.f32 0.0, %v2204
    %2206 = vmatmul.bf16.gmra.mxu0 %v2175
    %v2207 = vpop.f32.mrf.mxu0
    %v2208 = vadd.f32 0.0, %v2207
    %v2209 = vpop.f32.mrf.mxu0
    %2210 = vdwg.mxu0
    %v2218 = vunpack.c.l.b16 %v2110
    %v2219 = vunpack.c.l.b16 %v2111
    %v2220 = vunpack.c.l.b16 %v2112
    %v2221 = vunpack.c.l.b16 %v2113
    %v2222 = vunpack.c.l.b16 %v2114
    %v2223 = vunpack.c.l.b16 %v2115
    %v2224 = vunpack.c.l.b16 %v2116
    %v2225 = vpack.c.b16 %v2219, %v2218
    %v2226 = vpack.c.b16 %v2221, %v2220
    %v2227 = vpack.c.b16 %v2223, %v2222
    %v2228 = vpack.c.b16 %v2224, %v2224
    %v2229 = vunpack.c.l.b16 %v2075
    %v2230 = vunpack.c.l.b16 %v2080
    %v2231 = vunpack.c.l.b16 %v2085
    %v2232 = vunpack.c.l.b16 %v2090
    %v2233 = vunpack.c.l.b16 %v2095
    %v2234 = vunpack.c.l.b16 %v2100
    %v2235 = vunpack.c.l.b16 %v2105
    %v2236 = vpack.c.b16 %v2230, %v2229
    %v2237 = vpack.c.b16 %v2232, %v2231
    %v2238 = vpack.c.b16 %v2234, %v2233
    %v2239 = vpack.c.b16 %v2235, %v2235
    %v2244 = vsel %vm2164, %v2225, 0
    %v2247 = vsel %vm2164, %v2226, 0
    %v2250 = vsel %vm2164, %v2227, 0
    %v2253 = vsel %vm2164, %v2228, 0
    %v2256 = vand.u32 %v2239, %v2179
    %2258 = vmatpush.bf16.msra.mxu0 0
    %2259 = vmatpush.bf16.msra.mxu0 0
    %2260 = vmatpush.bf16.msra.mxu0 0
    %2261 = vmatpush.bf16.msra.mxu0 0
    %2262 = vmatpush.bf16.msra.mxu0 %v2256
    %2263 = vmatpush.bf16.msra.mxu0 %v2238
    %2264 = vmatpush.bf16.msra.mxu0 %v2237
    %2265 = vmatpush.bf16.msra.mxu0 %v2236
    %2266 = vmatmul.bf16.gmra.mxu0 %v2244
    %v2267 = vpop.f32.mrf.mxu0
    %v2268 = vadd.f32 %v2193, %v2267
    %v2269 = vpop.f32.mrf.mxu0
    %v2270 = vadd.f32 %v2195, %v2269
    %2271 = vmatmul.bf16.gmra.mxu0 %v2247
    %v2272 = vpop.f32.mrf.mxu0
    %v2273 = vadd.f32 %v2198, %v2272
    %v2274 = vpop.f32.mrf.mxu0
    %v2275 = vadd.f32 %v2200, %v2274
    %2276 = vmatmul.bf16.gmra.mxu0 %v2250
    %v2277 = vpop.f32.mrf.mxu0
    %v2278 = vadd.f32 %v2203, %v2277
    %v2279 = vpop.f32.mrf.mxu0
    %v2280 = vadd.f32 %v2205, %v2279
    %2281 = vmatmul.bf16.gmra.mxu0 %v2253
    %v2282 = vpop.f32.mrf.mxu0
    %v2283 = vadd.f32 %v2208, %v2282
    %v2284 = vpop.f32.mrf.mxu0
    %2285 = vdwg.mxu0
    %s2286 = scalar_lea.vmem %s4, 56
    %v2287 = vld [vmem:[%s2286] sm:$0xf]
    %v2288 = vld [vmem:[%s2286 + $0x4] sm:$0xf]
    %v2289 = vld [vmem:[%s2286 + $0x8] sm:$0xf]
    %v2290 = vld [vmem:[%s2286 + $0xc] sm:$0xf]
    %v2291 = vld [vmem:[%s2286 + $0x10] sm:$0xf]
    %v2292 = vld [vmem:[%s2286 + $0x14] sm:$0xf]
    %v2293 = vld [vmem:[%s2286 + $0x18] sm:$0x1]
    %v2301 = vunpack.c.l.b16 %v2287
    %v2302 = vunpack.c.l.b16 %v2288
    %v2303 = vunpack.c.l.b16 %v2289
    %v2304 = vunpack.c.l.b16 %v2290
    %v2305 = vunpack.c.l.b16 %v2291
    %v2306 = vunpack.c.l.b16 %v2292
    %v2307 = vunpack.c.l.b16 %v2293
    %v2308 = vpack.c.b16 %v2302, %v2301
    %v2309 = vpack.c.b16 %v2304, %v2303
    %v2310 = vpack.c.b16 %v2306, %v2305
    %v2311 = vpack.c.b16 %v2307, %v2307
    %v2319 = vunpack.c.l.b16 %v2076
    %v2320 = vunpack.c.l.b16 %v2081
    %v2321 = vunpack.c.l.b16 %v2086
    %v2322 = vunpack.c.l.b16 %v2091
    %v2323 = vunpack.c.l.b16 %v2096
    %v2324 = vunpack.c.l.b16 %v2101
    %v2325 = vunpack.c.l.b16 %v2106
    %v2326 = vpack.c.b16 %v2320, %v2319
    %v2327 = vpack.c.b16 %v2322, %v2321
    %v2328 = vpack.c.b16 %v2324, %v2323
    %v2329 = vpack.c.b16 %v2325, %v2325
    %v2334 = vsel %vm2164, %v2308, 0
    %v2337 = vsel %vm2164, %v2309, 0
    %v2340 = vsel %vm2164, %v2310, 0
    %v2343 = vsel %vm2164, %v2311, 0
    %v2346 = vand.u32 %v2329, %v2179
    %2348 = vmatpush.bf16.msra.mxu0 0
    %2349 = vmatpush.bf16.msra.mxu0 0
    %2350 = vmatpush.bf16.msra.mxu0 0
    %2351 = vmatpush.bf16.msra.mxu0 0
    %2352 = vmatpush.bf16.msra.mxu0 %v2346
    %2353 = vmatpush.bf16.msra.mxu0 %v2328
    %2354 = vmatpush.bf16.msra.mxu0 %v2327
    %2355 = vmatpush.bf16.msra.mxu0 %v2326
    %2356 = vmatmul.bf16.gmra.mxu0 %v2334
    %v2357 = vpop.f32.mrf.mxu0
    %v2358 = vadd.f32 0.0, %v2357
    %v2359 = vpop.f32.mrf.mxu0
    %v2360 = vadd.f32 0.0, %v2359
    %2361 = vmatmul.bf16.gmra.mxu0 %v2337
    %v2362 = vpop.f32.mrf.mxu0
    %v2363 = vadd.f32 0.0, %v2362
    %v2364 = vpop.f32.mrf.mxu0
    %v2365 = vadd.f32 0.0, %v2364
    %2366 = vmatmul.bf16.gmra.mxu0 %v2340
    %v2367 = vpop.f32.mrf.mxu0
    %v2368 = vadd.f32 0.0, %v2367
    %v2369 = vpop.f32.mrf.mxu0
    %v2370 = vadd.f32 0.0, %v2369
    %2371 = vmatmul.bf16.gmra.mxu0 %v2343
    %v2372 = vpop.f32.mrf.mxu0
    %v2373 = vadd.f32 0.0, %v2372
    %v2374 = vpop.f32.mrf.mxu0
    %2375 = vdwg.mxu0
    %v2376 = vadd.f32 %v2268, %v2358
    %v2377 = vadd.f32 %v2270, %v2360
    %v2378 = vadd.f32 %v2273, %v2363
    %v2379 = vadd.f32 %v2275, %v2365
    %v2380 = vadd.f32 %v2278, %v2368
    %v2381 = vadd.f32 %v2280, %v2370
    %v2382 = vadd.f32 %v2283, %v2373
    %s2383 = scalar_lea.vmem %s4, 84
    %v2384 = vld [vmem:[%s2383] sm:$0xf]
    %v2385 = vld [vmem:[%s2383 + $0x4] sm:$0xf]
    %v2386 = vld [vmem:[%s2383 + $0x8] sm:$0xf]
    %v2387 = vld [vmem:[%s2383 + $0xc] sm:$0xf]
    %v2388 = vld [vmem:[%s2383 + $0x10] sm:$0xf]
    %v2389 = vld [vmem:[%s2383 + $0x14] sm:$0xf]
    %v2390 = vld [vmem:[%s2383 + $0x18] sm:$0x1]
    %v2398 = vunpack.c.l.b16 %v2384
    %v2399 = vunpack.c.l.b16 %v2385
    %v2400 = vunpack.c.l.b16 %v2386
    %v2401 = vunpack.c.l.b16 %v2387
    %v2402 = vunpack.c.l.b16 %v2388
    %v2403 = vunpack.c.l.b16 %v2389
    %v2404 = vunpack.c.l.b16 %v2390
    %v2405 = vpack.c.b16 %v2399, %v2398
    %v2406 = vpack.c.b16 %v2401, %v2400
    %v2407 = vpack.c.b16 %v2403, %v2402
    %v2408 = vpack.c.b16 %v2404, %v2404
    %v2409 = vunpack.c.h.b16 %v2076
    %v2410 = vunpack.c.h.b16 %v2081
    %v2411 = vunpack.c.h.b16 %v2086
    %v2412 = vunpack.c.h.b16 %v2091
    %v2413 = vunpack.c.h.b16 %v2096
    %v2414 = vunpack.c.h.b16 %v2101
    %v2415 = vunpack.c.h.b16 %v2106
    %v2416 = vpack.c.b16 %v2410, %v2409
    %v2417 = vpack.c.b16 %v2412, %v2411
    %v2418 = vpack.c.b16 %v2414, %v2413
    %v2419 = vpack.c.b16 %v2415, %v2415
    %v2424 = vsel %vm2164, %v2405, 0
    %v2427 = vsel %vm2164, %v2406, 0
    %v2430 = vsel %vm2164, %v2407, 0
    %v2433 = vsel %vm2164, %v2408, 0
    %v2436 = vand.u32 %v2419, %v2179
    %2438 = vmatpush.bf16.msra.mxu0 0
    %2439 = vmatpush.bf16.msra.mxu0 0
    %2440 = vmatpush.bf16.msra.mxu0 0
    %2441 = vmatpush.bf16.msra.mxu0 0
    %2442 = vmatpush.bf16.msra.mxu0 %v2436
    %2443 = vmatpush.bf16.msra.mxu0 %v2418
    %2444 = vmatpush.bf16.msra.mxu0 %v2417
    %2445 = vmatpush.bf16.msra.mxu0 %v2416
    %2446 = vmatmul.bf16.gmra.mxu0 %v2424
    %v2447 = vpop.f32.mrf.mxu0
    %v2448 = vadd.f32 0.0, %v2447
    %v2449 = vpop.f32.mrf.mxu0
    %v2450 = vadd.f32 0.0, %v2449
    %2451 = vmatmul.bf16.gmra.mxu0 %v2427
    %v2452 = vpop.f32.mrf.mxu0
    %v2453 = vadd.f32 0.0, %v2452
    %v2454 = vpop.f32.mrf.mxu0
    %v2455 = vadd.f32 0.0, %v2454
    %2456 = vmatmul.bf16.gmra.mxu0 %v2430
    %v2457 = vpop.f32.mrf.mxu0
    %v2458 = vadd.f32 0.0, %v2457
    %v2459 = vpop.f32.mrf.mxu0
    %v2460 = vadd.f32 0.0, %v2459
    %2461 = vmatmul.bf16.gmra.mxu0 %v2433
    %v2462 = vpop.f32.mrf.mxu0
    %v2463 = vadd.f32 0.0, %v2462
    %v2464 = vpop.f32.mrf.mxu0
    %2465 = vdwg.mxu0
    %v2466 = vadd.f32 %v2376, %v2448
    %v2467 = vadd.f32 %v2377, %v2450
    %v2468 = vadd.f32 %v2378, %v2453
    %v2469 = vadd.f32 %v2379, %v2455
    %v2470 = vadd.f32 %v2380, %v2458
    %v2471 = vadd.f32 %v2381, %v2460
    %v2472 = vadd.f32 %v2382, %v2463
    %s2473 = scalar_lea.vmem %s4, 112
    %v2474 = vld [vmem:[%s2473] sm:$0xf]
    %v2475 = vld [vmem:[%s2473 + $0x4] sm:$0xf]
    %v2476 = vld [vmem:[%s2473 + $0x8] sm:$0xf]
    %v2477 = vld [vmem:[%s2473 + $0xc] sm:$0xf]
    %v2478 = vld [vmem:[%s2473 + $0x10] sm:$0xf]
    %v2479 = vld [vmem:[%s2473 + $0x14] sm:$0xf]
    %v2480 = vld [vmem:[%s2473 + $0x18] sm:$0x1]
    %v2488 = vunpack.c.l.b16 %v2474
    %v2489 = vunpack.c.l.b16 %v2475
    %v2490 = vunpack.c.l.b16 %v2476
    %v2491 = vunpack.c.l.b16 %v2477
    %v2492 = vunpack.c.l.b16 %v2478
    %v2493 = vunpack.c.l.b16 %v2479
    %v2494 = vunpack.c.l.b16 %v2480
    %v2495 = vpack.c.b16 %v2489, %v2488
    %v2496 = vpack.c.b16 %v2491, %v2490
    %v2497 = vpack.c.b16 %v2493, %v2492
    %v2498 = vpack.c.b16 %v2494, %v2494
    %v2506 = vunpack.c.l.b16 %v2077
    %v2507 = vunpack.c.l.b16 %v2082
    %v2508 = vunpack.c.l.b16 %v2087
    %v2509 = vunpack.c.l.b16 %v2092
    %v2510 = vunpack.c.l.b16 %v2097
    %v2511 = vunpack.c.l.b16 %v2102
    %v2512 = vunpack.c.l.b16 %v2107
    %v2513 = vpack.c.b16 %v2507, %v2506
    %v2514 = vpack.c.b16 %v2509, %v2508
    %v2515 = vpack.c.b16 %v2511, %v2510
    %v2516 = vpack.c.b16 %v2512, %v2512
    %v2521 = vsel %vm2164, %v2495, 0
    %v2524 = vsel %vm2164, %v2496, 0
    %v2527 = vsel %vm2164, %v2497, 0
    %v2530 = vsel %vm2164, %v2498, 0
    %v2533 = vand.u32 %v2516, %v2179
    %2535 = vmatpush.bf16.msra.mxu0 0
    %2536 = vmatpush.bf16.msra.mxu0 0
    %2537 = vmatpush.bf16.msra.mxu0 0
    %2538 = vmatpush.bf16.msra.mxu0 0
    %2539 = vmatpush.bf16.msra.mxu0 %v2533
    %2540 = vmatpush.bf16.msra.mxu0 %v2515
    %2541 = vmatpush.bf16.msra.mxu0 %v2514
    %2542 = vmatpush.bf16.msra.mxu0 %v2513
    %2543 = vmatmul.bf16.gmra.mxu0 %v2521
    %v2544 = vpop.f32.mrf.mxu0
    %v2545 = vadd.f32 0.0, %v2544
    %v2546 = vpop.f32.mrf.mxu0
    %v2547 = vadd.f32 0.0, %v2546
    %2548 = vmatmul.bf16.gmra.mxu0 %v2524
    %v2549 = vpop.f32.mrf.mxu0
    %v2550 = vadd.f32 0.0, %v2549
    %v2551 = vpop.f32.mrf.mxu0
    %v2552 = vadd.f32 0.0, %v2551
    %2553 = vmatmul.bf16.gmra.mxu0 %v2527
    %v2554 = vpop.f32.mrf.mxu0
    %v2555 = vadd.f32 0.0, %v2554
    %v2556 = vpop.f32.mrf.mxu0
    %v2557 = vadd.f32 0.0, %v2556
    %2558 = vmatmul.bf16.gmra.mxu0 %v2530
    %v2559 = vpop.f32.mrf.mxu0
    %v2560 = vadd.f32 0.0, %v2559
    %v2561 = vpop.f32.mrf.mxu0
    %2562 = vdwg.mxu0
    %v2563 = vadd.f32 %v2466, %v2545
    %v2564 = vadd.f32 %v2467, %v2547
    %v2565 = vadd.f32 %v2468, %v2550
    %v2566 = vadd.f32 %v2469, %v2552
    %v2567 = vadd.f32 %v2470, %v2555
    %v2568 = vadd.f32 %v2471, %v2557
    %v2569 = vadd.f32 %v2472, %v2560
    %s2570 = scalar_lea.vmem %s4, 140
    %v2571 = vld [vmem:[%s2570] sm:$0xf]
    %v2572 = vld [vmem:[%s2570 + $0x4] sm:$0xf]
    %v2573 = vld [vmem:[%s2570 + $0x8] sm:$0xf]
    %v2574 = vld [vmem:[%s2570 + $0xc] sm:$0xf]
    %v2575 = vld [vmem:[%s2570 + $0x10] sm:$0xf]
    %v2576 = vld [vmem:[%s2570 + $0x14] sm:$0xf]
    %v2577 = vld [vmem:[%s2570 + $0x18] sm:$0x1]
    %v2585 = vunpack.c.l.b16 %v2571
    %v2586 = vunpack.c.l.b16 %v2572
    %v2587 = vunpack.c.l.b16 %v2573
    %v2588 = vunpack.c.l.b16 %v2574
    %v2589 = vunpack.c.l.b16 %v2575
    %v2590 = vunpack.c.l.b16 %v2576
    %v2591 = vunpack.c.l.b16 %v2577
    %v2592 = vpack.c.b16 %v2586, %v2585
    %v2593 = vpack.c.b16 %v2588, %v2587
    %v2594 = vpack.c.b16 %v2590, %v2589
    %v2595 = vpack.c.b16 %v2591, %v2591
    %v2596 = vunpack.c.h.b16 %v2077
    %v2597 = vunpack.c.h.b16 %v2082
    %v2598 = vunpack.c.h.b16 %v2087
    %v2599 = vunpack.c.h.b16 %v2092
    %v2600 = vunpack.c.h.b16 %v2097
    %v2601 = vunpack.c.h.b16 %v2102
    %v2602 = vunpack.c.h.b16 %v2107
    %v2603 = vpack.c.b16 %v2597, %v2596
    %v2604 = vpack.c.b16 %v2599, %v2598
    %v2605 = vpack.c.b16 %v2601, %v2600
    %v2606 = vpack.c.b16 %v2602, %v2602
    %v2611 = vsel %vm2164, %v2592, 0
    %v2614 = vsel %vm2164, %v2593, 0
    %v2617 = vsel %vm2164, %v2594, 0
    %v2620 = vsel %vm2164, %v2595, 0
    %v2623 = vand.u32 %v2606, %v2179
    %2625 = vmatpush.bf16.msra.mxu0 0
    %2626 = vmatpush.bf16.msra.mxu0 0
    %2627 = vmatpush.bf16.msra.mxu0 0
    %2628 = vmatpush.bf16.msra.mxu0 0
    %2629 = vmatpush.bf16.msra.mxu0 %v2623
    %2630 = vmatpush.bf16.msra.mxu0 %v2605
    %2631 = vmatpush.bf16.msra.mxu0 %v2604
    %2632 = vmatpush.bf16.msra.mxu0 %v2603
    %2633 = vmatmul.bf16.gmra.mxu0 %v2611
    %v2634 = vpop.f32.mrf.mxu0
    %v2635 = vadd.f32 0.0, %v2634
    %v2636 = vpop.f32.mrf.mxu0
    %v2637 = vadd.f32 0.0, %v2636
    %2638 = vmatmul.bf16.gmra.mxu0 %v2614
    %v2639 = vpop.f32.mrf.mxu0
    %v2640 = vadd.f32 0.0, %v2639
    %v2641 = vpop.f32.mrf.mxu0
    %v2642 = vadd.f32 0.0, %v2641
    %2643 = vmatmul.bf16.gmra.mxu0 %v2617
    %v2644 = vpop.f32.mrf.mxu0
    %v2645 = vadd.f32 0.0, %v2644
    %v2646 = vpop.f32.mrf.mxu0
    %v2647 = vadd.f32 0.0, %v2646
    %2648 = vmatmul.bf16.gmra.mxu0 %v2620
    %v2649 = vpop.f32.mrf.mxu0
    %v2650 = vadd.f32 0.0, %v2649
    %v2651 = vpop.f32.mrf.mxu0
    %2652 = vdwg.mxu0
    %v2653 = vadd.f32 %v2563, %v2635
    %v2654 = vadd.f32 %v2564, %v2637
    %v2655 = vadd.f32 %v2565, %v2640
    %v2656 = vadd.f32 %v2566, %v2642
    %v2657 = vadd.f32 %v2567, %v2645
    %v2658 = vadd.f32 %v2568, %v2647
    %v2659 = vadd.f32 %v2569, %v2650
    %s2660 = scalar_lea.vmem %s4, 168
    %v2661 = vld [vmem:[%s2660] sm:$0xf]
    %v2662 = vld [vmem:[%s2660 + $0x4] sm:$0xf]
    %v2663 = vld [vmem:[%s2660 + $0x8] sm:$0xf]
    %v2664 = vld [vmem:[%s2660 + $0xc] sm:$0xf]
    %v2665 = vld [vmem:[%s2660 + $0x10] sm:$0xf]
    %v2666 = vld [vmem:[%s2660 + $0x14] sm:$0xf]
    %v2667 = vld [vmem:[%s2660 + $0x18] sm:$0x1]
    %v2675 = vunpack.c.l.b16 %v2661
    %v2676 = vunpack.c.l.b16 %v2662
    %v2677 = vunpack.c.l.b16 %v2663
    %v2678 = vunpack.c.l.b16 %v2664
    %v2679 = vunpack.c.l.b16 %v2665
    %v2680 = vunpack.c.l.b16 %v2666
    %v2681 = vunpack.c.l.b16 %v2667
    %v2682 = vpack.c.b16 %v2676, %v2675
    %v2683 = vpack.c.b16 %v2678, %v2677
    %v2684 = vpack.c.b16 %v2680, %v2679
    %v2685 = vpack.c.b16 %v2681, %v2681
    %v2693 = vunpack.c.l.b16 %v2078
    %v2694 = vunpack.c.l.b16 %v2083
    %v2695 = vunpack.c.l.b16 %v2088
    %v2696 = vunpack.c.l.b16 %v2093
    %v2697 = vunpack.c.l.b16 %v2098
    %v2698 = vunpack.c.l.b16 %v2103
    %v2699 = vunpack.c.l.b16 %v2108
    %v2700 = vpack.c.b16 %v2694, %v2693
    %v2701 = vpack.c.b16 %v2696, %v2695
    %v2702 = vpack.c.b16 %v2698, %v2697
    %v2703 = vpack.c.b16 %v2699, %v2699
    %v2708 = vsel %vm2164, %v2682, 0
    %v2711 = vsel %vm2164, %v2683, 0
    %v2714 = vsel %vm2164, %v2684, 0
    %v2717 = vsel %vm2164, %v2685, 0
    %v2720 = vand.u32 %v2703, %v2179
    %2722 = vmatpush.bf16.msra.mxu0 0
    %2723 = vmatpush.bf16.msra.mxu0 0
    %2724 = vmatpush.bf16.msra.mxu0 0
    %2725 = vmatpush.bf16.msra.mxu0 0
    %2726 = vmatpush.bf16.msra.mxu0 %v2720
    %2727 = vmatpush.bf16.msra.mxu0 %v2702
    %2728 = vmatpush.bf16.msra.mxu0 %v2701
    %2729 = vmatpush.bf16.msra.mxu0 %v2700
    %2730 = vmatmul.bf16.gmra.mxu0 %v2708
    %v2731 = vpop.f32.mrf.mxu0
    %v2732 = vadd.f32 0.0, %v2731
    %v2733 = vpop.f32.mrf.mxu0
    %v2734 = vadd.f32 0.0, %v2733
    %2735 = vmatmul.bf16.gmra.mxu0 %v2711
    %v2736 = vpop.f32.mrf.mxu0
    %v2737 = vadd.f32 0.0, %v2736
    %v2738 = vpop.f32.mrf.mxu0
    %v2739 = vadd.f32 0.0, %v2738
    %2740 = vmatmul.bf16.gmra.mxu0 %v2714
    %v2741 = vpop.f32.mrf.mxu0
    %v2742 = vadd.f32 0.0, %v2741
    %v2743 = vpop.f32.mrf.mxu0
    %v2744 = vadd.f32 0.0, %v2743
    %2745 = vmatmul.bf16.gmra.mxu0 %v2717
    %v2746 = vpop.f32.mrf.mxu0
    %v2747 = vadd.f32 0.0, %v2746
    %v2748 = vpop.f32.mrf.mxu0
    %2749 = vdwg.mxu0
    %v2750 = vadd.f32 %v2653, %v2732
    %v2751 = vadd.f32 %v2654, %v2734
    %v2752 = vadd.f32 %v2655, %v2737
    %v2753 = vadd.f32 %v2656, %v2739
    %v2754 = vadd.f32 %v2657, %v2742
    %v2755 = vadd.f32 %v2658, %v2744
    %v2756 = vadd.f32 %v2659, %v2747
    %s2757 = scalar_lea.vmem %s4, 196
    %v2758 = vld [vmem:[%s2757] sm:$0xf]
    %v2759 = vld [vmem:[%s2757 + $0x4] sm:$0xf]
    %v2760 = vld [vmem:[%s2757 + $0x8] sm:$0xf]
    %v2761 = vld [vmem:[%s2757 + $0xc] sm:$0xf]
    %v2762 = vld [vmem:[%s2757 + $0x10] sm:$0xf]
    %v2763 = vld [vmem:[%s2757 + $0x14] sm:$0xf]
    %v2764 = vld [vmem:[%s2757 + $0x18] sm:$0x1]
    %v2772 = vunpack.c.l.b16 %v2758
    %v2773 = vunpack.c.l.b16 %v2759
    %v2774 = vunpack.c.l.b16 %v2760
    %v2775 = vunpack.c.l.b16 %v2761
    %v2776 = vunpack.c.l.b16 %v2762
    %v2777 = vunpack.c.l.b16 %v2763
    %v2778 = vunpack.c.l.b16 %v2764
    %v2779 = vpack.c.b16 %v2773, %v2772
    %v2780 = vpack.c.b16 %v2775, %v2774
    %v2781 = vpack.c.b16 %v2777, %v2776
    %v2782 = vpack.c.b16 %v2778, %v2778
    %v2783 = vunpack.c.h.b16 %v2078
    %v2784 = vunpack.c.h.b16 %v2083
    %v2785 = vunpack.c.h.b16 %v2088
    %v2786 = vunpack.c.h.b16 %v2093
    %v2787 = vunpack.c.h.b16 %v2098
    %v2788 = vunpack.c.h.b16 %v2103
    %v2789 = vunpack.c.h.b16 %v2108
    %v2790 = vpack.c.b16 %v2784, %v2783
    %v2791 = vpack.c.b16 %v2786, %v2785
    %v2792 = vpack.c.b16 %v2788, %v2787
    %v2793 = vpack.c.b16 %v2789, %v2789
    %v2798 = vsel %vm2164, %v2779, 0
    %v2801 = vsel %vm2164, %v2780, 0
    %v2804 = vsel %vm2164, %v2781, 0
    %v2807 = vsel %vm2164, %v2782, 0
    %v2810 = vand.u32 %v2793, %v2179
    %2812 = vmatpush.bf16.msra.mxu0 0
    %2813 = vmatpush.bf16.msra.mxu0 0
    %2814 = vmatpush.bf16.msra.mxu0 0
    %2815 = vmatpush.bf16.msra.mxu0 0
    %2816 = vmatpush.bf16.msra.mxu0 %v2810
    %2817 = vmatpush.bf16.msra.mxu0 %v2792
    %2818 = vmatpush.bf16.msra.mxu0 %v2791
    %2819 = vmatpush.bf16.msra.mxu0 %v2790
    %2820 = vmatmul.bf16.gmra.mxu0 %v2798
    %v2821 = vpop.f32.mrf.mxu0
    %v2822 = vadd.f32 0.0, %v2821
    %v2823 = vpop.f32.mrf.mxu0
    %v2824 = vadd.f32 0.0, %v2823
    %2825 = vmatmul.bf16.gmra.mxu0 %v2801
    %v2826 = vpop.f32.mrf.mxu0
    %v2827 = vadd.f32 0.0, %v2826
    %v2828 = vpop.f32.mrf.mxu0
    %v2829 = vadd.f32 0.0, %v2828
    %2830 = vmatmul.bf16.gmra.mxu0 %v2804
    %v2831 = vpop.f32.mrf.mxu0
    %v2832 = vadd.f32 0.0, %v2831
    %v2833 = vpop.f32.mrf.mxu0
    %v2834 = vadd.f32 0.0, %v2833
    %2835 = vmatmul.bf16.gmra.mxu0 %v2807
    %v2836 = vpop.f32.mrf.mxu0
    %v2837 = vadd.f32 0.0, %v2836
    %v2838 = vpop.f32.mrf.mxu0
    %2839 = vdwg.mxu0
    %v2840 = vadd.f32 %v2750, %v2822
    %v2841 = vadd.f32 %v2751, %v2824
    %v2842 = vadd.f32 %v2752, %v2827
    %v2843 = vadd.f32 %v2753, %v2829
    %v2844 = vadd.f32 %v2754, %v2832
    %v2845 = vadd.f32 %v2755, %v2834
    %v2846 = vadd.f32 %v2756, %v2837
    %s2847 = scalar_lea.vmem %s4, 224
    %v2848 = vld [vmem:[%s2847] sm:$0xf]
    %v2849 = vld [vmem:[%s2847 + $0x4] sm:$0xf]
    %v2850 = vld [vmem:[%s2847 + $0x8] sm:$0xf]
    %v2851 = vld [vmem:[%s2847 + $0xc] sm:$0xf]
    %v2852 = vld [vmem:[%s2847 + $0x10] sm:$0xf]
    %v2853 = vld [vmem:[%s2847 + $0x14] sm:$0xf]
    %v2854 = vld [vmem:[%s2847 + $0x18] sm:$0x1]
    %v2862 = vunpack.c.l.b16 %v2848
    %v2863 = vunpack.c.l.b16 %v2849
    %v2864 = vunpack.c.l.b16 %v2850
    %v2865 = vunpack.c.l.b16 %v2851
    %v2866 = vunpack.c.l.b16 %v2852
    %v2867 = vunpack.c.l.b16 %v2853
    %v2868 = vunpack.c.l.b16 %v2854
    %v2869 = vpack.c.b16 %v2863, %v2862
    %v2870 = vpack.c.b16 %v2865, %v2864
    %v2871 = vpack.c.b16 %v2867, %v2866
    %v2872 = vpack.c.b16 %v2868, %v2868
    %v2880 = vunpack.c.l.b16 %v2079
    %v2881 = vunpack.c.l.b16 %v2084
    %v2882 = vunpack.c.l.b16 %v2089
    %v2883 = vunpack.c.l.b16 %v2094
    %v2884 = vunpack.c.l.b16 %v2099
    %v2885 = vunpack.c.l.b16 %v2104
    %v2886 = vunpack.c.l.b16 %v2109
    %v2887 = vpack.c.b16 %v2881, %v2880
    %v2888 = vpack.c.b16 %v2883, %v2882
    %v2889 = vpack.c.b16 %v2885, %v2884
    %v2890 = vpack.c.b16 %v2886, %v2886
    %v2895 = vsel %vm2164, %v2869, 0
    %v2898 = vsel %vm2164, %v2870, 0
    %v2901 = vsel %vm2164, %v2871, 0
    %v2904 = vsel %vm2164, %v2872, 0
    %v2907 = vand.u32 %v2890, %v2179
    %2909 = vmatpush.bf16.msra.mxu0 0
    %2910 = vmatpush.bf16.msra.mxu0 0
    %2911 = vmatpush.bf16.msra.mxu0 0
    %2912 = vmatpush.bf16.msra.mxu0 0
    %2913 = vmatpush.bf16.msra.mxu0 %v2907
    %2914 = vmatpush.bf16.msra.mxu0 %v2889
    %2915 = vmatpush.bf16.msra.mxu0 %v2888
    %2916 = vmatpush.bf16.msra.mxu0 %v2887
    %2917 = vmatmul.bf16.gmra.mxu0 %v2895
    %v2918 = vpop.f32.mrf.mxu0
    %v2919 = vadd.f32 0.0, %v2918
    %v2920 = vpop.f32.mrf.mxu0
    %v2921 = vadd.f32 0.0, %v2920
    %2922 = vmatmul.bf16.gmra.mxu0 %v2898
    %v2923 = vpop.f32.mrf.mxu0
    %v2924 = vadd.f32 0.0, %v2923
    %v2925 = vpop.f32.mrf.mxu0
    %v2926 = vadd.f32 0.0, %v2925
    %2927 = vmatmul.bf16.gmra.mxu0 %v2901
    %v2928 = vpop.f32.mrf.mxu0
    %v2929 = vadd.f32 0.0, %v2928
    %v2930 = vpop.f32.mrf.mxu0
    %v2931 = vadd.f32 0.0, %v2930
    %2932 = vmatmul.bf16.gmra.mxu0 %v2904
    %v2933 = vpop.f32.mrf.mxu0
    %v2934 = vadd.f32 0.0, %v2933
    %v2935 = vpop.f32.mrf.mxu0
    %2936 = vdwg.mxu0
    %v2937 = vadd.f32 %v2840, %v2919
    %v2938 = vadd.f32 %v2841, %v2921
    %v2939 = vadd.f32 %v2842, %v2924
    %v2940 = vadd.f32 %v2843, %v2926
    %v2941 = vadd.f32 %v2844, %v2929
    %v2942 = vadd.f32 %v2845, %v2931
    %v2943 = vadd.f32 %v2846, %v2934
    %v2944 = vld [vmem:[%s3] sm:$0xf]
    %v2945 = vperm.slane %v2944, 0
    %v2946 = vadd.f32 %v2937, %v2945
    %v2947 = vadd.f32 %v2938, %v2945
    %v2948 = vadd.f32 %v2939, %v2945
    %v2949 = vadd.f32 %v2940, %v2945
    %v2950 = vadd.f32 %v2941, %v2945
    %v2951 = vadd.f32 %v2942, %v2945
    %v2952 = vadd.f32 %v2943, %v2945
    %vm2953 = vcmp.gt.f32.partialorder %v2946, 0.0
    %vm2954 = vcmp.gt.f32.partialorder %v2947, 0.0
    %vm2955 = vcmp.gt.f32.partialorder %v2948, 0.0
    %vm2956 = vcmp.gt.f32.partialorder %v2949, 0.0
    %vm2957 = vcmp.gt.f32.partialorder %v2950, 0.0
    %vm2958 = vcmp.gt.f32.partialorder %v2951, 0.0
    %vm2959 = vcmp.gt.f32.partialorder %v2952, 0.0
    %v2960 = vperm.slane %v2944, 1
    %v2961 = vmul.f32 %v2946, %v2960
    %v2962 = vmul.f32 %v2947, %v2960
    %v2963 = vmul.f32 %v2948, %v2960
    %v2964 = vmul.f32 %v2949, %v2960
    %v2965 = vmul.f32 %v2950, %v2960
    %v2966 = vmul.f32 %v2951, %v2960
    %v2967 = vmul.f32 %v2952, %v2960
    %v2968 = vsel %vm2953, %v2946, %v2961
    %v2969 = vsel %vm2954, %v2947, %v2962
    %v2970 = vsel %vm2955, %v2948, %v2963
    %v2971 = vsel %vm2956, %v2949, %v2964
    %v2972 = vsel %vm2957, %v2950, %v2965
    %v2973 = vsel %vm2958, %v2951, %v2966
    %v2974 = vsel %vm2959, %v2952, %v2967
    %v2975 = vperm.slane %v2944, 2
    %v2976 = vmul.f32 %v2968, %v2975
    %v2977 = vmul.f32 %v2969, %v2975
    %v2978 = vmul.f32 %v2970, %v2975
    %v2979 = vmul.f32 %v2971, %v2975
    %v2980 = vmul.f32 %v2972, %v2975
    %v2981 = vmul.f32 %v2973, %v2975
    %v2982 = vmul.f32 %v2974, %v2975
    %v2983 = vperm.slane %v2944, 3
    %v2984 = vadd.f32 %v2976, %v2983
    %v2985 = vadd.f32 %v2977, %v2983
    %v2986 = vadd.f32 %v2978, %v2983
    %v2987 = vadd.f32 %v2979, %v2983
    %v2988 = vadd.f32 %v2980, %v2983
    %v2989 = vadd.f32 %v2981, %v2983
    %v2990 = vadd.f32 %v2982, %v2983
    %v2991 = vpack.c.bf16 %v2985, %v2984
    %v2992 = vpack.c.bf16 %v2987, %v2986
    %v2993 = vpack.c.bf16 %v2989, %v2988
    %v2994 = vpack.c.bf16 %v2990, %v2990
    %v2995 = vld [vmem:[%s7] sm:$0xff]
    %v2996 = vld [vmem:[%s7 + $0x8] sm:$0xff]
    %v2997 = vld [vmem:[%s7 + $0x10] sm:$0xf]
    %v2998 = vld [vmem:[%s7 + $0x14] sm:$0xff]
    %v2999 = vld [vmem:[%s7 + $0x1c] sm:$0xff]
    %v3000 = vld [vmem:[%s7 + $0x24] sm:$0xf]
    %v3001 = vld [vmem:[%s7 + $0x28] sm:$0xff]
    %v3002 = vld [vmem:[%s7 + $0x30] sm:$0xff]
    %v3003 = vld [vmem:[%s7 + $0x38] sm:$0xf]
    %v3004 = vld [vmem:[%s7 + $0x3c] sm:$0xff]
    %v3005 = vld [vmem:[%s7 + $0x44] sm:$0xff]
    %v3006 = vld [vmem:[%s7 + $0x4c] sm:$0xf]
    %v3007 = vld [vmem:[%s7 + $0x50] sm:$0xff]
    %v3008 = vld [vmem:[%s7 + $0x58] sm:$0xff]
    %v3009 = vld [vmem:[%s7 + $0x60] sm:$0xf]
    %v3010 = vld [vmem:[%s7 + $0x64] sm:$0xff]
    %v3011 = vld [vmem:[%s7 + $0x6c] sm:$0xff]
    %v3012 = vld [vmem:[%s7 + $0x74] sm:$0xf]
    %v3013 = vld [vmem:[%s7 + $0x78] sm:$0xff]
    %v3014 = vld [vmem:[%s7 + $0x80] sm:$0xff]
    %v3015 = vld [vmem:[%s7 + $0x88] sm:$0xf]
    %v3016 = vld [vmem:[%s7 + $0x8c] sm:$0xff]
    %v3017 = vld [vmem:[%s7 + $0x94] sm:$0xff]
    %v3018 = vld [vmem:[%s7 + $0x9c] sm:$0xf]
    %v3019 = vld [vmem:[%s7 + $0xa0] sm:$0xff]
    %v3020 = vld [vmem:[%s7 + $0xa8] sm:$0xff]
    %v3021 = vld [vmem:[%s7 + $0xb0] sm:$0xf]
    %v3022 = vld [vmem:[%s7 + $0xb4] sm:$0xff]
    %v3023 = vld [vmem:[%s7 + $0xbc] sm:$0xff]
    %v3024 = vld [vmem:[%s7 + $0xc4] sm:$0xf]
    %v3025 = vld [vmem:[%s7 + $0xc8] sm:$0xff]
    %v3026 = vld [vmem:[%s7 + $0xd0] sm:$0xff]
    %v3027 = vld [vmem:[%s7 + $0xd8] sm:$0xf]
    %v3028 = vld [vmem:[%s7 + $0xdc] sm:$0xff]
    %v3029 = vld [vmem:[%s7 + $0xe4] sm:$0xff]
    %v3030 = vld [vmem:[%s7 + $0xec] sm:$0xf]
    %v3031 = vld [vmem:[%s7 + $0xf0] sm:$0xff]
    %v3032 = vld [vmem:[%s7 + $0xf8] sm:$0xff]
    %v3033 = vld [vmem:[%s7 + $0x100] sm:$0xf]
    %v3034 = vld [vmem:[%s7 + $0x104] sm:$0xff]
    %v3035 = vld [vmem:[%s7 + $0x10c] sm:$0xff]
    %v3036 = vld [vmem:[%s7 + $0x114] sm:$0xf]
    %v3037 = vld [vmem:[%s7 + $0x118] sm:$0xff]
    %v3038 = vld [vmem:[%s7 + $0x120] sm:$0xff]
    %v3039 = vld [vmem:[%s7 + $0x128] sm:$0xf]
    %v3040 = vld [vmem:[%s7 + $0x12c] sm:$0xff]
    %v3041 = vld [vmem:[%s7 + $0x134] sm:$0xff]
    %v3042 = vld [vmem:[%s7 + $0x13c] sm:$0xf]
    %v3091 = vunpack.c.l.b16 %v2995
    %v3092 = vunpack.c.h.b16 %v2995
    %v3093 = vunpack.c.l.b16 %v2996
    %v3094 = vunpack.c.h.b16 %v2996
    %v3095 = vunpack.c.l.b16 %v2997
    %v3096 = vunpack.c.l.b16 %v2998
    %v3097 = vunpack.c.h.b16 %v2998
    %v3098 = vunpack.c.l.b16 %v2999
    %v3099 = vunpack.c.h.b16 %v2999
    %v3100 = vunpack.c.l.b16 %v3000
    %v3101 = vunpack.c.l.b16 %v3001
    %v3102 = vunpack.c.h.b16 %v3001
    %v3103 = vunpack.c.l.b16 %v3002
    %v3104 = vunpack.c.h.b16 %v3002
    %v3105 = vunpack.c.l.b16 %v3003
    %v3106 = vunpack.c.l.b16 %v3004
    %v3107 = vunpack.c.h.b16 %v3004
    %v3108 = vunpack.c.l.b16 %v3005
    %v3109 = vunpack.c.h.b16 %v3005
    %v3110 = vunpack.c.l.b16 %v3006
    %v3111 = vunpack.c.l.b16 %v3007
    %v3112 = vunpack.c.h.b16 %v3007
    %v3113 = vunpack.c.l.b16 %v3008
    %v3114 = vunpack.c.h.b16 %v3008
    %v3115 = vunpack.c.l.b16 %v3009
    %v3116 = vunpack.c.l.b16 %v3010
    %v3117 = vunpack.c.h.b16 %v3010
    %v3118 = vunpack.c.l.b16 %v3011
    %v3119 = vunpack.c.h.b16 %v3011
    %v3120 = vunpack.c.l.b16 %v3012
    %v3121 = vunpack.c.l.b16 %v3013
    %v3122 = vunpack.c.h.b16 %v3013
    %v3123 = vunpack.c.l.b16 %v3014
    %v3124 = vunpack.c.h.b16 %v3014
    %v3125 = vunpack.c.l.b16 %v3015
    %v3126 = vunpack.c.l.b16 %v3016
    %v3127 = vunpack.c.h.b16 %v3016
    %v3128 = vunpack.c.l.b16 %v3017
    %v3129 = vunpack.c.h.b16 %v3017
    %v3130 = vunpack.c.l.b16 %v3018
    %v3131 = vunpack.c.l.b16 %v3019
    %v3132 = vunpack.c.h.b16 %v3019
    %v3133 = vunpack.c.l.b16 %v3020
    %v3134 = vunpack.c.h.b16 %v3020
    %v3135 = vunpack.c.l.b16 %v3021
    %v3136 = vunpack.c.l.b16 %v3022
    %v3137 = vunpack.c.h.b16 %v3022
    %v3138 = vunpack.c.l.b16 %v3023
    %v3139 = vunpack.c.h.b16 %v3023
    %v3140 = vunpack.c.l.b16 %v3024
    %v3141 = vunpack.c.l.b16 %v3025
    %v3142 = vunpack.c.h.b16 %v3025
    %v3143 = vunpack.c.l.b16 %v3026
    %v3144 = vunpack.c.h.b16 %v3026
    %v3145 = vunpack.c.l.b16 %v3027
    %v3146 = vunpack.c.l.b16 %v3028
    %v3147 = vunpack.c.h.b16 %v3028
    %v3148 = vunpack.c.l.b16 %v3029
    %v3149 = vunpack.c.h.b16 %v3029
    %v3150 = vunpack.c.l.b16 %v3030
    %v3151 = vunpack.c.l.b16 %v3031
    %v3152 = vunpack.c.h.b16 %v3031
    %v3153 = vunpack.c.l.b16 %v3032
    %v3154 = vunpack.c.h.b16 %v3032
    %v3155 = vunpack.c.l.b16 %v3033
    %v3156 = vunpack.c.l.b16 %v3034
    %v3157 = vunpack.c.h.b16 %v3034
    %v3158 = vunpack.c.l.b16 %v3035
    %v3159 = vunpack.c.h.b16 %v3035
    %v3160 = vunpack.c.l.b16 %v3036
    %v3161 = vunpack.c.l.b16 %v3037
    %v3162 = vunpack.c.h.b16 %v3037
    %v3163 = vunpack.c.l.b16 %v3038
    %v3164 = vunpack.c.h.b16 %v3038
    %v3165 = vunpack.c.l.b16 %v3039
    %v3166 = vunpack.c.l.b16 %v3040
    %v3167 = vunpack.c.h.b16 %v3040
    %v3168 = vunpack.c.l.b16 %v3041
    %v3169 = vunpack.c.h.b16 %v3041
    %v3170 = vunpack.c.l.b16 %v3042
    %v3171 = vpack.c.b16 %v3096, %v3091
    %v3172 = vpack.c.b16 %v3097, %v3092
    %v3173 = vpack.c.b16 %v3098, %v3093
    %v3174 = vpack.c.b16 %v3099, %v3094
    %v3175 = vpack.c.b16 %v3100, %v3095
    %v3176 = vpack.c.b16 %v3106, %v3101
    %v3177 = vpack.c.b16 %v3107, %v3102
    %v3178 = vpack.c.b16 %v3108, %v3103
    %v3179 = vpack.c.b16 %v3109, %v3104
    %v3180 = vpack.c.b16 %v3110, %v3105
    %v3181 = vpack.c.b16 %v3116, %v3111
    %v3182 = vpack.c.b16 %v3117, %v3112
    %v3183 = vpack.c.b16 %v3118, %v3113
    %v3184 = vpack.c.b16 %v3119, %v3114
    %v3185 = vpack.c.b16 %v3120, %v3115
    %v3186 = vpack.c.b16 %v3126, %v3121
    %v3187 = vpack.c.b16 %v3127, %v3122
    %v3188 = vpack.c.b16 %v3128, %v3123
    %v3189 = vpack.c.b16 %v3129, %v3124
    %v3190 = vpack.c.b16 %v3130, %v3125
    %v3191 = vpack.c.b16 %v3136, %v3131
    %v3192 = vpack.c.b16 %v3137, %v3132
    %v3193 = vpack.c.b16 %v3138, %v3133
    %v3194 = vpack.c.b16 %v3139, %v3134
    %v3195 = vpack.c.b16 %v3140, %v3135
    %v3196 = vpack.c.b16 %v3146, %v3141
    %v3197 = vpack.c.b16 %v3147, %v3142
    %v3198 = vpack.c.b16 %v3148, %v3143
    %v3199 = vpack.c.b16 %v3149, %v3144
    %v3200 = vpack.c.b16 %v3150, %v3145
    %v3201 = vpack.c.b16 %v3156, %v3151
    %v3202 = vpack.c.b16 %v3157, %v3152
    %v3203 = vpack.c.b16 %v3158, %v3153
    %v3204 = vpack.c.b16 %v3159, %v3154
    %v3205 = vpack.c.b16 %v3160, %v3155
    %v3206 = vpack.c.b16 %v3166, %v3161
    %v3207 = vpack.c.b16 %v3167, %v3162
    %v3208 = vpack.c.b16 %v3168, %v3163
    %v3209 = vpack.c.b16 %v3169, %v3164
    %v3210 = vpack.c.b16 %v3170, %v3165
    %3251 = vmatpush.bf16.msra.mxu0 %v3206
    %3252 = vmatpush.bf16.msra.mxu0 %v3201
    %3253 = vmatpush.bf16.msra.mxu0 %v3196
    %3254 = vmatpush.bf16.msra.mxu0 %v3191
    %3255 = vmatpush.bf16.msra.mxu0 %v3186
    %3256 = vmatpush.bf16.msra.mxu0 %v3181
    %3257 = vmatpush.bf16.msra.mxu0 %v3176
    %3258 = vmatpush.bf16.msra.mxu0 %v3171
    %3259 = vmatmul.bf16.gmra.mxu0 %v2991
    %v3260 = vpop.f32.mrf.mxu0
    %v3261 = vadd.f32 0.0, %v3260
    %v3262 = vpop.f32.mrf.mxu0
    %v3263 = vadd.f32 0.0, %v3262
    %3264 = vmatmul.bf16.gmra.mxu0 %v2992
    %v3265 = vpop.f32.mrf.mxu0
    %v3266 = vadd.f32 0.0, %v3265
    %v3267 = vpop.f32.mrf.mxu0
    %v3268 = vadd.f32 0.0, %v3267
    %3269 = vmatmul.bf16.gmra.mxu0 %v2993
    %v3270 = vpop.f32.mrf.mxu0
    %v3271 = vadd.f32 0.0, %v3270
    %v3272 = vpop.f32.mrf.mxu0
    %v3273 = vadd.f32 0.0, %v3272
    %3274 = vmatmul.bf16.gmra.mxu0 %v2994
    %v3275 = vpop.f32.mrf.mxu0
    %v3276 = vadd.f32 0.0, %v3275
    %v3277 = vpop.f32.mrf.mxu0
    %3278 = vdwg.mxu0
    %3279 = vmatpush.bf16.msra.mxu0 %v3207
    %3280 = vmatpush.bf16.msra.mxu0 %v3202
    %3281 = vmatpush.bf16.msra.mxu0 %v3197
    %3282 = vmatpush.bf16.msra.mxu0 %v3192
    %3283 = vmatpush.bf16.msra.mxu0 %v3187
    %3284 = vmatpush.bf16.msra.mxu0 %v3182
    %3285 = vmatpush.bf16.msra.mxu0 %v3177
    %3286 = vmatpush.bf16.msra.mxu0 %v3172
    %3287 = vmatmul.bf16.gmra.mxu0 %v2991
    %v3288 = vpop.f32.mrf.mxu0
    %v3289 = vadd.f32 0.0, %v3288
    %v3290 = vpop.f32.mrf.mxu0
    %v3291 = vadd.f32 0.0, %v3290
    %3292 = vmatmul.bf16.gmra.mxu0 %v2992
    %v3293 = vpop.f32.mrf.mxu0
    %v3294 = vadd.f32 0.0, %v3293
    %v3295 = vpop.f32.mrf.mxu0
    %v3296 = vadd.f32 0.0, %v3295
    %3297 = vmatmul.bf16.gmra.mxu0 %v2993
    %v3298 = vpop.f32.mrf.mxu0
    %v3299 = vadd.f32 0.0, %v3298
    %v3300 = vpop.f32.mrf.mxu0
    %v3301 = vadd.f32 0.0, %v3300
    %3302 = vmatmul.bf16.gmra.mxu0 %v2994
    %v3303 = vpop.f32.mrf.mxu0
    %v3304 = vadd.f32 0.0, %v3303
    %v3305 = vpop.f32.mrf.mxu0
    %3306 = vdwg.mxu0
    %3307 = vmatpush.bf16.msra.mxu0 %v3208
    %3308 = vmatpush.bf16.msra.mxu0 %v3203
    %3309 = vmatpush.bf16.msra.mxu0 %v3198
    %3310 = vmatpush.bf16.msra.mxu0 %v3193
    %3311 = vmatpush.bf16.msra.mxu0 %v3188
    %3312 = vmatpush.bf16.msra.mxu0 %v3183
    %3313 = vmatpush.bf16.msra.mxu0 %v3178
    %3314 = vmatpush.bf16.msra.mxu0 %v3173
    %3315 = vmatmul.bf16.gmra.mxu0 %v2991
    %v3316 = vpop.f32.mrf.mxu0
    %v3317 = vadd.f32 0.0, %v3316
    %v3318 = vpop.f32.mrf.mxu0
    %v3319 = vadd.f32 0.0, %v3318
    %3320 = vmatmul.bf16.gmra.mxu0 %v2992
    %v3321 = vpop.f32.mrf.mxu0
    %v3322 = vadd.f32 0.0, %v3321
    %v3323 = vpop.f32.mrf.mxu0
    %v3324 = vadd.f32 0.0, %v3323
    %3325 = vmatmul.bf16.gmra.mxu0 %v2993
    %v3326 = vpop.f32.mrf.mxu0
    %v3327 = vadd.f32 0.0, %v3326
    %v3328 = vpop.f32.mrf.mxu0
    %v3329 = vadd.f32 0.0, %v3328
    %3330 = vmatmul.bf16.gmra.mxu0 %v2994
    %v3331 = vpop.f32.mrf.mxu0
    %v3332 = vadd.f32 0.0, %v3331
    %v3333 = vpop.f32.mrf.mxu0
    %3334 = vdwg.mxu0
    %3335 = vmatpush.bf16.msra.mxu0 %v3209
    %3336 = vmatpush.bf16.msra.mxu0 %v3204
    %3337 = vmatpush.bf16.msra.mxu0 %v3199
    %3338 = vmatpush.bf16.msra.mxu0 %v3194
    %3339 = vmatpush.bf16.msra.mxu0 %v3189
    %3340 = vmatpush.bf16.msra.mxu0 %v3184
    %3341 = vmatpush.bf16.msra.mxu0 %v3179
    %3342 = vmatpush.bf16.msra.mxu0 %v3174
    %3343 = vmatmul.bf16.gmra.mxu0 %v2991
    %v3344 = vpop.f32.mrf.mxu0
    %v3345 = vadd.f32 0.0, %v3344
    %v3346 = vpop.f32.mrf.mxu0
    %v3347 = vadd.f32 0.0, %v3346
    %3348 = vmatmul.bf16.gmra.mxu0 %v2992
    %v3349 = vpop.f32.mrf.mxu0
    %v3350 = vadd.f32 0.0, %v3349
    %v3351 = vpop.f32.mrf.mxu0
    %v3352 = vadd.f32 0.0, %v3351
    %3353 = vmatmul.bf16.gmra.mxu0 %v2993
    %v3354 = vpop.f32.mrf.mxu0
    %v3355 = vadd.f32 0.0, %v3354
    %v3356 = vpop.f32.mrf.mxu0
    %v3357 = vadd.f32 0.0, %v3356
    %3358 = vmatmul.bf16.gmra.mxu0 %v2994
    %v3359 = vpop.f32.mrf.mxu0
    %v3360 = vadd.f32 0.0, %v3359
    %v3361 = vpop.f32.mrf.mxu0
    %3362 = vdwg.mxu0
    %3363 = vmatpush.bf16.msra.mxu0 %v3210
    %3364 = vmatpush.bf16.msra.mxu0 %v3205
    %3365 = vmatpush.bf16.msra.mxu0 %v3200
    %3366 = vmatpush.bf16.msra.mxu0 %v3195
    %3367 = vmatpush.bf16.msra.mxu0 %v3190
    %3368 = vmatpush.bf16.msra.mxu0 %v3185
    %3369 = vmatpush.bf16.msra.mxu0 %v3180
    %3370 = vmatpush.bf16.msra.mxu0 %v3175
    %3371 = vmatmul.bf16.gmra.mxu0 %v2991
    %v3372 = vpop.f32.mrf.mxu0
    %v3373 = vadd.f32 0.0, %v3372
    %v3374 = vpop.f32.mrf.mxu0
    %v3375 = vadd.f32 0.0, %v3374
    %3376 = vmatmul.bf16.gmra.mxu0 %v2992
    %v3377 = vpop.f32.mrf.mxu0
    %v3378 = vadd.f32 0.0, %v3377
    %v3379 = vpop.f32.mrf.mxu0
    %v3380 = vadd.f32 0.0, %v3379
    %3381 = vmatmul.bf16.gmra.mxu0 %v2993
    %v3382 = vpop.f32.mrf.mxu0
    %v3383 = vadd.f32 0.0, %v3382
    %v3384 = vpop.f32.mrf.mxu0
    %v3385 = vadd.f32 0.0, %v3384
    %3386 = vmatmul.bf16.gmra.mxu0 %v2994
    %v3387 = vpop.f32.mrf.mxu0
    %v3388 = vadd.f32 0.0, %v3387
    %v3389 = vpop.f32.mrf.mxu0
    %3390 = vdwg.mxu0
    %v3391 = vpack.c.bf16 %v3289, %v3261
    %v3392 = vpack.c.bf16 %v3345, %v3317
    %v3393 = vpack.c.bf16 %v3373, %v3373
    %v3394 = vpack.c.bf16 %v3291, %v3263
    %v3395 = vpack.c.bf16 %v3347, %v3319
    %v3396 = vpack.c.bf16 %v3375, %v3375
    %v3397 = vpack.c.bf16 %v3294, %v3266
    %v3398 = vpack.c.bf16 %v3350, %v3322
    %v3399 = vpack.c.bf16 %v3378, %v3378
    %v3400 = vpack.c.bf16 %v3296, %v3268
    %v3401 = vpack.c.bf16 %v3352, %v3324
    %v3402 = vpack.c.bf16 %v3380, %v3380
    %v3403 = vpack.c.bf16 %v3299, %v3271
    %v3404 = vpack.c.bf16 %v3355, %v3327
    %v3405 = vpack.c.bf16 %v3383, %v3383
    %v3406 = vpack.c.bf16 %v3301, %v3273
    %v3407 = vpack.c.bf16 %v3357, %v3329
    %v3408 = vpack.c.bf16 %v3385, %v3385
    %v3409 = vpack.c.bf16 %v3304, %v3276
    %v3410 = vpack.c.bf16 %v3360, %v3332
    %v3411 = vpack.c.bf16 %v3388, %v3388
    %v3412 = vld [vmem:[%s6] sm:$0xf]
    %v3413 = vld [vmem:[%s6 + $0x4] sm:$0xf]
    %v3414 = vld [vmem:[%s6 + $0x8] sm:$0xf]
    %v3415 = vld [vmem:[%s6 + $0xc] sm:$0xf]
    %v3416 = vld [vmem:[%s6 + $0x10] sm:$0xf]
    %v3417 = vld [vmem:[%s6 + $0x14] sm:$0xf]
    %v3418 = vld [vmem:[%s6 + $0x18] sm:$0xf]
    %s3419 = scalar_lea.vmem %s6, 28
    %v3420 = vld [vmem:[%s3419] sm:$0xf]
    %v3421 = vld [vmem:[%s3419 + $0x4] sm:$0xf]
    %v3422 = vld [vmem:[%s3419 + $0x8] sm:$0xf]
    %v3423 = vld [vmem:[%s3419 + $0xc] sm:$0xf]
    %v3424 = vld [vmem:[%s3419 + $0x10] sm:$0xf]
    %v3425 = vld [vmem:[%s3419 + $0x14] sm:$0xf]
    %v3426 = vld [vmem:[%s3419 + $0x18] sm:$0xf]
    %s3427 = scalar_lea.vmem %s6, 56
    %v3428 = vld [vmem:[%s3427] sm:$0xf]
    %v3429 = vld [vmem:[%s3427 + $0x4] sm:$0xf]
    %v3430 = vld [vmem:[%s3427 + $0x8] sm:$0xf]
    %v3431 = vld [vmem:[%s3427 + $0xc] sm:$0xf]
    %v3432 = vld [vmem:[%s3427 + $0x10] sm:$0xf]
    %v3433 = vld [vmem:[%s3427 + $0x14] sm:$0xf]
    %v3434 = vld [vmem:[%s3427 + $0x18] sm:$0xf]
    %v3442 = vunpack.c.l.b16 %v3428
    %v3443 = vunpack.c.l.b16 %v3429
    %v3444 = vunpack.c.l.b16 %v3430
    %v3445 = vunpack.c.l.b16 %v3431
    %v3446 = vunpack.c.l.b16 %v3432
    %v3447 = vunpack.c.l.b16 %v3433
    %v3448 = vunpack.c.l.b16 %v3434
    %v3449 = vpack.c.b16 %v3443, %v3442
    %v3450 = vpack.c.b16 %v3445, %v3444
    %v3451 = vpack.c.b16 %v3447, %v3446
    %v3452 = vpack.c.b16 %v3448, %v3448
    %v3460 = vunpack.c.h.b16 %v3391
    %v3461 = vunpack.c.h.b16 %v3394
    %v3462 = vunpack.c.h.b16 %v3397
    %v3463 = vunpack.c.h.b16 %v3400
    %v3464 = vunpack.c.h.b16 %v3403
    %v3465 = vunpack.c.h.b16 %v3406
    %v3466 = vunpack.c.h.b16 %v3409
    %v3467 = vpack.c.b16 %v3461, %v3460
    %v3468 = vpack.c.b16 %v3463, %v3462
    %v3469 = vpack.c.b16 %v3465, %v3464
    %v3470 = vpack.c.b16 %v3466, %v3466
    %v3475 = vsel %vm2164, %v3449, 0
    %v3478 = vsel %vm2164, %v3450, 0
    %v3481 = vsel %vm2164, %v3451, 0
    %v3484 = vsel %vm2164, %v3452, 0
    %v3487 = vand.u32 %v3470, %v2179
    %3489 = vmatpush.bf16.msra.mxu0 0
    %3490 = vmatpush.bf16.msra.mxu0 0
    %3491 = vmatpush.bf16.msra.mxu0 0
    %3492 = vmatpush.bf16.msra.mxu0 0
    %3493 = vmatpush.bf16.msra.mxu0 %v3487
    %3494 = vmatpush.bf16.msra.mxu0 %v3469
    %3495 = vmatpush.bf16.msra.mxu0 %v3468
    %3496 = vmatpush.bf16.msra.mxu0 %v3467
    %3497 = vmatmul.bf16.gmra.mxu0 %v3475
    %v3498 = vpop.f32.mrf.mxu0
    %v3499 = vadd.f32 0.0, %v3498
    %v3500 = vpop.f32.mrf.mxu0
    %v3501 = vadd.f32 0.0, %v3500
    %3502 = vmatmul.bf16.gmra.mxu0 %v3478
    %v3503 = vpop.f32.mrf.mxu0
    %v3504 = vadd.f32 0.0, %v3503
    %v3505 = vpop.f32.mrf.mxu0
    %v3506 = vadd.f32 0.0, %v3505
    %3507 = vmatmul.bf16.gmra.mxu0 %v3481
    %v3508 = vpop.f32.mrf.mxu0
    %v3509 = vadd.f32 0.0, %v3508
    %v3510 = vpop.f32.mrf.mxu0
    %v3511 = vadd.f32 0.0, %v3510
    %3512 = vmatmul.bf16.gmra.mxu0 %v3484
    %v3513 = vpop.f32.mrf.mxu0
    %v3514 = vadd.f32 0.0, %v3513
    %v3515 = vpop.f32.mrf.mxu0
    %3516 = vdwg.mxu0
    %v3524 = vunpack.c.l.b16 %v3412
    %v3525 = vunpack.c.l.b16 %v3413
    %v3526 = vunpack.c.l.b16 %v3414
    %v3527 = vunpack.c.l.b16 %v3415
    %v3528 = vunpack.c.l.b16 %v3416
    %v3529 = vunpack.c.l.b16 %v3417
    %v3530 = vunpack.c.l.b16 %v3418
    %v3531 = vpack.c.b16 %v3525, %v3524
    %v3532 = vpack.c.b16 %v3527, %v3526
    %v3533 = vpack.c.b16 %v3529, %v3528
    %v3534 = vpack.c.b16 %v3530, %v3530
    %v3535 = vunpack.c.l.b16 %v3391
    %v3536 = vunpack.c.l.b16 %v3394
    %v3537 = vunpack.c.l.b16 %v3397
    %v3538 = vunpack.c.l.b16 %v3400
    %v3539 = vunpack.c.l.b16 %v3403
    %v3540 = vunpack.c.l.b16 %v3406
    %v3541 = vunpack.c.l.b16 %v3409
    %v3542 = vpack.c.b16 %v3536, %v3535
    %v3543 = vpack.c.b16 %v3538, %v3537
    %v3544 = vpack.c.b16 %v3540, %v3539
    %v3545 = vpack.c.b16 %v3541, %v3541
    %v3550 = vsel %vm2164, %v3531, 0
    %v3553 = vsel %vm2164, %v3532, 0
    %v3556 = vsel %vm2164, %v3533, 0
    %v3559 = vsel %vm2164, %v3534, 0
    %v3562 = vand.u32 %v3545, %v2179
    %3564 = vmatpush.bf16.msra.mxu0 0
    %3565 = vmatpush.bf16.msra.mxu0 0
    %3566 = vmatpush.bf16.msra.mxu0 0
    %3567 = vmatpush.bf16.msra.mxu0 0
    %3568 = vmatpush.bf16.msra.mxu0 %v3562
    %3569 = vmatpush.bf16.msra.mxu0 %v3544
    %3570 = vmatpush.bf16.msra.mxu0 %v3543
    %3571 = vmatpush.bf16.msra.mxu0 %v3542
    %3572 = vmatmul.bf16.gmra.mxu0 %v3550
    %v3573 = vpop.f32.mrf.mxu0
    %v3574 = vadd.f32 %v3499, %v3573
    %v3575 = vpop.f32.mrf.mxu0
    %v3576 = vadd.f32 %v3501, %v3575
    %3577 = vmatmul.bf16.gmra.mxu0 %v3553
    %v3578 = vpop.f32.mrf.mxu0
    %v3579 = vadd.f32 %v3504, %v3578
    %v3580 = vpop.f32.mrf.mxu0
    %v3581 = vadd.f32 %v3506, %v3580
    %3582 = vmatmul.bf16.gmra.mxu0 %v3556
    %v3583 = vpop.f32.mrf.mxu0
    %v3584 = vadd.f32 %v3509, %v3583
    %v3585 = vpop.f32.mrf.mxu0
    %v3586 = vadd.f32 %v3511, %v3585
    %3587 = vmatmul.bf16.gmra.mxu0 %v3559
    %v3588 = vpop.f32.mrf.mxu0
    %v3589 = vadd.f32 %v3514, %v3588
    %v3590 = vpop.f32.mrf.mxu0
    %3591 = vdwg.mxu0
    %s3592 = scalar_lea.vmem %s6, 84
    %v3593 = vld [vmem:[%s3592] sm:$0xf]
    %v3594 = vld [vmem:[%s3592 + $0x4] sm:$0xf]
    %v3595 = vld [vmem:[%s3592 + $0x8] sm:$0xf]
    %v3596 = vld [vmem:[%s3592 + $0xc] sm:$0xf]
    %v3597 = vld [vmem:[%s3592 + $0x10] sm:$0xf]
    %v3598 = vld [vmem:[%s3592 + $0x14] sm:$0xf]
    %v3599 = vld [vmem:[%s3592 + $0x18] sm:$0xf]
    %s3600 = scalar_lea.vmem %s6, 112
    %v3601 = vld [vmem:[%s3600] sm:$0xf]
    %v3602 = vld [vmem:[%s3600 + $0x4] sm:$0xf]
    %v3603 = vld [vmem:[%s3600 + $0x8] sm:$0xf]
    %v3604 = vld [vmem:[%s3600 + $0xc] sm:$0xf]
    %v3605 = vld [vmem:[%s3600 + $0x10] sm:$0xf]
    %v3606 = vld [vmem:[%s3600 + $0x14] sm:$0xf]
    %v3607 = vld [vmem:[%s3600 + $0x18] sm:$0xf]
    %s3608 = scalar_lea.vmem %s6, 140
    %v3609 = vld [vmem:[%s3608] sm:$0xf]
    %v3610 = vld [vmem:[%s3608 + $0x4] sm:$0xf]
    %v3611 = vld [vmem:[%s3608 + $0x8] sm:$0xf]
    %v3612 = vld [vmem:[%s3608 + $0xc] sm:$0xf]
    %v3613 = vld [vmem:[%s3608 + $0x10] sm:$0xf]
    %v3614 = vld [vmem:[%s3608 + $0x14] sm:$0xf]
    %v3615 = vld [vmem:[%s3608 + $0x18] sm:$0xf]
    %v3623 = vunpack.c.l.b16 %v3609
    %v3624 = vunpack.c.l.b16 %v3610
    %v3625 = vunpack.c.l.b16 %v3611
    %v3626 = vunpack.c.l.b16 %v3612
    %v3627 = vunpack.c.l.b16 %v3613
    %v3628 = vunpack.c.l.b16 %v3614
    %v3629 = vunpack.c.l.b16 %v3615
    %v3630 = vpack.c.b16 %v3624, %v3623
    %v3631 = vpack.c.b16 %v3626, %v3625
    %v3632 = vpack.c.b16 %v3628, %v3627
    %v3633 = vpack.c.b16 %v3629, %v3629
    %v3641 = vunpack.c.l.b16 %v3392
    %v3642 = vunpack.c.l.b16 %v3395
    %v3643 = vunpack.c.l.b16 %v3398
    %v3644 = vunpack.c.l.b16 %v3401
    %v3645 = vunpack.c.l.b16 %v3404
    %v3646 = vunpack.c.l.b16 %v3407
    %v3647 = vunpack.c.l.b16 %v3410
    %v3648 = vpack.c.b16 %v3642, %v3641
    %v3649 = vpack.c.b16 %v3644, %v3643
    %v3650 = vpack.c.b16 %v3646, %v3645
    %v3651 = vpack.c.b16 %v3647, %v3647
    %3652 = vrot.lane.b32.xlu0 %v3648, 64
    %v3653 = vpop.permute.xlu0 %3652
    %3654 = vrot.lane.b32.xlu0 %v3649, 64
    %v3655 = vpop.permute.xlu0 %3654
    %3656 = vrot.lane.b32.xlu0 %v3650, 64
    %v3657 = vpop.permute.xlu0 %3656
    %3658 = vrot.lane.b32.xlu0 %v3651, 64
    %v3659 = vpop.permute.xlu0 %3658
    %v3664 = vsel %vm2164, %v3630, 0
    %v3667 = vsel %vm2164, %v3631, 0
    %v3670 = vsel %vm2164, %v3632, 0
    %v3673 = vsel %vm2164, %v3633, 0
    %v3676 = vand.u32 %v3659, %v2179
    %3678 = vmatpush.bf16.msra.mxu0 0
    %3679 = vmatpush.bf16.msra.mxu0 0
    %3680 = vmatpush.bf16.msra.mxu0 0
    %3681 = vmatpush.bf16.msra.mxu0 0
    %3682 = vmatpush.bf16.msra.mxu0 %v3676
    %3683 = vmatpush.bf16.msra.mxu0 %v3657
    %3684 = vmatpush.bf16.msra.mxu0 %v3655
    %3685 = vmatpush.bf16.msra.mxu0 %v3653
    %3686 = vmatmul.bf16.gmra.mxu0 %v3664
    %v3687 = vpop.f32.mrf.mxu0
    %v3688 = vadd.f32 0.0, %v3687
    %v3689 = vpop.f32.mrf.mxu0
    %v3690 = vadd.f32 0.0, %v3689
    %3691 = vmatmul.bf16.gmra.mxu0 %v3667
    %v3692 = vpop.f32.mrf.mxu0
    %v3693 = vadd.f32 0.0, %v3692
    %v3694 = vpop.f32.mrf.mxu0
    %v3695 = vadd.f32 0.0, %v3694
    %3696 = vmatmul.bf16.gmra.mxu0 %v3670
    %v3697 = vpop.f32.mrf.mxu0
    %v3698 = vadd.f32 0.0, %v3697
    %v3699 = vpop.f32.mrf.mxu0
    %v3700 = vadd.f32 0.0, %v3699
    %3701 = vmatmul.bf16.gmra.mxu0 %v3673
    %v3702 = vpop.f32.mrf.mxu0
    %v3703 = vadd.f32 0.0, %v3702
    %v3704 = vpop.f32.mrf.mxu0
    %3705 = vdwg.mxu0
    %v3713 = vunpack.c.l.b16 %v3593
    %v3714 = vunpack.c.l.b16 %v3594
    %v3715 = vunpack.c.l.b16 %v3595
    %v3716 = vunpack.c.l.b16 %v3596
    %v3717 = vunpack.c.l.b16 %v3597
    %v3718 = vunpack.c.l.b16 %v3598
    %v3719 = vunpack.c.l.b16 %v3599
    %v3720 = vpack.c.b16 %v3714, %v3713
    %v3721 = vpack.c.b16 %v3716, %v3715
    %v3722 = vpack.c.b16 %v3718, %v3717
    %v3723 = vpack.c.b16 %v3719, %v3719
    %3724 = vrot.lane.b32.xlu0 %v3467, 64
    %v3725 = vpop.permute.xlu0 %3724
    %3726 = vrot.lane.b32.xlu0 %v3468, 64
    %v3727 = vpop.permute.xlu0 %3726
    %3728 = vrot.lane.b32.xlu0 %v3469, 64
    %v3729 = vpop.permute.xlu0 %3728
    %3730 = vrot.lane.b32.xlu0 %v3470, 64
    %v3731 = vpop.permute.xlu0 %3730
    %v3736 = vsel %vm2164, %v3720, 0
    %v3739 = vsel %vm2164, %v3721, 0
    %v3742 = vsel %vm2164, %v3722, 0
    %v3745 = vsel %vm2164, %v3723, 0
    %v3748 = vand.u32 %v3731, %v2179
    %3750 = vmatpush.bf16.msra.mxu0 0
    %3751 = vmatpush.bf16.msra.mxu0 0
    %3752 = vmatpush.bf16.msra.mxu0 0
    %3753 = vmatpush.bf16.msra.mxu0 0
    %3754 = vmatpush.bf16.msra.mxu0 %v3748
    %3755 = vmatpush.bf16.msra.mxu0 %v3729
    %3756 = vmatpush.bf16.msra.mxu0 %v3727
    %3757 = vmatpush.bf16.msra.mxu0 %v3725
    %3758 = vmatmul.bf16.gmra.mxu0 %v3736
    %v3759 = vpop.f32.mrf.mxu0
    %v3760 = vadd.f32 %v3688, %v3759
    %v3761 = vpop.f32.mrf.mxu0
    %v3762 = vadd.f32 %v3690, %v3761
    %3763 = vmatmul.bf16.gmra.mxu0 %v3739
    %v3764 = vpop.f32.mrf.mxu0
    %v3765 = vadd.f32 %v3693, %v3764
    %v3766 = vpop.f32.mrf.mxu0
    %v3767 = vadd.f32 %v3695, %v3766
    %3768 = vmatmul.bf16.gmra.mxu0 %v3742
    %v3769 = vpop.f32.mrf.mxu0
    %v3770 = vadd.f32 %v3698, %v3769
    %v3771 = vpop.f32.mrf.mxu0
    %v3772 = vadd.f32 %v3700, %v3771
    %3773 = vmatmul.bf16.gmra.mxu0 %v3745
    %v3774 = vpop.f32.mrf.mxu0
    %v3775 = vadd.f32 %v3703, %v3774
    %v3776 = vpop.f32.mrf.mxu0
    %3777 = vdwg.mxu0
    %s3778 = scalar_lea.vmem %s6, 168
    %v3779 = vld [vmem:[%s3778] sm:$0xf]
    %v3780 = vld [vmem:[%s3778 + $0x4] sm:$0xf]
    %v3781 = vld [vmem:[%s3778 + $0x8] sm:$0xf]
    %v3782 = vld [vmem:[%s3778 + $0xc] sm:$0xf]
    %v3783 = vld [vmem:[%s3778 + $0x10] sm:$0xf]
    %v3784 = vld [vmem:[%s3778 + $0x14] sm:$0xf]
    %v3785 = vld [vmem:[%s3778 + $0x18] sm:$0xf]
    %v3793 = vunpack.c.l.b16 %v3779
    %v3794 = vunpack.c.l.b16 %v3780
    %v3795 = vunpack.c.l.b16 %v3781
    %v3796 = vunpack.c.l.b16 %v3782
    %v3797 = vunpack.c.l.b16 %v3783
    %v3798 = vunpack.c.l.b16 %v3784
    %v3799 = vunpack.c.l.b16 %v3785
    %v3800 = vpack.c.b16 %v3794, %v3793
    %v3801 = vpack.c.b16 %v3796, %v3795
    %v3802 = vpack.c.b16 %v3798, %v3797
    %v3803 = vpack.c.b16 %v3799, %v3799
    %v3804 = vunpack.c.h.b16 %v3392
    %v3805 = vunpack.c.h.b16 %v3395
    %v3806 = vunpack.c.h.b16 %v3398
    %v3807 = vunpack.c.h.b16 %v3401
    %v3808 = vunpack.c.h.b16 %v3404
    %v3809 = vunpack.c.h.b16 %v3407
    %v3810 = vunpack.c.h.b16 %v3410
    %v3811 = vpack.c.b16 %v3805, %v3804
    %v3812 = vpack.c.b16 %v3807, %v3806
    %v3813 = vpack.c.b16 %v3809, %v3808
    %v3814 = vpack.c.b16 %v3810, %v3810
    %v3819 = vsel %vm2164, %v3800, 0
    %v3822 = vsel %vm2164, %v3801, 0
    %v3825 = vsel %vm2164, %v3802, 0
    %v3828 = vsel %vm2164, %v3803, 0
    %v3831 = vand.u32 %v3814, %v2179
    %3833 = vmatpush.bf16.msra.mxu0 0
    %3834 = vmatpush.bf16.msra.mxu0 0
    %3835 = vmatpush.bf16.msra.mxu0 0
    %3836 = vmatpush.bf16.msra.mxu0 0
    %3837 = vmatpush.bf16.msra.mxu0 %v3831
    %3838 = vmatpush.bf16.msra.mxu0 %v3813
    %3839 = vmatpush.bf16.msra.mxu0 %v3812
    %3840 = vmatpush.bf16.msra.mxu0 %v3811
    %3841 = vmatmul.bf16.gmra.mxu0 %v3819
    %v3842 = vpop.f32.mrf.mxu0
    %v3843 = vadd.f32 0.0, %v3842
    %v3844 = vpop.f32.mrf.mxu0
    %v3845 = vadd.f32 0.0, %v3844
    %3846 = vmatmul.bf16.gmra.mxu0 %v3822
    %v3847 = vpop.f32.mrf.mxu0
    %v3848 = vadd.f32 0.0, %v3847
    %v3849 = vpop.f32.mrf.mxu0
    %v3850 = vadd.f32 0.0, %v3849
    %3851 = vmatmul.bf16.gmra.mxu0 %v3825
    %v3852 = vpop.f32.mrf.mxu0
    %v3853 = vadd.f32 0.0, %v3852
    %v3854 = vpop.f32.mrf.mxu0
    %v3855 = vadd.f32 0.0, %v3854
    %3856 = vmatmul.bf16.gmra.mxu0 %v3828
    %v3857 = vpop.f32.mrf.mxu0
    %v3858 = vadd.f32 0.0, %v3857
    %v3859 = vpop.f32.mrf.mxu0
    %3860 = vdwg.mxu0
    %v3861 = vadd.f32 %v3574, %v3843
    %v3862 = vadd.f32 %v3576, %v3845
    %v3863 = vadd.f32 %v3579, %v3848
    %v3864 = vadd.f32 %v3581, %v3850
    %v3865 = vadd.f32 %v3584, %v3853
    %v3866 = vadd.f32 %v3586, %v3855
    %v3867 = vadd.f32 %v3589, %v3858
    %s3868 = scalar_lea.vmem %s6, 196
    %v3869 = vld [vmem:[%s3868] sm:$0xf]
    %v3870 = vld [vmem:[%s3868 + $0x4] sm:$0xf]
    %v3871 = vld [vmem:[%s3868 + $0x8] sm:$0xf]
    %v3872 = vld [vmem:[%s3868 + $0xc] sm:$0xf]
    %v3873 = vld [vmem:[%s3868 + $0x10] sm:$0xf]
    %v3874 = vld [vmem:[%s3868 + $0x14] sm:$0xf]
    %v3875 = vld [vmem:[%s3868 + $0x18] sm:$0xf]
    %v3883 = vunpack.c.l.b16 %v3869
    %v3884 = vunpack.c.l.b16 %v3870
    %v3885 = vunpack.c.l.b16 %v3871
    %v3886 = vunpack.c.l.b16 %v3872
    %v3887 = vunpack.c.l.b16 %v3873
    %v3888 = vunpack.c.l.b16 %v3874
    %v3889 = vunpack.c.l.b16 %v3875
    %v3890 = vpack.c.b16 %v3884, %v3883
    %v3891 = vpack.c.b16 %v3886, %v3885
    %v3892 = vpack.c.b16 %v3888, %v3887
    %v3893 = vpack.c.b16 %v3889, %v3889
    %3894 = vrot.lane.b32.xlu0 %v3811, 64
    %v3895 = vpop.permute.xlu0 %3894
    %3896 = vrot.lane.b32.xlu0 %v3812, 64
    %v3897 = vpop.permute.xlu0 %3896
    %3898 = vrot.lane.b32.xlu0 %v3813, 64
    %v3899 = vpop.permute.xlu0 %3898
    %3900 = vrot.lane.b32.xlu0 %v3814, 64
    %v3901 = vpop.permute.xlu0 %3900
    %v3906 = vsel %vm2164, %v3890, 0
    %v3909 = vsel %vm2164, %v3891, 0
    %v3912 = vsel %vm2164, %v3892, 0
    %v3915 = vsel %vm2164, %v3893, 0
    %v3918 = vand.u32 %v3901, %v2179
    %3920 = vmatpush.bf16.msra.mxu0 0
    %3921 = vmatpush.bf16.msra.mxu0 0
    %3922 = vmatpush.bf16.msra.mxu0 0
    %3923 = vmatpush.bf16.msra.mxu0 0
    %3924 = vmatpush.bf16.msra.mxu0 %v3918
    %3925 = vmatpush.bf16.msra.mxu0 %v3899
    %3926 = vmatpush.bf16.msra.mxu0 %v3897
    %3927 = vmatpush.bf16.msra.mxu0 %v3895
    %3928 = vmatmul.bf16.gmra.mxu0 %v3906
    %v3929 = vpop.f32.mrf.mxu0
    %v3930 = vadd.f32 0.0, %v3929
    %v3931 = vpop.f32.mrf.mxu0
    %v3932 = vadd.f32 0.0, %v3931
    %3933 = vmatmul.bf16.gmra.mxu0 %v3909
    %v3934 = vpop.f32.mrf.mxu0
    %v3935 = vadd.f32 0.0, %v3934
    %v3936 = vpop.f32.mrf.mxu0
    %v3937 = vadd.f32 0.0, %v3936
    %3938 = vmatmul.bf16.gmra.mxu0 %v3912
    %v3939 = vpop.f32.mrf.mxu0
    %v3940 = vadd.f32 0.0, %v3939
    %v3941 = vpop.f32.mrf.mxu0
    %v3942 = vadd.f32 0.0, %v3941
    %3943 = vmatmul.bf16.gmra.mxu0 %v3915
    %v3944 = vpop.f32.mrf.mxu0
    %v3945 = vadd.f32 0.0, %v3944
    %v3946 = vpop.f32.mrf.mxu0
    %3947 = vdwg.mxu0
    %v3955 = vunpack.c.l.b16 %v3420
    %v3956 = vunpack.c.l.b16 %v3421
    %v3957 = vunpack.c.l.b16 %v3422
    %v3958 = vunpack.c.l.b16 %v3423
    %v3959 = vunpack.c.l.b16 %v3424
    %v3960 = vunpack.c.l.b16 %v3425
    %v3961 = vunpack.c.l.b16 %v3426
    %v3962 = vpack.c.b16 %v3956, %v3955
    %v3963 = vpack.c.b16 %v3958, %v3957
    %v3964 = vpack.c.b16 %v3960, %v3959
    %v3965 = vpack.c.b16 %v3961, %v3961
    %3966 = vrot.lane.b32.xlu0 %v3542, 64
    %v3967 = vpop.permute.xlu0 %3966
    %3968 = vrot.lane.b32.xlu0 %v3543, 64
    %v3969 = vpop.permute.xlu0 %3968
    %3970 = vrot.lane.b32.xlu0 %v3544, 64
    %v3971 = vpop.permute.xlu0 %3970
    %3972 = vrot.lane.b32.xlu0 %v3545, 64
    %v3973 = vpop.permute.xlu0 %3972
    %v3978 = vsel %vm2164, %v3962, 0
    %v3981 = vsel %vm2164, %v3963, 0
    %v3984 = vsel %vm2164, %v3964, 0
    %v3987 = vsel %vm2164, %v3965, 0
    %v3990 = vand.u32 %v3973, %v2179
    %3992 = vmatpush.bf16.msra.mxu0 0
    %3993 = vmatpush.bf16.msra.mxu0 0
    %3994 = vmatpush.bf16.msra.mxu0 0
    %3995 = vmatpush.bf16.msra.mxu0 0
    %3996 = vmatpush.bf16.msra.mxu0 %v3990
    %3997 = vmatpush.bf16.msra.mxu0 %v3971
    %3998 = vmatpush.bf16.msra.mxu0 %v3969
    %3999 = vmatpush.bf16.msra.mxu0 %v3967
    %4000 = vmatmul.bf16.gmra.mxu0 %v3978
    %v4001 = vpop.f32.mrf.mxu0
    %v4002 = vadd.f32 %v3930, %v4001
    %v4003 = vpop.f32.mrf.mxu0
    %v4004 = vadd.f32 %v3932, %v4003
    %4005 = vmatmul.bf16.gmra.mxu0 %v3981
    %v4006 = vpop.f32.mrf.mxu0
    %v4007 = vadd.f32 %v3935, %v4006
    %v4008 = vpop.f32.mrf.mxu0
    %v4009 = vadd.f32 %v3937, %v4008
    %4010 = vmatmul.bf16.gmra.mxu0 %v3984
    %v4011 = vpop.f32.mrf.mxu0
    %v4012 = vadd.f32 %v3940, %v4011
    %v4013 = vpop.f32.mrf.mxu0
    %v4014 = vadd.f32 %v3942, %v4013
    %4015 = vmatmul.bf16.gmra.mxu0 %v3987
    %v4016 = vpop.f32.mrf.mxu0
    %v4017 = vadd.f32 %v3945, %v4016
    %v4018 = vpop.f32.mrf.mxu0
    %4019 = vdwg.mxu0
    %s4020 = scalar_lea.vmem %s6, 224
    %v4021 = vld [vmem:[%s4020] sm:$0xf]
    %v4022 = vld [vmem:[%s4020 + $0x4] sm:$0xf]
    %v4023 = vld [vmem:[%s4020 + $0x8] sm:$0xf]
    %v4024 = vld [vmem:[%s4020 + $0xc] sm:$0xf]
    %v4025 = vld [vmem:[%s4020 + $0x10] sm:$0xf]
    %v4026 = vld [vmem:[%s4020 + $0x14] sm:$0xf]
    %v4027 = vld [vmem:[%s4020 + $0x18] sm:$0xf]
    %v4035 = vunpack.c.l.b16 %v4021
    %v4036 = vunpack.c.l.b16 %v4022
    %v4037 = vunpack.c.l.b16 %v4023
    %v4038 = vunpack.c.l.b16 %v4024
    %v4039 = vunpack.c.l.b16 %v4025
    %v4040 = vunpack.c.l.b16 %v4026
    %v4041 = vunpack.c.l.b16 %v4027
    %v4042 = vpack.c.b16 %v4036, %v4035
    %v4043 = vpack.c.b16 %v4038, %v4037
    %v4044 = vpack.c.b16 %v4040, %v4039
    %v4045 = vpack.c.b16 %v4041, %v4041
    %v4053 = vunpack.c.l.b16 %v3393
    %v4054 = vunpack.c.l.b16 %v3396
    %v4055 = vunpack.c.l.b16 %v3399
    %v4056 = vunpack.c.l.b16 %v3402
    %v4057 = vunpack.c.l.b16 %v3405
    %v4058 = vunpack.c.l.b16 %v3408
    %v4059 = vunpack.c.l.b16 %v3411
    %v4060 = vpack.c.b16 %v4054, %v4053
    %v4061 = vpack.c.b16 %v4056, %v4055
    %v4062 = vpack.c.b16 %v4058, %v4057
    %v4063 = vpack.c.b16 %v4059, %v4059
    %v4068 = vsel %vm2164, %v4042, 0
    %v4071 = vsel %vm2164, %v4043, 0
    %v4074 = vsel %vm2164, %v4044, 0
    %v4077 = vsel %vm2164, %v4045, 0
    %v4080 = vand.u32 %v4063, %v2179
    %4082 = vmatpush.bf16.msra.mxu0 0
    %4083 = vmatpush.bf16.msra.mxu0 0
    %4084 = vmatpush.bf16.msra.mxu0 0
    %4085 = vmatpush.bf16.msra.mxu0 0
    %4086 = vmatpush.bf16.msra.mxu0 %v4080
    %4087 = vmatpush.bf16.msra.mxu0 %v4062
    %4088 = vmatpush.bf16.msra.mxu0 %v4061
    %4089 = vmatpush.bf16.msra.mxu0 %v4060
    %4090 = vmatmul.bf16.gmra.mxu0 %v4068
    %v4091 = vpop.f32.mrf.mxu0
    %v4092 = vadd.f32 0.0, %v4091
    %v4093 = vpop.f32.mrf.mxu0
    %v4094 = vadd.f32 0.0, %v4093
    %4095 = vmatmul.bf16.gmra.mxu0 %v4071
    %v4096 = vpop.f32.mrf.mxu0
    %v4097 = vadd.f32 0.0, %v4096
    %v4098 = vpop.f32.mrf.mxu0
    %v4099 = vadd.f32 0.0, %v4098
    %4100 = vmatmul.bf16.gmra.mxu0 %v4074
    %v4101 = vpop.f32.mrf.mxu0
    %v4102 = vadd.f32 0.0, %v4101
    %v4103 = vpop.f32.mrf.mxu0
    %v4104 = vadd.f32 0.0, %v4103
    %4105 = vmatmul.bf16.gmra.mxu0 %v4077
    %v4106 = vpop.f32.mrf.mxu0
    %v4107 = vadd.f32 0.0, %v4106
    %v4108 = vpop.f32.mrf.mxu0
    %4109 = vdwg.mxu0
    %v4110 = vadd.f32 %v3861, %v4092
    %v4111 = vadd.f32 %v3862, %v4094
    %v4112 = vadd.f32 %v3863, %v4097
    %v4113 = vadd.f32 %v3864, %v4099
    %v4114 = vadd.f32 %v3865, %v4102
    %v4115 = vadd.f32 %v3866, %v4104
    %v4116 = vadd.f32 %v3867, %v4107
    %s4117 = scalar_lea.vmem %s3, 4
    %v4118 = vld [vmem:[%s4117] sm:$0xf]
    %v4119 = vperm.slane %v4118, 0
    %v4127 = vunpack.c.l.b16 %v3601
    %v4128 = vunpack.c.l.b16 %v3602
    %v4129 = vunpack.c.l.b16 %v3603
    %v4130 = vunpack.c.l.b16 %v3604
    %v4131 = vunpack.c.l.b16 %v3605
    %v4132 = vunpack.c.l.b16 %v3606
    %v4133 = vunpack.c.l.b16 %v3607
    %v4134 = vpack.c.b16 %v4128, %v4127
    %v4135 = vpack.c.b16 %v4130, %v4129
    %v4136 = vpack.c.b16 %v4132, %v4131
    %v4137 = vpack.c.b16 %v4133, %v4133
    %v4142 = vsel %vm2164, %v4134, 0
    %v4145 = vsel %vm2164, %v4135, 0
    %v4148 = vsel %vm2164, %v4136, 0
    %v4151 = vsel %vm2164, %v4137, 0
    %v4154 = vand.u32 %v3651, %v2179
    %4156 = vmatpush.bf16.msra.mxu0 0
    %4157 = vmatpush.bf16.msra.mxu0 0
    %4158 = vmatpush.bf16.msra.mxu0 0
    %4159 = vmatpush.bf16.msra.mxu0 0
    %4160 = vmatpush.bf16.msra.mxu0 %v4154
    %4161 = vmatpush.bf16.msra.mxu0 %v3650
    %4162 = vmatpush.bf16.msra.mxu0 %v3649
    %4163 = vmatpush.bf16.msra.mxu0 %v3648
    %4164 = vmatmul.bf16.gmra.mxu0 %v4142
    %v4165 = vpop.f32.mrf.mxu0
    %v4166 = vadd.f32 %v4119, %v4165
    %v4167 = vpop.f32.mrf.mxu0
    %v4168 = vadd.f32 %v4119, %v4167
    %4169 = vmatmul.bf16.gmra.mxu0 %v4145
    %v4170 = vpop.f32.mrf.mxu0
    %v4171 = vadd.f32 %v4119, %v4170
    %v4172 = vpop.f32.mrf.mxu0
    %v4173 = vadd.f32 %v4119, %v4172
    %4174 = vmatmul.bf16.gmra.mxu0 %v4148
    %v4175 = vpop.f32.mrf.mxu0
    %v4176 = vadd.f32 %v4119, %v4175
    %v4177 = vpop.f32.mrf.mxu0
    %v4178 = vadd.f32 %v4119, %v4177
    %4179 = vmatmul.bf16.gmra.mxu0 %v4151
    %v4180 = vpop.f32.mrf.mxu0
    %v4181 = vadd.f32 %v4119, %v4180
    %v4182 = vpop.f32.mrf.mxu0
    %4183 = vdwg.mxu0
    %vm4184 = vcmp.gt.f32.partialorder %v4166, 0.0
    %vm4185 = vcmp.gt.f32.partialorder %v4168, 0.0
    %vm4186 = vcmp.gt.f32.partialorder %v4171, 0.0
    %vm4187 = vcmp.gt.f32.partialorder %v4173, 0.0
    %vm4188 = vcmp.gt.f32.partialorder %v4176, 0.0
    %vm4189 = vcmp.gt.f32.partialorder %v4178, 0.0
    %vm4190 = vcmp.gt.f32.partialorder %v4181, 0.0
    %v4191 = vperm.slane %v4118, 1
    %v4192 = vmul.f32 %v4166, %v4191
    %v4193 = vmul.f32 %v4168, %v4191
    %v4194 = vmul.f32 %v4171, %v4191
    %v4195 = vmul.f32 %v4173, %v4191
    %v4196 = vmul.f32 %v4176, %v4191
    %v4197 = vmul.f32 %v4178, %v4191
    %v4198 = vmul.f32 %v4181, %v4191
    %v4199 = vsel %vm4184, %v4166, %v4192
    %v4200 = vsel %vm4185, %v4168, %v4193
    %v4201 = vsel %vm4186, %v4171, %v4194
    %v4202 = vsel %vm4187, %v4173, %v4195
    %v4203 = vsel %vm4188, %v4176, %v4196
    %v4204 = vsel %vm4189, %v4178, %v4197
    %v4205 = vsel %vm4190, %v4181, %v4198
    %v4206 = vperm.slane %v4118, 2
    %v4207 = vmul.f32 %v4199, %v4206
    %v4208 = vmul.f32 %v4200, %v4206
    %v4209 = vmul.f32 %v4201, %v4206
    %v4210 = vmul.f32 %v4202, %v4206
    %v4211 = vmul.f32 %v4203, %v4206
    %v4212 = vmul.f32 %v4204, %v4206
    %v4213 = vmul.f32 %v4205, %v4206
    %v4214 = vperm.slane %v4118, 3
    %v4215 = vadd.f32 %v4207, %v4214
    %v4216 = vadd.f32 %v4208, %v4214
    %v4217 = vadd.f32 %v4209, %v4214
    %v4218 = vadd.f32 %v4210, %v4214
    %v4219 = vadd.f32 %v4211, %v4214
    %v4220 = vadd.f32 %v4212, %v4214
    %v4221 = vadd.f32 %v4213, %v4214
    %v4222 = vadd.f32 %v3760, %v4119
    %v4223 = vadd.f32 %v3762, %v4119
    %v4224 = vadd.f32 %v3765, %v4119
    %v4225 = vadd.f32 %v3767, %v4119
    %v4226 = vadd.f32 %v3770, %v4119
    %v4227 = vadd.f32 %v3772, %v4119
    %v4228 = vadd.f32 %v3775, %v4119
    %vm4229 = vcmp.gt.f32.partialorder %v4222, 0.0
    %vm4230 = vcmp.gt.f32.partialorder %v4223, 0.0
    %vm4231 = vcmp.gt.f32.partialorder %v4224, 0.0
    %vm4232 = vcmp.gt.f32.partialorder %v4225, 0.0
    %vm4233 = vcmp.gt.f32.partialorder %v4226, 0.0
    %vm4234 = vcmp.gt.f32.partialorder %v4227, 0.0
    %vm4235 = vcmp.gt.f32.partialorder %v4228, 0.0
    %v4236 = vmul.f32 %v4222, %v4191
    %v4237 = vmul.f32 %v4223, %v4191
    %v4238 = vmul.f32 %v4224, %v4191
    %v4239 = vmul.f32 %v4225, %v4191
    %v4240 = vmul.f32 %v4226, %v4191
    %v4241 = vmul.f32 %v4227, %v4191
    %v4242 = vmul.f32 %v4228, %v4191
    %v4243 = vsel %vm4229, %v4222, %v4236
    %v4244 = vsel %vm4230, %v4223, %v4237
    %v4245 = vsel %vm4231, %v4224, %v4238
    %v4246 = vsel %vm4232, %v4225, %v4239
    %v4247 = vsel %vm4233, %v4226, %v4240
    %v4248 = vsel %vm4234, %v4227, %v4241
    %v4249 = vsel %vm4235, %v4228, %v4242
    %v4250 = vmul.f32 %v4243, %v4206
    %v4251 = vmul.f32 %v4244, %v4206
    %v4252 = vmul.f32 %v4245, %v4206
    %v4253 = vmul.f32 %v4246, %v4206
    %v4254 = vmul.f32 %v4247, %v4206
    %v4255 = vmul.f32 %v4248, %v4206
    %v4256 = vmul.f32 %v4249, %v4206
    %v4257 = vadd.f32 %v4250, %v4214
    %v4258 = vadd.f32 %v4251, %v4214
    %v4259 = vadd.f32 %v4252, %v4214
    %v4260 = vadd.f32 %v4253, %v4214
    %v4261 = vadd.f32 %v4254, %v4214
    %v4262 = vadd.f32 %v4255, %v4214
    %v4263 = vadd.f32 %v4256, %v4214
    %v4264 = vadd.f32 %v4002, %v4119
    %v4265 = vadd.f32 %v4004, %v4119
    %v4266 = vadd.f32 %v4007, %v4119
    %v4267 = vadd.f32 %v4009, %v4119
    %v4268 = vadd.f32 %v4012, %v4119
    %v4269 = vadd.f32 %v4014, %v4119
    %v4270 = vadd.f32 %v4017, %v4119
    %vm4271 = vcmp.gt.f32.partialorder %v4264, 0.0
    %vm4272 = vcmp.gt.f32.partialorder %v4265, 0.0
    %vm4273 = vcmp.gt.f32.partialorder %v4266, 0.0
    %vm4274 = vcmp.gt.f32.partialorder %v4267, 0.0
    %vm4275 = vcmp.gt.f32.partialorder %v4268, 0.0
    %vm4276 = vcmp.gt.f32.partialorder %v4269, 0.0
    %vm4277 = vcmp.gt.f32.partialorder %v4270, 0.0
    %v4278 = vmul.f32 %v4264, %v4191
    %v4279 = vmul.f32 %v4265, %v4191
    %v4280 = vmul.f32 %v4266, %v4191
    %v4281 = vmul.f32 %v4267, %v4191
    %v4282 = vmul.f32 %v4268, %v4191
    %v4283 = vmul.f32 %v4269, %v4191
    %v4284 = vmul.f32 %v4270, %v4191
    %v4285 = vsel %vm4271, %v4264, %v4278
    %v4286 = vsel %vm4272, %v4265, %v4279
    %v4287 = vsel %vm4273, %v4266, %v4280
    %v4288 = vsel %vm4274, %v4267, %v4281
    %v4289 = vsel %vm4275, %v4268, %v4282
    %v4290 = vsel %vm4276, %v4269, %v4283
    %v4291 = vsel %vm4277, %v4270, %v4284
    %v4292 = vmul.f32 %v4285, %v4206
    %v4293 = vmul.f32 %v4286, %v4206
    %v4294 = vmul.f32 %v4287, %v4206
    %v4295 = vmul.f32 %v4288, %v4206
    %v4296 = vmul.f32 %v4289, %v4206
    %v4297 = vmul.f32 %v4290, %v4206
    %v4298 = vmul.f32 %v4291, %v4206
    %v4299 = vadd.f32 %v4292, %v4214
    %v4300 = vadd.f32 %v4293, %v4214
    %v4301 = vadd.f32 %v4294, %v4214
    %v4302 = vadd.f32 %v4295, %v4214
    %v4303 = vadd.f32 %v4296, %v4214
    %v4304 = vadd.f32 %v4297, %v4214
    %v4305 = vadd.f32 %v4298, %v4214
    %v4306 = vadd.f32 %v4110, %v4119
    %v4307 = vadd.f32 %v4111, %v4119
    %v4308 = vadd.f32 %v4112, %v4119
    %v4309 = vadd.f32 %v4113, %v4119
    %v4310 = vadd.f32 %v4114, %v4119
    %v4311 = vadd.f32 %v4115, %v4119
    %v4312 = vadd.f32 %v4116, %v4119
    %vm4313 = vcmp.gt.f32.partialorder %v4306, 0.0
    %vm4314 = vcmp.gt.f32.partialorder %v4307, 0.0
    %vm4315 = vcmp.gt.f32.partialorder %v4308, 0.0
    %vm4316 = vcmp.gt.f32.partialorder %v4309, 0.0
    %vm4317 = vcmp.gt.f32.partialorder %v4310, 0.0
    %vm4318 = vcmp.gt.f32.partialorder %v4311, 0.0
    %vm4319 = vcmp.gt.f32.partialorder %v4312, 0.0
    %v4320 = vmul.f32 %v4306, %v4191
    %v4321 = vmul.f32 %v4307, %v4191
    %v4322 = vmul.f32 %v4308, %v4191
    %v4323 = vmul.f32 %v4309, %v4191
    %v4324 = vmul.f32 %v4310, %v4191
    %v4325 = vmul.f32 %v4311, %v4191
    %v4326 = vmul.f32 %v4312, %v4191
    %v4327 = vsel %vm4313, %v4306, %v4320
    %v4328 = vsel %vm4314, %v4307, %v4321
    %v4329 = vsel %vm4315, %v4308, %v4322
    %v4330 = vsel %vm4316, %v4309, %v4323
    %v4331 = vsel %vm4317, %v4310, %v4324
    %v4332 = vsel %vm4318, %v4311, %v4325
    %v4333 = vsel %vm4319, %v4312, %v4326
    %v4334 = vmul.f32 %v4327, %v4206
    %v4335 = vmul.f32 %v4328, %v4206
    %v4336 = vmul.f32 %v4329, %v4206
    %v4337 = vmul.f32 %v4330, %v4206
    %v4338 = vmul.f32 %v4331, %v4206
    %v4339 = vmul.f32 %v4332, %v4206
    %v4340 = vmul.f32 %v4333, %v4206
    %v4341 = vadd.f32 %v4334, %v4214
    %v4342 = vadd.f32 %v4335, %v4214
    %v4343 = vadd.f32 %v4336, %v4214
    %v4344 = vadd.f32 %v4337, %v4214
    %v4345 = vadd.f32 %v4338, %v4214
    %v4346 = vadd.f32 %v4339, %v4214
    %v4347 = vadd.f32 %v4340, %v4214
    %v4348 = vpack.c.bf16 %v4216, %v4215
    %v4349 = vpack.c.bf16 %v4218, %v4217
    %v4350 = vpack.c.bf16 %v4220, %v4219
    %v4351 = vpack.c.bf16 %v4257, %v4221
    %v4352 = vpack.c.bf16 %v4259, %v4258
    %v4353 = vpack.c.bf16 %v4261, %v4260
    %v4354 = vpack.c.bf16 %v4263, %v4262
    %v4355 = vpack.c.bf16 %v4300, %v4299
    %v4356 = vpack.c.bf16 %v4302, %v4301
    %v4357 = vpack.c.bf16 %v4304, %v4303
    %v4358 = vpack.c.bf16 %v4341, %v4305
    %v4359 = vpack.c.bf16 %v4343, %v4342
    %v4360 = vpack.c.bf16 %v4345, %v4344
    %v4361 = vpack.c.bf16 %v4347, %v4346
    %v4362 = vld [vmem:[%s9] sm:$0xf]
    %v4363 = vld [vmem:[%s9 + $0x4] sm:$0xf]
    %v4364 = vld [vmem:[%s9 + $0x8] sm:$0xf]
    %v4365 = vld [vmem:[%s9 + $0xc] sm:$0xf]
    %v4366 = vld [vmem:[%s9 + $0x10] sm:$0xf]
    %v4367 = vld [vmem:[%s9 + $0x14] sm:$0xf]
    %v4368 = vld [vmem:[%s9 + $0x18] sm:$0xf]
    %v4369 = vld [vmem:[%s9 + $0x1c] sm:$0xf]
    %v4378 = vunpack.c.l.b16 %v4362
    %v4379 = vunpack.c.l.b16 %v4363
    %v4380 = vunpack.c.l.b16 %v4364
    %v4381 = vunpack.c.l.b16 %v4365
    %v4382 = vunpack.c.l.b16 %v4366
    %v4383 = vunpack.c.l.b16 %v4367
    %v4384 = vunpack.c.l.b16 %v4368
    %v4385 = vunpack.c.l.b16 %v4369
    %v4386 = vpack.c.b16 %v4379, %v4378
    %v4387 = vpack.c.b16 %v4381, %v4380
    %v4388 = vpack.c.b16 %v4383, %v4382
    %v4389 = vpack.c.b16 %v4385, %v4384
    %v4395 = vsel %vm1363, %v4348, 0
    %v4398 = vsel %vm1363, %v4349, 0
    %v4401 = vsel %vm1363, %v4350, 0
    %v4404 = vsel %vm1363, %v4351, 0
    %v4407 = vsel %vm1363, %v4352, 0
    %v4410 = vsel %vm1363, %v4353, 0
    %v4413 = vsel %vm1363, %v4354, 0
    %v4416 = vsel %vm1363, %v4355, 0
    %v4419 = vsel %vm1363, %v4356, 0
    %v4422 = vsel %vm1363, %v4357, 0
    %v4425 = vsel %vm1363, %v4358, 0
    %v4428 = vsel %vm1363, %v4359, 0
    %v4431 = vsel %vm1363, %v4360, 0
    %v4434 = vsel %vm1363, %v4361, 0
    %4436 = vmatpush.bf16.msra.mxu0 0
    %4437 = vmatpush.bf16.msra.mxu0 0
    %4438 = vmatpush.bf16.msra.mxu0 0
    %4439 = vmatpush.bf16.msra.mxu0 0
    %4440 = vmatpush.bf16.msra.mxu0 %v4389
    %4441 = vmatpush.bf16.msra.mxu0 %v4388
    %4442 = vmatpush.bf16.msra.mxu0 %v4387
    %4443 = vmatpush.bf16.msra.mxu0 %v4386
    %4444 = vmatmul.bf16.gmra.mxu0 %v4395
    %v4445 = vpop.f32.mrf.mxu0
    %v4446 = vadd.f32 0.0, %v4445
    %v4447 = vpop.f32.mrf.mxu0
    %v4448 = vadd.f32 0.0, %v4447
    %4449 = vmatmul.bf16.gmra.mxu0 %v4398
    %v4450 = vpop.f32.mrf.mxu0
    %v4451 = vadd.f32 0.0, %v4450
    %v4452 = vpop.f32.mrf.mxu0
    %v4453 = vadd.f32 0.0, %v4452
    %4454 = vmatmul.bf16.gmra.mxu0 %v4401
    %v4455 = vpop.f32.mrf.mxu0
    %v4456 = vadd.f32 0.0, %v4455
    %v4457 = vpop.f32.mrf.mxu0
    %v4458 = vadd.f32 0.0, %v4457
    %4459 = vmatmul.bf16.gmra.mxu0 %v4404
    %v4460 = vpop.f32.mrf.mxu0
    %v4461 = vadd.f32 0.0, %v4460
    %v4462 = vpop.f32.mrf.mxu0
    %v4463 = vadd.f32 0.0, %v4462
    %4464 = vmatmul.bf16.gmra.mxu0 %v4407
    %v4465 = vpop.f32.mrf.mxu0
    %v4466 = vadd.f32 0.0, %v4465
    %v4467 = vpop.f32.mrf.mxu0
    %v4468 = vadd.f32 0.0, %v4467
    %4469 = vmatmul.bf16.gmra.mxu0 %v4410
    %v4470 = vpop.f32.mrf.mxu0
    %v4471 = vadd.f32 0.0, %v4470
    %v4472 = vpop.f32.mrf.mxu0
    %v4473 = vadd.f32 0.0, %v4472
    %4474 = vmatmul.bf16.gmra.mxu0 %v4413
    %v4475 = vpop.f32.mrf.mxu0
    %v4476 = vadd.f32 0.0, %v4475
    %v4477 = vpop.f32.mrf.mxu0
    %v4478 = vadd.f32 0.0, %v4477
    %4479 = vmatmul.bf16.gmra.mxu0 %v4416
    %v4480 = vpop.f32.mrf.mxu0
    %v4481 = vadd.f32 0.0, %v4480
    %v4482 = vpop.f32.mrf.mxu0
    %v4483 = vadd.f32 0.0, %v4482
    %4484 = vmatmul.bf16.gmra.mxu0 %v4419
    %v4485 = vpop.f32.mrf.mxu0
    %v4486 = vadd.f32 0.0, %v4485
    %v4487 = vpop.f32.mrf.mxu0
    %v4488 = vadd.f32 0.0, %v4487
    %4489 = vmatmul.bf16.gmra.mxu0 %v4422
    %v4490 = vpop.f32.mrf.mxu0
    %v4491 = vadd.f32 0.0, %v4490
    %v4492 = vpop.f32.mrf.mxu0
    %v4493 = vadd.f32 0.0, %v4492
    %4494 = vmatmul.bf16.gmra.mxu0 %v4425
    %v4495 = vpop.f32.mrf.mxu0
    %v4496 = vadd.f32 0.0, %v4495
    %v4497 = vpop.f32.mrf.mxu0
    %v4498 = vadd.f32 0.0, %v4497
    %4499 = vmatmul.bf16.gmra.mxu0 %v4428
    %v4500 = vpop.f32.mrf.mxu0
    %v4501 = vadd.f32 0.0, %v4500
    %v4502 = vpop.f32.mrf.mxu0
    %v4503 = vadd.f32 0.0, %v4502
    %4504 = vmatmul.bf16.gmra.mxu0 %v4431
    %v4505 = vpop.f32.mrf.mxu0
    %v4506 = vadd.f32 0.0, %v4505
    %v4507 = vpop.f32.mrf.mxu0
    %v4508 = vadd.f32 0.0, %v4507
    %4509 = vmatmul.bf16.gmra.mxu0 %v4434
    %v4510 = vpop.f32.mrf.mxu0
    %v4511 = vadd.f32 0.0, %v4510
    %v4512 = vpop.f32.mrf.mxu0
    %v4513 = vadd.f32 0.0, %v4512
    %4514 = vdwg.mxu0
    %v4515 = vpack.c.bf16 %v4446, %v4446
    %v4516 = vpack.c.bf16 %v4448, %v4448
    %v4517 = vpack.c.bf16 %v4451, %v4451
    %v4518 = vpack.c.bf16 %v4453, %v4453
    %v4519 = vpack.c.bf16 %v4456, %v4456
    %v4520 = vpack.c.bf16 %v4458, %v4458
    %v4521 = vpack.c.bf16 %v4461, %v4461
    %v4522 = vpack.c.bf16 %v4463, %v4463
    %v4523 = vpack.c.bf16 %v4466, %v4466
    %v4524 = vpack.c.bf16 %v4468, %v4468
    %v4525 = vpack.c.bf16 %v4471, %v4471
    %v4526 = vpack.c.bf16 %v4473, %v4473
    %v4527 = vpack.c.bf16 %v4476, %v4476
    %v4528 = vpack.c.bf16 %v4478, %v4478
    %v4529 = vpack.c.bf16 %v4481, %v4481
    %v4530 = vpack.c.bf16 %v4483, %v4483
    %v4531 = vpack.c.bf16 %v4486, %v4486
    %v4532 = vpack.c.bf16 %v4488, %v4488
    %v4533 = vpack.c.bf16 %v4491, %v4491
    %v4534 = vpack.c.bf16 %v4493, %v4493
    %v4535 = vpack.c.bf16 %v4496, %v4496
    %v4536 = vpack.c.bf16 %v4498, %v4498
    %v4537 = vpack.c.bf16 %v4501, %v4501
    %v4538 = vpack.c.bf16 %v4503, %v4503
    %v4539 = vpack.c.bf16 %v4506, %v4506
    %v4540 = vpack.c.bf16 %v4508, %v4508
    %v4541 = vpack.c.bf16 %v4511, %v4511
    %v4542 = vpack.c.bf16 %v4513, %v4513
    %v4543 = vld [vmem:[%s8] sm:$0xff]
    %v4544 = vld [vmem:[%s8 + $0x8] sm:$0xff]
    %v4545 = vld [vmem:[%s8 + $0x10] sm:$0xff]
    %v4546 = vld [vmem:[%s8 + $0x18] sm:$0xff]
    %v4547 = vld [vmem:[%s8 + $0x20] sm:$0xff]
    %v4548 = vld [vmem:[%s8 + $0x28] sm:$0xff]
    %v4549 = vld [vmem:[%s8 + $0x30] sm:$0xff]
    %v4550 = vld [vmem:[%s8 + $0x38] sm:$0xff]
    %v4551 = vld [vmem:[%s8 + $0x40] sm:$0xff]
    %v4552 = vld [vmem:[%s8 + $0x48] sm:$0xff]
    %v4553 = vld [vmem:[%s8 + $0x50] sm:$0xff]
    %v4554 = vld [vmem:[%s8 + $0x58] sm:$0xff]
    %v4555 = vld [vmem:[%s8 + $0x60] sm:$0xff]
    %v4556 = vld [vmem:[%s8 + $0x68] sm:$0xff]
    %v4557 = vld [vmem:[%s8 + $0x70] sm:$0xff]
    %v4558 = vld [vmem:[%s8 + $0x78] sm:$0xff]
    %v4559 = vld [vmem:[%s8 + $0x80] sm:$0xff]
    %v4560 = vld [vmem:[%s8 + $0x88] sm:$0xff]
    %v4561 = vld [vmem:[%s8 + $0x90] sm:$0xff]
    %v4562 = vld [vmem:[%s8 + $0x98] sm:$0xff]
    %v4563 = vld [vmem:[%s8 + $0xa0] sm:$0xff]
    %v4564 = vld [vmem:[%s8 + $0xa8] sm:$0xff]
    %v4565 = vld [vmem:[%s8 + $0xb0] sm:$0xff]
    %v4566 = vld [vmem:[%s8 + $0xb8] sm:$0xff]
    %v4567 = vld [vmem:[%s8 + $0xc0] sm:$0x33]
    %s4568 = scalar_lea.vmem %s8, 200
    %v4569 = vld [vmem:[%s4568] sm:$0xff]
    %v4570 = vld [vmem:[%s4568 + $0x8] sm:$0xff]
    %v4571 = vld [vmem:[%s4568 + $0x10] sm:$0xff]
    %v4572 = vld [vmem:[%s4568 + $0x18] sm:$0xff]
    %v4573 = vld [vmem:[%s4568 + $0x20] sm:$0xff]
    %v4574 = vld [vmem:[%s4568 + $0x28] sm:$0xff]
    %v4575 = vld [vmem:[%s4568 + $0x30] sm:$0xff]
    %v4576 = vld [vmem:[%s4568 + $0x38] sm:$0xff]
    %v4577 = vld [vmem:[%s4568 + $0x40] sm:$0xff]
    %v4578 = vld [vmem:[%s4568 + $0x48] sm:$0xff]
    %v4579 = vld [vmem:[%s4568 + $0x50] sm:$0xff]
    %v4580 = vld [vmem:[%s4568 + $0x58] sm:$0xff]
    %v4581 = vld [vmem:[%s4568 + $0x60] sm:$0xff]
    %v4582 = vld [vmem:[%s4568 + $0x68] sm:$0xff]
    %v4583 = vld [vmem:[%s4568 + $0x70] sm:$0xff]
    %v4584 = vld [vmem:[%s4568 + $0x78] sm:$0xff]
    %v4585 = vld [vmem:[%s4568 + $0x80] sm:$0xff]
    %v4586 = vld [vmem:[%s4568 + $0x88] sm:$0xff]
    %v4587 = vld [vmem:[%s4568 + $0x90] sm:$0xff]
    %v4588 = vld [vmem:[%s4568 + $0x98] sm:$0xff]
    %v4589 = vld [vmem:[%s4568 + $0xa0] sm:$0xff]
    %v4590 = vld [vmem:[%s4568 + $0xa8] sm:$0xff]
    %v4591 = vld [vmem:[%s4568 + $0xb0] sm:$0xff]
    %v4592 = vld [vmem:[%s4568 + $0xb8] sm:$0xff]
    %v4593 = vld [vmem:[%s4568 + $0xc0] sm:$0x33]
    %s4594 = scalar_lea.vmem %s8, 400
    %v4595 = vld [vmem:[%s4594] sm:$0xff]
    %v4596 = vld [vmem:[%s4594 + $0x8] sm:$0xff]
    %v4597 = vld [vmem:[%s4594 + $0x10] sm:$0xff]
    %v4598 = vld [vmem:[%s4594 + $0x18] sm:$0xff]
    %v4599 = vld [vmem:[%s4594 + $0x20] sm:$0xff]
    %v4600 = vld [vmem:[%s4594 + $0x28] sm:$0xff]
    %v4601 = vld [vmem:[%s4594 + $0x30] sm:$0xff]
    %v4602 = vld [vmem:[%s4594 + $0x38] sm:$0xff]
    %v4603 = vld [vmem:[%s4594 + $0x40] sm:$0xff]
    %v4604 = vld [vmem:[%s4594 + $0x48] sm:$0xff]
    %v4605 = vld [vmem:[%s4594 + $0x50] sm:$0xff]
    %v4606 = vld [vmem:[%s4594 + $0x58] sm:$0xff]
    %v4607 = vld [vmem:[%s4594 + $0x60] sm:$0xff]
    %v4608 = vld [vmem:[%s4594 + $0x68] sm:$0xff]
    %v4609 = vld [vmem:[%s4594 + $0x70] sm:$0xff]
    %v4610 = vld [vmem:[%s4594 + $0x78] sm:$0xff]
    %v4611 = vld [vmem:[%s4594 + $0x80] sm:$0xff]
    %v4612 = vld [vmem:[%s4594 + $0x88] sm:$0xff]
    %v4613 = vld [vmem:[%s4594 + $0x90] sm:$0xff]
    %v4614 = vld [vmem:[%s4594 + $0x98] sm:$0xff]
    %v4615 = vld [vmem:[%s4594 + $0xa0] sm:$0xff]
    %v4616 = vld [vmem:[%s4594 + $0xa8] sm:$0xff]
    %v4617 = vld [vmem:[%s4594 + $0xb0] sm:$0xff]
    %v4618 = vld [vmem:[%s4594 + $0xb8] sm:$0xff]
    %v4619 = vld [vmem:[%s4594 + $0xc0] sm:$0x33]
    %v4645 = vunpack.c.l.b16 %v4595
    %v4646 = vunpack.c.h.b16 %v4595
    %v4647 = vunpack.c.l.b16 %v4596
    %v4648 = vunpack.c.h.b16 %v4596
    %v4649 = vunpack.c.l.b16 %v4597
    %v4650 = vunpack.c.h.b16 %v4597
    %v4651 = vunpack.c.l.b16 %v4598
    %v4652 = vunpack.c.h.b16 %v4598
    %v4653 = vunpack.c.l.b16 %v4599
    %v4654 = vunpack.c.h.b16 %v4599
    %v4655 = vunpack.c.l.b16 %v4600
    %v4656 = vunpack.c.h.b16 %v4600
    %v4657 = vunpack.c.l.b16 %v4601
    %v4658 = vunpack.c.h.b16 %v4601
    %v4659 = vunpack.c.l.b16 %v4602
    %v4660 = vunpack.c.h.b16 %v4602
    %v4661 = vunpack.c.l.b16 %v4603
    %v4662 = vunpack.c.h.b16 %v4603
    %v4663 = vunpack.c.l.b16 %v4604
    %v4664 = vunpack.c.h.b16 %v4604
    %v4665 = vunpack.c.l.b16 %v4605
    %v4666 = vunpack.c.h.b16 %v4605
    %v4667 = vunpack.c.l.b16 %v4606
    %v4668 = vunpack.c.h.b16 %v4606
    %v4669 = vunpack.c.l.b16 %v4607
    %v4670 = vunpack.c.h.b16 %v4607
    %v4671 = vunpack.c.l.b16 %v4608
    %v4672 = vunpack.c.h.b16 %v4608
    %v4673 = vunpack.c.l.b16 %v4609
    %v4674 = vunpack.c.h.b16 %v4609
    %v4675 = vunpack.c.l.b16 %v4610
    %v4676 = vunpack.c.h.b16 %v4610
    %v4677 = vunpack.c.l.b16 %v4611
    %v4678 = vunpack.c.h.b16 %v4611
    %v4679 = vunpack.c.l.b16 %v4612
    %v4680 = vunpack.c.h.b16 %v4612
    %v4681 = vunpack.c.l.b16 %v4613
    %v4682 = vunpack.c.h.b16 %v4613
    %v4683 = vunpack.c.l.b16 %v4614
    %v4684 = vunpack.c.h.b16 %v4614
    %v4685 = vunpack.c.l.b16 %v4615
    %v4686 = vunpack.c.h.b16 %v4615
    %v4687 = vunpack.c.l.b16 %v4616
    %v4688 = vunpack.c.h.b16 %v4616
    %v4689 = vunpack.c.l.b16 %v4617
    %v4690 = vunpack.c.h.b16 %v4617
    %v4691 = vunpack.c.l.b16 %v4618
    %v4692 = vunpack.c.h.b16 %v4618
    %v4693 = vunpack.c.l.b16 %v4619
    %v4694 = vunpack.c.h.b16 %v4619
    %v4695 = vpack.c.b16 %v4647, %v4645
    %v4696 = vpack.c.b16 %v4648, %v4646
    %v4697 = vpack.c.b16 %v4651, %v4649
    %v4698 = vpack.c.b16 %v4652, %v4650
    %v4699 = vpack.c.b16 %v4655, %v4653
    %v4700 = vpack.c.b16 %v4656, %v4654
    %v4701 = vpack.c.b16 %v4659, %v4657
    %v4702 = vpack.c.b16 %v4660, %v4658
    %v4703 = vpack.c.b16 %v4663, %v4661
    %v4704 = vpack.c.b16 %v4664, %v4662
    %v4705 = vpack.c.b16 %v4667, %v4665
    %v4706 = vpack.c.b16 %v4668, %v4666
    %v4707 = vpack.c.b16 %v4671, %v4669
    %v4708 = vpack.c.b16 %v4672, %v4670
    %v4709 = vpack.c.b16 %v4675, %v4673
    %v4710 = vpack.c.b16 %v4676, %v4674
    %v4711 = vpack.c.b16 %v4679, %v4677
    %v4712 = vpack.c.b16 %v4680, %v4678
    %v4713 = vpack.c.b16 %v4683, %v4681
    %v4714 = vpack.c.b16 %v4684, %v4682
    %v4715 = vpack.c.b16 %v4687, %v4685
    %v4716 = vpack.c.b16 %v4688, %v4686
    %v4717 = vpack.c.b16 %v4691, %v4689
    %v4718 = vpack.c.b16 %v4692, %v4690
    %v4719 = vpack.c.b16 %v4693, %v4693
    %v4720 = vpack.c.b16 %v4694, %v4694
    %v4762 = vunpack.c.l.b16 %v4515
    %v4763 = vunpack.c.l.b16 %v4516
    %v4764 = vunpack.c.l.b16 %v4517
    %v4765 = vunpack.c.l.b16 %v4518
    %v4766 = vunpack.c.l.b16 %v4519
    %v4767 = vunpack.c.l.b16 %v4520
    %v4768 = vunpack.c.l.b16 %v4521
    %v4769 = vunpack.c.l.b16 %v4522
    %v4770 = vunpack.c.l.b16 %v4523
    %v4771 = vunpack.c.l.b16 %v4524
    %v4772 = vunpack.c.l.b16 %v4525
    %v4773 = vunpack.c.l.b16 %v4526
    %v4774 = vunpack.c.l.b16 %v4527
    %v4775 = vunpack.c.l.b16 %v4528
    %v4776 = vunpack.c.l.b16 %v4529
    %v4777 = vunpack.c.l.b16 %v4530
    %v4778 = vunpack.c.l.b16 %v4531
    %v4779 = vunpack.c.l.b16 %v4532
    %v4780 = vunpack.c.l.b16 %v4533
    %v4781 = vunpack.c.l.b16 %v4534
    %v4782 = vunpack.c.l.b16 %v4535
    %v4783 = vunpack.c.l.b16 %v4536
    %v4784 = vunpack.c.l.b16 %v4537
    %v4785 = vunpack.c.l.b16 %v4538
    %v4786 = vunpack.c.l.b16 %v4539
    %v4787 = vunpack.c.l.b16 %v4540
    %v4788 = vunpack.c.l.b16 %v4541
    %v4789 = vunpack.c.l.b16 %v4542
    %v4790 = vpack.c.b16 %v4763, %v4762
    %v4791 = vpack.c.b16 %v4765, %v4764
    %v4792 = vpack.c.b16 %v4767, %v4766
    %v4793 = vpack.c.b16 %v4769, %v4768
    %v4794 = vpack.c.b16 %v4771, %v4770
    %v4795 = vpack.c.b16 %v4773, %v4772
    %v4796 = vpack.c.b16 %v4775, %v4774
    %v4797 = vpack.c.b16 %v4777, %v4776
    %v4798 = vpack.c.b16 %v4779, %v4778
    %v4799 = vpack.c.b16 %v4781, %v4780
    %v4800 = vpack.c.b16 %v4783, %v4782
    %v4801 = vpack.c.b16 %v4785, %v4784
    %v4802 = vpack.c.b16 %v4787, %v4786
    %v4803 = vpack.c.b16 %v4789, %v4788
    %4804 = vrot.lane.b32.xlu0 %v4790, 124
    %v4805 = vpop.permute.xlu0 %4804
    %4806 = vrot.lane.b32.xlu0 %v4791, 124
    %v4807 = vpop.permute.xlu0 %4806
    %4808 = vrot.lane.b32.xlu0 %v4792, 124
    %v4809 = vpop.permute.xlu0 %4808
    %4810 = vrot.lane.b32.xlu0 %v4793, 124
    %v4811 = vpop.permute.xlu0 %4810
    %4812 = vrot.lane.b32.xlu0 %v4794, 124
    %v4813 = vpop.permute.xlu0 %4812
    %4814 = vrot.lane.b32.xlu0 %v4795, 124
    %v4815 = vpop.permute.xlu0 %4814
    %4816 = vrot.lane.b32.xlu0 %v4796, 124
    %v4817 = vpop.permute.xlu0 %4816
    %4818 = vrot.lane.b32.xlu0 %v4797, 124
    %v4819 = vpop.permute.xlu0 %4818
    %4820 = vrot.lane.b32.xlu0 %v4798, 124
    %v4821 = vpop.permute.xlu0 %4820
    %4822 = vrot.lane.b32.xlu0 %v4799, 124
    %v4823 = vpop.permute.xlu0 %4822
    %4824 = vrot.lane.b32.xlu0 %v4800, 124
    %v4825 = vpop.permute.xlu0 %4824
    %4826 = vrot.lane.b32.xlu0 %v4801, 124
    %v4827 = vpop.permute.xlu0 %4826
    %4828 = vrot.lane.b32.xlu0 %v4802, 124
    %v4829 = vpop.permute.xlu0 %4828
    %4830 = vrot.lane.b32.xlu0 %v4803, 124
    %v4831 = vpop.permute.xlu0 %4830
    %vm4846 = vcmask 785408
    %v4848 = vsel %vm4846, %v4696, 0
    %v4851 = vsel %vm4846, %v4698, 0
    %v4854 = vsel %vm4846, %v4700, 0
    %v4857 = vsel %vm4846, %v4702, 0
    %v4860 = vsel %vm4846, %v4704, 0
    %v4863 = vsel %vm4846, %v4706, 0
    %v4866 = vsel %vm4846, %v4708, 0
    %v4869 = vsel %vm4846, %v4710, 0
    %v4872 = vsel %vm4846, %v4712, 0
    %v4875 = vsel %vm4846, %v4714, 0
    %v4878 = vsel %vm4846, %v4716, 0
    %v4881 = vsel %vm4846, %v4718, 0
    %v4884 = vsel %vm4846, %v4720, 0
    %4886 = vmatpush.bf16.msra.mxu0 %v4819
    %4887 = vmatpush.bf16.msra.mxu0 %v4817
    %4888 = vmatpush.bf16.msra.mxu0 %v4815
    %4889 = vmatpush.bf16.msra.mxu0 %v4813
    %4890 = vmatpush.bf16.msra.mxu0 %v4811
    %4891 = vmatpush.bf16.msra.mxu0 %v4809
    %4892 = vmatpush.bf16.msra.mxu0 %v4807
    %4893 = vmatpush.bf16.msra.mxu0 %v4805
    %4894 = vmatmul.bf16.gmra.mxu0 %v4695
    %v4895 = vpop.f32.mrf.mxu0
    %v4896 = vadd.f32 0.0, %v4895
    %v4897 = vpop.f32.mrf.mxu0
    %v4898 = vadd.f32 0.0, %v4897
    %4899 = vmatmul.bf16.gmra.mxu0 %v4697
    %v4900 = vpop.f32.mrf.mxu0
    %v4901 = vadd.f32 0.0, %v4900
    %v4902 = vpop.f32.mrf.mxu0
    %v4903 = vadd.f32 0.0, %v4902
    %4904 = vmatmul.bf16.gmra.mxu0 %v4699
    %v4905 = vpop.f32.mrf.mxu0
    %v4906 = vadd.f32 0.0, %v4905
    %v4907 = vpop.f32.mrf.mxu0
    %v4908 = vadd.f32 0.0, %v4907
    %4909 = vmatmul.bf16.gmra.mxu0 %v4701
    %v4910 = vpop.f32.mrf.mxu0
    %v4911 = vadd.f32 0.0, %v4910
    %v4912 = vpop.f32.mrf.mxu0
    %v4913 = vadd.f32 0.0, %v4912
    %4914 = vmatmul.bf16.gmra.mxu0 %v4703
    %v4915 = vpop.f32.mrf.mxu0
    %v4916 = vadd.f32 0.0, %v4915
    %v4917 = vpop.f32.mrf.mxu0
    %v4918 = vadd.f32 0.0, %v4917
    %4919 = vmatmul.bf16.gmra.mxu0 %v4705
    %v4920 = vpop.f32.mrf.mxu0
    %v4921 = vadd.f32 0.0, %v4920
    %v4922 = vpop.f32.mrf.mxu0
    %v4923 = vadd.f32 0.0, %v4922
    %4924 = vmatmul.bf16.gmra.mxu0 %v4707
    %v4925 = vpop.f32.mrf.mxu0
    %v4926 = vadd.f32 0.0, %v4925
    %v4927 = vpop.f32.mrf.mxu0
    %v4928 = vadd.f32 0.0, %v4927
    %4929 = vmatmul.bf16.gmra.mxu0 %v4709
    %v4930 = vpop.f32.mrf.mxu0
    %v4931 = vadd.f32 0.0, %v4930
    %v4932 = vpop.f32.mrf.mxu0
    %v4933 = vadd.f32 0.0, %v4932
    %4934 = vmatmul.bf16.gmra.mxu0 %v4711
    %v4935 = vpop.f32.mrf.mxu0
    %v4936 = vadd.f32 0.0, %v4935
    %v4937 = vpop.f32.mrf.mxu0
    %v4938 = vadd.f32 0.0, %v4937
    %4939 = vmatmul.bf16.gmra.mxu0 %v4713
    %v4940 = vpop.f32.mrf.mxu0
    %v4941 = vadd.f32 0.0, %v4940
    %v4942 = vpop.f32.mrf.mxu0
    %v4943 = vadd.f32 0.0, %v4942
    %4944 = vmatmul.bf16.gmra.mxu0 %v4715
    %v4945 = vpop.f32.mrf.mxu0
    %v4946 = vadd.f32 0.0, %v4945
    %v4947 = vpop.f32.mrf.mxu0
    %v4948 = vadd.f32 0.0, %v4947
    %4949 = vmatmul.bf16.gmra.mxu0 %v4717
    %v4950 = vpop.f32.mrf.mxu0
    %v4951 = vadd.f32 0.0, %v4950
    %v4952 = vpop.f32.mrf.mxu0
    %v4953 = vadd.f32 0.0, %v4952
    %4954 = vmatmul.bf16.gmra.mxu0 %v4719
    %v4955 = vpop.f32.mrf.mxu0
    %v4956 = vadd.f32 0.0, %v4955
    %v4957 = vpop.f32.mrf.mxu0
    %4958 = vdwg.mxu0
    %4959 = vmatpush.bf16.msra.mxu0 0
    %4960 = vmatpush.bf16.msra.mxu0 0
    %4961 = vmatpush.bf16.msra.mxu0 %v4831
    %4962 = vmatpush.bf16.msra.mxu0 %v4829
    %4963 = vmatpush.bf16.msra.mxu0 %v4827
    %4964 = vmatpush.bf16.msra.mxu0 %v4825
    %4965 = vmatpush.bf16.msra.mxu0 %v4823
    %4966 = vmatpush.bf16.msra.mxu0 %v4821
    %4967 = vmatmul.bf16.gmra.mxu0 %v4848
    %v4968 = vpop.f32.mrf.mxu0
    %v4969 = vadd.f32 %v4896, %v4968
    %v4970 = vpop.f32.mrf.mxu0
    %v4971 = vadd.f32 %v4898, %v4970
    %4972 = vmatmul.bf16.gmra.mxu0 %v4851
    %v4973 = vpop.f32.mrf.mxu0
    %v4974 = vadd.f32 %v4901, %v4973
    %v4975 = vpop.f32.mrf.mxu0
    %v4976 = vadd.f32 %v4903, %v4975
    %4977 = vmatmul.bf16.gmra.mxu0 %v4854
    %v4978 = vpop.f32.mrf.mxu0
    %v4979 = vadd.f32 %v4906, %v4978
    %v4980 = vpop.f32.mrf.mxu0
    %v4981 = vadd.f32 %v4908, %v4980
    %4982 = vmatmul.bf16.gmra.mxu0 %v4857
    %v4983 = vpop.f32.mrf.mxu0
    %v4984 = vadd.f32 %v4911, %v4983
    %v4985 = vpop.f32.mrf.mxu0
    %v4986 = vadd.f32 %v4913, %v4985
    %4987 = vmatmul.bf16.gmra.mxu0 %v4860
    %v4988 = vpop.f32.mrf.mxu0
    %v4989 = vadd.f32 %v4916, %v4988
    %v4990 = vpop.f32.mrf.mxu0
    %v4991 = vadd.f32 %v4918, %v4990
    %4992 = vmatmul.bf16.gmra.mxu0 %v4863
    %v4993 = vpop.f32.mrf.mxu0
    %v4994 = vadd.f32 %v4921, %v4993
    %v4995 = vpop.f32.mrf.mxu0
    %v4996 = vadd.f32 %v4923, %v4995
    %4997 = vmatmul.bf16.gmra.mxu0 %v4866
    %v4998 = vpop.f32.mrf.mxu0
    %v4999 = vadd.f32 %v4926, %v4998
    %v5000 = vpop.f32.mrf.mxu0
    %v5001 = vadd.f32 %v4928, %v5000
    %5002 = vmatmul.bf16.gmra.mxu0 %v4869
    %v5003 = vpop.f32.mrf.mxu0
    %v5004 = vadd.f32 %v4931, %v5003
    %v5005 = vpop.f32.mrf.mxu0
    %v5006 = vadd.f32 %v4933, %v5005
    %5007 = vmatmul.bf16.gmra.mxu0 %v4872
    %v5008 = vpop.f32.mrf.mxu0
    %v5009 = vadd.f32 %v4936, %v5008
    %v5010 = vpop.f32.mrf.mxu0
    %v5011 = vadd.f32 %v4938, %v5010
    %5012 = vmatmul.bf16.gmra.mxu0 %v4875
    %v5013 = vpop.f32.mrf.mxu0
    %v5014 = vadd.f32 %v4941, %v5013
    %v5015 = vpop.f32.mrf.mxu0
    %v5016 = vadd.f32 %v4943, %v5015
    %5017 = vmatmul.bf16.gmra.mxu0 %v4878
    %v5018 = vpop.f32.mrf.mxu0
    %v5019 = vadd.f32 %v4946, %v5018
    %v5020 = vpop.f32.mrf.mxu0
    %v5021 = vadd.f32 %v4948, %v5020
    %5022 = vmatmul.bf16.gmra.mxu0 %v4881
    %v5023 = vpop.f32.mrf.mxu0
    %v5024 = vadd.f32 %v4951, %v5023
    %v5025 = vpop.f32.mrf.mxu0
    %v5026 = vadd.f32 %v4953, %v5025
    %5027 = vmatmul.bf16.gmra.mxu0 %v4884
    %v5028 = vpop.f32.mrf.mxu0
    %v5029 = vadd.f32 %v4956, %v5028
    %v5030 = vpop.f32.mrf.mxu0
    %5031 = vdwg.mxu0
    %v5057 = vunpack.c.l.b16 %v4543
    %v5058 = vunpack.c.h.b16 %v4543
    %v5059 = vunpack.c.l.b16 %v4544
    %v5060 = vunpack.c.h.b16 %v4544
    %v5061 = vunpack.c.l.b16 %v4545
    %v5062 = vunpack.c.h.b16 %v4545
    %v5063 = vunpack.c.l.b16 %v4546
    %v5064 = vunpack.c.h.b16 %v4546
    %v5065 = vunpack.c.l.b16 %v4547
    %v5066 = vunpack.c.h.b16 %v4547
    %v5067 = vunpack.c.l.b16 %v4548
    %v5068 = vunpack.c.h.b16 %v4548
    %v5069 = vunpack.c.l.b16 %v4549
    %v5070 = vunpack.c.h.b16 %v4549
    %v5071 = vunpack.c.l.b16 %v4550
    %v5072 = vunpack.c.h.b16 %v4550
    %v5073 = vunpack.c.l.b16 %v4551
    %v5074 = vunpack.c.h.b16 %v4551
    %v5075 = vunpack.c.l.b16 %v4552
    %v5076 = vunpack.c.h.b16 %v4552
    %v5077 = vunpack.c.l.b16 %v4553
    %v5078 = vunpack.c.h.b16 %v4553
    %v5079 = vunpack.c.l.b16 %v4554
    %v5080 = vunpack.c.h.b16 %v4554
    %v5081 = vunpack.c.l.b16 %v4555
    %v5082 = vunpack.c.h.b16 %v4555
    %v5083 = vunpack.c.l.b16 %v4556
    %v5084 = vunpack.c.h.b16 %v4556
    %v5085 = vunpack.c.l.b16 %v4557
    %v5086 = vunpack.c.h.b16 %v4557
    %v5087 = vunpack.c.l.b16 %v4558
    %v5088 = vunpack.c.h.b16 %v4558
    %v5089 = vunpack.c.l.b16 %v4559
    %v5090 = vunpack.c.h.b16 %v4559
    %v5091 = vunpack.c.l.b16 %v4560
    %v5092 = vunpack.c.h.b16 %v4560
    %v5093 = vunpack.c.l.b16 %v4561
    %v5094 = vunpack.c.h.b16 %v4561
    %v5095 = vunpack.c.l.b16 %v4562
    %v5096 = vunpack.c.h.b16 %v4562
    %v5097 = vunpack.c.l.b16 %v4563
    %v5098 = vunpack.c.h.b16 %v4563
    %v5099 = vunpack.c.l.b16 %v4564
    %v5100 = vunpack.c.h.b16 %v4564
    %v5101 = vunpack.c.l.b16 %v4565
    %v5102 = vunpack.c.h.b16 %v4565
    %v5103 = vunpack.c.l.b16 %v4566
    %v5104 = vunpack.c.h.b16 %v4566
    %v5105 = vunpack.c.l.b16 %v4567
    %v5106 = vunpack.c.h.b16 %v4567
    %v5107 = vpack.c.b16 %v5059, %v5057
    %v5108 = vpack.c.b16 %v5060, %v5058
    %v5109 = vpack.c.b16 %v5063, %v5061
    %v5110 = vpack.c.b16 %v5064, %v5062
    %v5111 = vpack.c.b16 %v5067, %v5065
    %v5112 = vpack.c.b16 %v5068, %v5066
    %v5113 = vpack.c.b16 %v5071, %v5069
    %v5114 = vpack.c.b16 %v5072, %v5070
    %v5115 = vpack.c.b16 %v5075, %v5073
    %v5116 = vpack.c.b16 %v5076, %v5074
    %v5117 = vpack.c.b16 %v5079, %v5077
    %v5118 = vpack.c.b16 %v5080, %v5078
    %v5119 = vpack.c.b16 %v5083, %v5081
    %v5120 = vpack.c.b16 %v5084, %v5082
    %v5121 = vpack.c.b16 %v5087, %v5085
    %v5122 = vpack.c.b16 %v5088, %v5086
    %v5123 = vpack.c.b16 %v5091, %v5089
    %v5124 = vpack.c.b16 %v5092, %v5090
    %v5125 = vpack.c.b16 %v5095, %v5093
    %v5126 = vpack.c.b16 %v5096, %v5094
    %v5127 = vpack.c.b16 %v5099, %v5097
    %v5128 = vpack.c.b16 %v5100, %v5098
    %v5129 = vpack.c.b16 %v5103, %v5101
    %v5130 = vpack.c.b16 %v5104, %v5102
    %v5131 = vpack.c.b16 %v5105, %v5105
    %v5132 = vpack.c.b16 %v5106, %v5106
    %v5161 = vsel %vm4846, %v5108, 0
    %v5164 = vsel %vm4846, %v5110, 0
    %v5167 = vsel %vm4846, %v5112, 0
    %v5170 = vsel %vm4846, %v5114, 0
    %v5173 = vsel %vm4846, %v5116, 0
    %v5176 = vsel %vm4846, %v5118, 0
    %v5179 = vsel %vm4846, %v5120, 0
    %v5182 = vsel %vm4846, %v5122, 0
    %v5185 = vsel %vm4846, %v5124, 0
    %v5188 = vsel %vm4846, %v5126, 0
    %v5191 = vsel %vm4846, %v5128, 0
    %v5194 = vsel %vm4846, %v5130, 0
    %v5197 = vsel %vm4846, %v5132, 0
    %5199 = vmatpush.bf16.msra.mxu0 %v4797
    %5200 = vmatpush.bf16.msra.mxu0 %v4796
    %5201 = vmatpush.bf16.msra.mxu0 %v4795
    %5202 = vmatpush.bf16.msra.mxu0 %v4794
    %5203 = vmatpush.bf16.msra.mxu0 %v4793
    %5204 = vmatpush.bf16.msra.mxu0 %v4792
    %5205 = vmatpush.bf16.msra.mxu0 %v4791
    %5206 = vmatpush.bf16.msra.mxu0 %v4790
    %5207 = vmatmul.bf16.gmra.mxu0 %v5107
    %v5208 = vpop.f32.mrf.mxu0
    %v5209 = vadd.f32 %v4969, %v5208
    %v5210 = vpop.f32.mrf.mxu0
    %v5211 = vadd.f32 %v4971, %v5210
    %5212 = vmatmul.bf16.gmra.mxu0 %v5109
    %v5213 = vpop.f32.mrf.mxu0
    %v5214 = vadd.f32 %v4974, %v5213
    %v5215 = vpop.f32.mrf.mxu0
    %v5216 = vadd.f32 %v4976, %v5215
    %5217 = vmatmul.bf16.gmra.mxu0 %v5111
    %v5218 = vpop.f32.mrf.mxu0
    %v5219 = vadd.f32 %v4979, %v5218
    %v5220 = vpop.f32.mrf.mxu0
    %v5221 = vadd.f32 %v4981, %v5220
    %5222 = vmatmul.bf16.gmra.mxu0 %v5113
    %v5223 = vpop.f32.mrf.mxu0
    %v5224 = vadd.f32 %v4984, %v5223
    %v5225 = vpop.f32.mrf.mxu0
    %v5226 = vadd.f32 %v4986, %v5225
    %5227 = vmatmul.bf16.gmra.mxu0 %v5115
    %v5228 = vpop.f32.mrf.mxu0
    %v5229 = vadd.f32 %v4989, %v5228
    %v5230 = vpop.f32.mrf.mxu0
    %v5231 = vadd.f32 %v4991, %v5230
    %5232 = vmatmul.bf16.gmra.mxu0 %v5117
    %v5233 = vpop.f32.mrf.mxu0
    %v5234 = vadd.f32 %v4994, %v5233
    %v5235 = vpop.f32.mrf.mxu0
    %v5236 = vadd.f32 %v4996, %v5235
    %5237 = vmatmul.bf16.gmra.mxu0 %v5119
    %v5238 = vpop.f32.mrf.mxu0
    %v5239 = vadd.f32 %v4999, %v5238
    %v5240 = vpop.f32.mrf.mxu0
    %v5241 = vadd.f32 %v5001, %v5240
    %5242 = vmatmul.bf16.gmra.mxu0 %v5121
    %v5243 = vpop.f32.mrf.mxu0
    %v5244 = vadd.f32 %v5004, %v5243
    %v5245 = vpop.f32.mrf.mxu0
    %v5246 = vadd.f32 %v5006, %v5245
    %5247 = vmatmul.bf16.gmra.mxu0 %v5123
    %v5248 = vpop.f32.mrf.mxu0
    %v5249 = vadd.f32 %v5009, %v5248
    %v5250 = vpop.f32.mrf.mxu0
    %v5251 = vadd.f32 %v5011, %v5250
    %5252 = vmatmul.bf16.gmra.mxu0 %v5125
    %v5253 = vpop.f32.mrf.mxu0
    %v5254 = vadd.f32 %v5014, %v5253
    %v5255 = vpop.f32.mrf.mxu0
    %v5256 = vadd.f32 %v5016, %v5255
    %5257 = vmatmul.bf16.gmra.mxu0 %v5127
    %v5258 = vpop.f32.mrf.mxu0
    %v5259 = vadd.f32 %v5019, %v5258
    %v5260 = vpop.f32.mrf.mxu0
    %v5261 = vadd.f32 %v5021, %v5260
    %5262 = vmatmul.bf16.gmra.mxu0 %v5129
    %v5263 = vpop.f32.mrf.mxu0
    %v5264 = vadd.f32 %v5024, %v5263
    %v5265 = vpop.f32.mrf.mxu0
    %v5266 = vadd.f32 %v5026, %v5265
    %5267 = vmatmul.bf16.gmra.mxu0 %v5131
    %v5268 = vpop.f32.mrf.mxu0
    %v5269 = vadd.f32 %v5029, %v5268
    %v5270 = vpop.f32.mrf.mxu0
    %5271 = vdwg.mxu0
    %5272 = vmatpush.bf16.msra.mxu0 0
    %5273 = vmatpush.bf16.msra.mxu0 0
    %5274 = vmatpush.bf16.msra.mxu0 %v4803
    %5275 = vmatpush.bf16.msra.mxu0 %v4802
    %5276 = vmatpush.bf16.msra.mxu0 %v4801
    %5277 = vmatpush.bf16.msra.mxu0 %v4800
    %5278 = vmatpush.bf16.msra.mxu0 %v4799
    %5279 = vmatpush.bf16.msra.mxu0 %v4798
    %5280 = vmatmul.bf16.gmra.mxu0 %v5161
    %v5281 = vpop.f32.mrf.mxu0
    %v5282 = vadd.f32 %v5209, %v5281
    %v5283 = vpop.f32.mrf.mxu0
    %v5284 = vadd.f32 %v5211, %v5283
    %5285 = vmatmul.bf16.gmra.mxu0 %v5164
    %v5286 = vpop.f32.mrf.mxu0
    %v5287 = vadd.f32 %v5214, %v5286
    %v5288 = vpop.f32.mrf.mxu0
    %v5289 = vadd.f32 %v5216, %v5288
    %5290 = vmatmul.bf16.gmra.mxu0 %v5167
    %v5291 = vpop.f32.mrf.mxu0
    %v5292 = vadd.f32 %v5219, %v5291
    %v5293 = vpop.f32.mrf.mxu0
    %v5294 = vadd.f32 %v5221, %v5293
    %5295 = vmatmul.bf16.gmra.mxu0 %v5170
    %v5296 = vpop.f32.mrf.mxu0
    %v5297 = vadd.f32 %v5224, %v5296
    %v5298 = vpop.f32.mrf.mxu0
    %v5299 = vadd.f32 %v5226, %v5298
    %5300 = vmatmul.bf16.gmra.mxu0 %v5173
    %v5301 = vpop.f32.mrf.mxu0
    %v5302 = vadd.f32 %v5229, %v5301
    %v5303 = vpop.f32.mrf.mxu0
    %v5304 = vadd.f32 %v5231, %v5303
    %5305 = vmatmul.bf16.gmra.mxu0 %v5176
    %v5306 = vpop.f32.mrf.mxu0
    %v5307 = vadd.f32 %v5234, %v5306
    %v5308 = vpop.f32.mrf.mxu0
    %v5309 = vadd.f32 %v5236, %v5308
    %5310 = vmatmul.bf16.gmra.mxu0 %v5179
    %v5311 = vpop.f32.mrf.mxu0
    %v5312 = vadd.f32 %v5239, %v5311
    %v5313 = vpop.f32.mrf.mxu0
    %v5314 = vadd.f32 %v5241, %v5313
    %5315 = vmatmul.bf16.gmra.mxu0 %v5182
    %v5316 = vpop.f32.mrf.mxu0
    %v5317 = vadd.f32 %v5244, %v5316
    %v5318 = vpop.f32.mrf.mxu0
    %v5319 = vadd.f32 %v5246, %v5318
    %5320 = vmatmul.bf16.gmra.mxu0 %v5185
    %v5321 = vpop.f32.mrf.mxu0
    %v5322 = vadd.f32 %v5249, %v5321
    %v5323 = vpop.f32.mrf.mxu0
    %v5324 = vadd.f32 %v5251, %v5323
    %5325 = vmatmul.bf16.gmra.mxu0 %v5188
    %v5326 = vpop.f32.mrf.mxu0
    %v5327 = vadd.f32 %v5254, %v5326
    %v5328 = vpop.f32.mrf.mxu0
    %v5329 = vadd.f32 %v5256, %v5328
    %5330 = vmatmul.bf16.gmra.mxu0 %v5191
    %v5331 = vpop.f32.mrf.mxu0
    %v5332 = vadd.f32 %v5259, %v5331
    %v5333 = vpop.f32.mrf.mxu0
    %v5334 = vadd.f32 %v5261, %v5333
    %5335 = vmatmul.bf16.gmra.mxu0 %v5194
    %v5336 = vpop.f32.mrf.mxu0
    %v5337 = vadd.f32 %v5264, %v5336
    %v5338 = vpop.f32.mrf.mxu0
    %v5339 = vadd.f32 %v5266, %v5338
    %5340 = vmatmul.bf16.gmra.mxu0 %v5197
    %v5341 = vpop.f32.mrf.mxu0
    %v5342 = vadd.f32 %v5269, %v5341
    %v5343 = vpop.f32.mrf.mxu0
    %5344 = vdwg.mxu0
    %s5345 = scalar_lea.vmem %s8, 600
    %v5346 = vld [vmem:[%s5345] sm:$0xff]
    %v5347 = vld [vmem:[%s5345 + $0x8] sm:$0xff]
    %v5348 = vld [vmem:[%s5345 + $0x10] sm:$0xff]
    %v5349 = vld [vmem:[%s5345 + $0x18] sm:$0xff]
    %v5350 = vld [vmem:[%s5345 + $0x20] sm:$0xff]
    %v5351 = vld [vmem:[%s5345 + $0x28] sm:$0xff]
    %v5352 = vld [vmem:[%s5345 + $0x30] sm:$0xff]
    %v5353 = vld [vmem:[%s5345 + $0x38] sm:$0xff]
    %v5354 = vld [vmem:[%s5345 + $0x40] sm:$0xff]
    %v5355 = vld [vmem:[%s5345 + $0x48] sm:$0xff]
    %v5356 = vld [vmem:[%s5345 + $0x50] sm:$0xff]
    %v5357 = vld [vmem:[%s5345 + $0x58] sm:$0xff]
    %v5358 = vld [vmem:[%s5345 + $0x60] sm:$0xff]
    %v5359 = vld [vmem:[%s5345 + $0x68] sm:$0xff]
    %v5360 = vld [vmem:[%s5345 + $0x70] sm:$0xff]
    %v5361 = vld [vmem:[%s5345 + $0x78] sm:$0xff]
    %v5362 = vld [vmem:[%s5345 + $0x80] sm:$0xff]
    %v5363 = vld [vmem:[%s5345 + $0x88] sm:$0xff]
    %v5364 = vld [vmem:[%s5345 + $0x90] sm:$0xff]
    %v5365 = vld [vmem:[%s5345 + $0x98] sm:$0xff]
    %v5366 = vld [vmem:[%s5345 + $0xa0] sm:$0xff]
    %v5367 = vld [vmem:[%s5345 + $0xa8] sm:$0xff]
    %v5368 = vld [vmem:[%s5345 + $0xb0] sm:$0xff]
    %v5369 = vld [vmem:[%s5345 + $0xb8] sm:$0xff]
    %v5370 = vld [vmem:[%s5345 + $0xc0] sm:$0x33]
    %s5371 = scalar_lea.vmem %s8, 800
    %v5372 = vld [vmem:[%s5371] sm:$0xff]
    %v5373 = vld [vmem:[%s5371 + $0x8] sm:$0xff]
    %v5374 = vld [vmem:[%s5371 + $0x10] sm:$0xff]
    %v5375 = vld [vmem:[%s5371 + $0x18] sm:$0xff]
    %v5376 = vld [vmem:[%s5371 + $0x20] sm:$0xff]
    %v5377 = vld [vmem:[%s5371 + $0x28] sm:$0xff]
    %v5378 = vld [vmem:[%s5371 + $0x30] sm:$0xff]
    %v5379 = vld [vmem:[%s5371 + $0x38] sm:$0xff]
    %v5380 = vld [vmem:[%s5371 + $0x40] sm:$0xff]
    %v5381 = vld [vmem:[%s5371 + $0x48] sm:$0xff]
    %v5382 = vld [vmem:[%s5371 + $0x50] sm:$0xff]
    %v5383 = vld [vmem:[%s5371 + $0x58] sm:$0xff]
    %v5384 = vld [vmem:[%s5371 + $0x60] sm:$0xff]
    %v5385 = vld [vmem:[%s5371 + $0x68] sm:$0xff]
    %v5386 = vld [vmem:[%s5371 + $0x70] sm:$0xff]
    %v5387 = vld [vmem:[%s5371 + $0x78] sm:$0xff]
    %v5388 = vld [vmem:[%s5371 + $0x80] sm:$0xff]
    %v5389 = vld [vmem:[%s5371 + $0x88] sm:$0xff]
    %v5390 = vld [vmem:[%s5371 + $0x90] sm:$0xff]
    %v5391 = vld [vmem:[%s5371 + $0x98] sm:$0xff]
    %v5392 = vld [vmem:[%s5371 + $0xa0] sm:$0xff]
    %v5393 = vld [vmem:[%s5371 + $0xa8] sm:$0xff]
    %v5394 = vld [vmem:[%s5371 + $0xb0] sm:$0xff]
    %v5395 = vld [vmem:[%s5371 + $0xb8] sm:$0xff]
    %v5396 = vld [vmem:[%s5371 + $0xc0] sm:$0x33]
    %s5397 = scalar_lea.vmem %s8, 1000
    %v5398 = vld [vmem:[%s5397] sm:$0xff]
    %v5399 = vld [vmem:[%s5397 + $0x8] sm:$0xff]
    %v5400 = vld [vmem:[%s5397 + $0x10] sm:$0xff]
    %v5401 = vld [vmem:[%s5397 + $0x18] sm:$0xff]
    %v5402 = vld [vmem:[%s5397 + $0x20] sm:$0xff]
    %v5403 = vld [vmem:[%s5397 + $0x28] sm:$0xff]
    %v5404 = vld [vmem:[%s5397 + $0x30] sm:$0xff]
    %v5405 = vld [vmem:[%s5397 + $0x38] sm:$0xff]
    %v5406 = vld [vmem:[%s5397 + $0x40] sm:$0xff]
    %v5407 = vld [vmem:[%s5397 + $0x48] sm:$0xff]
    %v5408 = vld [vmem:[%s5397 + $0x50] sm:$0xff]
    %v5409 = vld [vmem:[%s5397 + $0x58] sm:$0xff]
    %v5410 = vld [vmem:[%s5397 + $0x60] sm:$0xff]
    %v5411 = vld [vmem:[%s5397 + $0x68] sm:$0xff]
    %v5412 = vld [vmem:[%s5397 + $0x70] sm:$0xff]
    %v5413 = vld [vmem:[%s5397 + $0x78] sm:$0xff]
    %v5414 = vld [vmem:[%s5397 + $0x80] sm:$0xff]
    %v5415 = vld [vmem:[%s5397 + $0x88] sm:$0xff]
    %v5416 = vld [vmem:[%s5397 + $0x90] sm:$0xff]
    %v5417 = vld [vmem:[%s5397 + $0x98] sm:$0xff]
    %v5418 = vld [vmem:[%s5397 + $0xa0] sm:$0xff]
    %v5419 = vld [vmem:[%s5397 + $0xa8] sm:$0xff]
    %v5420 = vld [vmem:[%s5397 + $0xb0] sm:$0xff]
    %v5421 = vld [vmem:[%s5397 + $0xb8] sm:$0xff]
    %v5422 = vld [vmem:[%s5397 + $0xc0] sm:$0x33]
    %v5448 = vunpack.c.l.b16 %v5398
    %v5449 = vunpack.c.h.b16 %v5398
    %v5450 = vunpack.c.l.b16 %v5399
    %v5451 = vunpack.c.h.b16 %v5399
    %v5452 = vunpack.c.l.b16 %v5400
    %v5453 = vunpack.c.h.b16 %v5400
    %v5454 = vunpack.c.l.b16 %v5401
    %v5455 = vunpack.c.h.b16 %v5401
    %v5456 = vunpack.c.l.b16 %v5402
    %v5457 = vunpack.c.h.b16 %v5402
    %v5458 = vunpack.c.l.b16 %v5403
    %v5459 = vunpack.c.h.b16 %v5403
    %v5460 = vunpack.c.l.b16 %v5404
    %v5461 = vunpack.c.h.b16 %v5404
    %v5462 = vunpack.c.l.b16 %v5405
    %v5463 = vunpack.c.h.b16 %v5405
    %v5464 = vunpack.c.l.b16 %v5406
    %v5465 = vunpack.c.h.b16 %v5406
    %v5466 = vunpack.c.l.b16 %v5407
    %v5467 = vunpack.c.h.b16 %v5407
    %v5468 = vunpack.c.l.b16 %v5408
    %v5469 = vunpack.c.h.b16 %v5408
    %v5470 = vunpack.c.l.b16 %v5409
    %v5471 = vunpack.c.h.b16 %v5409
    %v5472 = vunpack.c.l.b16 %v5410
    %v5473 = vunpack.c.h.b16 %v5410
    %v5474 = vunpack.c.l.b16 %v5411
    %v5475 = vunpack.c.h.b16 %v5411
    %v5476 = vunpack.c.l.b16 %v5412
    %v5477 = vunpack.c.h.b16 %v5412
    %v5478 = vunpack.c.l.b16 %v5413
    %v5479 = vunpack.c.h.b16 %v5413
    %v5480 = vunpack.c.l.b16 %v5414
    %v5481 = vunpack.c.h.b16 %v5414
    %v5482 = vunpack.c.l.b16 %v5415
    %v5483 = vunpack.c.h.b16 %v5415
    %v5484 = vunpack.c.l.b16 %v5416
    %v5485 = vunpack.c.h.b16 %v5416
    %v5486 = vunpack.c.l.b16 %v5417
    %v5487 = vunpack.c.h.b16 %v5417
    %v5488 = vunpack.c.l.b16 %v5418
    %v5489 = vunpack.c.h.b16 %v5418
    %v5490 = vunpack.c.l.b16 %v5419
    %v5491 = vunpack.c.h.b16 %v5419
    %v5492 = vunpack.c.l.b16 %v5420
    %v5493 = vunpack.c.h.b16 %v5420
    %v5494 = vunpack.c.l.b16 %v5421
    %v5495 = vunpack.c.h.b16 %v5421
    %v5496 = vunpack.c.l.b16 %v5422
    %v5497 = vunpack.c.h.b16 %v5422
    %v5498 = vpack.c.b16 %v5450, %v5448
    %v5499 = vpack.c.b16 %v5451, %v5449
    %v5500 = vpack.c.b16 %v5454, %v5452
    %v5501 = vpack.c.b16 %v5455, %v5453
    %v5502 = vpack.c.b16 %v5458, %v5456
    %v5503 = vpack.c.b16 %v5459, %v5457
    %v5504 = vpack.c.b16 %v5462, %v5460
    %v5505 = vpack.c.b16 %v5463, %v5461
    %v5506 = vpack.c.b16 %v5466, %v5464
    %v5507 = vpack.c.b16 %v5467, %v5465
    %v5508 = vpack.c.b16 %v5470, %v5468
    %v5509 = vpack.c.b16 %v5471, %v5469
    %v5510 = vpack.c.b16 %v5474, %v5472
    %v5511 = vpack.c.b16 %v5475, %v5473
    %v5512 = vpack.c.b16 %v5478, %v5476
    %v5513 = vpack.c.b16 %v5479, %v5477
    %v5514 = vpack.c.b16 %v5482, %v5480
    %v5515 = vpack.c.b16 %v5483, %v5481
    %v5516 = vpack.c.b16 %v5486, %v5484
    %v5517 = vpack.c.b16 %v5487, %v5485
    %v5518 = vpack.c.b16 %v5490, %v5488
    %v5519 = vpack.c.b16 %v5491, %v5489
    %v5520 = vpack.c.b16 %v5494, %v5492
    %v5521 = vpack.c.b16 %v5495, %v5493
    %v5522 = vpack.c.b16 %v5496, %v5496
    %v5523 = vpack.c.b16 %v5497, %v5497
    %5537 = vrot.lane.b32.xlu0 %v4790, 118
    %v5538 = vpop.permute.xlu0 %5537
    %5539 = vrot.lane.b32.xlu0 %v4791, 118
    %v5540 = vpop.permute.xlu0 %5539
    %5541 = vrot.lane.b32.xlu0 %v4792, 118
    %v5542 = vpop.permute.xlu0 %5541
    %5543 = vrot.lane.b32.xlu0 %v4793, 118
    %v5544 = vpop.permute.xlu0 %5543
    %5545 = vrot.lane.b32.xlu0 %v4794, 118
    %v5546 = vpop.permute.xlu0 %5545
    %5547 = vrot.lane.b32.xlu0 %v4795, 118
    %v5548 = vpop.permute.xlu0 %5547
    %5549 = vrot.lane.b32.xlu0 %v4796, 118
    %v5550 = vpop.permute.xlu0 %5549
    %5551 = vrot.lane.b32.xlu0 %v4797, 118
    %v5552 = vpop.permute.xlu0 %5551
    %5553 = vrot.lane.b32.xlu0 %v4798, 118
    %v5554 = vpop.permute.xlu0 %5553
    %5555 = vrot.lane.b32.xlu0 %v4799, 118
    %v5556 = vpop.permute.xlu0 %5555
    %5557 = vrot.lane.b32.xlu0 %v4800, 118
    %v5558 = vpop.permute.xlu0 %5557
    %5559 = vrot.lane.b32.xlu0 %v4801, 118
    %v5560 = vpop.permute.xlu0 %5559
    %5561 = vrot.lane.b32.xlu0 %v4802, 118
    %v5562 = vpop.permute.xlu0 %5561
    %5563 = vrot.lane.b32.xlu0 %v4803, 118
    %v5564 = vpop.permute.xlu0 %5563
    %v5580 = vsel %vm4846, %v5499, 0
    %v5583 = vsel %vm4846, %v5501, 0
    %v5586 = vsel %vm4846, %v5503, 0
    %v5589 = vsel %vm4846, %v5505, 0
    %v5592 = vsel %vm4846, %v5507, 0
    %v5595 = vsel %vm4846, %v5509, 0
    %v5598 = vsel %vm4846, %v5511, 0
    %v5601 = vsel %vm4846, %v5513, 0
    %v5604 = vsel %vm4846, %v5515, 0
    %v5607 = vsel %vm4846, %v5517, 0
    %v5610 = vsel %vm4846, %v5519, 0
    %v5613 = vsel %vm4846, %v5521, 0
    %v5616 = vsel %vm4846, %v5523, 0
    %5618 = vmatpush.bf16.msra.mxu0 %v5552
    %5619 = vmatpush.bf16.msra.mxu0 %v5550
    %5620 = vmatpush.bf16.msra.mxu0 %v5548
    %5621 = vmatpush.bf16.msra.mxu0 %v5546
    %5622 = vmatpush.bf16.msra.mxu0 %v5544
    %5623 = vmatpush.bf16.msra.mxu0 %v5542
    %5624 = vmatpush.bf16.msra.mxu0 %v5540
    %5625 = vmatpush.bf16.msra.mxu0 %v5538
    %5626 = vmatmul.bf16.gmra.mxu0 %v5498
    %v5627 = vpop.f32.mrf.mxu0
    %v5628 = vadd.f32 0.0, %v5627
    %v5629 = vpop.f32.mrf.mxu0
    %v5630 = vadd.f32 0.0, %v5629
    %5631 = vmatmul.bf16.gmra.mxu0 %v5500
    %v5632 = vpop.f32.mrf.mxu0
    %v5633 = vadd.f32 0.0, %v5632
    %v5634 = vpop.f32.mrf.mxu0
    %v5635 = vadd.f32 0.0, %v5634
    %5636 = vmatmul.bf16.gmra.mxu0 %v5502
    %v5637 = vpop.f32.mrf.mxu0
    %v5638 = vadd.f32 0.0, %v5637
    %v5639 = vpop.f32.mrf.mxu0
    %v5640 = vadd.f32 0.0, %v5639
    %5641 = vmatmul.bf16.gmra.mxu0 %v5504
    %v5642 = vpop.f32.mrf.mxu0
    %v5643 = vadd.f32 0.0, %v5642
    %v5644 = vpop.f32.mrf.mxu0
    %v5645 = vadd.f32 0.0, %v5644
    %5646 = vmatmul.bf16.gmra.mxu0 %v5506
    %v5647 = vpop.f32.mrf.mxu0
    %v5648 = vadd.f32 0.0, %v5647
    %v5649 = vpop.f32.mrf.mxu0
    %v5650 = vadd.f32 0.0, %v5649
    %5651 = vmatmul.bf16.gmra.mxu0 %v5508
    %v5652 = vpop.f32.mrf.mxu0
    %v5653 = vadd.f32 0.0, %v5652
    %v5654 = vpop.f32.mrf.mxu0
    %v5655 = vadd.f32 0.0, %v5654
    %5656 = vmatmul.bf16.gmra.mxu0 %v5510
    %v5657 = vpop.f32.mrf.mxu0
    %v5658 = vadd.f32 0.0, %v5657
    %v5659 = vpop.f32.mrf.mxu0
    %v5660 = vadd.f32 0.0, %v5659
    %5661 = vmatmul.bf16.gmra.mxu0 %v5512
    %v5662 = vpop.f32.mrf.mxu0
    %v5663 = vadd.f32 0.0, %v5662
    %v5664 = vpop.f32.mrf.mxu0
    %v5665 = vadd.f32 0.0, %v5664
    %5666 = vmatmul.bf16.gmra.mxu0 %v5514
    %v5667 = vpop.f32.mrf.mxu0
    %v5668 = vadd.f32 0.0, %v5667
    %v5669 = vpop.f32.mrf.mxu0
    %v5670 = vadd.f32 0.0, %v5669
    %5671 = vmatmul.bf16.gmra.mxu0 %v5516
    %v5672 = vpop.f32.mrf.mxu0
    %v5673 = vadd.f32 0.0, %v5672
    %v5674 = vpop.f32.mrf.mxu0
    %v5675 = vadd.f32 0.0, %v5674
    %5676 = vmatmul.bf16.gmra.mxu0 %v5518
    %v5677 = vpop.f32.mrf.mxu0
    %v5678 = vadd.f32 0.0, %v5677
    %v5679 = vpop.f32.mrf.mxu0
    %v5680 = vadd.f32 0.0, %v5679
    %5681 = vmatmul.bf16.gmra.mxu0 %v5520
    %v5682 = vpop.f32.mrf.mxu0
    %v5683 = vadd.f32 0.0, %v5682
    %v5684 = vpop.f32.mrf.mxu0
    %v5685 = vadd.f32 0.0, %v5684
    %5686 = vmatmul.bf16.gmra.mxu0 %v5522
    %v5687 = vpop.f32.mrf.mxu0
    %v5688 = vadd.f32 0.0, %v5687
    %v5689 = vpop.f32.mrf.mxu0
    %5690 = vdwg.mxu0
    %5691 = vmatpush.bf16.msra.mxu0 0
    %5692 = vmatpush.bf16.msra.mxu0 0
    %5693 = vmatpush.bf16.msra.mxu0 %v5564
    %5694 = vmatpush.bf16.msra.mxu0 %v5562
    %5695 = vmatpush.bf16.msra.mxu0 %v5560
    %5696 = vmatpush.bf16.msra.mxu0 %v5558
    %5697 = vmatpush.bf16.msra.mxu0 %v5556
    %5698 = vmatpush.bf16.msra.mxu0 %v5554
    %5699 = vmatmul.bf16.gmra.mxu0 %v5580
    %v5700 = vpop.f32.mrf.mxu0
    %v5701 = vadd.f32 %v5628, %v5700
    %v5702 = vpop.f32.mrf.mxu0
    %v5703 = vadd.f32 %v5630, %v5702
    %5704 = vmatmul.bf16.gmra.mxu0 %v5583
    %v5705 = vpop.f32.mrf.mxu0
    %v5706 = vadd.f32 %v5633, %v5705
    %v5707 = vpop.f32.mrf.mxu0
    %v5708 = vadd.f32 %v5635, %v5707
    %5709 = vmatmul.bf16.gmra.mxu0 %v5586
    %v5710 = vpop.f32.mrf.mxu0
    %v5711 = vadd.f32 %v5638, %v5710
    %v5712 = vpop.f32.mrf.mxu0
    %v5713 = vadd.f32 %v5640, %v5712
    %5714 = vmatmul.bf16.gmra.mxu0 %v5589
    %v5715 = vpop.f32.mrf.mxu0
    %v5716 = vadd.f32 %v5643, %v5715
    %v5717 = vpop.f32.mrf.mxu0
    %v5718 = vadd.f32 %v5645, %v5717
    %5719 = vmatmul.bf16.gmra.mxu0 %v5592
    %v5720 = vpop.f32.mrf.mxu0
    %v5721 = vadd.f32 %v5648, %v5720
    %v5722 = vpop.f32.mrf.mxu0
    %v5723 = vadd.f32 %v5650, %v5722
    %5724 = vmatmul.bf16.gmra.mxu0 %v5595
    %v5725 = vpop.f32.mrf.mxu0
    %v5726 = vadd.f32 %v5653, %v5725
    %v5727 = vpop.f32.mrf.mxu0
    %v5728 = vadd.f32 %v5655, %v5727
    %5729 = vmatmul.bf16.gmra.mxu0 %v5598
    %v5730 = vpop.f32.mrf.mxu0
    %v5731 = vadd.f32 %v5658, %v5730
    %v5732 = vpop.f32.mrf.mxu0
    %v5733 = vadd.f32 %v5660, %v5732
    %5734 = vmatmul.bf16.gmra.mxu0 %v5601
    %v5735 = vpop.f32.mrf.mxu0
    %v5736 = vadd.f32 %v5663, %v5735
    %v5737 = vpop.f32.mrf.mxu0
    %v5738 = vadd.f32 %v5665, %v5737
    %5739 = vmatmul.bf16.gmra.mxu0 %v5604
    %v5740 = vpop.f32.mrf.mxu0
    %v5741 = vadd.f32 %v5668, %v5740
    %v5742 = vpop.f32.mrf.mxu0
    %v5743 = vadd.f32 %v5670, %v5742
    %5744 = vmatmul.bf16.gmra.mxu0 %v5607
    %v5745 = vpop.f32.mrf.mxu0
    %v5746 = vadd.f32 %v5673, %v5745
    %v5747 = vpop.f32.mrf.mxu0
    %v5748 = vadd.f32 %v5675, %v5747
    %5749 = vmatmul.bf16.gmra.mxu0 %v5610
    %v5750 = vpop.f32.mrf.mxu0
    %v5751 = vadd.f32 %v5678, %v5750
    %v5752 = vpop.f32.mrf.mxu0
    %v5753 = vadd.f32 %v5680, %v5752
    %5754 = vmatmul.bf16.gmra.mxu0 %v5613
    %v5755 = vpop.f32.mrf.mxu0
    %v5756 = vadd.f32 %v5683, %v5755
    %v5757 = vpop.f32.mrf.mxu0
    %v5758 = vadd.f32 %v5685, %v5757
    %5759 = vmatmul.bf16.gmra.mxu0 %v5616
    %v5760 = vpop.f32.mrf.mxu0
    %v5761 = vadd.f32 %v5688, %v5760
    %v5762 = vpop.f32.mrf.mxu0
    %5763 = vdwg.mxu0
    %v5789 = vunpack.c.l.b16 %v5346
    %v5790 = vunpack.c.h.b16 %v5346
    %v5791 = vunpack.c.l.b16 %v5347
    %v5792 = vunpack.c.h.b16 %v5347
    %v5793 = vunpack.c.l.b16 %v5348
    %v5794 = vunpack.c.h.b16 %v5348
    %v5795 = vunpack.c.l.b16 %v5349
    %v5796 = vunpack.c.h.b16 %v5349
    %v5797 = vunpack.c.l.b16 %v5350
    %v5798 = vunpack.c.h.b16 %v5350
    %v5799 = vunpack.c.l.b16 %v5351
    %v5800 = vunpack.c.h.b16 %v5351
    %v5801 = vunpack.c.l.b16 %v5352
    %v5802 = vunpack.c.h.b16 %v5352
    %v5803 = vunpack.c.l.b16 %v5353
    %v5804 = vunpack.c.h.b16 %v5353
    %v5805 = vunpack.c.l.b16 %v5354
    %v5806 = vunpack.c.h.b16 %v5354
    %v5807 = vunpack.c.l.b16 %v5355
    %v5808 = vunpack.c.h.b16 %v5355
    %v5809 = vunpack.c.l.b16 %v5356
    %v5810 = vunpack.c.h.b16 %v5356
    %v5811 = vunpack.c.l.b16 %v5357
    %v5812 = vunpack.c.h.b16 %v5357
    %v5813 = vunpack.c.l.b16 %v5358
    %v5814 = vunpack.c.h.b16 %v5358
    %v5815 = vunpack.c.l.b16 %v5359
    %v5816 = vunpack.c.h.b16 %v5359
    %v5817 = vunpack.c.l.b16 %v5360
    %v5818 = vunpack.c.h.b16 %v5360
    %v5819 = vunpack.c.l.b16 %v5361
    %v5820 = vunpack.c.h.b16 %v5361
    %v5821 = vunpack.c.l.b16 %v5362
    %v5822 = vunpack.c.h.b16 %v5362
    %v5823 = vunpack.c.l.b16 %v5363
    %v5824 = vunpack.c.h.b16 %v5363
    %v5825 = vunpack.c.l.b16 %v5364
    %v5826 = vunpack.c.h.b16 %v5364
    %v5827 = vunpack.c.l.b16 %v5365
    %v5828 = vunpack.c.h.b16 %v5365
    %v5829 = vunpack.c.l.b16 %v5366
    %v5830 = vunpack.c.h.b16 %v5366
    %v5831 = vunpack.c.l.b16 %v5367
    %v5832 = vunpack.c.h.b16 %v5367
    %v5833 = vunpack.c.l.b16 %v5368
    %v5834 = vunpack.c.h.b16 %v5368
    %v5835 = vunpack.c.l.b16 %v5369
    %v5836 = vunpack.c.h.b16 %v5369
    %v5837 = vunpack.c.l.b16 %v5370
    %v5838 = vunpack.c.h.b16 %v5370
    %v5839 = vpack.c.b16 %v5791, %v5789
    %v5840 = vpack.c.b16 %v5792, %v5790
    %v5841 = vpack.c.b16 %v5795, %v5793
    %v5842 = vpack.c.b16 %v5796, %v5794
    %v5843 = vpack.c.b16 %v5799, %v5797
    %v5844 = vpack.c.b16 %v5800, %v5798
    %v5845 = vpack.c.b16 %v5803, %v5801
    %v5846 = vpack.c.b16 %v5804, %v5802
    %v5847 = vpack.c.b16 %v5807, %v5805
    %v5848 = vpack.c.b16 %v5808, %v5806
    %v5849 = vpack.c.b16 %v5811, %v5809
    %v5850 = vpack.c.b16 %v5812, %v5810
    %v5851 = vpack.c.b16 %v5815, %v5813
    %v5852 = vpack.c.b16 %v5816, %v5814
    %v5853 = vpack.c.b16 %v5819, %v5817
    %v5854 = vpack.c.b16 %v5820, %v5818
    %v5855 = vpack.c.b16 %v5823, %v5821
    %v5856 = vpack.c.b16 %v5824, %v5822
    %v5857 = vpack.c.b16 %v5827, %v5825
    %v5858 = vpack.c.b16 %v5828, %v5826
    %v5859 = vpack.c.b16 %v5831, %v5829
    %v5860 = vpack.c.b16 %v5832, %v5830
    %v5861 = vpack.c.b16 %v5835, %v5833
    %v5862 = vpack.c.b16 %v5836, %v5834
    %v5863 = vpack.c.b16 %v5837, %v5837
    %v5864 = vpack.c.b16 %v5838, %v5838
    %5878 = vrot.lane.b32.xlu0 %v4790, 122
    %v5879 = vpop.permute.xlu0 %5878
    %5880 = vrot.lane.b32.xlu0 %v4791, 122
    %v5881 = vpop.permute.xlu0 %5880
    %5882 = vrot.lane.b32.xlu0 %v4792, 122
    %v5883 = vpop.permute.xlu0 %5882
    %5884 = vrot.lane.b32.xlu0 %v4793, 122
    %v5885 = vpop.permute.xlu0 %5884
    %5886 = vrot.lane.b32.xlu0 %v4794, 122
    %v5887 = vpop.permute.xlu0 %5886
    %5888 = vrot.lane.b32.xlu0 %v4795, 122
    %v5889 = vpop.permute.xlu0 %5888
    %5890 = vrot.lane.b32.xlu0 %v4796, 122
    %v5891 = vpop.permute.xlu0 %5890
    %5892 = vrot.lane.b32.xlu0 %v4797, 122
    %v5893 = vpop.permute.xlu0 %5892
    %5894 = vrot.lane.b32.xlu0 %v4798, 122
    %v5895 = vpop.permute.xlu0 %5894
    %5896 = vrot.lane.b32.xlu0 %v4799, 122
    %v5897 = vpop.permute.xlu0 %5896
    %5898 = vrot.lane.b32.xlu0 %v4800, 122
    %v5899 = vpop.permute.xlu0 %5898
    %5900 = vrot.lane.b32.xlu0 %v4801, 122
    %v5901 = vpop.permute.xlu0 %5900
    %5902 = vrot.lane.b32.xlu0 %v4802, 122
    %v5903 = vpop.permute.xlu0 %5902
    %5904 = vrot.lane.b32.xlu0 %v4803, 122
    %v5905 = vpop.permute.xlu0 %5904
    %v5921 = vsel %vm4846, %v5840, 0
    %v5924 = vsel %vm4846, %v5842, 0
    %v5927 = vsel %vm4846, %v5844, 0
    %v5930 = vsel %vm4846, %v5846, 0
    %v5933 = vsel %vm4846, %v5848, 0
    %v5936 = vsel %vm4846, %v5850, 0
    %v5939 = vsel %vm4846, %v5852, 0
    %v5942 = vsel %vm4846, %v5854, 0
    %v5945 = vsel %vm4846, %v5856, 0
    %v5948 = vsel %vm4846, %v5858, 0
    %v5951 = vsel %vm4846, %v5860, 0
    %v5954 = vsel %vm4846, %v5862, 0
    %v5957 = vsel %vm4846, %v5864, 0
    %5959 = vmatpush.bf16.msra.mxu0 %v5893
    %5960 = vmatpush.bf16.msra.mxu0 %v5891
    %5961 = vmatpush.bf16.msra.mxu0 %v5889
    %5962 = vmatpush.bf16.msra.mxu0 %v5887
    %5963 = vmatpush.bf16.msra.mxu0 %v5885
    %5964 = vmatpush.bf16.msra.mxu0 %v5883
    %5965 = vmatpush.bf16.msra.mxu0 %v5881
    %5966 = vmatpush.bf16.msra.mxu0 %v5879
    %5967 = vmatmul.bf16.gmra.mxu0 %v5839
    %v5968 = vpop.f32.mrf.mxu0
    %v5969 = vadd.f32 %v5701, %v5968
    %v5970 = vpop.f32.mrf.mxu0
    %v5971 = vadd.f32 %v5703, %v5970
    %5972 = vmatmul.bf16.gmra.mxu0 %v5841
    %v5973 = vpop.f32.mrf.mxu0
    %v5974 = vadd.f32 %v5706, %v5973
    %v5975 = vpop.f32.mrf.mxu0
    %v5976 = vadd.f32 %v5708, %v5975
    %5977 = vmatmul.bf16.gmra.mxu0 %v5843
    %v5978 = vpop.f32.mrf.mxu0
    %v5979 = vadd.f32 %v5711, %v5978
    %v5980 = vpop.f32.mrf.mxu0
    %v5981 = vadd.f32 %v5713, %v5980
    %5982 = vmatmul.bf16.gmra.mxu0 %v5845
    %v5983 = vpop.f32.mrf.mxu0
    %v5984 = vadd.f32 %v5716, %v5983
    %v5985 = vpop.f32.mrf.mxu0
    %v5986 = vadd.f32 %v5718, %v5985
    %5987 = vmatmul.bf16.gmra.mxu0 %v5847
    %v5988 = vpop.f32.mrf.mxu0
    %v5989 = vadd.f32 %v5721, %v5988
    %v5990 = vpop.f32.mrf.mxu0
    %v5991 = vadd.f32 %v5723, %v5990
    %5992 = vmatmul.bf16.gmra.mxu0 %v5849
    %v5993 = vpop.f32.mrf.mxu0
    %v5994 = vadd.f32 %v5726, %v5993
    %v5995 = vpop.f32.mrf.mxu0
    %v5996 = vadd.f32 %v5728, %v5995
    %5997 = vmatmul.bf16.gmra.mxu0 %v5851
    %v5998 = vpop.f32.mrf.mxu0
    %v5999 = vadd.f32 %v5731, %v5998
    %v6000 = vpop.f32.mrf.mxu0
    %v6001 = vadd.f32 %v5733, %v6000
    %6002 = vmatmul.bf16.gmra.mxu0 %v5853
    %v6003 = vpop.f32.mrf.mxu0
    %v6004 = vadd.f32 %v5736, %v6003
    %v6005 = vpop.f32.mrf.mxu0
    %v6006 = vadd.f32 %v5738, %v6005
    %6007 = vmatmul.bf16.gmra.mxu0 %v5855
    %v6008 = vpop.f32.mrf.mxu0
    %v6009 = vadd.f32 %v5741, %v6008
    %v6010 = vpop.f32.mrf.mxu0
    %v6011 = vadd.f32 %v5743, %v6010
    %6012 = vmatmul.bf16.gmra.mxu0 %v5857
    %v6013 = vpop.f32.mrf.mxu0
    %v6014 = vadd.f32 %v5746, %v6013
    %v6015 = vpop.f32.mrf.mxu0
    %v6016 = vadd.f32 %v5748, %v6015
    %6017 = vmatmul.bf16.gmra.mxu0 %v5859
    %v6018 = vpop.f32.mrf.mxu0
    %v6019 = vadd.f32 %v5751, %v6018
    %v6020 = vpop.f32.mrf.mxu0
    %v6021 = vadd.f32 %v5753, %v6020
    %6022 = vmatmul.bf16.gmra.mxu0 %v5861
    %v6023 = vpop.f32.mrf.mxu0
    %v6024 = vadd.f32 %v5756, %v6023
    %v6025 = vpop.f32.mrf.mxu0
    %v6026 = vadd.f32 %v5758, %v6025
    %6027 = vmatmul.bf16.gmra.mxu0 %v5863
    %v6028 = vpop.f32.mrf.mxu0
    %v6029 = vadd.f32 %v5761, %v6028
    %v6030 = vpop.f32.mrf.mxu0
    %6031 = vdwg.mxu0
    %6032 = vmatpush.bf16.msra.mxu0 0
    %6033 = vmatpush.bf16.msra.mxu0 0
    %6034 = vmatpush.bf16.msra.mxu0 %v5905
    %6035 = vmatpush.bf16.msra.mxu0 %v5903
    %6036 = vmatpush.bf16.msra.mxu0 %v5901
    %6037 = vmatpush.bf16.msra.mxu0 %v5899
    %6038 = vmatpush.bf16.msra.mxu0 %v5897
    %6039 = vmatpush.bf16.msra.mxu0 %v5895
    %6040 = vmatmul.bf16.gmra.mxu0 %v5921
    %v6041 = vpop.f32.mrf.mxu0
    %v6042 = vadd.f32 %v5969, %v6041
    %v6043 = vpop.f32.mrf.mxu0
    %v6044 = vadd.f32 %v5971, %v6043
    %6045 = vmatmul.bf16.gmra.mxu0 %v5924
    %v6046 = vpop.f32.mrf.mxu0
    %v6047 = vadd.f32 %v5974, %v6046
    %v6048 = vpop.f32.mrf.mxu0
    %v6049 = vadd.f32 %v5976, %v6048
    %6050 = vmatmul.bf16.gmra.mxu0 %v5927
    %v6051 = vpop.f32.mrf.mxu0
    %v6052 = vadd.f32 %v5979, %v6051
    %v6053 = vpop.f32.mrf.mxu0
    %v6054 = vadd.f32 %v5981, %v6053
    %6055 = vmatmul.bf16.gmra.mxu0 %v5930
    %v6056 = vpop.f32.mrf.mxu0
    %v6057 = vadd.f32 %v5984, %v6056
    %v6058 = vpop.f32.mrf.mxu0
    %v6059 = vadd.f32 %v5986, %v6058
    %6060 = vmatmul.bf16.gmra.mxu0 %v5933
    %v6061 = vpop.f32.mrf.mxu0
    %v6062 = vadd.f32 %v5989, %v6061
    %v6063 = vpop.f32.mrf.mxu0
    %v6064 = vadd.f32 %v5991, %v6063
    %6065 = vmatmul.bf16.gmra.mxu0 %v5936
    %v6066 = vpop.f32.mrf.mxu0
    %v6067 = vadd.f32 %v5994, %v6066
    %v6068 = vpop.f32.mrf.mxu0
    %v6069 = vadd.f32 %v5996, %v6068
    %6070 = vmatmul.bf16.gmra.mxu0 %v5939
    %v6071 = vpop.f32.mrf.mxu0
    %v6072 = vadd.f32 %v5999, %v6071
    %v6073 = vpop.f32.mrf.mxu0
    %v6074 = vadd.f32 %v6001, %v6073
    %6075 = vmatmul.bf16.gmra.mxu0 %v5942
    %v6076 = vpop.f32.mrf.mxu0
    %v6077 = vadd.f32 %v6004, %v6076
    %v6078 = vpop.f32.mrf.mxu0
    %v6079 = vadd.f32 %v6006, %v6078
    %6080 = vmatmul.bf16.gmra.mxu0 %v5945
    %v6081 = vpop.f32.mrf.mxu0
    %v6082 = vadd.f32 %v6009, %v6081
    %v6083 = vpop.f32.mrf.mxu0
    %v6084 = vadd.f32 %v6011, %v6083
    %6085 = vmatmul.bf16.gmra.mxu0 %v5948
    %v6086 = vpop.f32.mrf.mxu0
    %v6087 = vadd.f32 %v6014, %v6086
    %v6088 = vpop.f32.mrf.mxu0
    %v6089 = vadd.f32 %v6016, %v6088
    %6090 = vmatmul.bf16.gmra.mxu0 %v5951
    %v6091 = vpop.f32.mrf.mxu0
    %v6092 = vadd.f32 %v6019, %v6091
    %v6093 = vpop.f32.mrf.mxu0
    %v6094 = vadd.f32 %v6021, %v6093
    %6095 = vmatmul.bf16.gmra.mxu0 %v5954
    %v6096 = vpop.f32.mrf.mxu0
    %v6097 = vadd.f32 %v6024, %v6096
    %v6098 = vpop.f32.mrf.mxu0
    %v6099 = vadd.f32 %v6026, %v6098
    %6100 = vmatmul.bf16.gmra.mxu0 %v5957
    %v6101 = vpop.f32.mrf.mxu0
    %v6102 = vadd.f32 %v6029, %v6101
    %v6103 = vpop.f32.mrf.mxu0
    %6104 = vdwg.mxu0
    %s6105 = scalar_lea.vmem %s8, 1200
    %v6106 = vld [vmem:[%s6105] sm:$0xff]
    %v6107 = vld [vmem:[%s6105 + $0x8] sm:$0xff]
    %v6108 = vld [vmem:[%s6105 + $0x10] sm:$0xff]
    %v6109 = vld [vmem:[%s6105 + $0x18] sm:$0xff]
    %v6110 = vld [vmem:[%s6105 + $0x20] sm:$0xff]
    %v6111 = vld [vmem:[%s6105 + $0x28] sm:$0xff]
    %v6112 = vld [vmem:[%s6105 + $0x30] sm:$0xff]
    %v6113 = vld [vmem:[%s6105 + $0x38] sm:$0xff]
    %v6114 = vld [vmem:[%s6105 + $0x40] sm:$0xff]
    %v6115 = vld [vmem:[%s6105 + $0x48] sm:$0xff]
    %v6116 = vld [vmem:[%s6105 + $0x50] sm:$0xff]
    %v6117 = vld [vmem:[%s6105 + $0x58] sm:$0xff]
    %v6118 = vld [vmem:[%s6105 + $0x60] sm:$0xff]
    %v6119 = vld [vmem:[%s6105 + $0x68] sm:$0xff]
    %v6120 = vld [vmem:[%s6105 + $0x70] sm:$0xff]
    %v6121 = vld [vmem:[%s6105 + $0x78] sm:$0xff]
    %v6122 = vld [vmem:[%s6105 + $0x80] sm:$0xff]
    %v6123 = vld [vmem:[%s6105 + $0x88] sm:$0xff]
    %v6124 = vld [vmem:[%s6105 + $0x90] sm:$0xff]
    %v6125 = vld [vmem:[%s6105 + $0x98] sm:$0xff]
    %v6126 = vld [vmem:[%s6105 + $0xa0] sm:$0xff]
    %v6127 = vld [vmem:[%s6105 + $0xa8] sm:$0xff]
    %v6128 = vld [vmem:[%s6105 + $0xb0] sm:$0xff]
    %v6129 = vld [vmem:[%s6105 + $0xb8] sm:$0xff]
    %v6130 = vld [vmem:[%s6105 + $0xc0] sm:$0x33]
    %v6156 = vunpack.c.l.b16 %v6106
    %v6157 = vunpack.c.h.b16 %v6106
    %v6158 = vunpack.c.l.b16 %v6107
    %v6159 = vunpack.c.h.b16 %v6107
    %v6160 = vunpack.c.l.b16 %v6108
    %v6161 = vunpack.c.h.b16 %v6108
    %v6162 = vunpack.c.l.b16 %v6109
    %v6163 = vunpack.c.h.b16 %v6109
    %v6164 = vunpack.c.l.b16 %v6110
    %v6165 = vunpack.c.h.b16 %v6110
    %v6166 = vunpack.c.l.b16 %v6111
    %v6167 = vunpack.c.h.b16 %v6111
    %v6168 = vunpack.c.l.b16 %v6112
    %v6169 = vunpack.c.h.b16 %v6112
    %v6170 = vunpack.c.l.b16 %v6113
    %v6171 = vunpack.c.h.b16 %v6113
    %v6172 = vunpack.c.l.b16 %v6114
    %v6173 = vunpack.c.h.b16 %v6114
    %v6174 = vunpack.c.l.b16 %v6115
    %v6175 = vunpack.c.h.b16 %v6115
    %v6176 = vunpack.c.l.b16 %v6116
    %v6177 = vunpack.c.h.b16 %v6116
    %v6178 = vunpack.c.l.b16 %v6117
    %v6179 = vunpack.c.h.b16 %v6117
    %v6180 = vunpack.c.l.b16 %v6118
    %v6181 = vunpack.c.h.b16 %v6118
    %v6182 = vunpack.c.l.b16 %v6119
    %v6183 = vunpack.c.h.b16 %v6119
    %v6184 = vunpack.c.l.b16 %v6120
    %v6185 = vunpack.c.h.b16 %v6120
    %v6186 = vunpack.c.l.b16 %v6121
    %v6187 = vunpack.c.h.b16 %v6121
    %v6188 = vunpack.c.l.b16 %v6122
    %v6189 = vunpack.c.h.b16 %v6122
    %v6190 = vunpack.c.l.b16 %v6123
    %v6191 = vunpack.c.h.b16 %v6123
    %v6192 = vunpack.c.l.b16 %v6124
    %v6193 = vunpack.c.h.b16 %v6124
    %v6194 = vunpack.c.l.b16 %v6125
    %v6195 = vunpack.c.h.b16 %v6125
    %v6196 = vunpack.c.l.b16 %v6126
    %v6197 = vunpack.c.h.b16 %v6126
    %v6198 = vunpack.c.l.b16 %v6127
    %v6199 = vunpack.c.h.b16 %v6127
    %v6200 = vunpack.c.l.b16 %v6128
    %v6201 = vunpack.c.h.b16 %v6128
    %v6202 = vunpack.c.l.b16 %v6129
    %v6203 = vunpack.c.h.b16 %v6129
    %v6204 = vunpack.c.l.b16 %v6130
    %v6205 = vunpack.c.h.b16 %v6130
    %v6206 = vpack.c.b16 %v6158, %v6156
    %v6207 = vpack.c.b16 %v6159, %v6157
    %v6208 = vpack.c.b16 %v6162, %v6160
    %v6209 = vpack.c.b16 %v6163, %v6161
    %v6210 = vpack.c.b16 %v6166, %v6164
    %v6211 = vpack.c.b16 %v6167, %v6165
    %v6212 = vpack.c.b16 %v6170, %v6168
    %v6213 = vpack.c.b16 %v6171, %v6169
    %v6214 = vpack.c.b16 %v6174, %v6172
    %v6215 = vpack.c.b16 %v6175, %v6173
    %v6216 = vpack.c.b16 %v6178, %v6176
    %v6217 = vpack.c.b16 %v6179, %v6177
    %v6218 = vpack.c.b16 %v6182, %v6180
    %v6219 = vpack.c.b16 %v6183, %v6181
    %v6220 = vpack.c.b16 %v6186, %v6184
    %v6221 = vpack.c.b16 %v6187, %v6185
    %v6222 = vpack.c.b16 %v6190, %v6188
    %v6223 = vpack.c.b16 %v6191, %v6189
    %v6224 = vpack.c.b16 %v6194, %v6192
    %v6225 = vpack.c.b16 %v6195, %v6193
    %v6226 = vpack.c.b16 %v6198, %v6196
    %v6227 = vpack.c.b16 %v6199, %v6197
    %v6228 = vpack.c.b16 %v6202, %v6200
    %v6229 = vpack.c.b16 %v6203, %v6201
    %v6230 = vpack.c.b16 %v6204, %v6204
    %v6231 = vpack.c.b16 %v6205, %v6205
    %6245 = vrot.lane.b32.xlu0 %v4790, 116
    %v6246 = vpop.permute.xlu0 %6245
    %6247 = vrot.lane.b32.xlu0 %v4791, 116
    %v6248 = vpop.permute.xlu0 %6247
    %6249 = vrot.lane.b32.xlu0 %v4792, 116
    %v6250 = vpop.permute.xlu0 %6249
    %6251 = vrot.lane.b32.xlu0 %v4793, 116
    %v6252 = vpop.permute.xlu0 %6251
    %6253 = vrot.lane.b32.xlu0 %v4794, 116
    %v6254 = vpop.permute.xlu0 %6253
    %6255 = vrot.lane.b32.xlu0 %v4795, 116
    %v6256 = vpop.permute.xlu0 %6255
    %6257 = vrot.lane.b32.xlu0 %v4796, 116
    %v6258 = vpop.permute.xlu0 %6257
    %6259 = vrot.lane.b32.xlu0 %v4797, 116
    %v6260 = vpop.permute.xlu0 %6259
    %6261 = vrot.lane.b32.xlu0 %v4798, 116
    %v6262 = vpop.permute.xlu0 %6261
    %6263 = vrot.lane.b32.xlu0 %v4799, 116
    %v6264 = vpop.permute.xlu0 %6263
    %6265 = vrot.lane.b32.xlu0 %v4800, 116
    %v6266 = vpop.permute.xlu0 %6265
    %6267 = vrot.lane.b32.xlu0 %v4801, 116
    %v6268 = vpop.permute.xlu0 %6267
    %6269 = vrot.lane.b32.xlu0 %v4802, 116
    %v6270 = vpop.permute.xlu0 %6269
    %6271 = vrot.lane.b32.xlu0 %v4803, 116
    %v6272 = vpop.permute.xlu0 %6271
    %v6288 = vsel %vm4846, %v6207, 0
    %v6291 = vsel %vm4846, %v6209, 0
    %v6294 = vsel %vm4846, %v6211, 0
    %v6297 = vsel %vm4846, %v6213, 0
    %v6300 = vsel %vm4846, %v6215, 0
    %v6303 = vsel %vm4846, %v6217, 0
    %v6306 = vsel %vm4846, %v6219, 0
    %v6309 = vsel %vm4846, %v6221, 0
    %v6312 = vsel %vm4846, %v6223, 0
    %v6315 = vsel %vm4846, %v6225, 0
    %v6318 = vsel %vm4846, %v6227, 0
    %v6321 = vsel %vm4846, %v6229, 0
    %v6324 = vsel %vm4846, %v6231, 0
    %6326 = vmatpush.bf16.msra.mxu0 %v6260
    %6327 = vmatpush.bf16.msra.mxu0 %v6258
    %6328 = vmatpush.bf16.msra.mxu0 %v6256
    %6329 = vmatpush.bf16.msra.mxu0 %v6254
    %6330 = vmatpush.bf16.msra.mxu0 %v6252
    %6331 = vmatpush.bf16.msra.mxu0 %v6250
    %6332 = vmatpush.bf16.msra.mxu0 %v6248
    %6333 = vmatpush.bf16.msra.mxu0 %v6246
    %6334 = vmatmul.bf16.gmra.mxu0 %v6206
    %v6335 = vpop.f32.mrf.mxu0
    %v6336 = vadd.f32 0.0, %v6335
    %v6337 = vpop.f32.mrf.mxu0
    %v6338 = vadd.f32 0.0, %v6337
    %6339 = vmatmul.bf16.gmra.mxu0 %v6208
    %v6340 = vpop.f32.mrf.mxu0
    %v6341 = vadd.f32 0.0, %v6340
    %v6342 = vpop.f32.mrf.mxu0
    %v6343 = vadd.f32 0.0, %v6342
    %6344 = vmatmul.bf16.gmra.mxu0 %v6210
    %v6345 = vpop.f32.mrf.mxu0
    %v6346 = vadd.f32 0.0, %v6345
    %v6347 = vpop.f32.mrf.mxu0
    %v6348 = vadd.f32 0.0, %v6347
    %6349 = vmatmul.bf16.gmra.mxu0 %v6212
    %v6350 = vpop.f32.mrf.mxu0
    %v6351 = vadd.f32 0.0, %v6350
    %v6352 = vpop.f32.mrf.mxu0
    %v6353 = vadd.f32 0.0, %v6352
    %6354 = vmatmul.bf16.gmra.mxu0 %v6214
    %v6355 = vpop.f32.mrf.mxu0
    %v6356 = vadd.f32 0.0, %v6355
    %v6357 = vpop.f32.mrf.mxu0
    %v6358 = vadd.f32 0.0, %v6357
    %6359 = vmatmul.bf16.gmra.mxu0 %v6216
    %v6360 = vpop.f32.mrf.mxu0
    %v6361 = vadd.f32 0.0, %v6360
    %v6362 = vpop.f32.mrf.mxu0
    %v6363 = vadd.f32 0.0, %v6362
    %6364 = vmatmul.bf16.gmra.mxu0 %v6218
    %v6365 = vpop.f32.mrf.mxu0
    %v6366 = vadd.f32 0.0, %v6365
    %v6367 = vpop.f32.mrf.mxu0
    %v6368 = vadd.f32 0.0, %v6367
    %6369 = vmatmul.bf16.gmra.mxu0 %v6220
    %v6370 = vpop.f32.mrf.mxu0
    %v6371 = vadd.f32 0.0, %v6370
    %v6372 = vpop.f32.mrf.mxu0
    %v6373 = vadd.f32 0.0, %v6372
    %6374 = vmatmul.bf16.gmra.mxu0 %v6222
    %v6375 = vpop.f32.mrf.mxu0
    %v6376 = vadd.f32 0.0, %v6375
    %v6377 = vpop.f32.mrf.mxu0
    %v6378 = vadd.f32 0.0, %v6377
    %6379 = vmatmul.bf16.gmra.mxu0 %v6224
    %v6380 = vpop.f32.mrf.mxu0
    %v6381 = vadd.f32 0.0, %v6380
    %v6382 = vpop.f32.mrf.mxu0
    %v6383 = vadd.f32 0.0, %v6382
    %6384 = vmatmul.bf16.gmra.mxu0 %v6226
    %v6385 = vpop.f32.mrf.mxu0
    %v6386 = vadd.f32 0.0, %v6385
    %v6387 = vpop.f32.mrf.mxu0
    %v6388 = vadd.f32 0.0, %v6387
    %6389 = vmatmul.bf16.gmra.mxu0 %v6228
    %v6390 = vpop.f32.mrf.mxu0
    %v6391 = vadd.f32 0.0, %v6390
    %v6392 = vpop.f32.mrf.mxu0
    %v6393 = vadd.f32 0.0, %v6392
    %6394 = vmatmul.bf16.gmra.mxu0 %v6230
    %v6395 = vpop.f32.mrf.mxu0
    %v6396 = vadd.f32 0.0, %v6395
    %v6397 = vpop.f32.mrf.mxu0
    %6398 = vdwg.mxu0
    %6399 = vmatpush.bf16.msra.mxu0 0
    %6400 = vmatpush.bf16.msra.mxu0 0
    %6401 = vmatpush.bf16.msra.mxu0 %v6272
    %6402 = vmatpush.bf16.msra.mxu0 %v6270
    %6403 = vmatpush.bf16.msra.mxu0 %v6268
    %6404 = vmatpush.bf16.msra.mxu0 %v6266
    %6405 = vmatpush.bf16.msra.mxu0 %v6264
    %6406 = vmatpush.bf16.msra.mxu0 %v6262
    %6407 = vmatmul.bf16.gmra.mxu0 %v6288
    %v6408 = vpop.f32.mrf.mxu0
    %v6409 = vadd.f32 %v6336, %v6408
    %v6410 = vpop.f32.mrf.mxu0
    %v6411 = vadd.f32 %v6338, %v6410
    %6412 = vmatmul.bf16.gmra.mxu0 %v6291
    %v6413 = vpop.f32.mrf.mxu0
    %v6414 = vadd.f32 %v6341, %v6413
    %v6415 = vpop.f32.mrf.mxu0
    %v6416 = vadd.f32 %v6343, %v6415
    %6417 = vmatmul.bf16.gmra.mxu0 %v6294
    %v6418 = vpop.f32.mrf.mxu0
    %v6419 = vadd.f32 %v6346, %v6418
    %v6420 = vpop.f32.mrf.mxu0
    %v6421 = vadd.f32 %v6348, %v6420
    %6422 = vmatmul.bf16.gmra.mxu0 %v6297
    %v6423 = vpop.f32.mrf.mxu0
    %v6424 = vadd.f32 %v6351, %v6423
    %v6425 = vpop.f32.mrf.mxu0
    %v6426 = vadd.f32 %v6353, %v6425
    %6427 = vmatmul.bf16.gmra.mxu0 %v6300
    %v6428 = vpop.f32.mrf.mxu0
    %v6429 = vadd.f32 %v6356, %v6428
    %v6430 = vpop.f32.mrf.mxu0
    %v6431 = vadd.f32 %v6358, %v6430
    %6432 = vmatmul.bf16.gmra.mxu0 %v6303
    %v6433 = vpop.f32.mrf.mxu0
    %v6434 = vadd.f32 %v6361, %v6433
    %v6435 = vpop.f32.mrf.mxu0
    %v6436 = vadd.f32 %v6363, %v6435
    %6437 = vmatmul.bf16.gmra.mxu0 %v6306
    %v6438 = vpop.f32.mrf.mxu0
    %v6439 = vadd.f32 %v6366, %v6438
    %v6440 = vpop.f32.mrf.mxu0
    %v6441 = vadd.f32 %v6368, %v6440
    %6442 = vmatmul.bf16.gmra.mxu0 %v6309
    %v6443 = vpop.f32.mrf.mxu0
    %v6444 = vadd.f32 %v6371, %v6443
    %v6445 = vpop.f32.mrf.mxu0
    %v6446 = vadd.f32 %v6373, %v6445
    %6447 = vmatmul.bf16.gmra.mxu0 %v6312
    %v6448 = vpop.f32.mrf.mxu0
    %v6449 = vadd.f32 %v6376, %v6448
    %v6450 = vpop.f32.mrf.mxu0
    %v6451 = vadd.f32 %v6378, %v6450
    %6452 = vmatmul.bf16.gmra.mxu0 %v6315
    %v6453 = vpop.f32.mrf.mxu0
    %v6454 = vadd.f32 %v6381, %v6453
    %v6455 = vpop.f32.mrf.mxu0
    %v6456 = vadd.f32 %v6383, %v6455
    %6457 = vmatmul.bf16.gmra.mxu0 %v6318
    %v6458 = vpop.f32.mrf.mxu0
    %v6459 = vadd.f32 %v6386, %v6458
    %v6460 = vpop.f32.mrf.mxu0
    %v6461 = vadd.f32 %v6388, %v6460
    %6462 = vmatmul.bf16.gmra.mxu0 %v6321
    %v6463 = vpop.f32.mrf.mxu0
    %v6464 = vadd.f32 %v6391, %v6463
    %v6465 = vpop.f32.mrf.mxu0
    %v6466 = vadd.f32 %v6393, %v6465
    %6467 = vmatmul.bf16.gmra.mxu0 %v6324
    %v6468 = vpop.f32.mrf.mxu0
    %v6469 = vadd.f32 %v6396, %v6468
    %v6470 = vpop.f32.mrf.mxu0
    %6471 = vdwg.mxu0
    %v6472 = vadd.f32 %v5282, %v6409
    %v6473 = vadd.f32 %v5284, %v6411
    %v6474 = vadd.f32 %v5287, %v6414
    %v6475 = vadd.f32 %v5289, %v6416
    %v6476 = vadd.f32 %v5292, %v6419
    %v6477 = vadd.f32 %v5294, %v6421
    %v6478 = vadd.f32 %v5297, %v6424
    %v6479 = vadd.f32 %v5299, %v6426
    %v6480 = vadd.f32 %v5302, %v6429
    %v6481 = vadd.f32 %v5304, %v6431
    %v6482 = vadd.f32 %v5307, %v6434
    %v6483 = vadd.f32 %v5309, %v6436
    %v6484 = vadd.f32 %v5312, %v6439
    %v6485 = vadd.f32 %v5314, %v6441
    %v6486 = vadd.f32 %v5317, %v6444
    %v6487 = vadd.f32 %v5319, %v6446
    %v6488 = vadd.f32 %v5322, %v6449
    %v6489 = vadd.f32 %v5324, %v6451
    %v6490 = vadd.f32 %v5327, %v6454
    %v6491 = vadd.f32 %v5329, %v6456
    %v6492 = vadd.f32 %v5332, %v6459
    %v6493 = vadd.f32 %v5334, %v6461
    %v6494 = vadd.f32 %v5337, %v6464
    %v6495 = vadd.f32 %v5339, %v6466
    %v6496 = vadd.f32 %v5342, %v6469
    %s6497 = scalar_lea.vmem %s8, 1400
    %v6498 = vld [vmem:[%s6497] sm:$0xff]
    %v6499 = vld [vmem:[%s6497 + $0x8] sm:$0xff]
    %v6500 = vld [vmem:[%s6497 + $0x10] sm:$0xff]
    %v6501 = vld [vmem:[%s6497 + $0x18] sm:$0xff]
    %v6502 = vld [vmem:[%s6497 + $0x20] sm:$0xff]
    %v6503 = vld [vmem:[%s6497 + $0x28] sm:$0xff]
    %v6504 = vld [vmem:[%s6497 + $0x30] sm:$0xff]
    %v6505 = vld [vmem:[%s6497 + $0x38] sm:$0xff]
    %v6506 = vld [vmem:[%s6497 + $0x40] sm:$0xff]
    %v6507 = vld [vmem:[%s6497 + $0x48] sm:$0xff]
    %v6508 = vld [vmem:[%s6497 + $0x50] sm:$0xff]
    %v6509 = vld [vmem:[%s6497 + $0x58] sm:$0xff]
    %v6510 = vld [vmem:[%s6497 + $0x60] sm:$0xff]
    %v6511 = vld [vmem:[%s6497 + $0x68] sm:$0xff]
    %v6512 = vld [vmem:[%s6497 + $0x70] sm:$0xff]
    %v6513 = vld [vmem:[%s6497 + $0x78] sm:$0xff]
    %v6514 = vld [vmem:[%s6497 + $0x80] sm:$0xff]
    %v6515 = vld [vmem:[%s6497 + $0x88] sm:$0xff]
    %v6516 = vld [vmem:[%s6497 + $0x90] sm:$0xff]
    %v6517 = vld [vmem:[%s6497 + $0x98] sm:$0xff]
    %v6518 = vld [vmem:[%s6497 + $0xa0] sm:$0xff]
    %v6519 = vld [vmem:[%s6497 + $0xa8] sm:$0xff]
    %v6520 = vld [vmem:[%s6497 + $0xb0] sm:$0xff]
    %v6521 = vld [vmem:[%s6497 + $0xb8] sm:$0xff]
    %v6522 = vld [vmem:[%s6497 + $0xc0] sm:$0x33]
    %v6548 = vunpack.c.l.b16 %v6498
    %v6549 = vunpack.c.h.b16 %v6498
    %v6550 = vunpack.c.l.b16 %v6499
    %v6551 = vunpack.c.h.b16 %v6499
    %v6552 = vunpack.c.l.b16 %v6500
    %v6553 = vunpack.c.h.b16 %v6500
    %v6554 = vunpack.c.l.b16 %v6501
    %v6555 = vunpack.c.h.b16 %v6501
    %v6556 = vunpack.c.l.b16 %v6502
    %v6557 = vunpack.c.h.b16 %v6502
    %v6558 = vunpack.c.l.b16 %v6503
    %v6559 = vunpack.c.h.b16 %v6503
    %v6560 = vunpack.c.l.b16 %v6504
    %v6561 = vunpack.c.h.b16 %v6504
    %v6562 = vunpack.c.l.b16 %v6505
    %v6563 = vunpack.c.h.b16 %v6505
    %v6564 = vunpack.c.l.b16 %v6506
    %v6565 = vunpack.c.h.b16 %v6506
    %v6566 = vunpack.c.l.b16 %v6507
    %v6567 = vunpack.c.h.b16 %v6507
    %v6568 = vunpack.c.l.b16 %v6508
    %v6569 = vunpack.c.h.b16 %v6508
    %v6570 = vunpack.c.l.b16 %v6509
    %v6571 = vunpack.c.h.b16 %v6509
    %v6572 = vunpack.c.l.b16 %v6510
    %v6573 = vunpack.c.h.b16 %v6510
    %v6574 = vunpack.c.l.b16 %v6511
    %v6575 = vunpack.c.h.b16 %v6511
    %v6576 = vunpack.c.l.b16 %v6512
    %v6577 = vunpack.c.h.b16 %v6512
    %v6578 = vunpack.c.l.b16 %v6513
    %v6579 = vunpack.c.h.b16 %v6513
    %v6580 = vunpack.c.l.b16 %v6514
    %v6581 = vunpack.c.h.b16 %v6514
    %v6582 = vunpack.c.l.b16 %v6515
    %v6583 = vunpack.c.h.b16 %v6515
    %v6584 = vunpack.c.l.b16 %v6516
    %v6585 = vunpack.c.h.b16 %v6516
    %v6586 = vunpack.c.l.b16 %v6517
    %v6587 = vunpack.c.h.b16 %v6517
    %v6588 = vunpack.c.l.b16 %v6518
    %v6589 = vunpack.c.h.b16 %v6518
    %v6590 = vunpack.c.l.b16 %v6519
    %v6591 = vunpack.c.h.b16 %v6519
    %v6592 = vunpack.c.l.b16 %v6520
    %v6593 = vunpack.c.h.b16 %v6520
    %v6594 = vunpack.c.l.b16 %v6521
    %v6595 = vunpack.c.h.b16 %v6521
    %v6596 = vunpack.c.l.b16 %v6522
    %v6597 = vunpack.c.h.b16 %v6522
    %v6598 = vpack.c.b16 %v6550, %v6548
    %v6599 = vpack.c.b16 %v6551, %v6549
    %v6600 = vpack.c.b16 %v6554, %v6552
    %v6601 = vpack.c.b16 %v6555, %v6553
    %v6602 = vpack.c.b16 %v6558, %v6556
    %v6603 = vpack.c.b16 %v6559, %v6557
    %v6604 = vpack.c.b16 %v6562, %v6560
    %v6605 = vpack.c.b16 %v6563, %v6561
    %v6606 = vpack.c.b16 %v6566, %v6564
    %v6607 = vpack.c.b16 %v6567, %v6565
    %v6608 = vpack.c.b16 %v6570, %v6568
    %v6609 = vpack.c.b16 %v6571, %v6569
    %v6610 = vpack.c.b16 %v6574, %v6572
    %v6611 = vpack.c.b16 %v6575, %v6573
    %v6612 = vpack.c.b16 %v6578, %v6576
    %v6613 = vpack.c.b16 %v6579, %v6577
    %v6614 = vpack.c.b16 %v6582, %v6580
    %v6615 = vpack.c.b16 %v6583, %v6581
    %v6616 = vpack.c.b16 %v6586, %v6584
    %v6617 = vpack.c.b16 %v6587, %v6585
    %v6618 = vpack.c.b16 %v6590, %v6588
    %v6619 = vpack.c.b16 %v6591, %v6589
    %v6620 = vpack.c.b16 %v6594, %v6592
    %v6621 = vpack.c.b16 %v6595, %v6593
    %v6622 = vpack.c.b16 %v6596, %v6596
    %v6623 = vpack.c.b16 %v6597, %v6597
    %6637 = vrot.lane.b32.xlu0 %v4790, 114
    %v6638 = vpop.permute.xlu0 %6637
    %6639 = vrot.lane.b32.xlu0 %v4791, 114
    %v6640 = vpop.permute.xlu0 %6639
    %6641 = vrot.lane.b32.xlu0 %v4792, 114
    %v6642 = vpop.permute.xlu0 %6641
    %6643 = vrot.lane.b32.xlu0 %v4793, 114
    %v6644 = vpop.permute.xlu0 %6643
    %6645 = vrot.lane.b32.xlu0 %v4794, 114
    %v6646 = vpop.permute.xlu0 %6645
    %6647 = vrot.lane.b32.xlu0 %v4795, 114
    %v6648 = vpop.permute.xlu0 %6647
    %6649 = vrot.lane.b32.xlu0 %v4796, 114
    %v6650 = vpop.permute.xlu0 %6649
    %6651 = vrot.lane.b32.xlu0 %v4797, 114
    %v6652 = vpop.permute.xlu0 %6651
    %6653 = vrot.lane.b32.xlu0 %v4798, 114
    %v6654 = vpop.permute.xlu0 %6653
    %6655 = vrot.lane.b32.xlu0 %v4799, 114
    %v6656 = vpop.permute.xlu0 %6655
    %6657 = vrot.lane.b32.xlu0 %v4800, 114
    %v6658 = vpop.permute.xlu0 %6657
    %6659 = vrot.lane.b32.xlu0 %v4801, 114
    %v6660 = vpop.permute.xlu0 %6659
    %6661 = vrot.lane.b32.xlu0 %v4802, 114
    %v6662 = vpop.permute.xlu0 %6661
    %6663 = vrot.lane.b32.xlu0 %v4803, 114
    %v6664 = vpop.permute.xlu0 %6663
    %v6680 = vsel %vm4846, %v6599, 0
    %v6683 = vsel %vm4846, %v6601, 0
    %v6686 = vsel %vm4846, %v6603, 0
    %v6689 = vsel %vm4846, %v6605, 0
    %v6692 = vsel %vm4846, %v6607, 0
    %v6695 = vsel %vm4846, %v6609, 0
    %v6698 = vsel %vm4846, %v6611, 0
    %v6701 = vsel %vm4846, %v6613, 0
    %v6704 = vsel %vm4846, %v6615, 0
    %v6707 = vsel %vm4846, %v6617, 0
    %v6710 = vsel %vm4846, %v6619, 0
    %v6713 = vsel %vm4846, %v6621, 0
    %v6716 = vsel %vm4846, %v6623, 0
    %6718 = vmatpush.bf16.msra.mxu0 %v6652
    %6719 = vmatpush.bf16.msra.mxu0 %v6650
    %6720 = vmatpush.bf16.msra.mxu0 %v6648
    %6721 = vmatpush.bf16.msra.mxu0 %v6646
    %6722 = vmatpush.bf16.msra.mxu0 %v6644
    %6723 = vmatpush.bf16.msra.mxu0 %v6642
    %6724 = vmatpush.bf16.msra.mxu0 %v6640
    %6725 = vmatpush.bf16.msra.mxu0 %v6638
    %6726 = vmatmul.bf16.gmra.mxu0 %v6598
    %v6727 = vpop.f32.mrf.mxu0
    %v6728 = vadd.f32 0.0, %v6727
    %v6729 = vpop.f32.mrf.mxu0
    %v6730 = vadd.f32 0.0, %v6729
    %6731 = vmatmul.bf16.gmra.mxu0 %v6600
    %v6732 = vpop.f32.mrf.mxu0
    %v6733 = vadd.f32 0.0, %v6732
    %v6734 = vpop.f32.mrf.mxu0
    %v6735 = vadd.f32 0.0, %v6734
    %6736 = vmatmul.bf16.gmra.mxu0 %v6602
    %v6737 = vpop.f32.mrf.mxu0
    %v6738 = vadd.f32 0.0, %v6737
    %v6739 = vpop.f32.mrf.mxu0
    %v6740 = vadd.f32 0.0, %v6739
    %6741 = vmatmul.bf16.gmra.mxu0 %v6604
    %v6742 = vpop.f32.mrf.mxu0
    %v6743 = vadd.f32 0.0, %v6742
    %v6744 = vpop.f32.mrf.mxu0
    %v6745 = vadd.f32 0.0, %v6744
    %6746 = vmatmul.bf16.gmra.mxu0 %v6606
    %v6747 = vpop.f32.mrf.mxu0
    %v6748 = vadd.f32 0.0, %v6747
    %v6749 = vpop.f32.mrf.mxu0
    %v6750 = vadd.f32 0.0, %v6749
    %6751 = vmatmul.bf16.gmra.mxu0 %v6608
    %v6752 = vpop.f32.mrf.mxu0
    %v6753 = vadd.f32 0.0, %v6752
    %v6754 = vpop.f32.mrf.mxu0
    %v6755 = vadd.f32 0.0, %v6754
    %6756 = vmatmul.bf16.gmra.mxu0 %v6610
    %v6757 = vpop.f32.mrf.mxu0
    %v6758 = vadd.f32 0.0, %v6757
    %v6759 = vpop.f32.mrf.mxu0
    %v6760 = vadd.f32 0.0, %v6759
    %6761 = vmatmul.bf16.gmra.mxu0 %v6612
    %v6762 = vpop.f32.mrf.mxu0
    %v6763 = vadd.f32 0.0, %v6762
    %v6764 = vpop.f32.mrf.mxu0
    %v6765 = vadd.f32 0.0, %v6764
    %6766 = vmatmul.bf16.gmra.mxu0 %v6614
    %v6767 = vpop.f32.mrf.mxu0
    %v6768 = vadd.f32 0.0, %v6767
    %v6769 = vpop.f32.mrf.mxu0
    %v6770 = vadd.f32 0.0, %v6769
    %6771 = vmatmul.bf16.gmra.mxu0 %v6616
    %v6772 = vpop.f32.mrf.mxu0
    %v6773 = vadd.f32 0.0, %v6772
    %v6774 = vpop.f32.mrf.mxu0
    %v6775 = vadd.f32 0.0, %v6774
    %6776 = vmatmul.bf16.gmra.mxu0 %v6618
    %v6777 = vpop.f32.mrf.mxu0
    %v6778 = vadd.f32 0.0, %v6777
    %v6779 = vpop.f32.mrf.mxu0
    %v6780 = vadd.f32 0.0, %v6779
    %6781 = vmatmul.bf16.gmra.mxu0 %v6620
    %v6782 = vpop.f32.mrf.mxu0
    %v6783 = vadd.f32 0.0, %v6782
    %v6784 = vpop.f32.mrf.mxu0
    %v6785 = vadd.f32 0.0, %v6784
    %6786 = vmatmul.bf16.gmra.mxu0 %v6622
    %v6787 = vpop.f32.mrf.mxu0
    %v6788 = vadd.f32 0.0, %v6787
    %v6789 = vpop.f32.mrf.mxu0
    %6790 = vdwg.mxu0
    %6791 = vmatpush.bf16.msra.mxu0 0
    %6792 = vmatpush.bf16.msra.mxu0 0
    %6793 = vmatpush.bf16.msra.mxu0 %v6664
    %6794 = vmatpush.bf16.msra.mxu0 %v6662
    %6795 = vmatpush.bf16.msra.mxu0 %v6660
    %6796 = vmatpush.bf16.msra.mxu0 %v6658
    %6797 = vmatpush.bf16.msra.mxu0 %v6656
    %6798 = vmatpush.bf16.msra.mxu0 %v6654
    %6799 = vmatmul.bf16.gmra.mxu0 %v6680
    %v6800 = vpop.f32.mrf.mxu0
    %v6801 = vadd.f32 %v6728, %v6800
    %v6802 = vpop.f32.mrf.mxu0
    %v6803 = vadd.f32 %v6730, %v6802
    %6804 = vmatmul.bf16.gmra.mxu0 %v6683
    %v6805 = vpop.f32.mrf.mxu0
    %v6806 = vadd.f32 %v6733, %v6805
    %v6807 = vpop.f32.mrf.mxu0
    %v6808 = vadd.f32 %v6735, %v6807
    %6809 = vmatmul.bf16.gmra.mxu0 %v6686
    %v6810 = vpop.f32.mrf.mxu0
    %v6811 = vadd.f32 %v6738, %v6810
    %v6812 = vpop.f32.mrf.mxu0
    %v6813 = vadd.f32 %v6740, %v6812
    %6814 = vmatmul.bf16.gmra.mxu0 %v6689
    %v6815 = vpop.f32.mrf.mxu0
    %v6816 = vadd.f32 %v6743, %v6815
    %v6817 = vpop.f32.mrf.mxu0
    %v6818 = vadd.f32 %v6745, %v6817
    %6819 = vmatmul.bf16.gmra.mxu0 %v6692
    %v6820 = vpop.f32.mrf.mxu0
    %v6821 = vadd.f32 %v6748, %v6820
    %v6822 = vpop.f32.mrf.mxu0
    %v6823 = vadd.f32 %v6750, %v6822
    %6824 = vmatmul.bf16.gmra.mxu0 %v6695
    %v6825 = vpop.f32.mrf.mxu0
    %v6826 = vadd.f32 %v6753, %v6825
    %v6827 = vpop.f32.mrf.mxu0
    %v6828 = vadd.f32 %v6755, %v6827
    %6829 = vmatmul.bf16.gmra.mxu0 %v6698
    %v6830 = vpop.f32.mrf.mxu0
    %v6831 = vadd.f32 %v6758, %v6830
    %v6832 = vpop.f32.mrf.mxu0
    %v6833 = vadd.f32 %v6760, %v6832
    %6834 = vmatmul.bf16.gmra.mxu0 %v6701
    %v6835 = vpop.f32.mrf.mxu0
    %v6836 = vadd.f32 %v6763, %v6835
    %v6837 = vpop.f32.mrf.mxu0
    %v6838 = vadd.f32 %v6765, %v6837
    %6839 = vmatmul.bf16.gmra.mxu0 %v6704
    %v6840 = vpop.f32.mrf.mxu0
    %v6841 = vadd.f32 %v6768, %v6840
    %v6842 = vpop.f32.mrf.mxu0
    %v6843 = vadd.f32 %v6770, %v6842
    %6844 = vmatmul.bf16.gmra.mxu0 %v6707
    %v6845 = vpop.f32.mrf.mxu0
    %v6846 = vadd.f32 %v6773, %v6845
    %v6847 = vpop.f32.mrf.mxu0
    %v6848 = vadd.f32 %v6775, %v6847
    %6849 = vmatmul.bf16.gmra.mxu0 %v6710
    %v6850 = vpop.f32.mrf.mxu0
    %v6851 = vadd.f32 %v6778, %v6850
    %v6852 = vpop.f32.mrf.mxu0
    %v6853 = vadd.f32 %v6780, %v6852
    %6854 = vmatmul.bf16.gmra.mxu0 %v6713
    %v6855 = vpop.f32.mrf.mxu0
    %v6856 = vadd.f32 %v6783, %v6855
    %v6857 = vpop.f32.mrf.mxu0
    %v6858 = vadd.f32 %v6785, %v6857
    %6859 = vmatmul.bf16.gmra.mxu0 %v6716
    %v6860 = vpop.f32.mrf.mxu0
    %v6861 = vadd.f32 %v6788, %v6860
    %v6862 = vpop.f32.mrf.mxu0
    %6863 = vdwg.mxu0
    %v6889 = vunpack.c.l.b16 %v4569
    %v6890 = vunpack.c.h.b16 %v4569
    %v6891 = vunpack.c.l.b16 %v4570
    %v6892 = vunpack.c.h.b16 %v4570
    %v6893 = vunpack.c.l.b16 %v4571
    %v6894 = vunpack.c.h.b16 %v4571
    %v6895 = vunpack.c.l.b16 %v4572
    %v6896 = vunpack.c.h.b16 %v4572
    %v6897 = vunpack.c.l.b16 %v4573
    %v6898 = vunpack.c.h.b16 %v4573
    %v6899 = vunpack.c.l.b16 %v4574
    %v6900 = vunpack.c.h.b16 %v4574
    %v6901 = vunpack.c.l.b16 %v4575
    %v6902 = vunpack.c.h.b16 %v4575
    %v6903 = vunpack.c.l.b16 %v4576
    %v6904 = vunpack.c.h.b16 %v4576
    %v6905 = vunpack.c.l.b16 %v4577
    %v6906 = vunpack.c.h.b16 %v4577
    %v6907 = vunpack.c.l.b16 %v4578
    %v6908 = vunpack.c.h.b16 %v4578
    %v6909 = vunpack.c.l.b16 %v4579
    %v6910 = vunpack.c.h.b16 %v4579
    %v6911 = vunpack.c.l.b16 %v4580
    %v6912 = vunpack.c.h.b16 %v4580
    %v6913 = vunpack.c.l.b16 %v4581
    %v6914 = vunpack.c.h.b16 %v4581
    %v6915 = vunpack.c.l.b16 %v4582
    %v6916 = vunpack.c.h.b16 %v4582
    %v6917 = vunpack.c.l.b16 %v4583
    %v6918 = vunpack.c.h.b16 %v4583
    %v6919 = vunpack.c.l.b16 %v4584
    %v6920 = vunpack.c.h.b16 %v4584
    %v6921 = vunpack.c.l.b16 %v4585
    %v6922 = vunpack.c.h.b16 %v4585
    %v6923 = vunpack.c.l.b16 %v4586
    %v6924 = vunpack.c.h.b16 %v4586
    %v6925 = vunpack.c.l.b16 %v4587
    %v6926 = vunpack.c.h.b16 %v4587
    %v6927 = vunpack.c.l.b16 %v4588
    %v6928 = vunpack.c.h.b16 %v4588
    %v6929 = vunpack.c.l.b16 %v4589
    %v6930 = vunpack.c.h.b16 %v4589
    %v6931 = vunpack.c.l.b16 %v4590
    %v6932 = vunpack.c.h.b16 %v4590
    %v6933 = vunpack.c.l.b16 %v4591
    %v6934 = vunpack.c.h.b16 %v4591
    %v6935 = vunpack.c.l.b16 %v4592
    %v6936 = vunpack.c.h.b16 %v4592
    %v6937 = vunpack.c.l.b16 %v4593
    %v6938 = vunpack.c.h.b16 %v4593
    %v6939 = vpack.c.b16 %v6891, %v6889
    %v6940 = vpack.c.b16 %v6892, %v6890
    %v6941 = vpack.c.b16 %v6895, %v6893
    %v6942 = vpack.c.b16 %v6896, %v6894
    %v6943 = vpack.c.b16 %v6899, %v6897
    %v6944 = vpack.c.b16 %v6900, %v6898
    %v6945 = vpack.c.b16 %v6903, %v6901
    %v6946 = vpack.c.b16 %v6904, %v6902
    %v6947 = vpack.c.b16 %v6907, %v6905
    %v6948 = vpack.c.b16 %v6908, %v6906
    %v6949 = vpack.c.b16 %v6911, %v6909
    %v6950 = vpack.c.b16 %v6912, %v6910
    %v6951 = vpack.c.b16 %v6915, %v6913
    %v6952 = vpack.c.b16 %v6916, %v6914
    %v6953 = vpack.c.b16 %v6919, %v6917
    %v6954 = vpack.c.b16 %v6920, %v6918
    %v6955 = vpack.c.b16 %v6923, %v6921
    %v6956 = vpack.c.b16 %v6924, %v6922
    %v6957 = vpack.c.b16 %v6927, %v6925
    %v6958 = vpack.c.b16 %v6928, %v6926
    %v6959 = vpack.c.b16 %v6931, %v6929
    %v6960 = vpack.c.b16 %v6932, %v6930
    %v6961 = vpack.c.b16 %v6935, %v6933
    %v6962 = vpack.c.b16 %v6936, %v6934
    %v6963 = vpack.c.b16 %v6937, %v6937
    %v6964 = vpack.c.b16 %v6938, %v6938
    %6978 = vrot.lane.b32.xlu0 %v4790, 126
    %v6979 = vpop.permute.xlu0 %6978
    %6980 = vrot.lane.b32.xlu0 %v4791, 126
    %v6981 = vpop.permute.xlu0 %6980
    %6982 = vrot.lane.b32.xlu0 %v4792, 126
    %v6983 = vpop.permute.xlu0 %6982
    %6984 = vrot.lane.b32.xlu0 %v4793, 126
    %v6985 = vpop.permute.xlu0 %6984
    %6986 = vrot.lane.b32.xlu0 %v4794, 126
    %v6987 = vpop.permute.xlu0 %6986
    %6988 = vrot.lane.b32.xlu0 %v4795, 126
    %v6989 = vpop.permute.xlu0 %6988
    %6990 = vrot.lane.b32.xlu0 %v4796, 126
    %v6991 = vpop.permute.xlu0 %6990
    %6992 = vrot.lane.b32.xlu0 %v4797, 126
    %v6993 = vpop.permute.xlu0 %6992
    %6994 = vrot.lane.b32.xlu0 %v4798, 126
    %v6995 = vpop.permute.xlu0 %6994
    %6996 = vrot.lane.b32.xlu0 %v4799, 126
    %v6997 = vpop.permute.xlu0 %6996
    %6998 = vrot.lane.b32.xlu0 %v4800, 126
    %v6999 = vpop.permute.xlu0 %6998
    %7000 = vrot.lane.b32.xlu0 %v4801, 126
    %v7001 = vpop.permute.xlu0 %7000
    %7002 = vrot.lane.b32.xlu0 %v4802, 126
    %v7003 = vpop.permute.xlu0 %7002
    %7004 = vrot.lane.b32.xlu0 %v4803, 126
    %v7005 = vpop.permute.xlu0 %7004
    %v7021 = vsel %vm4846, %v6940, 0
    %v7024 = vsel %vm4846, %v6942, 0
    %v7027 = vsel %vm4846, %v6944, 0
    %v7030 = vsel %vm4846, %v6946, 0
    %v7033 = vsel %vm4846, %v6948, 0
    %v7036 = vsel %vm4846, %v6950, 0
    %v7039 = vsel %vm4846, %v6952, 0
    %v7042 = vsel %vm4846, %v6954, 0
    %v7045 = vsel %vm4846, %v6956, 0
    %v7048 = vsel %vm4846, %v6958, 0
    %v7051 = vsel %vm4846, %v6960, 0
    %v7054 = vsel %vm4846, %v6962, 0
    %v7057 = vsel %vm4846, %v6964, 0
    %7059 = vmatpush.bf16.msra.mxu0 %v6993
    %7060 = vmatpush.bf16.msra.mxu0 %v6991
    %7061 = vmatpush.bf16.msra.mxu0 %v6989
    %7062 = vmatpush.bf16.msra.mxu0 %v6987
    %7063 = vmatpush.bf16.msra.mxu0 %v6985
    %7064 = vmatpush.bf16.msra.mxu0 %v6983
    %7065 = vmatpush.bf16.msra.mxu0 %v6981
    %7066 = vmatpush.bf16.msra.mxu0 %v6979
    %7067 = vmatmul.bf16.gmra.mxu0 %v6939
    %v7068 = vpop.f32.mrf.mxu0
    %v7069 = vadd.f32 %v6801, %v7068
    %v7070 = vpop.f32.mrf.mxu0
    %v7071 = vadd.f32 %v6803, %v7070
    %7072 = vmatmul.bf16.gmra.mxu0 %v6941
    %v7073 = vpop.f32.mrf.mxu0
    %v7074 = vadd.f32 %v6806, %v7073
    %v7075 = vpop.f32.mrf.mxu0
    %v7076 = vadd.f32 %v6808, %v7075
    %7077 = vmatmul.bf16.gmra.mxu0 %v6943
    %v7078 = vpop.f32.mrf.mxu0
    %v7079 = vadd.f32 %v6811, %v7078
    %v7080 = vpop.f32.mrf.mxu0
    %v7081 = vadd.f32 %v6813, %v7080
    %7082 = vmatmul.bf16.gmra.mxu0 %v6945
    %v7083 = vpop.f32.mrf.mxu0
    %v7084 = vadd.f32 %v6816, %v7083
    %v7085 = vpop.f32.mrf.mxu0
    %v7086 = vadd.f32 %v6818, %v7085
    %7087 = vmatmul.bf16.gmra.mxu0 %v6947
    %v7088 = vpop.f32.mrf.mxu0
    %v7089 = vadd.f32 %v6821, %v7088
    %v7090 = vpop.f32.mrf.mxu0
    %v7091 = vadd.f32 %v6823, %v7090
    %7092 = vmatmul.bf16.gmra.mxu0 %v6949
    %v7093 = vpop.f32.mrf.mxu0
    %v7094 = vadd.f32 %v6826, %v7093
    %v7095 = vpop.f32.mrf.mxu0
    %v7096 = vadd.f32 %v6828, %v7095
    %7097 = vmatmul.bf16.gmra.mxu0 %v6951
    %v7098 = vpop.f32.mrf.mxu0
    %v7099 = vadd.f32 %v6831, %v7098
    %v7100 = vpop.f32.mrf.mxu0
    %v7101 = vadd.f32 %v6833, %v7100
    %7102 = vmatmul.bf16.gmra.mxu0 %v6953
    %v7103 = vpop.f32.mrf.mxu0
    %v7104 = vadd.f32 %v6836, %v7103
    %v7105 = vpop.f32.mrf.mxu0
    %v7106 = vadd.f32 %v6838, %v7105
    %7107 = vmatmul.bf16.gmra.mxu0 %v6955
    %v7108 = vpop.f32.mrf.mxu0
    %v7109 = vadd.f32 %v6841, %v7108
    %v7110 = vpop.f32.mrf.mxu0
    %v7111 = vadd.f32 %v6843, %v7110
    %7112 = vmatmul.bf16.gmra.mxu0 %v6957
    %v7113 = vpop.f32.mrf.mxu0
    %v7114 = vadd.f32 %v6846, %v7113
    %v7115 = vpop.f32.mrf.mxu0
    %v7116 = vadd.f32 %v6848, %v7115
    %7117 = vmatmul.bf16.gmra.mxu0 %v6959
    %v7118 = vpop.f32.mrf.mxu0
    %v7119 = vadd.f32 %v6851, %v7118
    %v7120 = vpop.f32.mrf.mxu0
    %v7121 = vadd.f32 %v6853, %v7120
    %7122 = vmatmul.bf16.gmra.mxu0 %v6961
    %v7123 = vpop.f32.mrf.mxu0
    %v7124 = vadd.f32 %v6856, %v7123
    %v7125 = vpop.f32.mrf.mxu0
    %v7126 = vadd.f32 %v6858, %v7125
    %7127 = vmatmul.bf16.gmra.mxu0 %v6963
    %v7128 = vpop.f32.mrf.mxu0
    %v7129 = vadd.f32 %v6861, %v7128
    %v7130 = vpop.f32.mrf.mxu0
    %7131 = vdwg.mxu0
    %7132 = vmatpush.bf16.msra.mxu0 0
    %7133 = vmatpush.bf16.msra.mxu0 0
    %7134 = vmatpush.bf16.msra.mxu0 %v7005
    %7135 = vmatpush.bf16.msra.mxu0 %v7003
    %7136 = vmatpush.bf16.msra.mxu0 %v7001
    %7137 = vmatpush.bf16.msra.mxu0 %v6999
    %7138 = vmatpush.bf16.msra.mxu0 %v6997
    %7139 = vmatpush.bf16.msra.mxu0 %v6995
    %7140 = vmatmul.bf16.gmra.mxu0 %v7021
    %v7141 = vpop.f32.mrf.mxu0
    %v7142 = vadd.f32 %v7069, %v7141
    %v7143 = vpop.f32.mrf.mxu0
    %v7144 = vadd.f32 %v7071, %v7143
    %7145 = vmatmul.bf16.gmra.mxu0 %v7024
    %v7146 = vpop.f32.mrf.mxu0
    %v7147 = vadd.f32 %v7074, %v7146
    %v7148 = vpop.f32.mrf.mxu0
    %v7149 = vadd.f32 %v7076, %v7148
    %7150 = vmatmul.bf16.gmra.mxu0 %v7027
    %v7151 = vpop.f32.mrf.mxu0
    %v7152 = vadd.f32 %v7079, %v7151
    %v7153 = vpop.f32.mrf.mxu0
    %v7154 = vadd.f32 %v7081, %v7153
    %7155 = vmatmul.bf16.gmra.mxu0 %v7030
    %v7156 = vpop.f32.mrf.mxu0
    %v7157 = vadd.f32 %v7084, %v7156
    %v7158 = vpop.f32.mrf.mxu0
    %v7159 = vadd.f32 %v7086, %v7158
    %7160 = vmatmul.bf16.gmra.mxu0 %v7033
    %v7161 = vpop.f32.mrf.mxu0
    %v7162 = vadd.f32 %v7089, %v7161
    %v7163 = vpop.f32.mrf.mxu0
    %v7164 = vadd.f32 %v7091, %v7163
    %7165 = vmatmul.bf16.gmra.mxu0 %v7036
    %v7166 = vpop.f32.mrf.mxu0
    %v7167 = vadd.f32 %v7094, %v7166
    %v7168 = vpop.f32.mrf.mxu0
    %v7169 = vadd.f32 %v7096, %v7168
    %7170 = vmatmul.bf16.gmra.mxu0 %v7039
    %v7171 = vpop.f32.mrf.mxu0
    %v7172 = vadd.f32 %v7099, %v7171
    %v7173 = vpop.f32.mrf.mxu0
    %v7174 = vadd.f32 %v7101, %v7173
    %7175 = vmatmul.bf16.gmra.mxu0 %v7042
    %v7176 = vpop.f32.mrf.mxu0
    %v7177 = vadd.f32 %v7104, %v7176
    %v7178 = vpop.f32.mrf.mxu0
    %v7179 = vadd.f32 %v7106, %v7178
    %7180 = vmatmul.bf16.gmra.mxu0 %v7045
    %v7181 = vpop.f32.mrf.mxu0
    %v7182 = vadd.f32 %v7109, %v7181
    %v7183 = vpop.f32.mrf.mxu0
    %v7184 = vadd.f32 %v7111, %v7183
    %7185 = vmatmul.bf16.gmra.mxu0 %v7048
    %v7186 = vpop.f32.mrf.mxu0
    %v7187 = vadd.f32 %v7114, %v7186
    %v7188 = vpop.f32.mrf.mxu0
    %v7189 = vadd.f32 %v7116, %v7188
    %7190 = vmatmul.bf16.gmra.mxu0 %v7051
    %v7191 = vpop.f32.mrf.mxu0
    %v7192 = vadd.f32 %v7119, %v7191
    %v7193 = vpop.f32.mrf.mxu0
    %v7194 = vadd.f32 %v7121, %v7193
    %7195 = vmatmul.bf16.gmra.mxu0 %v7054
    %v7196 = vpop.f32.mrf.mxu0
    %v7197 = vadd.f32 %v7124, %v7196
    %v7198 = vpop.f32.mrf.mxu0
    %v7199 = vadd.f32 %v7126, %v7198
    %7200 = vmatmul.bf16.gmra.mxu0 %v7057
    %v7201 = vpop.f32.mrf.mxu0
    %v7202 = vadd.f32 %v7129, %v7201
    %v7203 = vpop.f32.mrf.mxu0
    %7204 = vdwg.mxu0
    %s7205 = scalar_lea.vmem %s8, 1600
    %v7206 = vld [vmem:[%s7205] sm:$0xff]
    %v7207 = vld [vmem:[%s7205 + $0x8] sm:$0xff]
    %v7208 = vld [vmem:[%s7205 + $0x10] sm:$0xff]
    %v7209 = vld [vmem:[%s7205 + $0x18] sm:$0xff]
    %v7210 = vld [vmem:[%s7205 + $0x20] sm:$0xff]
    %v7211 = vld [vmem:[%s7205 + $0x28] sm:$0xff]
    %v7212 = vld [vmem:[%s7205 + $0x30] sm:$0xff]
    %v7213 = vld [vmem:[%s7205 + $0x38] sm:$0xff]
    %v7214 = vld [vmem:[%s7205 + $0x40] sm:$0xff]
    %v7215 = vld [vmem:[%s7205 + $0x48] sm:$0xff]
    %v7216 = vld [vmem:[%s7205 + $0x50] sm:$0xff]
    %v7217 = vld [vmem:[%s7205 + $0x58] sm:$0xff]
    %v7218 = vld [vmem:[%s7205 + $0x60] sm:$0xff]
    %v7219 = vld [vmem:[%s7205 + $0x68] sm:$0xff]
    %v7220 = vld [vmem:[%s7205 + $0x70] sm:$0xff]
    %v7221 = vld [vmem:[%s7205 + $0x78] sm:$0xff]
    %v7222 = vld [vmem:[%s7205 + $0x80] sm:$0xff]
    %v7223 = vld [vmem:[%s7205 + $0x88] sm:$0xff]
    %v7224 = vld [vmem:[%s7205 + $0x90] sm:$0xff]
    %v7225 = vld [vmem:[%s7205 + $0x98] sm:$0xff]
    %v7226 = vld [vmem:[%s7205 + $0xa0] sm:$0xff]
    %v7227 = vld [vmem:[%s7205 + $0xa8] sm:$0xff]
    %v7228 = vld [vmem:[%s7205 + $0xb0] sm:$0xff]
    %v7229 = vld [vmem:[%s7205 + $0xb8] sm:$0xff]
    %v7230 = vld [vmem:[%s7205 + $0xc0] sm:$0x33]
    %v7256 = vunpack.c.l.b16 %v7206
    %v7257 = vunpack.c.h.b16 %v7206
    %v7258 = vunpack.c.l.b16 %v7207
    %v7259 = vunpack.c.h.b16 %v7207
    %v7260 = vunpack.c.l.b16 %v7208
    %v7261 = vunpack.c.h.b16 %v7208
    %v7262 = vunpack.c.l.b16 %v7209
    %v7263 = vunpack.c.h.b16 %v7209
    %v7264 = vunpack.c.l.b16 %v7210
    %v7265 = vunpack.c.h.b16 %v7210
    %v7266 = vunpack.c.l.b16 %v7211
    %v7267 = vunpack.c.h.b16 %v7211
    %v7268 = vunpack.c.l.b16 %v7212
    %v7269 = vunpack.c.h.b16 %v7212
    %v7270 = vunpack.c.l.b16 %v7213
    %v7271 = vunpack.c.h.b16 %v7213
    %v7272 = vunpack.c.l.b16 %v7214
    %v7273 = vunpack.c.h.b16 %v7214
    %v7274 = vunpack.c.l.b16 %v7215
    %v7275 = vunpack.c.h.b16 %v7215
    %v7276 = vunpack.c.l.b16 %v7216
    %v7277 = vunpack.c.h.b16 %v7216
    %v7278 = vunpack.c.l.b16 %v7217
    %v7279 = vunpack.c.h.b16 %v7217
    %v7280 = vunpack.c.l.b16 %v7218
    %v7281 = vunpack.c.h.b16 %v7218
    %v7282 = vunpack.c.l.b16 %v7219
    %v7283 = vunpack.c.h.b16 %v7219
    %v7284 = vunpack.c.l.b16 %v7220
    %v7285 = vunpack.c.h.b16 %v7220
    %v7286 = vunpack.c.l.b16 %v7221
    %v7287 = vunpack.c.h.b16 %v7221
    %v7288 = vunpack.c.l.b16 %v7222
    %v7289 = vunpack.c.h.b16 %v7222
    %v7290 = vunpack.c.l.b16 %v7223
    %v7291 = vunpack.c.h.b16 %v7223
    %v7292 = vunpack.c.l.b16 %v7224
    %v7293 = vunpack.c.h.b16 %v7224
    %v7294 = vunpack.c.l.b16 %v7225
    %v7295 = vunpack.c.h.b16 %v7225
    %v7296 = vunpack.c.l.b16 %v7226
    %v7297 = vunpack.c.h.b16 %v7226
    %v7298 = vunpack.c.l.b16 %v7227
    %v7299 = vunpack.c.h.b16 %v7227
    %v7300 = vunpack.c.l.b16 %v7228
    %v7301 = vunpack.c.h.b16 %v7228
    %v7302 = vunpack.c.l.b16 %v7229
    %v7303 = vunpack.c.h.b16 %v7229
    %v7304 = vunpack.c.l.b16 %v7230
    %v7305 = vunpack.c.h.b16 %v7230
    %v7306 = vpack.c.b16 %v7258, %v7256
    %v7307 = vpack.c.b16 %v7259, %v7257
    %v7308 = vpack.c.b16 %v7262, %v7260
    %v7309 = vpack.c.b16 %v7263, %v7261
    %v7310 = vpack.c.b16 %v7266, %v7264
    %v7311 = vpack.c.b16 %v7267, %v7265
    %v7312 = vpack.c.b16 %v7270, %v7268
    %v7313 = vpack.c.b16 %v7271, %v7269
    %v7314 = vpack.c.b16 %v7274, %v7272
    %v7315 = vpack.c.b16 %v7275, %v7273
    %v7316 = vpack.c.b16 %v7278, %v7276
    %v7317 = vpack.c.b16 %v7279, %v7277
    %v7318 = vpack.c.b16 %v7282, %v7280
    %v7319 = vpack.c.b16 %v7283, %v7281
    %v7320 = vpack.c.b16 %v7286, %v7284
    %v7321 = vpack.c.b16 %v7287, %v7285
    %v7322 = vpack.c.b16 %v7290, %v7288
    %v7323 = vpack.c.b16 %v7291, %v7289
    %v7324 = vpack.c.b16 %v7294, %v7292
    %v7325 = vpack.c.b16 %v7295, %v7293
    %v7326 = vpack.c.b16 %v7298, %v7296
    %v7327 = vpack.c.b16 %v7299, %v7297
    %v7328 = vpack.c.b16 %v7302, %v7300
    %v7329 = vpack.c.b16 %v7303, %v7301
    %v7330 = vpack.c.b16 %v7304, %v7304
    %v7331 = vpack.c.b16 %v7305, %v7305
    %7345 = vrot.lane.b32.xlu0 %v4790, 112
    %v7346 = vpop.permute.xlu0 %7345
    %7347 = vrot.lane.b32.xlu0 %v4791, 112
    %v7348 = vpop.permute.xlu0 %7347
    %7349 = vrot.lane.b32.xlu0 %v4792, 112
    %v7350 = vpop.permute.xlu0 %7349
    %7351 = vrot.lane.b32.xlu0 %v4793, 112
    %v7352 = vpop.permute.xlu0 %7351
    %7353 = vrot.lane.b32.xlu0 %v4794, 112
    %v7354 = vpop.permute.xlu0 %7353
    %7355 = vrot.lane.b32.xlu0 %v4795, 112
    %v7356 = vpop.permute.xlu0 %7355
    %7357 = vrot.lane.b32.xlu0 %v4796, 112
    %v7358 = vpop.permute.xlu0 %7357
    %7359 = vrot.lane.b32.xlu0 %v4797, 112
    %v7360 = vpop.permute.xlu0 %7359
    %7361 = vrot.lane.b32.xlu0 %v4798, 112
    %v7362 = vpop.permute.xlu0 %7361
    %7363 = vrot.lane.b32.xlu0 %v4799, 112
    %v7364 = vpop.permute.xlu0 %7363
    %7365 = vrot.lane.b32.xlu0 %v4800, 112
    %v7366 = vpop.permute.xlu0 %7365
    %7367 = vrot.lane.b32.xlu0 %v4801, 112
    %v7368 = vpop.permute.xlu0 %7367
    %7369 = vrot.lane.b32.xlu0 %v4802, 112
    %v7370 = vpop.permute.xlu0 %7369
    %7371 = vrot.lane.b32.xlu0 %v4803, 112
    %v7372 = vpop.permute.xlu0 %7371
    %v7388 = vsel %vm4846, %v7307, 0
    %v7391 = vsel %vm4846, %v7309, 0
    %v7394 = vsel %vm4846, %v7311, 0
    %v7397 = vsel %vm4846, %v7313, 0
    %v7400 = vsel %vm4846, %v7315, 0
    %v7403 = vsel %vm4846, %v7317, 0
    %v7406 = vsel %vm4846, %v7319, 0
    %v7409 = vsel %vm4846, %v7321, 0
    %v7412 = vsel %vm4846, %v7323, 0
    %v7415 = vsel %vm4846, %v7325, 0
    %v7418 = vsel %vm4846, %v7327, 0
    %v7421 = vsel %vm4846, %v7329, 0
    %v7424 = vsel %vm4846, %v7331, 0
    %7426 = vmatpush.bf16.msra.mxu0 %v7360
    %7427 = vmatpush.bf16.msra.mxu0 %v7358
    %7428 = vmatpush.bf16.msra.mxu0 %v7356
    %7429 = vmatpush.bf16.msra.mxu0 %v7354
    %7430 = vmatpush.bf16.msra.mxu0 %v7352
    %7431 = vmatpush.bf16.msra.mxu0 %v7350
    %7432 = vmatpush.bf16.msra.mxu0 %v7348
    %7433 = vmatpush.bf16.msra.mxu0 %v7346
    %7434 = vmatmul.bf16.gmra.mxu0 %v7306
    %v7435 = vpop.f32.mrf.mxu0
    %v7436 = vadd.f32 0.0, %v7435
    %v7437 = vpop.f32.mrf.mxu0
    %v7438 = vadd.f32 0.0, %v7437
    %7439 = vmatmul.bf16.gmra.mxu0 %v7308
    %v7440 = vpop.f32.mrf.mxu0
    %v7441 = vadd.f32 0.0, %v7440
    %v7442 = vpop.f32.mrf.mxu0
    %v7443 = vadd.f32 0.0, %v7442
    %7444 = vmatmul.bf16.gmra.mxu0 %v7310
    %v7445 = vpop.f32.mrf.mxu0
    %v7446 = vadd.f32 0.0, %v7445
    %v7447 = vpop.f32.mrf.mxu0
    %v7448 = vadd.f32 0.0, %v7447
    %7449 = vmatmul.bf16.gmra.mxu0 %v7312
    %v7450 = vpop.f32.mrf.mxu0
    %v7451 = vadd.f32 0.0, %v7450
    %v7452 = vpop.f32.mrf.mxu0
    %v7453 = vadd.f32 0.0, %v7452
    %7454 = vmatmul.bf16.gmra.mxu0 %v7314
    %v7455 = vpop.f32.mrf.mxu0
    %v7456 = vadd.f32 0.0, %v7455
    %v7457 = vpop.f32.mrf.mxu0
    %v7458 = vadd.f32 0.0, %v7457
    %7459 = vmatmul.bf16.gmra.mxu0 %v7316
    %v7460 = vpop.f32.mrf.mxu0
    %v7461 = vadd.f32 0.0, %v7460
    %v7462 = vpop.f32.mrf.mxu0
    %v7463 = vadd.f32 0.0, %v7462
    %7464 = vmatmul.bf16.gmra.mxu0 %v7318
    %v7465 = vpop.f32.mrf.mxu0
    %v7466 = vadd.f32 0.0, %v7465
    %v7467 = vpop.f32.mrf.mxu0
    %v7468 = vadd.f32 0.0, %v7467
    %7469 = vmatmul.bf16.gmra.mxu0 %v7320
    %v7470 = vpop.f32.mrf.mxu0
    %v7471 = vadd.f32 0.0, %v7470
    %v7472 = vpop.f32.mrf.mxu0
    %v7473 = vadd.f32 0.0, %v7472
    %7474 = vmatmul.bf16.gmra.mxu0 %v7322
    %v7475 = vpop.f32.mrf.mxu0
    %v7476 = vadd.f32 0.0, %v7475
    %v7477 = vpop.f32.mrf.mxu0
    %v7478 = vadd.f32 0.0, %v7477
    %7479 = vmatmul.bf16.gmra.mxu0 %v7324
    %v7480 = vpop.f32.mrf.mxu0
    %v7481 = vadd.f32 0.0, %v7480
    %v7482 = vpop.f32.mrf.mxu0
    %v7483 = vadd.f32 0.0, %v7482
    %7484 = vmatmul.bf16.gmra.mxu0 %v7326
    %v7485 = vpop.f32.mrf.mxu0
    %v7486 = vadd.f32 0.0, %v7485
    %v7487 = vpop.f32.mrf.mxu0
    %v7488 = vadd.f32 0.0, %v7487
    %7489 = vmatmul.bf16.gmra.mxu0 %v7328
    %v7490 = vpop.f32.mrf.mxu0
    %v7491 = vadd.f32 0.0, %v7490
    %v7492 = vpop.f32.mrf.mxu0
    %v7493 = vadd.f32 0.0, %v7492
    %7494 = vmatmul.bf16.gmra.mxu0 %v7330
    %v7495 = vpop.f32.mrf.mxu0
    %v7496 = vadd.f32 0.0, %v7495
    %v7497 = vpop.f32.mrf.mxu0
    %7498 = vdwg.mxu0
    %7499 = vmatpush.bf16.msra.mxu0 0
    %7500 = vmatpush.bf16.msra.mxu0 0
    %7501 = vmatpush.bf16.msra.mxu0 %v7372
    %7502 = vmatpush.bf16.msra.mxu0 %v7370
    %7503 = vmatpush.bf16.msra.mxu0 %v7368
    %7504 = vmatpush.bf16.msra.mxu0 %v7366
    %7505 = vmatpush.bf16.msra.mxu0 %v7364
    %7506 = vmatpush.bf16.msra.mxu0 %v7362
    %7507 = vmatmul.bf16.gmra.mxu0 %v7388
    %v7508 = vpop.f32.mrf.mxu0
    %v7509 = vadd.f32 %v7436, %v7508
    %v7510 = vpop.f32.mrf.mxu0
    %v7511 = vadd.f32 %v7438, %v7510
    %7512 = vmatmul.bf16.gmra.mxu0 %v7391
    %v7513 = vpop.f32.mrf.mxu0
    %v7514 = vadd.f32 %v7441, %v7513
    %v7515 = vpop.f32.mrf.mxu0
    %v7516 = vadd.f32 %v7443, %v7515
    %7517 = vmatmul.bf16.gmra.mxu0 %v7394
    %v7518 = vpop.f32.mrf.mxu0
    %v7519 = vadd.f32 %v7446, %v7518
    %v7520 = vpop.f32.mrf.mxu0
    %v7521 = vadd.f32 %v7448, %v7520
    %7522 = vmatmul.bf16.gmra.mxu0 %v7397
    %v7523 = vpop.f32.mrf.mxu0
    %v7524 = vadd.f32 %v7451, %v7523
    %v7525 = vpop.f32.mrf.mxu0
    %v7526 = vadd.f32 %v7453, %v7525
    %7527 = vmatmul.bf16.gmra.mxu0 %v7400
    %v7528 = vpop.f32.mrf.mxu0
    %v7529 = vadd.f32 %v7456, %v7528
    %v7530 = vpop.f32.mrf.mxu0
    %v7531 = vadd.f32 %v7458, %v7530
    %7532 = vmatmul.bf16.gmra.mxu0 %v7403
    %v7533 = vpop.f32.mrf.mxu0
    %v7534 = vadd.f32 %v7461, %v7533
    %v7535 = vpop.f32.mrf.mxu0
    %v7536 = vadd.f32 %v7463, %v7535
    %7537 = vmatmul.bf16.gmra.mxu0 %v7406
    %v7538 = vpop.f32.mrf.mxu0
    %v7539 = vadd.f32 %v7466, %v7538
    %v7540 = vpop.f32.mrf.mxu0
    %v7541 = vadd.f32 %v7468, %v7540
    %7542 = vmatmul.bf16.gmra.mxu0 %v7409
    %v7543 = vpop.f32.mrf.mxu0
    %v7544 = vadd.f32 %v7471, %v7543
    %v7545 = vpop.f32.mrf.mxu0
    %v7546 = vadd.f32 %v7473, %v7545
    %7547 = vmatmul.bf16.gmra.mxu0 %v7412
    %v7548 = vpop.f32.mrf.mxu0
    %v7549 = vadd.f32 %v7476, %v7548
    %v7550 = vpop.f32.mrf.mxu0
    %v7551 = vadd.f32 %v7478, %v7550
    %7552 = vmatmul.bf16.gmra.mxu0 %v7415
    %v7553 = vpop.f32.mrf.mxu0
    %v7554 = vadd.f32 %v7481, %v7553
    %v7555 = vpop.f32.mrf.mxu0
    %v7556 = vadd.f32 %v7483, %v7555
    %7557 = vmatmul.bf16.gmra.mxu0 %v7418
    %v7558 = vpop.f32.mrf.mxu0
    %v7559 = vadd.f32 %v7486, %v7558
    %v7560 = vpop.f32.mrf.mxu0
    %v7561 = vadd.f32 %v7488, %v7560
    %7562 = vmatmul.bf16.gmra.mxu0 %v7421
    %v7563 = vpop.f32.mrf.mxu0
    %v7564 = vadd.f32 %v7491, %v7563
    %v7565 = vpop.f32.mrf.mxu0
    %v7566 = vadd.f32 %v7493, %v7565
    %7567 = vmatmul.bf16.gmra.mxu0 %v7424
    %v7568 = vpop.f32.mrf.mxu0
    %v7569 = vadd.f32 %v7496, %v7568
    %v7570 = vpop.f32.mrf.mxu0
    %7571 = vdwg.mxu0
    %v7572 = vadd.f32 %v6472, %v7509
    %v7573 = vadd.f32 %v6473, %v7511
    %v7574 = vadd.f32 %v6474, %v7514
    %v7575 = vadd.f32 %v6475, %v7516
    %v7576 = vadd.f32 %v6476, %v7519
    %v7577 = vadd.f32 %v6477, %v7521
    %v7578 = vadd.f32 %v6478, %v7524
    %v7579 = vadd.f32 %v6479, %v7526
    %v7580 = vadd.f32 %v6480, %v7529
    %v7581 = vadd.f32 %v6481, %v7531
    %v7582 = vadd.f32 %v6482, %v7534
    %v7583 = vadd.f32 %v6483, %v7536
    %v7584 = vadd.f32 %v6484, %v7539
    %v7585 = vadd.f32 %v6485, %v7541
    %v7586 = vadd.f32 %v6486, %v7544
    %v7587 = vadd.f32 %v6487, %v7546
    %v7588 = vadd.f32 %v6488, %v7549
    %v7589 = vadd.f32 %v6489, %v7551
    %v7590 = vadd.f32 %v6490, %v7554
    %v7591 = vadd.f32 %v6491, %v7556
    %v7592 = vadd.f32 %v6492, %v7559
    %v7593 = vadd.f32 %v6493, %v7561
    %v7594 = vadd.f32 %v6494, %v7564
    %v7595 = vadd.f32 %v6495, %v7566
    %v7596 = vadd.f32 %v6496, %v7569
    %s7597 = scalar_lea.vmem %s3, 8
    %v7598 = vld [vmem:[%s7597] sm:$0xf]
    %v7599 = vperm.slane %v7598, 0
    %v7625 = vunpack.c.l.b16 %v5372
    %v7626 = vunpack.c.h.b16 %v5372
    %v7627 = vunpack.c.l.b16 %v5373
    %v7628 = vunpack.c.h.b16 %v5373
    %v7629 = vunpack.c.l.b16 %v5374
    %v7630 = vunpack.c.h.b16 %v5374
    %v7631 = vunpack.c.l.b16 %v5375
    %v7632 = vunpack.c.h.b16 %v5375
    %v7633 = vunpack.c.l.b16 %v5376
    %v7634 = vunpack.c.h.b16 %v5376
    %v7635 = vunpack.c.l.b16 %v5377
    %v7636 = vunpack.c.h.b16 %v5377
    %v7637 = vunpack.c.l.b16 %v5378
    %v7638 = vunpack.c.h.b16 %v5378
    %v7639 = vunpack.c.l.b16 %v5379
    %v7640 = vunpack.c.h.b16 %v5379
    %v7641 = vunpack.c.l.b16 %v5380
    %v7642 = vunpack.c.h.b16 %v5380
    %v7643 = vunpack.c.l.b16 %v5381
    %v7644 = vunpack.c.h.b16 %v5381
    %v7645 = vunpack.c.l.b16 %v5382
    %v7646 = vunpack.c.h.b16 %v5382
    %v7647 = vunpack.c.l.b16 %v5383
    %v7648 = vunpack.c.h.b16 %v5383
    %v7649 = vunpack.c.l.b16 %v5384
    %v7650 = vunpack.c.h.b16 %v5384
    %v7651 = vunpack.c.l.b16 %v5385
    %v7652 = vunpack.c.h.b16 %v5385
    %v7653 = vunpack.c.l.b16 %v5386
    %v7654 = vunpack.c.h.b16 %v5386
    %v7655 = vunpack.c.l.b16 %v5387
    %v7656 = vunpack.c.h.b16 %v5387
    %v7657 = vunpack.c.l.b16 %v5388
    %v7658 = vunpack.c.h.b16 %v5388
    %v7659 = vunpack.c.l.b16 %v5389
    %v7660 = vunpack.c.h.b16 %v5389
    %v7661 = vunpack.c.l.b16 %v5390
    %v7662 = vunpack.c.h.b16 %v5390
    %v7663 = vunpack.c.l.b16 %v5391
    %v7664 = vunpack.c.h.b16 %v5391
    %v7665 = vunpack.c.l.b16 %v5392
    %v7666 = vunpack.c.h.b16 %v5392
    %v7667 = vunpack.c.l.b16 %v5393
    %v7668 = vunpack.c.h.b16 %v5393
    %v7669 = vunpack.c.l.b16 %v5394
    %v7670 = vunpack.c.h.b16 %v5394
    %v7671 = vunpack.c.l.b16 %v5395
    %v7672 = vunpack.c.h.b16 %v5395
    %v7673 = vunpack.c.l.b16 %v5396
    %v7674 = vunpack.c.h.b16 %v5396
    %v7675 = vpack.c.b16 %v7627, %v7625
    %v7676 = vpack.c.b16 %v7628, %v7626
    %v7677 = vpack.c.b16 %v7631, %v7629
    %v7678 = vpack.c.b16 %v7632, %v7630
    %v7679 = vpack.c.b16 %v7635, %v7633
    %v7680 = vpack.c.b16 %v7636, %v7634
    %v7681 = vpack.c.b16 %v7639, %v7637
    %v7682 = vpack.c.b16 %v7640, %v7638
    %v7683 = vpack.c.b16 %v7643, %v7641
    %v7684 = vpack.c.b16 %v7644, %v7642
    %v7685 = vpack.c.b16 %v7647, %v7645
    %v7686 = vpack.c.b16 %v7648, %v7646
    %v7687 = vpack.c.b16 %v7651, %v7649
    %v7688 = vpack.c.b16 %v7652, %v7650
    %v7689 = vpack.c.b16 %v7655, %v7653
    %v7690 = vpack.c.b16 %v7656, %v7654
    %v7691 = vpack.c.b16 %v7659, %v7657
    %v7692 = vpack.c.b16 %v7660, %v7658
    %v7693 = vpack.c.b16 %v7663, %v7661
    %v7694 = vpack.c.b16 %v7664, %v7662
    %v7695 = vpack.c.b16 %v7667, %v7665
    %v7696 = vpack.c.b16 %v7668, %v7666
    %v7697 = vpack.c.b16 %v7671, %v7669
    %v7698 = vpack.c.b16 %v7672, %v7670
    %v7699 = vpack.c.b16 %v7673, %v7673
    %v7700 = vpack.c.b16 %v7674, %v7674
    %7714 = vrot.lane.b32.xlu0 %v4790, 120
    %v7715 = vpop.permute.xlu0 %7714
    %7716 = vrot.lane.b32.xlu0 %v4791, 120
    %v7717 = vpop.permute.xlu0 %7716
    %7718 = vrot.lane.b32.xlu0 %v4792, 120
    %v7719 = vpop.permute.xlu0 %7718
    %7720 = vrot.lane.b32.xlu0 %v4793, 120
    %v7721 = vpop.permute.xlu0 %7720
    %7722 = vrot.lane.b32.xlu0 %v4794, 120
    %v7723 = vpop.permute.xlu0 %7722
    %7724 = vrot.lane.b32.xlu0 %v4795, 120
    %v7725 = vpop.permute.xlu0 %7724
    %7726 = vrot.lane.b32.xlu0 %v4796, 120
    %v7727 = vpop.permute.xlu0 %7726
    %7728 = vrot.lane.b32.xlu0 %v4797, 120
    %v7729 = vpop.permute.xlu0 %7728
    %7730 = vrot.lane.b32.xlu0 %v4798, 120
    %v7731 = vpop.permute.xlu0 %7730
    %7732 = vrot.lane.b32.xlu0 %v4799, 120
    %v7733 = vpop.permute.xlu0 %7732
    %7734 = vrot.lane.b32.xlu0 %v4800, 120
    %v7735 = vpop.permute.xlu0 %7734
    %7736 = vrot.lane.b32.xlu0 %v4801, 120
    %v7737 = vpop.permute.xlu0 %7736
    %7738 = vrot.lane.b32.xlu0 %v4802, 120
    %v7739 = vpop.permute.xlu0 %7738
    %7740 = vrot.lane.b32.xlu0 %v4803, 120
    %v7741 = vpop.permute.xlu0 %7740
    %v7757 = vsel %vm4846, %v7676, 0
    %v7760 = vsel %vm4846, %v7678, 0
    %v7763 = vsel %vm4846, %v7680, 0
    %v7766 = vsel %vm4846, %v7682, 0
    %v7769 = vsel %vm4846, %v7684, 0
    %v7772 = vsel %vm4846, %v7686, 0
    %v7775 = vsel %vm4846, %v7688, 0
    %v7778 = vsel %vm4846, %v7690, 0
    %v7781 = vsel %vm4846, %v7692, 0
    %v7784 = vsel %vm4846, %v7694, 0
    %v7787 = vsel %vm4846, %v7696, 0
    %v7790 = vsel %vm4846, %v7698, 0
    %v7793 = vsel %vm4846, %v7700, 0
    %7795 = vmatpush.bf16.msra.mxu0 %v7729
    %7796 = vmatpush.bf16.msra.mxu0 %v7727
    %7797 = vmatpush.bf16.msra.mxu0 %v7725
    %7798 = vmatpush.bf16.msra.mxu0 %v7723
    %7799 = vmatpush.bf16.msra.mxu0 %v7721
    %7800 = vmatpush.bf16.msra.mxu0 %v7719
    %7801 = vmatpush.bf16.msra.mxu0 %v7717
    %7802 = vmatpush.bf16.msra.mxu0 %v7715
    %7803 = vmatmul.bf16.gmra.mxu0 %v7675
    %v7804 = vpop.f32.mrf.mxu0
    %v7805 = vadd.f32 %v7599, %v7804
    %v7806 = vpop.f32.mrf.mxu0
    %v7807 = vadd.f32 %v7599, %v7806
    %7808 = vmatmul.bf16.gmra.mxu0 %v7677
    %v7809 = vpop.f32.mrf.mxu0
    %v7810 = vadd.f32 %v7599, %v7809
    %v7811 = vpop.f32.mrf.mxu0
    %v7812 = vadd.f32 %v7599, %v7811
    %7813 = vmatmul.bf16.gmra.mxu0 %v7679
    %v7814 = vpop.f32.mrf.mxu0
    %v7815 = vadd.f32 %v7599, %v7814
    %v7816 = vpop.f32.mrf.mxu0
    %v7817 = vadd.f32 %v7599, %v7816
    %7818 = vmatmul.bf16.gmra.mxu0 %v7681
    %v7819 = vpop.f32.mrf.mxu0
    %v7820 = vadd.f32 %v7599, %v7819
    %v7821 = vpop.f32.mrf.mxu0
    %v7822 = vadd.f32 %v7599, %v7821
    %7823 = vmatmul.bf16.gmra.mxu0 %v7683
    %v7824 = vpop.f32.mrf.mxu0
    %v7825 = vadd.f32 %v7599, %v7824
    %v7826 = vpop.f32.mrf.mxu0
    %v7827 = vadd.f32 %v7599, %v7826
    %7828 = vmatmul.bf16.gmra.mxu0 %v7685
    %v7829 = vpop.f32.mrf.mxu0
    %v7830 = vadd.f32 %v7599, %v7829
    %v7831 = vpop.f32.mrf.mxu0
    %v7832 = vadd.f32 %v7599, %v7831
    %7833 = vmatmul.bf16.gmra.mxu0 %v7687
    %v7834 = vpop.f32.mrf.mxu0
    %v7835 = vadd.f32 %v7599, %v7834
    %v7836 = vpop.f32.mrf.mxu0
    %v7837 = vadd.f32 %v7599, %v7836
    %7838 = vmatmul.bf16.gmra.mxu0 %v7689
    %v7839 = vpop.f32.mrf.mxu0
    %v7840 = vadd.f32 %v7599, %v7839
    %v7841 = vpop.f32.mrf.mxu0
    %v7842 = vadd.f32 %v7599, %v7841
    %7843 = vmatmul.bf16.gmra.mxu0 %v7691
    %v7844 = vpop.f32.mrf.mxu0
    %v7845 = vadd.f32 %v7599, %v7844
    %v7846 = vpop.f32.mrf.mxu0
    %v7847 = vadd.f32 %v7599, %v7846
    %7848 = vmatmul.bf16.gmra.mxu0 %v7693
    %v7849 = vpop.f32.mrf.mxu0
    %v7850 = vadd.f32 %v7599, %v7849
    %v7851 = vpop.f32.mrf.mxu0
    %v7852 = vadd.f32 %v7599, %v7851
    %7853 = vmatmul.bf16.gmra.mxu0 %v7695
    %v7854 = vpop.f32.mrf.mxu0
    %v7855 = vadd.f32 %v7599, %v7854
    %v7856 = vpop.f32.mrf.mxu0
    %v7857 = vadd.f32 %v7599, %v7856
    %7858 = vmatmul.bf16.gmra.mxu0 %v7697
    %v7859 = vpop.f32.mrf.mxu0
    %v7860 = vadd.f32 %v7599, %v7859
    %v7861 = vpop.f32.mrf.mxu0
    %v7862 = vadd.f32 %v7599, %v7861
    %7863 = vmatmul.bf16.gmra.mxu0 %v7699
    %v7864 = vpop.f32.mrf.mxu0
    %v7865 = vadd.f32 %v7599, %v7864
    %v7866 = vpop.f32.mrf.mxu0
    %7867 = vdwg.mxu0
    %7868 = vmatpush.bf16.msra.mxu0 0
    %7869 = vmatpush.bf16.msra.mxu0 0
    %7870 = vmatpush.bf16.msra.mxu0 %v7741
    %7871 = vmatpush.bf16.msra.mxu0 %v7739
    %7872 = vmatpush.bf16.msra.mxu0 %v7737
    %7873 = vmatpush.bf16.msra.mxu0 %v7735
    %7874 = vmatpush.bf16.msra.mxu0 %v7733
    %7875 = vmatpush.bf16.msra.mxu0 %v7731
    %7876 = vmatmul.bf16.gmra.mxu0 %v7757
    %v7877 = vpop.f32.mrf.mxu0
    %v7878 = vadd.f32 %v7805, %v7877
    %v7879 = vpop.f32.mrf.mxu0
    %v7880 = vadd.f32 %v7807, %v7879
    %7881 = vmatmul.bf16.gmra.mxu0 %v7760
    %v7882 = vpop.f32.mrf.mxu0
    %v7883 = vadd.f32 %v7810, %v7882
    %v7884 = vpop.f32.mrf.mxu0
    %v7885 = vadd.f32 %v7812, %v7884
    %7886 = vmatmul.bf16.gmra.mxu0 %v7763
    %v7887 = vpop.f32.mrf.mxu0
    %v7888 = vadd.f32 %v7815, %v7887
    %v7889 = vpop.f32.mrf.mxu0
    %v7890 = vadd.f32 %v7817, %v7889
    %7891 = vmatmul.bf16.gmra.mxu0 %v7766
    %v7892 = vpop.f32.mrf.mxu0
    %v7893 = vadd.f32 %v7820, %v7892
    %v7894 = vpop.f32.mrf.mxu0
    %v7895 = vadd.f32 %v7822, %v7894
    %7896 = vmatmul.bf16.gmra.mxu0 %v7769
    %v7897 = vpop.f32.mrf.mxu0
    %v7898 = vadd.f32 %v7825, %v7897
    %v7899 = vpop.f32.mrf.mxu0
    %v7900 = vadd.f32 %v7827, %v7899
    %7901 = vmatmul.bf16.gmra.mxu0 %v7772
    %v7902 = vpop.f32.mrf.mxu0
    %v7903 = vadd.f32 %v7830, %v7902
    %v7904 = vpop.f32.mrf.mxu0
    %v7905 = vadd.f32 %v7832, %v7904
    %7906 = vmatmul.bf16.gmra.mxu0 %v7775
    %v7907 = vpop.f32.mrf.mxu0
    %v7908 = vadd.f32 %v7835, %v7907
    %v7909 = vpop.f32.mrf.mxu0
    %v7910 = vadd.f32 %v7837, %v7909
    %7911 = vmatmul.bf16.gmra.mxu0 %v7778
    %v7912 = vpop.f32.mrf.mxu0
    %v7913 = vadd.f32 %v7840, %v7912
    %v7914 = vpop.f32.mrf.mxu0
    %v7915 = vadd.f32 %v7842, %v7914
    %7916 = vmatmul.bf16.gmra.mxu0 %v7781
    %v7917 = vpop.f32.mrf.mxu0
    %v7918 = vadd.f32 %v7845, %v7917
    %v7919 = vpop.f32.mrf.mxu0
    %v7920 = vadd.f32 %v7847, %v7919
    %7921 = vmatmul.bf16.gmra.mxu0 %v7784
    %v7922 = vpop.f32.mrf.mxu0
    %v7923 = vadd.f32 %v7850, %v7922
    %v7924 = vpop.f32.mrf.mxu0
    %v7925 = vadd.f32 %v7852, %v7924
    %7926 = vmatmul.bf16.gmra.mxu0 %v7787
    %v7927 = vpop.f32.mrf.mxu0
    %v7928 = vadd.f32 %v7855, %v7927
    %v7929 = vpop.f32.mrf.mxu0
    %v7930 = vadd.f32 %v7857, %v7929
    %7931 = vmatmul.bf16.gmra.mxu0 %v7790
    %v7932 = vpop.f32.mrf.mxu0
    %v7933 = vadd.f32 %v7860, %v7932
    %v7934 = vpop.f32.mrf.mxu0
    %v7935 = vadd.f32 %v7862, %v7934
    %7936 = vmatmul.bf16.gmra.mxu0 %v7793
    %v7937 = vpop.f32.mrf.mxu0
    %v7938 = vadd.f32 %v7865, %v7937
    %v7939 = vpop.f32.mrf.mxu0
    %7940 = vdwg.mxu0
    %vm7941 = vcmp.gt.f32.partialorder %v7878, 0.0
    %vm7942 = vcmp.gt.f32.partialorder %v7880, 0.0
    %vm7943 = vcmp.gt.f32.partialorder %v7883, 0.0
    %vm7944 = vcmp.gt.f32.partialorder %v7885, 0.0
    %vm7945 = vcmp.gt.f32.partialorder %v7888, 0.0
    %vm7946 = vcmp.gt.f32.partialorder %v7890, 0.0
    %vm7947 = vcmp.gt.f32.partialorder %v7893, 0.0
    %vm7948 = vcmp.gt.f32.partialorder %v7895, 0.0
    %vm7949 = vcmp.gt.f32.partialorder %v7898, 0.0
    %vm7950 = vcmp.gt.f32.partialorder %v7900, 0.0
    %vm7951 = vcmp.gt.f32.partialorder %v7903, 0.0
    %vm7952 = vcmp.gt.f32.partialorder %v7905, 0.0
    %vm7953 = vcmp.gt.f32.partialorder %v7908, 0.0
    %vm7954 = vcmp.gt.f32.partialorder %v7910, 0.0
    %vm7955 = vcmp.gt.f32.partialorder %v7913, 0.0
    %vm7956 = vcmp.gt.f32.partialorder %v7915, 0.0
    %vm7957 = vcmp.gt.f32.partialorder %v7918, 0.0
    %vm7958 = vcmp.gt.f32.partialorder %v7920, 0.0
    %vm7959 = vcmp.gt.f32.partialorder %v7923, 0.0
    %vm7960 = vcmp.gt.f32.partialorder %v7925, 0.0
    %vm7961 = vcmp.gt.f32.partialorder %v7928, 0.0
    %vm7962 = vcmp.gt.f32.partialorder %v7930, 0.0
    %vm7963 = vcmp.gt.f32.partialorder %v7933, 0.0
    %vm7964 = vcmp.gt.f32.partialorder %v7935, 0.0
    %vm7965 = vcmp.gt.f32.partialorder %v7938, 0.0
    %v7966 = vperm.slane %v7598, 1
    %v7967 = vmul.f32 %v7878, %v7966
    %v7968 = vmul.f32 %v7880, %v7966
    %v7969 = vmul.f32 %v7883, %v7966
    %v7970 = vmul.f32 %v7885, %v7966
    %v7971 = vmul.f32 %v7888, %v7966
    %v7972 = vmul.f32 %v7890, %v7966
    %v7973 = vmul.f32 %v7893, %v7966
    %v7974 = vmul.f32 %v7895, %v7966
    %v7975 = vmul.f32 %v7898, %v7966
    %v7976 = vmul.f32 %v7900, %v7966
    %v7977 = vmul.f32 %v7903, %v7966
    %v7978 = vmul.f32 %v7905, %v7966
    %v7979 = vmul.f32 %v7908, %v7966
    %v7980 = vmul.f32 %v7910, %v7966
    %v7981 = vmul.f32 %v7913, %v7966
    %v7982 = vmul.f32 %v7915, %v7966
    %v7983 = vmul.f32 %v7918, %v7966
    %v7984 = vmul.f32 %v7920, %v7966
    %v7985 = vmul.f32 %v7923, %v7966
    %v7986 = vmul.f32 %v7925, %v7966
    %v7987 = vmul.f32 %v7928, %v7966
    %v7988 = vmul.f32 %v7930, %v7966
    %v7989 = vmul.f32 %v7933, %v7966
    %v7990 = vmul.f32 %v7935, %v7966
    %v7991 = vmul.f32 %v7938, %v7966
    %v7992 = vsel %vm7941, %v7878, %v7967
    %v7993 = vsel %vm7942, %v7880, %v7968
    %v7994 = vsel %vm7943, %v7883, %v7969
    %v7995 = vsel %vm7944, %v7885, %v7970
    %v7996 = vsel %vm7945, %v7888, %v7971
    %v7997 = vsel %vm7946, %v7890, %v7972
    %v7998 = vsel %vm7947, %v7893, %v7973
    %v7999 = vsel %vm7948, %v7895, %v7974
    %v8000 = vsel %vm7949, %v7898, %v7975
    %v8001 = vsel %vm7950, %v7900, %v7976
    %v8002 = vsel %vm7951, %v7903, %v7977
    %v8003 = vsel %vm7952, %v7905, %v7978
    %v8004 = vsel %vm7953, %v7908, %v7979
    %v8005 = vsel %vm7954, %v7910, %v7980
    %v8006 = vsel %vm7955, %v7913, %v7981
    %v8007 = vsel %vm7956, %v7915, %v7982
    %v8008 = vsel %vm7957, %v7918, %v7983
    %v8009 = vsel %vm7958, %v7920, %v7984
    %v8010 = vsel %vm7959, %v7923, %v7985
    %v8011 = vsel %vm7960, %v7925, %v7986
    %v8012 = vsel %vm7961, %v7928, %v7987
    %v8013 = vsel %vm7962, %v7930, %v7988
    %v8014 = vsel %vm7963, %v7933, %v7989
    %v8015 = vsel %vm7964, %v7935, %v7990
    %v8016 = vsel %vm7965, %v7938, %v7991
    %v8017 = vperm.slane %v7598, 2
    %v8018 = vmul.f32 %v7992, %v8017
    %v8019 = vmul.f32 %v7993, %v8017
    %v8020 = vmul.f32 %v7994, %v8017
    %v8021 = vmul.f32 %v7995, %v8017
    %v8022 = vmul.f32 %v7996, %v8017
    %v8023 = vmul.f32 %v7997, %v8017
    %v8024 = vmul.f32 %v7998, %v8017
    %v8025 = vmul.f32 %v7999, %v8017
    %v8026 = vmul.f32 %v8000, %v8017
    %v8027 = vmul.f32 %v8001, %v8017
    %v8028 = vmul.f32 %v8002, %v8017
    %v8029 = vmul.f32 %v8003, %v8017
    %v8030 = vmul.f32 %v8004, %v8017
    %v8031 = vmul.f32 %v8005, %v8017
    %v8032 = vmul.f32 %v8006, %v8017
    %v8033 = vmul.f32 %v8007, %v8017
    %v8034 = vmul.f32 %v8008, %v8017
    %v8035 = vmul.f32 %v8009, %v8017
    %v8036 = vmul.f32 %v8010, %v8017
    %v8037 = vmul.f32 %v8011, %v8017
    %v8038 = vmul.f32 %v8012, %v8017
    %v8039 = vmul.f32 %v8013, %v8017
    %v8040 = vmul.f32 %v8014, %v8017
    %v8041 = vmul.f32 %v8015, %v8017
    %v8042 = vmul.f32 %v8016, %v8017
    %v8043 = vperm.slane %v7598, 3
    %v8044 = vadd.f32 %v8018, %v8043
    %v8045 = vadd.f32 %v8019, %v8043
    %v8046 = vadd.f32 %v8020, %v8043
    %v8047 = vadd.f32 %v8021, %v8043
    %v8048 = vadd.f32 %v8022, %v8043
    %v8049 = vadd.f32 %v8023, %v8043
    %v8050 = vadd.f32 %v8024, %v8043
    %v8051 = vadd.f32 %v8025, %v8043
    %v8052 = vadd.f32 %v8026, %v8043
    %v8053 = vadd.f32 %v8027, %v8043
    %v8054 = vadd.f32 %v8028, %v8043
    %v8055 = vadd.f32 %v8029, %v8043
    %v8056 = vadd.f32 %v8030, %v8043
    %v8057 = vadd.f32 %v8031, %v8043
    %v8058 = vadd.f32 %v8032, %v8043
    %v8059 = vadd.f32 %v8033, %v8043
    %v8060 = vadd.f32 %v8034, %v8043
    %v8061 = vadd.f32 %v8035, %v8043
    %v8062 = vadd.f32 %v8036, %v8043
    %v8063 = vadd.f32 %v8037, %v8043
    %v8064 = vadd.f32 %v8038, %v8043
    %v8065 = vadd.f32 %v8039, %v8043
    %v8066 = vadd.f32 %v8040, %v8043
    %v8067 = vadd.f32 %v8041, %v8043
    %v8068 = vadd.f32 %v8042, %v8043
    %v8069 = vsub.f32 0.0, %v8044
    %v8070 = vsub.f32 0.0, %v8045
    %v8071 = vsub.f32 0.0, %v8046
    %v8072 = vsub.f32 0.0, %v8047
    %v8073 = vsub.f32 0.0, %v8048
    %v8074 = vsub.f32 0.0, %v8049
    %v8075 = vsub.f32 0.0, %v8050
    %v8076 = vsub.f32 0.0, %v8051
    %v8077 = vsub.f32 0.0, %v8052
    %v8078 = vsub.f32 0.0, %v8053
    %v8079 = vsub.f32 0.0, %v8054
    %v8080 = vsub.f32 0.0, %v8055
    %v8081 = vsub.f32 0.0, %v8056
    %v8082 = vsub.f32 0.0, %v8057
    %v8083 = vsub.f32 0.0, %v8058
    %v8084 = vsub.f32 0.0, %v8059
    %v8085 = vsub.f32 0.0, %v8060
    %v8086 = vsub.f32 0.0, %v8061
    %v8087 = vsub.f32 0.0, %v8062
    %v8088 = vsub.f32 0.0, %v8063
    %v8089 = vsub.f32 0.0, %v8064
    %v8090 = vsub.f32 0.0, %v8065
    %v8091 = vsub.f32 0.0, %v8066
    %v8092 = vsub.f32 0.0, %v8067
    %v8093 = vsub.f32 0.0, %v8068
    %v8094 = vmul.f32 %v8069, 1.442695
    %v8095 = vpow.pop %v8094
    %v8096 = vmul.f32 %v8070, 1.442695
    %v8097 = vpow.pop %v8096
    %v8098 = vmul.f32 %v8071, 1.442695
    %v8099 = vpow.pop %v8098
    %v8100 = vmul.f32 %v8072, 1.442695
    %v8101 = vpow.pop %v8100
    %v8102 = vmul.f32 %v8073, 1.442695
    %v8103 = vpow.pop %v8102
    %v8104 = vmul.f32 %v8074, 1.442695
    %v8105 = vpow.pop %v8104
    %v8106 = vmul.f32 %v8075, 1.442695
    %v8107 = vpow.pop %v8106
    %v8108 = vmul.f32 %v8076, 1.442695
    %v8109 = vpow.pop %v8108
    %v8110 = vmul.f32 %v8077, 1.442695
    %v8111 = vpow.pop %v8110
    %v8112 = vmul.f32 %v8078, 1.442695
    %v8113 = vpow.pop %v8112
    %v8114 = vmul.f32 %v8079, 1.442695
    %v8115 = vpow.pop %v8114
    %v8116 = vmul.f32 %v8080, 1.442695
    %v8117 = vpow.pop %v8116
    %v8118 = vmul.f32 %v8081, 1.442695
    %v8119 = vpow.pop %v8118
    %v8120 = vmul.f32 %v8082, 1.442695
    %v8121 = vpow.pop %v8120
    %v8122 = vmul.f32 %v8083, 1.442695
    %v8123 = vpow.pop %v8122
    %v8124 = vmul.f32 %v8084, 1.442695
    %v8125 = vpow.pop %v8124
    %v8126 = vmul.f32 %v8085, 1.442695
    %v8127 = vpow.pop %v8126
    %v8128 = vmul.f32 %v8086, 1.442695
    %v8129 = vpow.pop %v8128
    %v8130 = vmul.f32 %v8087, 1.442695
    %v8131 = vpow.pop %v8130
    %v8132 = vmul.f32 %v8088, 1.442695
    %v8133 = vpow.pop %v8132
    %v8134 = vmul.f32 %v8089, 1.442695
    %v8135 = vpow.pop %v8134
    %v8136 = vmul.f32 %v8090, 1.442695
    %v8137 = vpow.pop %v8136
    %v8138 = vmul.f32 %v8091, 1.442695
    %v8139 = vpow.pop %v8138
    %v8140 = vmul.f32 %v8092, 1.442695
    %v8141 = vpow.pop %v8140
    %v8142 = vmul.f32 %v8093, 1.442695
    %v8143 = vpow.pop %v8142
    %v8144 = vadd.f32 %v8095, 1.0
    %v8145 = vadd.f32 %v8097, 1.0
    %v8146 = vadd.f32 %v8099, 1.0
    %v8147 = vadd.f32 %v8101, 1.0
    %v8148 = vadd.f32 %v8103, 1.0
    %v8149 = vadd.f32 %v8105, 1.0
    %v8150 = vadd.f32 %v8107, 1.0
    %v8151 = vadd.f32 %v8109, 1.0
    %v8152 = vadd.f32 %v8111, 1.0
    %v8153 = vadd.f32 %v8113, 1.0
    %v8154 = vadd.f32 %v8115, 1.0
    %v8155 = vadd.f32 %v8117, 1.0
    %v8156 = vadd.f32 %v8119, 1.0
    %v8157 = vadd.f32 %v8121, 1.0
    %v8158 = vadd.f32 %v8123, 1.0
    %v8159 = vadd.f32 %v8125, 1.0
    %v8160 = vadd.f32 %v8127, 1.0
    %v8161 = vadd.f32 %v8129, 1.0
    %v8162 = vadd.f32 %v8131, 1.0
    %v8163 = vadd.f32 %v8133, 1.0
    %v8164 = vadd.f32 %v8135, 1.0
    %v8165 = vadd.f32 %v8137, 1.0
    %v8166 = vadd.f32 %v8139, 1.0
    %v8167 = vadd.f32 %v8141, 1.0
    %v8168 = vadd.f32 %v8143, 1.0
    %v8169 = vrcp.pop %v8144
    %v8170 = vmul.f32 %v8144, %v8169
    %v8171 = vsub.f32 1.0, %v8170
    %v8172 = vmul.f32 %v8169, %v8171
    %v8173 = vadd.f32 %v8169, %v8172
    %vm8174 = vweird.f32 %v8144
    %vm8175 = vweird.f32 %v8169
    %vm8176 = vmor %vm8174, %vm8175
    %v8177 = vsel %vm8176, %v8169, %v8173
    %v8178 = vand.u32 2147483647, %v8144
    %vm8179 = vcmp.eq.f32.partialorder %v8178, 8.507059e+37
    %v8180 = vand.u32 %v8144, 2147483648
    %v8181 = vor.u32 1.1754944e-38, %v8180
    %v8182 = vsel %vm8179, %v8181, %v8177
    %v8183 = vmul.f32 1.0, %v8182
    %v8184 = vrcp.pop %v8145
    %v8185 = vmul.f32 %v8145, %v8184
    %v8186 = vsub.f32 1.0, %v8185
    %v8187 = vmul.f32 %v8184, %v8186
    %v8188 = vadd.f32 %v8184, %v8187
    %vm8189 = vweird.f32 %v8145
    %vm8190 = vweird.f32 %v8184
    %vm8191 = vmor %vm8189, %vm8190
    %v8192 = vsel %vm8191, %v8184, %v8188
    %v8193 = vand.u32 2147483647, %v8145
    %vm8194 = vcmp.eq.f32.partialorder %v8193, 8.507059e+37
    %v8195 = vand.u32 %v8145, 2147483648
    %v8196 = vor.u32 1.1754944e-38, %v8195
    %v8197 = vsel %vm8194, %v8196, %v8192
    %v8198 = vmul.f32 1.0, %v8197
    %v8199 = vrcp.pop %v8146
    %v8200 = vmul.f32 %v8146, %v8199
    %v8201 = vsub.f32 1.0, %v8200
    %v8202 = vmul.f32 %v8199, %v8201
    %v8203 = vadd.f32 %v8199, %v8202
    %vm8204 = vweird.f32 %v8146
    %vm8205 = vweird.f32 %v8199
    %vm8206 = vmor %vm8204, %vm8205
    %v8207 = vsel %vm8206, %v8199, %v8203
    %v8208 = vand.u32 2147483647, %v8146
    %vm8209 = vcmp.eq.f32.partialorder %v8208, 8.507059e+37
    %v8210 = vand.u32 %v8146, 2147483648
    %v8211 = vor.u32 1.1754944e-38, %v8210
    %v8212 = vsel %vm8209, %v8211, %v8207
    %v8213 = vmul.f32 1.0, %v8212
    %v8214 = vrcp.pop %v8147
    %v8215 = vmul.f32 %v8147, %v8214
    %v8216 = vsub.f32 1.0, %v8215
    %v8217 = vmul.f32 %v8214, %v8216
    %v8218 = vadd.f32 %v8214, %v8217
    %vm8219 = vweird.f32 %v8147
    %vm8220 = vweird.f32 %v8214
    %vm8221 = vmor %vm8219, %vm8220
    %v8222 = vsel %vm8221, %v8214, %v8218
    %v8223 = vand.u32 2147483647, %v8147
    %vm8224 = vcmp.eq.f32.partialorder %v8223, 8.507059e+37
    %v8225 = vand.u32 %v8147, 2147483648
    %v8226 = vor.u32 1.1754944e-38, %v8225
    %v8227 = vsel %vm8224, %v8226, %v8222
    %v8228 = vmul.f32 1.0, %v8227
    %v8229 = vrcp.pop %v8148
    %v8230 = vmul.f32 %v8148, %v8229
    %v8231 = vsub.f32 1.0, %v8230
    %v8232 = vmul.f32 %v8229, %v8231
    %v8233 = vadd.f32 %v8229, %v8232
    %vm8234 = vweird.f32 %v8148
    %vm8235 = vweird.f32 %v8229
    %vm8236 = vmor %vm8234, %vm8235
    %v8237 = vsel %vm8236, %v8229, %v8233
    %v8238 = vand.u32 2147483647, %v8148
    %vm8239 = vcmp.eq.f32.partialorder %v8238, 8.507059e+37
    %v8240 = vand.u32 %v8148, 2147483648
    %v8241 = vor.u32 1.1754944e-38, %v8240
    %v8242 = vsel %vm8239, %v8241, %v8237
    %v8243 = vmul.f32 1.0, %v8242
    %v8244 = vrcp.pop %v8149
    %v8245 = vmul.f32 %v8149, %v8244
    %v8246 = vsub.f32 1.0, %v8245
    %v8247 = vmul.f32 %v8244, %v8246
    %v8248 = vadd.f32 %v8244, %v8247
    %vm8249 = vweird.f32 %v8149
    %vm8250 = vweird.f32 %v8244
    %vm8251 = vmor %vm8249, %vm8250
    %v8252 = vsel %vm8251, %v8244, %v8248
    %v8253 = vand.u32 2147483647, %v8149
    %vm8254 = vcmp.eq.f32.partialorder %v8253, 8.507059e+37
    %v8255 = vand.u32 %v8149, 2147483648
    %v8256 = vor.u32 1.1754944e-38, %v8255
    %v8257 = vsel %vm8254, %v8256, %v8252
    %v8258 = vmul.f32 1.0, %v8257
    %v8259 = vrcp.pop %v8150
    %v8260 = vmul.f32 %v8150, %v8259
    %v8261 = vsub.f32 1.0, %v8260
    %v8262 = vmul.f32 %v8259, %v8261
    %v8263 = vadd.f32 %v8259, %v8262
    %vm8264 = vweird.f32 %v8150
    %vm8265 = vweird.f32 %v8259
    %vm8266 = vmor %vm8264, %vm8265
    %v8267 = vsel %vm8266, %v8259, %v8263
    %v8268 = vand.u32 2147483647, %v8150
    %vm8269 = vcmp.eq.f32.partialorder %v8268, 8.507059e+37
    %v8270 = vand.u32 %v8150, 2147483648
    %v8271 = vor.u32 1.1754944e-38, %v8270
    %v8272 = vsel %vm8269, %v8271, %v8267
    %v8273 = vmul.f32 1.0, %v8272
    %v8274 = vrcp.pop %v8151
    %v8275 = vmul.f32 %v8151, %v8274
    %v8276 = vsub.f32 1.0, %v8275
    %v8277 = vmul.f32 %v8274, %v8276
    %v8278 = vadd.f32 %v8274, %v8277
    %vm8279 = vweird.f32 %v8151
    %vm8280 = vweird.f32 %v8274
    %vm8281 = vmor %vm8279, %vm8280
    %v8282 = vsel %vm8281, %v8274, %v8278
    %v8283 = vand.u32 2147483647, %v8151
    %vm8284 = vcmp.eq.f32.partialorder %v8283, 8.507059e+37
    %v8285 = vand.u32 %v8151, 2147483648
    %v8286 = vor.u32 1.1754944e-38, %v8285
    %v8287 = vsel %vm8284, %v8286, %v8282
    %v8288 = vmul.f32 1.0, %v8287
    %v8289 = vrcp.pop %v8152
    %v8290 = vmul.f32 %v8152, %v8289
    %v8291 = vsub.f32 1.0, %v8290
    %v8292 = vmul.f32 %v8289, %v8291
    %v8293 = vadd.f32 %v8289, %v8292
    %vm8294 = vweird.f32 %v8152
    %vm8295 = vweird.f32 %v8289
    %vm8296 = vmor %vm8294, %vm8295
    %v8297 = vsel %vm8296, %v8289, %v8293
    %v8298 = vand.u32 2147483647, %v8152
    %vm8299 = vcmp.eq.f32.partialorder %v8298, 8.507059e+37
    %v8300 = vand.u32 %v8152, 2147483648
    %v8301 = vor.u32 1.1754944e-38, %v8300
    %v8302 = vsel %vm8299, %v8301, %v8297
    %v8303 = vmul.f32 1.0, %v8302
    %v8304 = vrcp.pop %v8153
    %v8305 = vmul.f32 %v8153, %v8304
    %v8306 = vsub.f32 1.0, %v8305
    %v8307 = vmul.f32 %v8304, %v8306
    %v8308 = vadd.f32 %v8304, %v8307
    %vm8309 = vweird.f32 %v8153
    %vm8310 = vweird.f32 %v8304
    %vm8311 = vmor %vm8309, %vm8310
    %v8312 = vsel %vm8311, %v8304, %v8308
    %v8313 = vand.u32 2147483647, %v8153
    %vm8314 = vcmp.eq.f32.partialorder %v8313, 8.507059e+37
    %v8315 = vand.u32 %v8153, 2147483648
    %v8316 = vor.u32 1.1754944e-38, %v8315
    %v8317 = vsel %vm8314, %v8316, %v8312
    %v8318 = vmul.f32 1.0, %v8317
    %v8319 = vrcp.pop %v8154
    %v8320 = vmul.f32 %v8154, %v8319
    %v8321 = vsub.f32 1.0, %v8320
    %v8322 = vmul.f32 %v8319, %v8321
    %v8323 = vadd.f32 %v8319, %v8322
    %vm8324 = vweird.f32 %v8154
    %vm8325 = vweird.f32 %v8319
    %vm8326 = vmor %vm8324, %vm8325
    %v8327 = vsel %vm8326, %v8319, %v8323
    %v8328 = vand.u32 2147483647, %v8154
    %vm8329 = vcmp.eq.f32.partialorder %v8328, 8.507059e+37
    %v8330 = vand.u32 %v8154, 2147483648
    %v8331 = vor.u32 1.1754944e-38, %v8330
    %v8332 = vsel %vm8329, %v8331, %v8327
    %v8333 = vmul.f32 1.0, %v8332
    %v8334 = vrcp.pop %v8155
    %v8335 = vmul.f32 %v8155, %v8334
    %v8336 = vsub.f32 1.0, %v8335
    %v8337 = vmul.f32 %v8334, %v8336
    %v8338 = vadd.f32 %v8334, %v8337
    %vm8339 = vweird.f32 %v8155
    %vm8340 = vweird.f32 %v8334
    %vm8341 = vmor %vm8339, %vm8340
    %v8342 = vsel %vm8341, %v8334, %v8338
    %v8343 = vand.u32 2147483647, %v8155
    %vm8344 = vcmp.eq.f32.partialorder %v8343, 8.507059e+37
    %v8345 = vand.u32 %v8155, 2147483648
    %v8346 = vor.u32 1.1754944e-38, %v8345
    %v8347 = vsel %vm8344, %v8346, %v8342
    %v8348 = vmul.f32 1.0, %v8347
    %v8349 = vrcp.pop %v8156
    %v8350 = vmul.f32 %v8156, %v8349
    %v8351 = vsub.f32 1.0, %v8350
    %v8352 = vmul.f32 %v8349, %v8351
    %v8353 = vadd.f32 %v8349, %v8352
    %vm8354 = vweird.f32 %v8156
    %vm8355 = vweird.f32 %v8349
    %vm8356 = vmor %vm8354, %vm8355
    %v8357 = vsel %vm8356, %v8349, %v8353
    %v8358 = vand.u32 2147483647, %v8156
    %vm8359 = vcmp.eq.f32.partialorder %v8358, 8.507059e+37
    %v8360 = vand.u32 %v8156, 2147483648
    %v8361 = vor.u32 1.1754944e-38, %v8360
    %v8362 = vsel %vm8359, %v8361, %v8357
    %v8363 = vmul.f32 1.0, %v8362
    %v8364 = vrcp.pop %v8157
    %v8365 = vmul.f32 %v8157, %v8364
    %v8366 = vsub.f32 1.0, %v8365
    %v8367 = vmul.f32 %v8364, %v8366
    %v8368 = vadd.f32 %v8364, %v8367
    %vm8369 = vweird.f32 %v8157
    %vm8370 = vweird.f32 %v8364
    %vm8371 = vmor %vm8369, %vm8370
    %v8372 = vsel %vm8371, %v8364, %v8368
    %v8373 = vand.u32 2147483647, %v8157
    %vm8374 = vcmp.eq.f32.partialorder %v8373, 8.507059e+37
    %v8375 = vand.u32 %v8157, 2147483648
    %v8376 = vor.u32 1.1754944e-38, %v8375
    %v8377 = vsel %vm8374, %v8376, %v8372
    %v8378 = vmul.f32 1.0, %v8377
    %v8379 = vrcp.pop %v8158
    %v8380 = vmul.f32 %v8158, %v8379
    %v8381 = vsub.f32 1.0, %v8380
    %v8382 = vmul.f32 %v8379, %v8381
    %v8383 = vadd.f32 %v8379, %v8382
    %vm8384 = vweird.f32 %v8158
    %vm8385 = vweird.f32 %v8379
    %vm8386 = vmor %vm8384, %vm8385
    %v8387 = vsel %vm8386, %v8379, %v8383
    %v8388 = vand.u32 2147483647, %v8158
    %vm8389 = vcmp.eq.f32.partialorder %v8388, 8.507059e+37
    %v8390 = vand.u32 %v8158, 2147483648
    %v8391 = vor.u32 1.1754944e-38, %v8390
    %v8392 = vsel %vm8389, %v8391, %v8387
    %v8393 = vmul.f32 1.0, %v8392
    %v8394 = vrcp.pop %v8159
    %v8395 = vmul.f32 %v8159, %v8394
    %v8396 = vsub.f32 1.0, %v8395
    %v8397 = vmul.f32 %v8394, %v8396
    %v8398 = vadd.f32 %v8394, %v8397
    %vm8399 = vweird.f32 %v8159
    %vm8400 = vweird.f32 %v8394
    %vm8401 = vmor %vm8399, %vm8400
    %v8402 = vsel %vm8401, %v8394, %v8398
    %v8403 = vand.u32 2147483647, %v8159
    %vm8404 = vcmp.eq.f32.partialorder %v8403, 8.507059e+37
    %v8405 = vand.u32 %v8159, 2147483648
    %v8406 = vor.u32 1.1754944e-38, %v8405
    %v8407 = vsel %vm8404, %v8406, %v8402
    %v8408 = vmul.f32 1.0, %v8407
    %v8409 = vrcp.pop %v8160
    %v8410 = vmul.f32 %v8160, %v8409
    %v8411 = vsub.f32 1.0, %v8410
    %v8412 = vmul.f32 %v8409, %v8411
    %v8413 = vadd.f32 %v8409, %v8412
    %vm8414 = vweird.f32 %v8160
    %vm8415 = vweird.f32 %v8409
    %vm8416 = vmor %vm8414, %vm8415
    %v8417 = vsel %vm8416, %v8409, %v8413
    %v8418 = vand.u32 2147483647, %v8160
    %vm8419 = vcmp.eq.f32.partialorder %v8418, 8.507059e+37
    %v8420 = vand.u32 %v8160, 2147483648
    %v8421 = vor.u32 1.1754944e-38, %v8420
    %v8422 = vsel %vm8419, %v8421, %v8417
    %v8423 = vmul.f32 1.0, %v8422
    %v8424 = vrcp.pop %v8161
    %v8425 = vmul.f32 %v8161, %v8424
    %v8426 = vsub.f32 1.0, %v8425
    %v8427 = vmul.f32 %v8424, %v8426
    %v8428 = vadd.f32 %v8424, %v8427
    %vm8429 = vweird.f32 %v8161
    %vm8430 = vweird.f32 %v8424
    %vm8431 = vmor %vm8429, %vm8430
    %v8432 = vsel %vm8431, %v8424, %v8428
    %v8433 = vand.u32 2147483647, %v8161
    %vm8434 = vcmp.eq.f32.partialorder %v8433, 8.507059e+37
    %v8435 = vand.u32 %v8161, 2147483648
    %v8436 = vor.u32 1.1754944e-38, %v8435
    %v8437 = vsel %vm8434, %v8436, %v8432
    %v8438 = vmul.f32 1.0, %v8437
    %v8439 = vrcp.pop %v8162
    %v8440 = vmul.f32 %v8162, %v8439
    %v8441 = vsub.f32 1.0, %v8440
    %v8442 = vmul.f32 %v8439, %v8441
    %v8443 = vadd.f32 %v8439, %v8442
    %vm8444 = vweird.f32 %v8162
    %vm8445 = vweird.f32 %v8439
    %vm8446 = vmor %vm8444, %vm8445
    %v8447 = vsel %vm8446, %v8439, %v8443
    %v8448 = vand.u32 2147483647, %v8162
    %vm8449 = vcmp.eq.f32.partialorder %v8448, 8.507059e+37
    %v8450 = vand.u32 %v8162, 2147483648
    %v8451 = vor.u32 1.1754944e-38, %v8450
    %v8452 = vsel %vm8449, %v8451, %v8447
    %v8453 = vmul.f32 1.0, %v8452
    %v8454 = vrcp.pop %v8163
    %v8455 = vmul.f32 %v8163, %v8454
    %v8456 = vsub.f32 1.0, %v8455
    %v8457 = vmul.f32 %v8454, %v8456
    %v8458 = vadd.f32 %v8454, %v8457
    %vm8459 = vweird.f32 %v8163
    %vm8460 = vweird.f32 %v8454
    %vm8461 = vmor %vm8459, %vm8460
    %v8462 = vsel %vm8461, %v8454, %v8458
    %v8463 = vand.u32 2147483647, %v8163
    %vm8464 = vcmp.eq.f32.partialorder %v8463, 8.507059e+37
    %v8465 = vand.u32 %v8163, 2147483648
    %v8466 = vor.u32 1.1754944e-38, %v8465
    %v8467 = vsel %vm8464, %v8466, %v8462
    %v8468 = vmul.f32 1.0, %v8467
    %v8469 = vrcp.pop %v8164
    %v8470 = vmul.f32 %v8164, %v8469
    %v8471 = vsub.f32 1.0, %v8470
    %v8472 = vmul.f32 %v8469, %v8471
    %v8473 = vadd.f32 %v8469, %v8472
    %vm8474 = vweird.f32 %v8164
    %vm8475 = vweird.f32 %v8469
    %vm8476 = vmor %vm8474, %vm8475
    %v8477 = vsel %vm8476, %v8469, %v8473
    %v8478 = vand.u32 2147483647, %v8164
    %vm8479 = vcmp.eq.f32.partialorder %v8478, 8.507059e+37
    %v8480 = vand.u32 %v8164, 2147483648
    %v8481 = vor.u32 1.1754944e-38, %v8480
    %v8482 = vsel %vm8479, %v8481, %v8477
    %v8483 = vmul.f32 1.0, %v8482
    %v8484 = vrcp.pop %v8165
    %v8485 = vmul.f32 %v8165, %v8484
    %v8486 = vsub.f32 1.0, %v8485
    %v8487 = vmul.f32 %v8484, %v8486
    %v8488 = vadd.f32 %v8484, %v8487
    %vm8489 = vweird.f32 %v8165
    %vm8490 = vweird.f32 %v8484
    %vm8491 = vmor %vm8489, %vm8490
    %v8492 = vsel %vm8491, %v8484, %v8488
    %v8493 = vand.u32 2147483647, %v8165
    %vm8494 = vcmp.eq.f32.partialorder %v8493, 8.507059e+37
    %v8495 = vand.u32 %v8165, 2147483648
    %v8496 = vor.u32 1.1754944e-38, %v8495
    %v8497 = vsel %vm8494, %v8496, %v8492
    %v8498 = vmul.f32 1.0, %v8497
    %v8499 = vrcp.pop %v8166
    %v8500 = vmul.f32 %v8166, %v8499
    %v8501 = vsub.f32 1.0, %v8500
    %v8502 = vmul.f32 %v8499, %v8501
    %v8503 = vadd.f32 %v8499, %v8502
    %vm8504 = vweird.f32 %v8166
    %vm8505 = vweird.f32 %v8499
    %vm8506 = vmor %vm8504, %vm8505
    %v8507 = vsel %vm8506, %v8499, %v8503
    %v8508 = vand.u32 2147483647, %v8166
    %vm8509 = vcmp.eq.f32.partialorder %v8508, 8.507059e+37
    %v8510 = vand.u32 %v8166, 2147483648
    %v8511 = vor.u32 1.1754944e-38, %v8510
    %v8512 = vsel %vm8509, %v8511, %v8507
    %v8513 = vmul.f32 1.0, %v8512
    %v8514 = vrcp.pop %v8167
    %v8515 = vmul.f32 %v8167, %v8514
    %v8516 = vsub.f32 1.0, %v8515
    %v8517 = vmul.f32 %v8514, %v8516
    %v8518 = vadd.f32 %v8514, %v8517
    %vm8519 = vweird.f32 %v8167
    %vm8520 = vweird.f32 %v8514
    %vm8521 = vmor %vm8519, %vm8520
    %v8522 = vsel %vm8521, %v8514, %v8518
    %v8523 = vand.u32 2147483647, %v8167
    %vm8524 = vcmp.eq.f32.partialorder %v8523, 8.507059e+37
    %v8525 = vand.u32 %v8167, 2147483648
    %v8526 = vor.u32 1.1754944e-38, %v8525
    %v8527 = vsel %vm8524, %v8526, %v8522
    %v8528 = vmul.f32 1.0, %v8527
    %v8529 = vrcp.pop %v8168
    %v8530 = vmul.f32 %v8168, %v8529
    %v8531 = vsub.f32 1.0, %v8530
    %v8532 = vmul.f32 %v8529, %v8531
    %v8533 = vadd.f32 %v8529, %v8532
    %vm8534 = vweird.f32 %v8168
    %vm8535 = vweird.f32 %v8529
    %vm8536 = vmor %vm8534, %vm8535
    %v8537 = vsel %vm8536, %v8529, %v8533
    %v8538 = vand.u32 2147483647, %v8168
    %vm8539 = vcmp.eq.f32.partialorder %v8538, 8.507059e+37
    %v8540 = vand.u32 %v8168, 2147483648
    %v8541 = vor.u32 1.1754944e-38, %v8540
    %v8542 = vsel %vm8539, %v8541, %v8537
    %v8543 = vmul.f32 1.0, %v8542
    %v8544 = vadd.f32 %v6042, %v7599
    %v8545 = vadd.f32 %v6044, %v7599
    %v8546 = vadd.f32 %v6047, %v7599
    %v8547 = vadd.f32 %v6049, %v7599
    %v8548 = vadd.f32 %v6052, %v7599
    %v8549 = vadd.f32 %v6054, %v7599
    %v8550 = vadd.f32 %v6057, %v7599
    %v8551 = vadd.f32 %v6059, %v7599
    %v8552 = vadd.f32 %v6062, %v7599
    %v8553 = vadd.f32 %v6064, %v7599
    %v8554 = vadd.f32 %v6067, %v7599
    %v8555 = vadd.f32 %v6069, %v7599
    %v8556 = vadd.f32 %v6072, %v7599
    %v8557 = vadd.f32 %v6074, %v7599
    %v8558 = vadd.f32 %v6077, %v7599
    %v8559 = vadd.f32 %v6079, %v7599
    %v8560 = vadd.f32 %v6082, %v7599
    %v8561 = vadd.f32 %v6084, %v7599
    %v8562 = vadd.f32 %v6087, %v7599
    %v8563 = vadd.f32 %v6089, %v7599
    %v8564 = vadd.f32 %v6092, %v7599
    %v8565 = vadd.f32 %v6094, %v7599
    %v8566 = vadd.f32 %v6097, %v7599
    %v8567 = vadd.f32 %v6099, %v7599
    %v8568 = vadd.f32 %v6102, %v7599
    %vm8569 = vcmp.gt.f32.partialorder %v8544, 0.0
    %vm8570 = vcmp.gt.f32.partialorder %v8545, 0.0
    %vm8571 = vcmp.gt.f32.partialorder %v8546, 0.0
    %vm8572 = vcmp.gt.f32.partialorder %v8547, 0.0
    %vm8573 = vcmp.gt.f32.partialorder %v8548, 0.0
    %vm8574 = vcmp.gt.f32.partialorder %v8549, 0.0
    %vm8575 = vcmp.gt.f32.partialorder %v8550, 0.0
    %vm8576 = vcmp.gt.f32.partialorder %v8551, 0.0
    %vm8577 = vcmp.gt.f32.partialorder %v8552, 0.0
    %vm8578 = vcmp.gt.f32.partialorder %v8553, 0.0
    %vm8579 = vcmp.gt.f32.partialorder %v8554, 0.0
    %vm8580 = vcmp.gt.f32.partialorder %v8555, 0.0
    %vm8581 = vcmp.gt.f32.partialorder %v8556, 0.0
    %vm8582 = vcmp.gt.f32.partialorder %v8557, 0.0
    %vm8583 = vcmp.gt.f32.partialorder %v8558, 0.0
    %vm8584 = vcmp.gt.f32.partialorder %v8559, 0.0
    %vm8585 = vcmp.gt.f32.partialorder %v8560, 0.0
    %vm8586 = vcmp.gt.f32.partialorder %v8561, 0.0
    %vm8587 = vcmp.gt.f32.partialorder %v8562, 0.0
    %vm8588 = vcmp.gt.f32.partialorder %v8563, 0.0
    %vm8589 = vcmp.gt.f32.partialorder %v8564, 0.0
    %vm8590 = vcmp.gt.f32.partialorder %v8565, 0.0
    %vm8591 = vcmp.gt.f32.partialorder %v8566, 0.0
    %vm8592 = vcmp.gt.f32.partialorder %v8567, 0.0
    %vm8593 = vcmp.gt.f32.partialorder %v8568, 0.0
    %v8594 = vmul.f32 %v8544, %v7966
    %v8595 = vmul.f32 %v8545, %v7966
    %v8596 = vmul.f32 %v8546, %v7966
    %v8597 = vmul.f32 %v8547, %v7966
    %v8598 = vmul.f32 %v8548, %v7966
    %v8599 = vmul.f32 %v8549, %v7966
    %v8600 = vmul.f32 %v8550, %v7966
    %v8601 = vmul.f32 %v8551, %v7966
    %v8602 = vmul.f32 %v8552, %v7966
    %v8603 = vmul.f32 %v8553, %v7966
    %v8604 = vmul.f32 %v8554, %v7966
    %v8605 = vmul.f32 %v8555, %v7966
    %v8606 = vmul.f32 %v8556, %v7966
    %v8607 = vmul.f32 %v8557, %v7966
    %v8608 = vmul.f32 %v8558, %v7966
    %v8609 = vmul.f32 %v8559, %v7966
    %v8610 = vmul.f32 %v8560, %v7966
    %v8611 = vmul.f32 %v8561, %v7966
    %v8612 = vmul.f32 %v8562, %v7966
    %v8613 = vmul.f32 %v8563, %v7966
    %v8614 = vmul.f32 %v8564, %v7966
    %v8615 = vmul.f32 %v8565, %v7966
    %v8616 = vmul.f32 %v8566, %v7966
    %v8617 = vmul.f32 %v8567, %v7966
    %v8618 = vmul.f32 %v8568, %v7966
    %v8619 = vsel %vm8569, %v8544, %v8594
    %v8620 = vsel %vm8570, %v8545, %v8595
    %v8621 = vsel %vm8571, %v8546, %v8596
    %v8622 = vsel %vm8572, %v8547, %v8597
    %v8623 = vsel %vm8573, %v8548, %v8598
    %v8624 = vsel %vm8574, %v8549, %v8599
    %v8625 = vsel %vm8575, %v8550, %v8600
    %v8626 = vsel %vm8576, %v8551, %v8601
    %v8627 = vsel %vm8577, %v8552, %v8602
    %v8628 = vsel %vm8578, %v8553, %v8603
    %v8629 = vsel %vm8579, %v8554, %v8604
    %v8630 = vsel %vm8580, %v8555, %v8605
    %v8631 = vsel %vm8581, %v8556, %v8606
    %v8632 = vsel %vm8582, %v8557, %v8607
    %v8633 = vsel %vm8583, %v8558, %v8608
    %v8634 = vsel %vm8584, %v8559, %v8609
    %v8635 = vsel %vm8585, %v8560, %v8610
    %v8636 = vsel %vm8586, %v8561, %v8611
    %v8637 = vsel %vm8587, %v8562, %v8612
    %v8638 = vsel %vm8588, %v8563, %v8613
    %v8639 = vsel %vm8589, %v8564, %v8614
    %v8640 = vsel %vm8590, %v8565, %v8615
    %v8641 = vsel %vm8591, %v8566, %v8616
    %v8642 = vsel %vm8592, %v8567, %v8617
    %v8643 = vsel %vm8593, %v8568, %v8618
    %v8644 = vmul.f32 %v8619, %v8017
    %v8645 = vmul.f32 %v8620, %v8017
    %v8646 = vmul.f32 %v8621, %v8017
    %v8647 = vmul.f32 %v8622, %v8017
    %v8648 = vmul.f32 %v8623, %v8017
    %v8649 = vmul.f32 %v8624, %v8017
    %v8650 = vmul.f32 %v8625, %v8017
    %v8651 = vmul.f32 %v8626, %v8017
    %v8652 = vmul.f32 %v8627, %v8017
    %v8653 = vmul.f32 %v8628, %v8017
    %v8654 = vmul.f32 %v8629, %v8017
    %v8655 = vmul.f32 %v8630, %v8017
    %v8656 = vmul.f32 %v8631, %v8017
    %v8657 = vmul.f32 %v8632, %v8017
    %v8658 = vmul.f32 %v8633, %v8017
    %v8659 = vmul.f32 %v8634, %v8017
    %v8660 = vmul.f32 %v8635, %v8017
    %v8661 = vmul.f32 %v8636, %v8017
    %v8662 = vmul.f32 %v8637, %v8017
    %v8663 = vmul.f32 %v8638, %v8017
    %v8664 = vmul.f32 %v8639, %v8017
    %v8665 = vmul.f32 %v8640, %v8017
    %v8666 = vmul.f32 %v8641, %v8017
    %v8667 = vmul.f32 %v8642, %v8017
    %v8668 = vmul.f32 %v8643, %v8017
    %v8669 = vadd.f32 %v8644, %v8043
    %v8670 = vadd.f32 %v8645, %v8043
    %v8671 = vadd.f32 %v8646, %v8043
    %v8672 = vadd.f32 %v8647, %v8043
    %v8673 = vadd.f32 %v8648, %v8043
    %v8674 = vadd.f32 %v8649, %v8043
    %v8675 = vadd.f32 %v8650, %v8043
    %v8676 = vadd.f32 %v8651, %v8043
    %v8677 = vadd.f32 %v8652, %v8043
    %v8678 = vadd.f32 %v8653, %v8043
    %v8679 = vadd.f32 %v8654, %v8043
    %v8680 = vadd.f32 %v8655, %v8043
    %v8681 = vadd.f32 %v8656, %v8043
    %v8682 = vadd.f32 %v8657, %v8043
    %v8683 = vadd.f32 %v8658, %v8043
    %v8684 = vadd.f32 %v8659, %v8043
    %v8685 = vadd.f32 %v8660, %v8043
    %v8686 = vadd.f32 %v8661, %v8043
    %v8687 = vadd.f32 %v8662, %v8043
    %v8688 = vadd.f32 %v8663, %v8043
    %v8689 = vadd.f32 %v8664, %v8043
    %v8690 = vadd.f32 %v8665, %v8043
    %v8691 = vadd.f32 %v8666, %v8043
    %v8692 = vadd.f32 %v8667, %v8043
    %v8693 = vadd.f32 %v8668, %v8043
    %v8694 = vsub.f32 0.0, %v8669
    %v8695 = vsub.f32 0.0, %v8670
    %v8696 = vsub.f32 0.0, %v8671
    %v8697 = vsub.f32 0.0, %v8672
    %v8698 = vsub.f32 0.0, %v8673
    %v8699 = vsub.f32 0.0, %v8674
    %v8700 = vsub.f32 0.0, %v8675
    %v8701 = vsub.f32 0.0, %v8676
    %v8702 = vsub.f32 0.0, %v8677
    %v8703 = vsub.f32 0.0, %v8678
    %v8704 = vsub.f32 0.0, %v8679
    %v8705 = vsub.f32 0.0, %v8680
    %v8706 = vsub.f32 0.0, %v8681
    %v8707 = vsub.f32 0.0, %v8682
    %v8708 = vsub.f32 0.0, %v8683
    %v8709 = vsub.f32 0.0, %v8684
    %v8710 = vsub.f32 0.0, %v8685
    %v8711 = vsub.f32 0.0, %v8686
    %v8712 = vsub.f32 0.0, %v8687
    %v8713 = vsub.f32 0.0, %v8688
    %v8714 = vsub.f32 0.0, %v8689
    %v8715 = vsub.f32 0.0, %v8690
    %v8716 = vsub.f32 0.0, %v8691
    %v8717 = vsub.f32 0.0, %v8692
    %v8718 = vsub.f32 0.0, %v8693
    %v8719 = vmul.f32 %v8694, 1.442695
    %v8720 = vpow.pop %v8719
    %v8721 = vmul.f32 %v8695, 1.442695
    %v8722 = vpow.pop %v8721
    %v8723 = vmul.f32 %v8696, 1.442695
    %v8724 = vpow.pop %v8723
    %v8725 = vmul.f32 %v8697, 1.442695
    %v8726 = vpow.pop %v8725
    %v8727 = vmul.f32 %v8698, 1.442695
    %v8728 = vpow.pop %v8727
    %v8729 = vmul.f32 %v8699, 1.442695
    %v8730 = vpow.pop %v8729
    %v8731 = vmul.f32 %v8700, 1.442695
    %v8732 = vpow.pop %v8731
    %v8733 = vmul.f32 %v8701, 1.442695
    %v8734 = vpow.pop %v8733
    %v8735 = vmul.f32 %v8702, 1.442695
    %v8736 = vpow.pop %v8735
    %v8737 = vmul.f32 %v8703, 1.442695
    %v8738 = vpow.pop %v8737
    %v8739 = vmul.f32 %v8704, 1.442695
    %v8740 = vpow.pop %v8739
    %v8741 = vmul.f32 %v8705, 1.442695
    %v8742 = vpow.pop %v8741
    %v8743 = vmul.f32 %v8706, 1.442695
    %v8744 = vpow.pop %v8743
    %v8745 = vmul.f32 %v8707, 1.442695
    %v8746 = vpow.pop %v8745
    %v8747 = vmul.f32 %v8708, 1.442695
    %v8748 = vpow.pop %v8747
    %v8749 = vmul.f32 %v8709, 1.442695
    %v8750 = vpow.pop %v8749
    %v8751 = vmul.f32 %v8710, 1.442695
    %v8752 = vpow.pop %v8751
    %v8753 = vmul.f32 %v8711, 1.442695
    %v8754 = vpow.pop %v8753
    %v8755 = vmul.f32 %v8712, 1.442695
    %v8756 = vpow.pop %v8755
    %v8757 = vmul.f32 %v8713, 1.442695
    %v8758 = vpow.pop %v8757
    %v8759 = vmul.f32 %v8714, 1.442695
    %v8760 = vpow.pop %v8759
    %v8761 = vmul.f32 %v8715, 1.442695
    %v8762 = vpow.pop %v8761
    %v8763 = vmul.f32 %v8716, 1.442695
    %v8764 = vpow.pop %v8763
    %v8765 = vmul.f32 %v8717, 1.442695
    %v8766 = vpow.pop %v8765
    %v8767 = vmul.f32 %v8718, 1.442695
    %v8768 = vpow.pop %v8767
    %v8769 = vadd.f32 %v8720, 1.0
    %v8770 = vadd.f32 %v8722, 1.0
    %v8771 = vadd.f32 %v8724, 1.0
    %v8772 = vadd.f32 %v8726, 1.0
    %v8773 = vadd.f32 %v8728, 1.0
    %v8774 = vadd.f32 %v8730, 1.0
    %v8775 = vadd.f32 %v8732, 1.0
    %v8776 = vadd.f32 %v8734, 1.0
    %v8777 = vadd.f32 %v8736, 1.0
    %v8778 = vadd.f32 %v8738, 1.0
    %v8779 = vadd.f32 %v8740, 1.0
    %v8780 = vadd.f32 %v8742, 1.0
    %v8781 = vadd.f32 %v8744, 1.0
    %v8782 = vadd.f32 %v8746, 1.0
    %v8783 = vadd.f32 %v8748, 1.0
    %v8784 = vadd.f32 %v8750, 1.0
    %v8785 = vadd.f32 %v8752, 1.0
    %v8786 = vadd.f32 %v8754, 1.0
    %v8787 = vadd.f32 %v8756, 1.0
    %v8788 = vadd.f32 %v8758, 1.0
    %v8789 = vadd.f32 %v8760, 1.0
    %v8790 = vadd.f32 %v8762, 1.0
    %v8791 = vadd.f32 %v8764, 1.0
    %v8792 = vadd.f32 %v8766, 1.0
    %v8793 = vadd.f32 %v8768, 1.0
    %v8794 = vrcp.pop %v8769
    %v8795 = vmul.f32 %v8769, %v8794
    %v8796 = vsub.f32 1.0, %v8795
    %v8797 = vmul.f32 %v8794, %v8796
    %v8798 = vadd.f32 %v8794, %v8797
    %vm8799 = vweird.f32 %v8769
    %vm8800 = vweird.f32 %v8794
    %vm8801 = vmor %vm8799, %vm8800
    %v8802 = vsel %vm8801, %v8794, %v8798
    %v8803 = vand.u32 2147483647, %v8769
    %vm8804 = vcmp.eq.f32.partialorder %v8803, 8.507059e+37
    %v8805 = vand.u32 %v8769, 2147483648
    %v8806 = vor.u32 1.1754944e-38, %v8805
    %v8807 = vsel %vm8804, %v8806, %v8802
    %v8808 = vmul.f32 1.0, %v8807
    %v8809 = vrcp.pop %v8770
    %v8810 = vmul.f32 %v8770, %v8809
    %v8811 = vsub.f32 1.0, %v8810
    %v8812 = vmul.f32 %v8809, %v8811
    %v8813 = vadd.f32 %v8809, %v8812
    %vm8814 = vweird.f32 %v8770
    %vm8815 = vweird.f32 %v8809
    %vm8816 = vmor %vm8814, %vm8815
    %v8817 = vsel %vm8816, %v8809, %v8813
    %v8818 = vand.u32 2147483647, %v8770
    %vm8819 = vcmp.eq.f32.partialorder %v8818, 8.507059e+37
    %v8820 = vand.u32 %v8770, 2147483648
    %v8821 = vor.u32 1.1754944e-38, %v8820
    %v8822 = vsel %vm8819, %v8821, %v8817
    %v8823 = vmul.f32 1.0, %v8822
    %v8824 = vrcp.pop %v8771
    %v8825 = vmul.f32 %v8771, %v8824
    %v8826 = vsub.f32 1.0, %v8825
    %v8827 = vmul.f32 %v8824, %v8826
    %v8828 = vadd.f32 %v8824, %v8827
    %vm8829 = vweird.f32 %v8771
    %vm8830 = vweird.f32 %v8824
    %vm8831 = vmor %vm8829, %vm8830
    %v8832 = vsel %vm8831, %v8824, %v8828
    %v8833 = vand.u32 2147483647, %v8771
    %vm8834 = vcmp.eq.f32.partialorder %v8833, 8.507059e+37
    %v8835 = vand.u32 %v8771, 2147483648
    %v8836 = vor.u32 1.1754944e-38, %v8835
    %v8837 = vsel %vm8834, %v8836, %v8832
    %v8838 = vmul.f32 1.0, %v8837
    %v8839 = vrcp.pop %v8772
    %v8840 = vmul.f32 %v8772, %v8839
    %v8841 = vsub.f32 1.0, %v8840
    %v8842 = vmul.f32 %v8839, %v8841
    %v8843 = vadd.f32 %v8839, %v8842
    %vm8844 = vweird.f32 %v8772
    %vm8845 = vweird.f32 %v8839
    %vm8846 = vmor %vm8844, %vm8845
    %v8847 = vsel %vm8846, %v8839, %v8843
    %v8848 = vand.u32 2147483647, %v8772
    %vm8849 = vcmp.eq.f32.partialorder %v8848, 8.507059e+37
    %v8850 = vand.u32 %v8772, 2147483648
    %v8851 = vor.u32 1.1754944e-38, %v8850
    %v8852 = vsel %vm8849, %v8851, %v8847
    %v8853 = vmul.f32 1.0, %v8852
    %v8854 = vrcp.pop %v8773
    %v8855 = vmul.f32 %v8773, %v8854
    %v8856 = vsub.f32 1.0, %v8855
    %v8857 = vmul.f32 %v8854, %v8856
    %v8858 = vadd.f32 %v8854, %v8857
    %vm8859 = vweird.f32 %v8773
    %vm8860 = vweird.f32 %v8854
    %vm8861 = vmor %vm8859, %vm8860
    %v8862 = vsel %vm8861, %v8854, %v8858
    %v8863 = vand.u32 2147483647, %v8773
    %vm8864 = vcmp.eq.f32.partialorder %v8863, 8.507059e+37
    %v8865 = vand.u32 %v8773, 2147483648
    %v8866 = vor.u32 1.1754944e-38, %v8865
    %v8867 = vsel %vm8864, %v8866, %v8862
    %v8868 = vmul.f32 1.0, %v8867
    %v8869 = vrcp.pop %v8774
    %v8870 = vmul.f32 %v8774, %v8869
    %v8871 = vsub.f32 1.0, %v8870
    %v8872 = vmul.f32 %v8869, %v8871
    %v8873 = vadd.f32 %v8869, %v8872
    %vm8874 = vweird.f32 %v8774
    %vm8875 = vweird.f32 %v8869
    %vm8876 = vmor %vm8874, %vm8875
    %v8877 = vsel %vm8876, %v8869, %v8873
    %v8878 = vand.u32 2147483647, %v8774
    %vm8879 = vcmp.eq.f32.partialorder %v8878, 8.507059e+37
    %v8880 = vand.u32 %v8774, 2147483648
    %v8881 = vor.u32 1.1754944e-38, %v8880
    %v8882 = vsel %vm8879, %v8881, %v8877
    %v8883 = vmul.f32 1.0, %v8882
    %v8884 = vrcp.pop %v8775
    %v8885 = vmul.f32 %v8775, %v8884
    %v8886 = vsub.f32 1.0, %v8885
    %v8887 = vmul.f32 %v8884, %v8886
    %v8888 = vadd.f32 %v8884, %v8887
    %vm8889 = vweird.f32 %v8775
    %vm8890 = vweird.f32 %v8884
    %vm8891 = vmor %vm8889, %vm8890
    %v8892 = vsel %vm8891, %v8884, %v8888
    %v8893 = vand.u32 2147483647, %v8775
    %vm8894 = vcmp.eq.f32.partialorder %v8893, 8.507059e+37
    %v8895 = vand.u32 %v8775, 2147483648
    %v8896 = vor.u32 1.1754944e-38, %v8895
    %v8897 = vsel %vm8894, %v8896, %v8892
    %v8898 = vmul.f32 1.0, %v8897
    %v8899 = vrcp.pop %v8776
    %v8900 = vmul.f32 %v8776, %v8899
    %v8901 = vsub.f32 1.0, %v8900
    %v8902 = vmul.f32 %v8899, %v8901
    %v8903 = vadd.f32 %v8899, %v8902
    %vm8904 = vweird.f32 %v8776
    %vm8905 = vweird.f32 %v8899
    %vm8906 = vmor %vm8904, %vm8905
    %v8907 = vsel %vm8906, %v8899, %v8903
    %v8908 = vand.u32 2147483647, %v8776
    %vm8909 = vcmp.eq.f32.partialorder %v8908, 8.507059e+37
    %v8910 = vand.u32 %v8776, 2147483648
    %v8911 = vor.u32 1.1754944e-38, %v8910
    %v8912 = vsel %vm8909, %v8911, %v8907
    %v8913 = vmul.f32 1.0, %v8912
    %v8914 = vrcp.pop %v8777
    %v8915 = vmul.f32 %v8777, %v8914
    %v8916 = vsub.f32 1.0, %v8915
    %v8917 = vmul.f32 %v8914, %v8916
    %v8918 = vadd.f32 %v8914, %v8917
    %vm8919 = vweird.f32 %v8777
    %vm8920 = vweird.f32 %v8914
    %vm8921 = vmor %vm8919, %vm8920
    %v8922 = vsel %vm8921, %v8914, %v8918
    %v8923 = vand.u32 2147483647, %v8777
    %vm8924 = vcmp.eq.f32.partialorder %v8923, 8.507059e+37
    %v8925 = vand.u32 %v8777, 2147483648
    %v8926 = vor.u32 1.1754944e-38, %v8925
    %v8927 = vsel %vm8924, %v8926, %v8922
    %v8928 = vmul.f32 1.0, %v8927
    %v8929 = vrcp.pop %v8778
    %v8930 = vmul.f32 %v8778, %v8929
    %v8931 = vsub.f32 1.0, %v8930
    %v8932 = vmul.f32 %v8929, %v8931
    %v8933 = vadd.f32 %v8929, %v8932
    %vm8934 = vweird.f32 %v8778
    %vm8935 = vweird.f32 %v8929
    %vm8936 = vmor %vm8934, %vm8935
    %v8937 = vsel %vm8936, %v8929, %v8933
    %v8938 = vand.u32 2147483647, %v8778
    %vm8939 = vcmp.eq.f32.partialorder %v8938, 8.507059e+37
    %v8940 = vand.u32 %v8778, 2147483648
    %v8941 = vor.u32 1.1754944e-38, %v8940
    %v8942 = vsel %vm8939, %v8941, %v8937
    %v8943 = vmul.f32 1.0, %v8942
    %v8944 = vrcp.pop %v8779
    %v8945 = vmul.f32 %v8779, %v8944
    %v8946 = vsub.f32 1.0, %v8945
    %v8947 = vmul.f32 %v8944, %v8946
    %v8948 = vadd.f32 %v8944, %v8947
    %vm8949 = vweird.f32 %v8779
    %vm8950 = vweird.f32 %v8944
    %vm8951 = vmor %vm8949, %vm8950
    %v8952 = vsel %vm8951, %v8944, %v8948
    %v8953 = vand.u32 2147483647, %v8779
    %vm8954 = vcmp.eq.f32.partialorder %v8953, 8.507059e+37
    %v8955 = vand.u32 %v8779, 2147483648
    %v8956 = vor.u32 1.1754944e-38, %v8955
    %v8957 = vsel %vm8954, %v8956, %v8952
    %v8958 = vmul.f32 1.0, %v8957
    %v8959 = vrcp.pop %v8780
    %v8960 = vmul.f32 %v8780, %v8959
    %v8961 = vsub.f32 1.0, %v8960
    %v8962 = vmul.f32 %v8959, %v8961
    %v8963 = vadd.f32 %v8959, %v8962
    %vm8964 = vweird.f32 %v8780
    %vm8965 = vweird.f32 %v8959
    %vm8966 = vmor %vm8964, %vm8965
    %v8967 = vsel %vm8966, %v8959, %v8963
    %v8968 = vand.u32 2147483647, %v8780
    %vm8969 = vcmp.eq.f32.partialorder %v8968, 8.507059e+37
    %v8970 = vand.u32 %v8780, 2147483648
    %v8971 = vor.u32 1.1754944e-38, %v8970
    %v8972 = vsel %vm8969, %v8971, %v8967
    %v8973 = vmul.f32 1.0, %v8972
    %v8974 = vrcp.pop %v8781
    %v8975 = vmul.f32 %v8781, %v8974
    %v8976 = vsub.f32 1.0, %v8975
    %v8977 = vmul.f32 %v8974, %v8976
    %v8978 = vadd.f32 %v8974, %v8977
    %vm8979 = vweird.f32 %v8781
    %vm8980 = vweird.f32 %v8974
    %vm8981 = vmor %vm8979, %vm8980
    %v8982 = vsel %vm8981, %v8974, %v8978
    %v8983 = vand.u32 2147483647, %v8781
    %vm8984 = vcmp.eq.f32.partialorder %v8983, 8.507059e+37
    %v8985 = vand.u32 %v8781, 2147483648
    %v8986 = vor.u32 1.1754944e-38, %v8985
    %v8987 = vsel %vm8984, %v8986, %v8982
    %v8988 = vmul.f32 1.0, %v8987
    %v8989 = vrcp.pop %v8782
    %v8990 = vmul.f32 %v8782, %v8989
    %v8991 = vsub.f32 1.0, %v8990
    %v8992 = vmul.f32 %v8989, %v8991
    %v8993 = vadd.f32 %v8989, %v8992
    %vm8994 = vweird.f32 %v8782
    %vm8995 = vweird.f32 %v8989
    %vm8996 = vmor %vm8994, %vm8995
    %v8997 = vsel %vm8996, %v8989, %v8993
    %v8998 = vand.u32 2147483647, %v8782
    %vm8999 = vcmp.eq.f32.partialorder %v8998, 8.507059e+37
    %v9000 = vand.u32 %v8782, 2147483648
    %v9001 = vor.u32 1.1754944e-38, %v9000
    %v9002 = vsel %vm8999, %v9001, %v8997
    %v9003 = vmul.f32 1.0, %v9002
    %v9004 = vrcp.pop %v8783
    %v9005 = vmul.f32 %v8783, %v9004
    %v9006 = vsub.f32 1.0, %v9005
    %v9007 = vmul.f32 %v9004, %v9006
    %v9008 = vadd.f32 %v9004, %v9007
    %vm9009 = vweird.f32 %v8783
    %vm9010 = vweird.f32 %v9004
    %vm9011 = vmor %vm9009, %vm9010
    %v9012 = vsel %vm9011, %v9004, %v9008
    %v9013 = vand.u32 2147483647, %v8783
    %vm9014 = vcmp.eq.f32.partialorder %v9013, 8.507059e+37
    %v9015 = vand.u32 %v8783, 2147483648
    %v9016 = vor.u32 1.1754944e-38, %v9015
    %v9017 = vsel %vm9014, %v9016, %v9012
    %v9018 = vmul.f32 1.0, %v9017
    %v9019 = vrcp.pop %v8784
    %v9020 = vmul.f32 %v8784, %v9019
    %v9021 = vsub.f32 1.0, %v9020
    %v9022 = vmul.f32 %v9019, %v9021
    %v9023 = vadd.f32 %v9019, %v9022
    %vm9024 = vweird.f32 %v8784
    %vm9025 = vweird.f32 %v9019
    %vm9026 = vmor %vm9024, %vm9025
    %v9027 = vsel %vm9026, %v9019, %v9023
    %v9028 = vand.u32 2147483647, %v8784
    %vm9029 = vcmp.eq.f32.partialorder %v9028, 8.507059e+37
    %v9030 = vand.u32 %v8784, 2147483648
    %v9031 = vor.u32 1.1754944e-38, %v9030
    %v9032 = vsel %vm9029, %v9031, %v9027
    %v9033 = vmul.f32 1.0, %v9032
    %v9034 = vrcp.pop %v8785
    %v9035 = vmul.f32 %v8785, %v9034
    %v9036 = vsub.f32 1.0, %v9035
    %v9037 = vmul.f32 %v9034, %v9036
    %v9038 = vadd.f32 %v9034, %v9037
    %vm9039 = vweird.f32 %v8785
    %vm9040 = vweird.f32 %v9034
    %vm9041 = vmor %vm9039, %vm9040
    %v9042 = vsel %vm9041, %v9034, %v9038
    %v9043 = vand.u32 2147483647, %v8785
    %vm9044 = vcmp.eq.f32.partialorder %v9043, 8.507059e+37
    %v9045 = vand.u32 %v8785, 2147483648
    %v9046 = vor.u32 1.1754944e-38, %v9045
    %v9047 = vsel %vm9044, %v9046, %v9042
    %v9048 = vmul.f32 1.0, %v9047
    %v9049 = vrcp.pop %v8786
    %v9050 = vmul.f32 %v8786, %v9049
    %v9051 = vsub.f32 1.0, %v9050
    %v9052 = vmul.f32 %v9049, %v9051
    %v9053 = vadd.f32 %v9049, %v9052
    %vm9054 = vweird.f32 %v8786
    %vm9055 = vweird.f32 %v9049
    %vm9056 = vmor %vm9054, %vm9055
    %v9057 = vsel %vm9056, %v9049, %v9053
    %v9058 = vand.u32 2147483647, %v8786
    %vm9059 = vcmp.eq.f32.partialorder %v9058, 8.507059e+37
    %v9060 = vand.u32 %v8786, 2147483648
    %v9061 = vor.u32 1.1754944e-38, %v9060
    %v9062 = vsel %vm9059, %v9061, %v9057
    %v9063 = vmul.f32 1.0, %v9062
    %v9064 = vrcp.pop %v8787
    %v9065 = vmul.f32 %v8787, %v9064
    %v9066 = vsub.f32 1.0, %v9065
    %v9067 = vmul.f32 %v9064, %v9066
    %v9068 = vadd.f32 %v9064, %v9067
    %vm9069 = vweird.f32 %v8787
    %vm9070 = vweird.f32 %v9064
    %vm9071 = vmor %vm9069, %vm9070
    %v9072 = vsel %vm9071, %v9064, %v9068
    %v9073 = vand.u32 2147483647, %v8787
    %vm9074 = vcmp.eq.f32.partialorder %v9073, 8.507059e+37
    %v9075 = vand.u32 %v8787, 2147483648
    %v9076 = vor.u32 1.1754944e-38, %v9075
    %v9077 = vsel %vm9074, %v9076, %v9072
    %v9078 = vmul.f32 1.0, %v9077
    %v9079 = vrcp.pop %v8788
    %v9080 = vmul.f32 %v8788, %v9079
    %v9081 = vsub.f32 1.0, %v9080
    %v9082 = vmul.f32 %v9079, %v9081
    %v9083 = vadd.f32 %v9079, %v9082
    %vm9084 = vweird.f32 %v8788
    %vm9085 = vweird.f32 %v9079
    %vm9086 = vmor %vm9084, %vm9085
    %v9087 = vsel %vm9086, %v9079, %v9083
    %v9088 = vand.u32 2147483647, %v8788
    %vm9089 = vcmp.eq.f32.partialorder %v9088, 8.507059e+37
    %v9090 = vand.u32 %v8788, 2147483648
    %v9091 = vor.u32 1.1754944e-38, %v9090
    %v9092 = vsel %vm9089, %v9091, %v9087
    %v9093 = vmul.f32 1.0, %v9092
    %v9094 = vrcp.pop %v8789
    %v9095 = vmul.f32 %v8789, %v9094
    %v9096 = vsub.f32 1.0, %v9095
    %v9097 = vmul.f32 %v9094, %v9096
    %v9098 = vadd.f32 %v9094, %v9097
    %vm9099 = vweird.f32 %v8789
    %vm9100 = vweird.f32 %v9094
    %vm9101 = vmor %vm9099, %vm9100
    %v9102 = vsel %vm9101, %v9094, %v9098
    %v9103 = vand.u32 2147483647, %v8789
    %vm9104 = vcmp.eq.f32.partialorder %v9103, 8.507059e+37
    %v9105 = vand.u32 %v8789, 2147483648
    %v9106 = vor.u32 1.1754944e-38, %v9105
    %v9107 = vsel %vm9104, %v9106, %v9102
    %v9108 = vmul.f32 1.0, %v9107
    %v9109 = vrcp.pop %v8790
    %v9110 = vmul.f32 %v8790, %v9109
    %v9111 = vsub.f32 1.0, %v9110
    %v9112 = vmul.f32 %v9109, %v9111
    %v9113 = vadd.f32 %v9109, %v9112
    %vm9114 = vweird.f32 %v8790
    %vm9115 = vweird.f32 %v9109
    %vm9116 = vmor %vm9114, %vm9115
    %v9117 = vsel %vm9116, %v9109, %v9113
    %v9118 = vand.u32 2147483647, %v8790
    %vm9119 = vcmp.eq.f32.partialorder %v9118, 8.507059e+37
    %v9120 = vand.u32 %v8790, 2147483648
    %v9121 = vor.u32 1.1754944e-38, %v9120
    %v9122 = vsel %vm9119, %v9121, %v9117
    %v9123 = vmul.f32 1.0, %v9122
    %v9124 = vrcp.pop %v8791
    %v9125 = vmul.f32 %v8791, %v9124
    %v9126 = vsub.f32 1.0, %v9125
    %v9127 = vmul.f32 %v9124, %v9126
    %v9128 = vadd.f32 %v9124, %v9127
    %vm9129 = vweird.f32 %v8791
    %vm9130 = vweird.f32 %v9124
    %vm9131 = vmor %vm9129, %vm9130
    %v9132 = vsel %vm9131, %v9124, %v9128
    %v9133 = vand.u32 2147483647, %v8791
    %vm9134 = vcmp.eq.f32.partialorder %v9133, 8.507059e+37
    %v9135 = vand.u32 %v8791, 2147483648
    %v9136 = vor.u32 1.1754944e-38, %v9135
    %v9137 = vsel %vm9134, %v9136, %v9132
    %v9138 = vmul.f32 1.0, %v9137
    %v9139 = vrcp.pop %v8792
    %v9140 = vmul.f32 %v8792, %v9139
    %v9141 = vsub.f32 1.0, %v9140
    %v9142 = vmul.f32 %v9139, %v9141
    %v9143 = vadd.f32 %v9139, %v9142
    %vm9144 = vweird.f32 %v8792
    %vm9145 = vweird.f32 %v9139
    %vm9146 = vmor %vm9144, %vm9145
    %v9147 = vsel %vm9146, %v9139, %v9143
    %v9148 = vand.u32 2147483647, %v8792
    %vm9149 = vcmp.eq.f32.partialorder %v9148, 8.507059e+37
    %v9150 = vand.u32 %v8792, 2147483648
    %v9151 = vor.u32 1.1754944e-38, %v9150
    %v9152 = vsel %vm9149, %v9151, %v9147
    %v9153 = vmul.f32 1.0, %v9152
    %v9154 = vrcp.pop %v8793
    %v9155 = vmul.f32 %v8793, %v9154
    %v9156 = vsub.f32 1.0, %v9155
    %v9157 = vmul.f32 %v9154, %v9156
    %v9158 = vadd.f32 %v9154, %v9157
    %vm9159 = vweird.f32 %v8793
    %vm9160 = vweird.f32 %v9154
    %vm9161 = vmor %vm9159, %vm9160
    %v9162 = vsel %vm9161, %v9154, %v9158
    %v9163 = vand.u32 2147483647, %v8793
    %vm9164 = vcmp.eq.f32.partialorder %v9163, 8.507059e+37
    %v9165 = vand.u32 %v8793, 2147483648
    %v9166 = vor.u32 1.1754944e-38, %v9165
    %v9167 = vsel %vm9164, %v9166, %v9162
    %v9168 = vmul.f32 1.0, %v9167
    %v9169 = vadd.f32 %v7142, %v7599
    %v9170 = vadd.f32 %v7144, %v7599
    %v9171 = vadd.f32 %v7147, %v7599
    %v9172 = vadd.f32 %v7149, %v7599
    %v9173 = vadd.f32 %v7152, %v7599
    %v9174 = vadd.f32 %v7154, %v7599
    %v9175 = vadd.f32 %v7157, %v7599
    %v9176 = vadd.f32 %v7159, %v7599
    %v9177 = vadd.f32 %v7162, %v7599
    %v9178 = vadd.f32 %v7164, %v7599
    %v9179 = vadd.f32 %v7167, %v7599
    %v9180 = vadd.f32 %v7169, %v7599
    %v9181 = vadd.f32 %v7172, %v7599
    %v9182 = vadd.f32 %v7174, %v7599
    %v9183 = vadd.f32 %v7177, %v7599
    %v9184 = vadd.f32 %v7179, %v7599
    %v9185 = vadd.f32 %v7182, %v7599
    %v9186 = vadd.f32 %v7184, %v7599
    %v9187 = vadd.f32 %v7187, %v7599
    %v9188 = vadd.f32 %v7189, %v7599
    %v9189 = vadd.f32 %v7192, %v7599
    %v9190 = vadd.f32 %v7194, %v7599
    %v9191 = vadd.f32 %v7197, %v7599
    %v9192 = vadd.f32 %v7199, %v7599
    %v9193 = vadd.f32 %v7202, %v7599
    %vm9194 = vcmp.gt.f32.partialorder %v9169, 0.0
    %vm9195 = vcmp.gt.f32.partialorder %v9170, 0.0
    %vm9196 = vcmp.gt.f32.partialorder %v9171, 0.0
    %vm9197 = vcmp.gt.f32.partialorder %v9172, 0.0
    %vm9198 = vcmp.gt.f32.partialorder %v9173, 0.0
    %vm9199 = vcmp.gt.f32.partialorder %v9174, 0.0
    %vm9200 = vcmp.gt.f32.partialorder %v9175, 0.0
    %vm9201 = vcmp.gt.f32.partialorder %v9176, 0.0
    %vm9202 = vcmp.gt.f32.partialorder %v9177, 0.0
    %vm9203 = vcmp.gt.f32.partialorder %v9178, 0.0
    %vm9204 = vcmp.gt.f32.partialorder %v9179, 0.0
    %vm9205 = vcmp.gt.f32.partialorder %v9180, 0.0
    %vm9206 = vcmp.gt.f32.partialorder %v9181, 0.0
    %vm9207 = vcmp.gt.f32.partialorder %v9182, 0.0
    %vm9208 = vcmp.gt.f32.partialorder %v9183, 0.0
    %vm9209 = vcmp.gt.f32.partialorder %v9184, 0.0
    %vm9210 = vcmp.gt.f32.partialorder %v9185, 0.0
    %vm9211 = vcmp.gt.f32.partialorder %v9186, 0.0
    %vm9212 = vcmp.gt.f32.partialorder %v9187, 0.0
    %vm9213 = vcmp.gt.f32.partialorder %v9188, 0.0
    %vm9214 = vcmp.gt.f32.partialorder %v9189, 0.0
    %vm9215 = vcmp.gt.f32.partialorder %v9190, 0.0
    %vm9216 = vcmp.gt.f32.partialorder %v9191, 0.0
    %vm9217 = vcmp.gt.f32.partialorder %v9192, 0.0
    %vm9218 = vcmp.gt.f32.partialorder %v9193, 0.0
    %v9219 = vmul.f32 %v9169, %v7966
    %v9220 = vmul.f32 %v9170, %v7966
    %v9221 = vmul.f32 %v9171, %v7966
    %v9222 = vmul.f32 %v9172, %v7966
    %v9223 = vmul.f32 %v9173, %v7966
    %v9224 = vmul.f32 %v9174, %v7966
    %v9225 = vmul.f32 %v9175, %v7966
    %v9226 = vmul.f32 %v9176, %v7966
    %v9227 = vmul.f32 %v9177, %v7966
    %v9228 = vmul.f32 %v9178, %v7966
    %v9229 = vmul.f32 %v9179, %v7966
    %v9230 = vmul.f32 %v9180, %v7966
    %v9231 = vmul.f32 %v9181, %v7966
    %v9232 = vmul.f32 %v9182, %v7966
    %v9233 = vmul.f32 %v9183, %v7966
    %v9234 = vmul.f32 %v9184, %v7966
    %v9235 = vmul.f32 %v9185, %v7966
    %v9236 = vmul.f32 %v9186, %v7966
    %v9237 = vmul.f32 %v9187, %v7966
    %v9238 = vmul.f32 %v9188, %v7966
    %v9239 = vmul.f32 %v9189, %v7966
    %v9240 = vmul.f32 %v9190, %v7966
    %v9241 = vmul.f32 %v9191, %v7966
    %v9242 = vmul.f32 %v9192, %v7966
    %v9243 = vmul.f32 %v9193, %v7966
    %v9244 = vsel %vm9194, %v9169, %v9219
    %v9245 = vsel %vm9195, %v9170, %v9220
    %v9246 = vsel %vm9196, %v9171, %v9221
    %v9247 = vsel %vm9197, %v9172, %v9222
    %v9248 = vsel %vm9198, %v9173, %v9223
    %v9249 = vsel %vm9199, %v9174, %v9224
    %v9250 = vsel %vm9200, %v9175, %v9225
    %v9251 = vsel %vm9201, %v9176, %v9226
    %v9252 = vsel %vm9202, %v9177, %v9227
    %v9253 = vsel %vm9203, %v9178, %v9228
    %v9254 = vsel %vm9204, %v9179, %v9229
    %v9255 = vsel %vm9205, %v9180, %v9230
    %v9256 = vsel %vm9206, %v9181, %v9231
    %v9257 = vsel %vm9207, %v9182, %v9232
    %v9258 = vsel %vm9208, %v9183, %v9233
    %v9259 = vsel %vm9209, %v9184, %v9234
    %v9260 = vsel %vm9210, %v9185, %v9235
    %v9261 = vsel %vm9211, %v9186, %v9236
    %v9262 = vsel %vm9212, %v9187, %v9237
    %v9263 = vsel %vm9213, %v9188, %v9238
    %v9264 = vsel %vm9214, %v9189, %v9239
    %v9265 = vsel %vm9215, %v9190, %v9240
    %v9266 = vsel %vm9216, %v9191, %v9241
    %v9267 = vsel %vm9217, %v9192, %v9242
    %v9268 = vsel %vm9218, %v9193, %v9243
    %v9269 = vmul.f32 %v9244, %v8017
    %v9270 = vmul.f32 %v9245, %v8017
    %v9271 = vmul.f32 %v9246, %v8017
    %v9272 = vmul.f32 %v9247, %v8017
    %v9273 = vmul.f32 %v9248, %v8017
    %v9274 = vmul.f32 %v9249, %v8017
    %v9275 = vmul.f32 %v9250, %v8017
    %v9276 = vmul.f32 %v9251, %v8017
    %v9277 = vmul.f32 %v9252, %v8017
    %v9278 = vmul.f32 %v9253, %v8017
    %v9279 = vmul.f32 %v9254, %v8017
    %v9280 = vmul.f32 %v9255, %v8017
    %v9281 = vmul.f32 %v9256, %v8017
    %v9282 = vmul.f32 %v9257, %v8017
    %v9283 = vmul.f32 %v9258, %v8017
    %v9284 = vmul.f32 %v9259, %v8017
    %v9285 = vmul.f32 %v9260, %v8017
    %v9286 = vmul.f32 %v9261, %v8017
    %v9287 = vmul.f32 %v9262, %v8017
    %v9288 = vmul.f32 %v9263, %v8017
    %v9289 = vmul.f32 %v9264, %v8017
    %v9290 = vmul.f32 %v9265, %v8017
    %v9291 = vmul.f32 %v9266, %v8017
    %v9292 = vmul.f32 %v9267, %v8017
    %v9293 = vmul.f32 %v9268, %v8017
    %v9294 = vadd.f32 %v9269, %v8043
    %v9295 = vadd.f32 %v9270, %v8043
    %v9296 = vadd.f32 %v9271, %v8043
    %v9297 = vadd.f32 %v9272, %v8043
    %v9298 = vadd.f32 %v9273, %v8043
    %v9299 = vadd.f32 %v9274, %v8043
    %v9300 = vadd.f32 %v9275, %v8043
    %v9301 = vadd.f32 %v9276, %v8043
    %v9302 = vadd.f32 %v9277, %v8043
    %v9303 = vadd.f32 %v9278, %v8043
    %v9304 = vadd.f32 %v9279, %v8043
    %v9305 = vadd.f32 %v9280, %v8043
    %v9306 = vadd.f32 %v9281, %v8043
    %v9307 = vadd.f32 %v9282, %v8043
    %v9308 = vadd.f32 %v9283, %v8043
    %v9309 = vadd.f32 %v9284, %v8043
    %v9310 = vadd.f32 %v9285, %v8043
    %v9311 = vadd.f32 %v9286, %v8043
    %v9312 = vadd.f32 %v9287, %v8043
    %v9313 = vadd.f32 %v9288, %v8043
    %v9314 = vadd.f32 %v9289, %v8043
    %v9315 = vadd.f32 %v9290, %v8043
    %v9316 = vadd.f32 %v9291, %v8043
    %v9317 = vadd.f32 %v9292, %v8043
    %v9318 = vadd.f32 %v9293, %v8043
    %v9319 = vsub.f32 0.0, %v9294
    %v9320 = vsub.f32 0.0, %v9295
    %v9321 = vsub.f32 0.0, %v9296
    %v9322 = vsub.f32 0.0, %v9297
    %v9323 = vsub.f32 0.0, %v9298
    %v9324 = vsub.f32 0.0, %v9299
    %v9325 = vsub.f32 0.0, %v9300
    %v9326 = vsub.f32 0.0, %v9301
    %v9327 = vsub.f32 0.0, %v9302
    %v9328 = vsub.f32 0.0, %v9303
    %v9329 = vsub.f32 0.0, %v9304
    %v9330 = vsub.f32 0.0, %v9305
    %v9331 = vsub.f32 0.0, %v9306
    %v9332 = vsub.f32 0.0, %v9307
    %v9333 = vsub.f32 0.0, %v9308
    %v9334 = vsub.f32 0.0, %v9309
    %v9335 = vsub.f32 0.0, %v9310
    %v9336 = vsub.f32 0.0, %v9311
    %v9337 = vsub.f32 0.0, %v9312
    %v9338 = vsub.f32 0.0, %v9313
    %v9339 = vsub.f32 0.0, %v9314
    %v9340 = vsub.f32 0.0, %v9315
    %v9341 = vsub.f32 0.0, %v9316
    %v9342 = vsub.f32 0.0, %v9317
    %v9343 = vsub.f32 0.0, %v9318
    %v9344 = vmul.f32 %v9319, 1.442695
    %v9345 = vpow.pop %v9344
    %v9346 = vmul.f32 %v9320, 1.442695
    %v9347 = vpow.pop %v9346
    %v9348 = vmul.f32 %v9321, 1.442695
    %v9349 = vpow.pop %v9348
    %v9350 = vmul.f32 %v9322, 1.442695
    %v9351 = vpow.pop %v9350
    %v9352 = vmul.f32 %v9323, 1.442695
    %v9353 = vpow.pop %v9352
    %v9354 = vmul.f32 %v9324, 1.442695
    %v9355 = vpow.pop %v9354
    %v9356 = vmul.f32 %v9325, 1.442695
    %v9357 = vpow.pop %v9356
    %v9358 = vmul.f32 %v9326, 1.442695
    %v9359 = vpow.pop %v9358
    %v9360 = vmul.f32 %v9327, 1.442695
    %v9361 = vpow.pop %v9360
    %v9362 = vmul.f32 %v9328, 1.442695
    %v9363 = vpow.pop %v9362
    %v9364 = vmul.f32 %v9329, 1.442695
    %v9365 = vpow.pop %v9364
    %v9366 = vmul.f32 %v9330, 1.442695
    %v9367 = vpow.pop %v9366
    %v9368 = vmul.f32 %v9331, 1.442695
    %v9369 = vpow.pop %v9368
    %v9370 = vmul.f32 %v9332, 1.442695
    %v9371 = vpow.pop %v9370
    %v9372 = vmul.f32 %v9333, 1.442695
    %v9373 = vpow.pop %v9372
    %v9374 = vmul.f32 %v9334, 1.442695
    %v9375 = vpow.pop %v9374
    %v9376 = vmul.f32 %v9335, 1.442695
    %v9377 = vpow.pop %v9376
    %v9378 = vmul.f32 %v9336, 1.442695
    %v9379 = vpow.pop %v9378
    %v9380 = vmul.f32 %v9337, 1.442695
    %v9381 = vpow.pop %v9380
    %v9382 = vmul.f32 %v9338, 1.442695
    %v9383 = vpow.pop %v9382
    %v9384 = vmul.f32 %v9339, 1.442695
    %v9385 = vpow.pop %v9384
    %v9386 = vmul.f32 %v9340, 1.442695
    %v9387 = vpow.pop %v9386
    %v9388 = vmul.f32 %v9341, 1.442695
    %v9389 = vpow.pop %v9388
    %v9390 = vmul.f32 %v9342, 1.442695
    %v9391 = vpow.pop %v9390
    %v9392 = vmul.f32 %v9343, 1.442695
    %v9393 = vpow.pop %v9392
    %v9394 = vadd.f32 %v9345, 1.0
    %v9395 = vadd.f32 %v9347, 1.0
    %v9396 = vadd.f32 %v9349, 1.0
    %v9397 = vadd.f32 %v9351, 1.0
    %v9398 = vadd.f32 %v9353, 1.0
    %v9399 = vadd.f32 %v9355, 1.0
    %v9400 = vadd.f32 %v9357, 1.0
    %v9401 = vadd.f32 %v9359, 1.0
    %v9402 = vadd.f32 %v9361, 1.0
    %v9403 = vadd.f32 %v9363, 1.0
    %v9404 = vadd.f32 %v9365, 1.0
    %v9405 = vadd.f32 %v9367, 1.0
    %v9406 = vadd.f32 %v9369, 1.0
    %v9407 = vadd.f32 %v9371, 1.0
    %v9408 = vadd.f32 %v9373, 1.0
    %v9409 = vadd.f32 %v9375, 1.0
    %v9410 = vadd.f32 %v9377, 1.0
    %v9411 = vadd.f32 %v9379, 1.0
    %v9412 = vadd.f32 %v9381, 1.0
    %v9413 = vadd.f32 %v9383, 1.0
    %v9414 = vadd.f32 %v9385, 1.0
    %v9415 = vadd.f32 %v9387, 1.0
    %v9416 = vadd.f32 %v9389, 1.0
    %v9417 = vadd.f32 %v9391, 1.0
    %v9418 = vadd.f32 %v9393, 1.0
    %v9419 = vrcp.pop %v9394
    %v9420 = vmul.f32 %v9394, %v9419
    %v9421 = vsub.f32 1.0, %v9420
    %v9422 = vmul.f32 %v9419, %v9421
    %v9423 = vadd.f32 %v9419, %v9422
    %vm9424 = vweird.f32 %v9394
    %vm9425 = vweird.f32 %v9419
    %vm9426 = vmor %vm9424, %vm9425
    %v9427 = vsel %vm9426, %v9419, %v9423
    %v9428 = vand.u32 2147483647, %v9394
    %vm9429 = vcmp.eq.f32.partialorder %v9428, 8.507059e+37
    %v9430 = vand.u32 %v9394, 2147483648
    %v9431 = vor.u32 1.1754944e-38, %v9430
    %v9432 = vsel %vm9429, %v9431, %v9427
    %v9433 = vmul.f32 1.0, %v9432
    %v9434 = vrcp.pop %v9395
    %v9435 = vmul.f32 %v9395, %v9434
    %v9436 = vsub.f32 1.0, %v9435
    %v9437 = vmul.f32 %v9434, %v9436
    %v9438 = vadd.f32 %v9434, %v9437
    %vm9439 = vweird.f32 %v9395
    %vm9440 = vweird.f32 %v9434
    %vm9441 = vmor %vm9439, %vm9440
    %v9442 = vsel %vm9441, %v9434, %v9438
    %v9443 = vand.u32 2147483647, %v9395
    %vm9444 = vcmp.eq.f32.partialorder %v9443, 8.507059e+37
    %v9445 = vand.u32 %v9395, 2147483648
    %v9446 = vor.u32 1.1754944e-38, %v9445
    %v9447 = vsel %vm9444, %v9446, %v9442
    %v9448 = vmul.f32 1.0, %v9447
    %v9449 = vrcp.pop %v9396
    %v9450 = vmul.f32 %v9396, %v9449
    %v9451 = vsub.f32 1.0, %v9450
    %v9452 = vmul.f32 %v9449, %v9451
    %v9453 = vadd.f32 %v9449, %v9452
    %vm9454 = vweird.f32 %v9396
    %vm9455 = vweird.f32 %v9449
    %vm9456 = vmor %vm9454, %vm9455
    %v9457 = vsel %vm9456, %v9449, %v9453
    %v9458 = vand.u32 2147483647, %v9396
    %vm9459 = vcmp.eq.f32.partialorder %v9458, 8.507059e+37
    %v9460 = vand.u32 %v9396, 2147483648
    %v9461 = vor.u32 1.1754944e-38, %v9460
    %v9462 = vsel %vm9459, %v9461, %v9457
    %v9463 = vmul.f32 1.0, %v9462
    %v9464 = vrcp.pop %v9397
    %v9465 = vmul.f32 %v9397, %v9464
    %v9466 = vsub.f32 1.0, %v9465
    %v9467 = vmul.f32 %v9464, %v9466
    %v9468 = vadd.f32 %v9464, %v9467
    %vm9469 = vweird.f32 %v9397
    %vm9470 = vweird.f32 %v9464
    %vm9471 = vmor %vm9469, %vm9470
    %v9472 = vsel %vm9471, %v9464, %v9468
    %v9473 = vand.u32 2147483647, %v9397
    %vm9474 = vcmp.eq.f32.partialorder %v9473, 8.507059e+37
    %v9475 = vand.u32 %v9397, 2147483648
    %v9476 = vor.u32 1.1754944e-38, %v9475
    %v9477 = vsel %vm9474, %v9476, %v9472
    %v9478 = vmul.f32 1.0, %v9477
    %v9479 = vrcp.pop %v9398
    %v9480 = vmul.f32 %v9398, %v9479
    %v9481 = vsub.f32 1.0, %v9480
    %v9482 = vmul.f32 %v9479, %v9481
    %v9483 = vadd.f32 %v9479, %v9482
    %vm9484 = vweird.f32 %v9398
    %vm9485 = vweird.f32 %v9479
    %vm9486 = vmor %vm9484, %vm9485
    %v9487 = vsel %vm9486, %v9479, %v9483
    %v9488 = vand.u32 2147483647, %v9398
    %vm9489 = vcmp.eq.f32.partialorder %v9488, 8.507059e+37
    %v9490 = vand.u32 %v9398, 2147483648
    %v9491 = vor.u32 1.1754944e-38, %v9490
    %v9492 = vsel %vm9489, %v9491, %v9487
    %v9493 = vmul.f32 1.0, %v9492
    %v9494 = vrcp.pop %v9399
    %v9495 = vmul.f32 %v9399, %v9494
    %v9496 = vsub.f32 1.0, %v9495
    %v9497 = vmul.f32 %v9494, %v9496
    %v9498 = vadd.f32 %v9494, %v9497
    %vm9499 = vweird.f32 %v9399
    %vm9500 = vweird.f32 %v9494
    %vm9501 = vmor %vm9499, %vm9500
    %v9502 = vsel %vm9501, %v9494, %v9498
    %v9503 = vand.u32 2147483647, %v9399
    %vm9504 = vcmp.eq.f32.partialorder %v9503, 8.507059e+37
    %v9505 = vand.u32 %v9399, 2147483648
    %v9506 = vor.u32 1.1754944e-38, %v9505
    %v9507 = vsel %vm9504, %v9506, %v9502
    %v9508 = vmul.f32 1.0, %v9507
    %v9509 = vrcp.pop %v9400
    %v9510 = vmul.f32 %v9400, %v9509
    %v9511 = vsub.f32 1.0, %v9510
    %v9512 = vmul.f32 %v9509, %v9511
    %v9513 = vadd.f32 %v9509, %v9512
    %vm9514 = vweird.f32 %v9400
    %vm9515 = vweird.f32 %v9509
    %vm9516 = vmor %vm9514, %vm9515
    %v9517 = vsel %vm9516, %v9509, %v9513
    %v9518 = vand.u32 2147483647, %v9400
    %vm9519 = vcmp.eq.f32.partialorder %v9518, 8.507059e+37
    %v9520 = vand.u32 %v9400, 2147483648
    %v9521 = vor.u32 1.1754944e-38, %v9520
    %v9522 = vsel %vm9519, %v9521, %v9517
    %v9523 = vmul.f32 1.0, %v9522
    %v9524 = vrcp.pop %v9401
    %v9525 = vmul.f32 %v9401, %v9524
    %v9526 = vsub.f32 1.0, %v9525
    %v9527 = vmul.f32 %v9524, %v9526
    %v9528 = vadd.f32 %v9524, %v9527
    %vm9529 = vweird.f32 %v9401
    %vm9530 = vweird.f32 %v9524
    %vm9531 = vmor %vm9529, %vm9530
    %v9532 = vsel %vm9531, %v9524, %v9528
    %v9533 = vand.u32 2147483647, %v9401
    %vm9534 = vcmp.eq.f32.partialorder %v9533, 8.507059e+37
    %v9535 = vand.u32 %v9401, 2147483648
    %v9536 = vor.u32 1.1754944e-38, %v9535
    %v9537 = vsel %vm9534, %v9536, %v9532
    %v9538 = vmul.f32 1.0, %v9537
    %v9539 = vrcp.pop %v9402
    %v9540 = vmul.f32 %v9402, %v9539
    %v9541 = vsub.f32 1.0, %v9540
    %v9542 = vmul.f32 %v9539, %v9541
    %v9543 = vadd.f32 %v9539, %v9542
    %vm9544 = vweird.f32 %v9402
    %vm9545 = vweird.f32 %v9539
    %vm9546 = vmor %vm9544, %vm9545
    %v9547 = vsel %vm9546, %v9539, %v9543
    %v9548 = vand.u32 2147483647, %v9402
    %vm9549 = vcmp.eq.f32.partialorder %v9548, 8.507059e+37
    %v9550 = vand.u32 %v9402, 2147483648
    %v9551 = vor.u32 1.1754944e-38, %v9550
    %v9552 = vsel %vm9549, %v9551, %v9547
    %v9553 = vmul.f32 1.0, %v9552
    %v9554 = vrcp.pop %v9403
    %v9555 = vmul.f32 %v9403, %v9554
    %v9556 = vsub.f32 1.0, %v9555
    %v9557 = vmul.f32 %v9554, %v9556
    %v9558 = vadd.f32 %v9554, %v9557
    %vm9559 = vweird.f32 %v9403
    %vm9560 = vweird.f32 %v9554
    %vm9561 = vmor %vm9559, %vm9560
    %v9562 = vsel %vm9561, %v9554, %v9558
    %v9563 = vand.u32 2147483647, %v9403
    %vm9564 = vcmp.eq.f32.partialorder %v9563, 8.507059e+37
    %v9565 = vand.u32 %v9403, 2147483648
    %v9566 = vor.u32 1.1754944e-38, %v9565
    %v9567 = vsel %vm9564, %v9566, %v9562
    %v9568 = vmul.f32 1.0, %v9567
    %v9569 = vrcp.pop %v9404
    %v9570 = vmul.f32 %v9404, %v9569
    %v9571 = vsub.f32 1.0, %v9570
    %v9572 = vmul.f32 %v9569, %v9571
    %v9573 = vadd.f32 %v9569, %v9572
    %vm9574 = vweird.f32 %v9404
    %vm9575 = vweird.f32 %v9569
    %vm9576 = vmor %vm9574, %vm9575
    %v9577 = vsel %vm9576, %v9569, %v9573
    %v9578 = vand.u32 2147483647, %v9404
    %vm9579 = vcmp.eq.f32.partialorder %v9578, 8.507059e+37
    %v9580 = vand.u32 %v9404, 2147483648
    %v9581 = vor.u32 1.1754944e-38, %v9580
    %v9582 = vsel %vm9579, %v9581, %v9577
    %v9583 = vmul.f32 1.0, %v9582
    %v9584 = vrcp.pop %v9405
    %v9585 = vmul.f32 %v9405, %v9584
    %v9586 = vsub.f32 1.0, %v9585
    %v9587 = vmul.f32 %v9584, %v9586
    %v9588 = vadd.f32 %v9584, %v9587
    %vm9589 = vweird.f32 %v9405
    %vm9590 = vweird.f32 %v9584
    %vm9591 = vmor %vm9589, %vm9590
    %v9592 = vsel %vm9591, %v9584, %v9588
    %v9593 = vand.u32 2147483647, %v9405
    %vm9594 = vcmp.eq.f32.partialorder %v9593, 8.507059e+37
    %v9595 = vand.u32 %v9405, 2147483648
    %v9596 = vor.u32 1.1754944e-38, %v9595
    %v9597 = vsel %vm9594, %v9596, %v9592
    %v9598 = vmul.f32 1.0, %v9597
    %v9599 = vrcp.pop %v9406
    %v9600 = vmul.f32 %v9406, %v9599
    %v9601 = vsub.f32 1.0, %v9600
    %v9602 = vmul.f32 %v9599, %v9601
    %v9603 = vadd.f32 %v9599, %v9602
    %vm9604 = vweird.f32 %v9406
    %vm9605 = vweird.f32 %v9599
    %vm9606 = vmor %vm9604, %vm9605
    %v9607 = vsel %vm9606, %v9599, %v9603
    %v9608 = vand.u32 2147483647, %v9406
    %vm9609 = vcmp.eq.f32.partialorder %v9608, 8.507059e+37
    %v9610 = vand.u32 %v9406, 2147483648
    %v9611 = vor.u32 1.1754944e-38, %v9610
    %v9612 = vsel %vm9609, %v9611, %v9607
    %v9613 = vmul.f32 1.0, %v9612
    %v9614 = vrcp.pop %v9407
    %v9615 = vmul.f32 %v9407, %v9614
    %v9616 = vsub.f32 1.0, %v9615
    %v9617 = vmul.f32 %v9614, %v9616
    %v9618 = vadd.f32 %v9614, %v9617
    %vm9619 = vweird.f32 %v9407
    %vm9620 = vweird.f32 %v9614
    %vm9621 = vmor %vm9619, %vm9620
    %v9622 = vsel %vm9621, %v9614, %v9618
    %v9623 = vand.u32 2147483647, %v9407
    %vm9624 = vcmp.eq.f32.partialorder %v9623, 8.507059e+37
    %v9625 = vand.u32 %v9407, 2147483648
    %v9626 = vor.u32 1.1754944e-38, %v9625
    %v9627 = vsel %vm9624, %v9626, %v9622
    %v9628 = vmul.f32 1.0, %v9627
    %v9629 = vrcp.pop %v9408
    %v9630 = vmul.f32 %v9408, %v9629
    %v9631 = vsub.f32 1.0, %v9630
    %v9632 = vmul.f32 %v9629, %v9631
    %v9633 = vadd.f32 %v9629, %v9632
    %vm9634 = vweird.f32 %v9408
    %vm9635 = vweird.f32 %v9629
    %vm9636 = vmor %vm9634, %vm9635
    %v9637 = vsel %vm9636, %v9629, %v9633
    %v9638 = vand.u32 2147483647, %v9408
    %vm9639 = vcmp.eq.f32.partialorder %v9638, 8.507059e+37
    %v9640 = vand.u32 %v9408, 2147483648
    %v9641 = vor.u32 1.1754944e-38, %v9640
    %v9642 = vsel %vm9639, %v9641, %v9637
    %v9643 = vmul.f32 1.0, %v9642
    %v9644 = vrcp.pop %v9409
    %v9645 = vmul.f32 %v9409, %v9644
    %v9646 = vsub.f32 1.0, %v9645
    %v9647 = vmul.f32 %v9644, %v9646
    %v9648 = vadd.f32 %v9644, %v9647
    %vm9649 = vweird.f32 %v9409
    %vm9650 = vweird.f32 %v9644
    %vm9651 = vmor %vm9649, %vm9650
    %v9652 = vsel %vm9651, %v9644, %v9648
    %v9653 = vand.u32 2147483647, %v9409
    %vm9654 = vcmp.eq.f32.partialorder %v9653, 8.507059e+37
    %v9655 = vand.u32 %v9409, 2147483648
    %v9656 = vor.u32 1.1754944e-38, %v9655
    %v9657 = vsel %vm9654, %v9656, %v9652
    %v9658 = vmul.f32 1.0, %v9657
    %v9659 = vrcp.pop %v9410
    %v9660 = vmul.f32 %v9410, %v9659
    %v9661 = vsub.f32 1.0, %v9660
    %v9662 = vmul.f32 %v9659, %v9661
    %v9663 = vadd.f32 %v9659, %v9662
    %vm9664 = vweird.f32 %v9410
    %vm9665 = vweird.f32 %v9659
    %vm9666 = vmor %vm9664, %vm9665
    %v9667 = vsel %vm9666, %v9659, %v9663
    %v9668 = vand.u32 2147483647, %v9410
    %vm9669 = vcmp.eq.f32.partialorder %v9668, 8.507059e+37
    %v9670 = vand.u32 %v9410, 2147483648
    %v9671 = vor.u32 1.1754944e-38, %v9670
    %v9672 = vsel %vm9669, %v9671, %v9667
    %v9673 = vmul.f32 1.0, %v9672
    %v9674 = vrcp.pop %v9411
    %v9675 = vmul.f32 %v9411, %v9674
    %v9676 = vsub.f32 1.0, %v9675
    %v9677 = vmul.f32 %v9674, %v9676
    %v9678 = vadd.f32 %v9674, %v9677
    %vm9679 = vweird.f32 %v9411
    %vm9680 = vweird.f32 %v9674
    %vm9681 = vmor %vm9679, %vm9680
    %v9682 = vsel %vm9681, %v9674, %v9678
    %v9683 = vand.u32 2147483647, %v9411
    %vm9684 = vcmp.eq.f32.partialorder %v9683, 8.507059e+37
    %v9685 = vand.u32 %v9411, 2147483648
    %v9686 = vor.u32 1.1754944e-38, %v9685
    %v9687 = vsel %vm9684, %v9686, %v9682
    %v9688 = vmul.f32 1.0, %v9687
    %v9689 = vrcp.pop %v9412
    %v9690 = vmul.f32 %v9412, %v9689
    %v9691 = vsub.f32 1.0, %v9690
    %v9692 = vmul.f32 %v9689, %v9691
    %v9693 = vadd.f32 %v9689, %v9692
    %vm9694 = vweird.f32 %v9412
    %vm9695 = vweird.f32 %v9689
    %vm9696 = vmor %vm9694, %vm9695
    %v9697 = vsel %vm9696, %v9689, %v9693
    %v9698 = vand.u32 2147483647, %v9412
    %vm9699 = vcmp.eq.f32.partialorder %v9698, 8.507059e+37
    %v9700 = vand.u32 %v9412, 2147483648
    %v9701 = vor.u32 1.1754944e-38, %v9700
    %v9702 = vsel %vm9699, %v9701, %v9697
    %v9703 = vmul.f32 1.0, %v9702
    %v9704 = vrcp.pop %v9413
    %v9705 = vmul.f32 %v9413, %v9704
    %v9706 = vsub.f32 1.0, %v9705
    %v9707 = vmul.f32 %v9704, %v9706
    %v9708 = vadd.f32 %v9704, %v9707
    %vm9709 = vweird.f32 %v9413
    %vm9710 = vweird.f32 %v9704
    %vm9711 = vmor %vm9709, %vm9710
    %v9712 = vsel %vm9711, %v9704, %v9708
    %v9713 = vand.u32 2147483647, %v9413
    %vm9714 = vcmp.eq.f32.partialorder %v9713, 8.507059e+37
    %v9715 = vand.u32 %v9413, 2147483648
    %v9716 = vor.u32 1.1754944e-38, %v9715
    %v9717 = vsel %vm9714, %v9716, %v9712
    %v9718 = vmul.f32 1.0, %v9717
    %v9719 = vrcp.pop %v9414
    %v9720 = vmul.f32 %v9414, %v9719
    %v9721 = vsub.f32 1.0, %v9720
    %v9722 = vmul.f32 %v9719, %v9721
    %v9723 = vadd.f32 %v9719, %v9722
    %vm9724 = vweird.f32 %v9414
    %vm9725 = vweird.f32 %v9719
    %vm9726 = vmor %vm9724, %vm9725
    %v9727 = vsel %vm9726, %v9719, %v9723
    %v9728 = vand.u32 2147483647, %v9414
    %vm9729 = vcmp.eq.f32.partialorder %v9728, 8.507059e+37
    %v9730 = vand.u32 %v9414, 2147483648
    %v9731 = vor.u32 1.1754944e-38, %v9730
    %v9732 = vsel %vm9729, %v9731, %v9727
    %v9733 = vmul.f32 1.0, %v9732
    %v9734 = vrcp.pop %v9415
    %v9735 = vmul.f32 %v9415, %v9734
    %v9736 = vsub.f32 1.0, %v9735
    %v9737 = vmul.f32 %v9734, %v9736
    %v9738 = vadd.f32 %v9734, %v9737
    %vm9739 = vweird.f32 %v9415
    %vm9740 = vweird.f32 %v9734
    %vm9741 = vmor %vm9739, %vm9740
    %v9742 = vsel %vm9741, %v9734, %v9738
    %v9743 = vand.u32 2147483647, %v9415
    %vm9744 = vcmp.eq.f32.partialorder %v9743, 8.507059e+37
    %v9745 = vand.u32 %v9415, 2147483648
    %v9746 = vor.u32 1.1754944e-38, %v9745
    %v9747 = vsel %vm9744, %v9746, %v9742
    %v9748 = vmul.f32 1.0, %v9747
    %v9749 = vrcp.pop %v9416
    %v9750 = vmul.f32 %v9416, %v9749
    %v9751 = vsub.f32 1.0, %v9750
    %v9752 = vmul.f32 %v9749, %v9751
    %v9753 = vadd.f32 %v9749, %v9752
    %vm9754 = vweird.f32 %v9416
    %vm9755 = vweird.f32 %v9749
    %vm9756 = vmor %vm9754, %vm9755
    %v9757 = vsel %vm9756, %v9749, %v9753
    %v9758 = vand.u32 2147483647, %v9416
    %vm9759 = vcmp.eq.f32.partialorder %v9758, 8.507059e+37
    %v9760 = vand.u32 %v9416, 2147483648
    %v9761 = vor.u32 1.1754944e-38, %v9760
    %v9762 = vsel %vm9759, %v9761, %v9757
    %v9763 = vmul.f32 1.0, %v9762
    %v9764 = vrcp.pop %v9417
    %v9765 = vmul.f32 %v9417, %v9764
    %v9766 = vsub.f32 1.0, %v9765
    %v9767 = vmul.f32 %v9764, %v9766
    %v9768 = vadd.f32 %v9764, %v9767
    %vm9769 = vweird.f32 %v9417
    %vm9770 = vweird.f32 %v9764
    %vm9771 = vmor %vm9769, %vm9770
    %v9772 = vsel %vm9771, %v9764, %v9768
    %v9773 = vand.u32 2147483647, %v9417
    %vm9774 = vcmp.eq.f32.partialorder %v9773, 8.507059e+37
    %v9775 = vand.u32 %v9417, 2147483648
    %v9776 = vor.u32 1.1754944e-38, %v9775
    %v9777 = vsel %vm9774, %v9776, %v9772
    %v9778 = vmul.f32 1.0, %v9777
    %v9779 = vrcp.pop %v9418
    %v9780 = vmul.f32 %v9418, %v9779
    %v9781 = vsub.f32 1.0, %v9780
    %v9782 = vmul.f32 %v9779, %v9781
    %v9783 = vadd.f32 %v9779, %v9782
    %vm9784 = vweird.f32 %v9418
    %vm9785 = vweird.f32 %v9779
    %vm9786 = vmor %vm9784, %vm9785
    %v9787 = vsel %vm9786, %v9779, %v9783
    %v9788 = vand.u32 2147483647, %v9418
    %vm9789 = vcmp.eq.f32.partialorder %v9788, 8.507059e+37
    %v9790 = vand.u32 %v9418, 2147483648
    %v9791 = vor.u32 1.1754944e-38, %v9790
    %v9792 = vsel %vm9789, %v9791, %v9787
    %v9793 = vmul.f32 1.0, %v9792
    %v9794 = vadd.f32 %v7572, %v7599
    %v9795 = vadd.f32 %v7573, %v7599
    %v9796 = vadd.f32 %v7574, %v7599
    %v9797 = vadd.f32 %v7575, %v7599
    %v9798 = vadd.f32 %v7576, %v7599
    %v9799 = vadd.f32 %v7577, %v7599
    %v9800 = vadd.f32 %v7578, %v7599
    %v9801 = vadd.f32 %v7579, %v7599
    %v9802 = vadd.f32 %v7580, %v7599
    %v9803 = vadd.f32 %v7581, %v7599
    %v9804 = vadd.f32 %v7582, %v7599
    %v9805 = vadd.f32 %v7583, %v7599
    %v9806 = vadd.f32 %v7584, %v7599
    %v9807 = vadd.f32 %v7585, %v7599
    %v9808 = vadd.f32 %v7586, %v7599
    %v9809 = vadd.f32 %v7587, %v7599
    %v9810 = vadd.f32 %v7588, %v7599
    %v9811 = vadd.f32 %v7589, %v7599
    %v9812 = vadd.f32 %v7590, %v7599
    %v9813 = vadd.f32 %v7591, %v7599
    %v9814 = vadd.f32 %v7592, %v7599
    %v9815 = vadd.f32 %v7593, %v7599
    %v9816 = vadd.f32 %v7594, %v7599
    %v9817 = vadd.f32 %v7595, %v7599
    %v9818 = vadd.f32 %v7596, %v7599
    %vm9819 = vcmp.gt.f32.partialorder %v9794, 0.0
    %vm9820 = vcmp.gt.f32.partialorder %v9795, 0.0
    %vm9821 = vcmp.gt.f32.partialorder %v9796, 0.0
    %vm9822 = vcmp.gt.f32.partialorder %v9797, 0.0
    %vm9823 = vcmp.gt.f32.partialorder %v9798, 0.0
    %vm9824 = vcmp.gt.f32.partialorder %v9799, 0.0
    %vm9825 = vcmp.gt.f32.partialorder %v9800, 0.0
    %vm9826 = vcmp.gt.f32.partialorder %v9801, 0.0
    %vm9827 = vcmp.gt.f32.partialorder %v9802, 0.0
    %vm9828 = vcmp.gt.f32.partialorder %v9803, 0.0
    %vm9829 = vcmp.gt.f32.partialorder %v9804, 0.0
    %vm9830 = vcmp.gt.f32.partialorder %v9805, 0.0
    %vm9831 = vcmp.gt.f32.partialorder %v9806, 0.0
    %vm9832 = vcmp.gt.f32.partialorder %v9807, 0.0
    %vm9833 = vcmp.gt.f32.partialorder %v9808, 0.0
    %vm9834 = vcmp.gt.f32.partialorder %v9809, 0.0
    %vm9835 = vcmp.gt.f32.partialorder %v9810, 0.0
    %vm9836 = vcmp.gt.f32.partialorder %v9811, 0.0
    %vm9837 = vcmp.gt.f32.partialorder %v9812, 0.0
    %vm9838 = vcmp.gt.f32.partialorder %v9813, 0.0
    %vm9839 = vcmp.gt.f32.partialorder %v9814, 0.0
    %vm9840 = vcmp.gt.f32.partialorder %v9815, 0.0
    %vm9841 = vcmp.gt.f32.partialorder %v9816, 0.0
    %vm9842 = vcmp.gt.f32.partialorder %v9817, 0.0
    %vm9843 = vcmp.gt.f32.partialorder %v9818, 0.0
    %v9844 = vmul.f32 %v9794, %v7966
    %v9845 = vmul.f32 %v9795, %v7966
    %v9846 = vmul.f32 %v9796, %v7966
    %v9847 = vmul.f32 %v9797, %v7966
    %v9848 = vmul.f32 %v9798, %v7966
    %v9849 = vmul.f32 %v9799, %v7966
    %v9850 = vmul.f32 %v9800, %v7966
    %v9851 = vmul.f32 %v9801, %v7966
    %v9852 = vmul.f32 %v9802, %v7966
    %v9853 = vmul.f32 %v9803, %v7966
    %v9854 = vmul.f32 %v9804, %v7966
    %v9855 = vmul.f32 %v9805, %v7966
    %v9856 = vmul.f32 %v9806, %v7966
    %v9857 = vmul.f32 %v9807, %v7966
    %v9858 = vmul.f32 %v9808, %v7966
    %v9859 = vmul.f32 %v9809, %v7966
    %v9860 = vmul.f32 %v9810, %v7966
    %v9861 = vmul.f32 %v9811, %v7966
    %v9862 = vmul.f32 %v9812, %v7966
    %v9863 = vmul.f32 %v9813, %v7966
    %v9864 = vmul.f32 %v9814, %v7966
    %v9865 = vmul.f32 %v9815, %v7966
    %v9866 = vmul.f32 %v9816, %v7966
    %v9867 = vmul.f32 %v9817, %v7966
    %v9868 = vmul.f32 %v9818, %v7966
    %v9869 = vsel %vm9819, %v9794, %v9844
    %v9870 = vsel %vm9820, %v9795, %v9845
    %v9871 = vsel %vm9821, %v9796, %v9846
    %v9872 = vsel %vm9822, %v9797, %v9847
    %v9873 = vsel %vm9823, %v9798, %v9848
    %v9874 = vsel %vm9824, %v9799, %v9849
    %v9875 = vsel %vm9825, %v9800, %v9850
    %v9876 = vsel %vm9826, %v9801, %v9851
    %v9877 = vsel %vm9827, %v9802, %v9852
    %v9878 = vsel %vm9828, %v9803, %v9853
    %v9879 = vsel %vm9829, %v9804, %v9854
    %v9880 = vsel %vm9830, %v9805, %v9855
    %v9881 = vsel %vm9831, %v9806, %v9856
    %v9882 = vsel %vm9832, %v9807, %v9857
    %v9883 = vsel %vm9833, %v9808, %v9858
    %v9884 = vsel %vm9834, %v9809, %v9859
    %v9885 = vsel %vm9835, %v9810, %v9860
    %v9886 = vsel %vm9836, %v9811, %v9861
    %v9887 = vsel %vm9837, %v9812, %v9862
    %v9888 = vsel %vm9838, %v9813, %v9863
    %v9889 = vsel %vm9839, %v9814, %v9864
    %v9890 = vsel %vm9840, %v9815, %v9865
    %v9891 = vsel %vm9841, %v9816, %v9866
    %v9892 = vsel %vm9842, %v9817, %v9867
    %v9893 = vsel %vm9843, %v9818, %v9868
    %v9894 = vmul.f32 %v9869, %v8017
    %v9895 = vmul.f32 %v9870, %v8017
    %v9896 = vmul.f32 %v9871, %v8017
    %v9897 = vmul.f32 %v9872, %v8017
    %v9898 = vmul.f32 %v9873, %v8017
    %v9899 = vmul.f32 %v9874, %v8017
    %v9900 = vmul.f32 %v9875, %v8017
    %v9901 = vmul.f32 %v9876, %v8017
    %v9902 = vmul.f32 %v9877, %v8017
    %v9903 = vmul.f32 %v9878, %v8017
    %v9904 = vmul.f32 %v9879, %v8017
    %v9905 = vmul.f32 %v9880, %v8017
    %v9906 = vmul.f32 %v9881, %v8017
    %v9907 = vmul.f32 %v9882, %v8017
    %v9908 = vmul.f32 %v9883, %v8017
    %v9909 = vmul.f32 %v9884, %v8017
    %v9910 = vmul.f32 %v9885, %v8017
    %v9911 = vmul.f32 %v9886, %v8017
    %v9912 = vmul.f32 %v9887, %v8017
    %v9913 = vmul.f32 %v9888, %v8017
    %v9914 = vmul.f32 %v9889, %v8017
    %v9915 = vmul.f32 %v9890, %v8017
    %v9916 = vmul.f32 %v9891, %v8017
    %v9917 = vmul.f32 %v9892, %v8017
    %v9918 = vmul.f32 %v9893, %v8017
    %v9919 = vadd.f32 %v9894, %v8043
    %v9920 = vadd.f32 %v9895, %v8043
    %v9921 = vadd.f32 %v9896, %v8043
    %v9922 = vadd.f32 %v9897, %v8043
    %v9923 = vadd.f32 %v9898, %v8043
    %v9924 = vadd.f32 %v9899, %v8043
    %v9925 = vadd.f32 %v9900, %v8043
    %v9926 = vadd.f32 %v9901, %v8043
    %v9927 = vadd.f32 %v9902, %v8043
    %v9928 = vadd.f32 %v9903, %v8043
    %v9929 = vadd.f32 %v9904, %v8043
    %v9930 = vadd.f32 %v9905, %v8043
    %v9931 = vadd.f32 %v9906, %v8043
    %v9932 = vadd.f32 %v9907, %v8043
    %v9933 = vadd.f32 %v9908, %v8043
    %v9934 = vadd.f32 %v9909, %v8043
    %v9935 = vadd.f32 %v9910, %v8043
    %v9936 = vadd.f32 %v9911, %v8043
    %v9937 = vadd.f32 %v9912, %v8043
    %v9938 = vadd.f32 %v9913, %v8043
    %v9939 = vadd.f32 %v9914, %v8043
    %v9940 = vadd.f32 %v9915, %v8043
    %v9941 = vadd.f32 %v9916, %v8043
    %v9942 = vadd.f32 %v9917, %v8043
    %v9943 = vadd.f32 %v9918, %v8043
    %v9944 = vsub.f32 0.0, %v9919
    %v9945 = vsub.f32 0.0, %v9920
    %v9946 = vsub.f32 0.0, %v9921
    %v9947 = vsub.f32 0.0, %v9922
    %v9948 = vsub.f32 0.0, %v9923
    %v9949 = vsub.f32 0.0, %v9924
    %v9950 = vsub.f32 0.0, %v9925
    %v9951 = vsub.f32 0.0, %v9926
    %v9952 = vsub.f32 0.0, %v9927
    %v9953 = vsub.f32 0.0, %v9928
    %v9954 = vsub.f32 0.0, %v9929
    %v9955 = vsub.f32 0.0, %v9930
    %v9956 = vsub.f32 0.0, %v9931
    %v9957 = vsub.f32 0.0, %v9932
    %v9958 = vsub.f32 0.0, %v9933
    %v9959 = vsub.f32 0.0, %v9934
    %v9960 = vsub.f32 0.0, %v9935
    %v9961 = vsub.f32 0.0, %v9936
    %v9962 = vsub.f32 0.0, %v9937
    %v9963 = vsub.f32 0.0, %v9938
    %v9964 = vsub.f32 0.0, %v9939
    %v9965 = vsub.f32 0.0, %v9940
    %v9966 = vsub.f32 0.0, %v9941
    %v9967 = vsub.f32 0.0, %v9942
    %v9968 = vsub.f32 0.0, %v9943
    %v9969 = vmul.f32 %v9944, 1.442695
    %v9970 = vpow.pop %v9969
    %v9971 = vmul.f32 %v9945, 1.442695
    %v9972 = vpow.pop %v9971
    %v9973 = vmul.f32 %v9946, 1.442695
    %v9974 = vpow.pop %v9973
    %v9975 = vmul.f32 %v9947, 1.442695
    %v9976 = vpow.pop %v9975
    %v9977 = vmul.f32 %v9948, 1.442695
    %v9978 = vpow.pop %v9977
    %v9979 = vmul.f32 %v9949, 1.442695
    %v9980 = vpow.pop %v9979
    %v9981 = vmul.f32 %v9950, 1.442695
    %v9982 = vpow.pop %v9981
    %v9983 = vmul.f32 %v9951, 1.442695
    %v9984 = vpow.pop %v9983
    %v9985 = vmul.f32 %v9952, 1.442695
    %v9986 = vpow.pop %v9985
    %v9987 = vmul.f32 %v9953, 1.442695
    %v9988 = vpow.pop %v9987
    %v9989 = vmul.f32 %v9954, 1.442695
    %v9990 = vpow.pop %v9989
    %v9991 = vmul.f32 %v9955, 1.442695
    %v9992 = vpow.pop %v9991
    %v9993 = vmul.f32 %v9956, 1.442695
    %v9994 = vpow.pop %v9993
    %v9995 = vmul.f32 %v9957, 1.442695
    %v9996 = vpow.pop %v9995
    %v9997 = vmul.f32 %v9958, 1.442695
    %v9998 = vpow.pop %v9997
    %v9999 = vmul.f32 %v9959, 1.442695
    %v10000 = vpow.pop %v9999
    %v10001 = vmul.f32 %v9960, 1.442695
    %v10002 = vpow.pop %v10001
    %v10003 = vmul.f32 %v9961, 1.442695
    %v10004 = vpow.pop %v10003
    %v10005 = vmul.f32 %v9962, 1.442695
    %v10006 = vpow.pop %v10005
    %v10007 = vmul.f32 %v9963, 1.442695
    %v10008 = vpow.pop %v10007
    %v10009 = vmul.f32 %v9964, 1.442695
    %v10010 = vpow.pop %v10009
    %v10011 = vmul.f32 %v9965, 1.442695
    %v10012 = vpow.pop %v10011
    %v10013 = vmul.f32 %v9966, 1.442695
    %v10014 = vpow.pop %v10013
    %v10015 = vmul.f32 %v9967, 1.442695
    %v10016 = vpow.pop %v10015
    %v10017 = vmul.f32 %v9968, 1.442695
    %v10018 = vpow.pop %v10017
    %v10019 = vadd.f32 %v9970, 1.0
    %v10020 = vadd.f32 %v9972, 1.0
    %v10021 = vadd.f32 %v9974, 1.0
    %v10022 = vadd.f32 %v9976, 1.0
    %v10023 = vadd.f32 %v9978, 1.0
    %v10024 = vadd.f32 %v9980, 1.0
    %v10025 = vadd.f32 %v9982, 1.0
    %v10026 = vadd.f32 %v9984, 1.0
    %v10027 = vadd.f32 %v9986, 1.0
    %v10028 = vadd.f32 %v9988, 1.0
    %v10029 = vadd.f32 %v9990, 1.0
    %v10030 = vadd.f32 %v9992, 1.0
    %v10031 = vadd.f32 %v9994, 1.0
    %v10032 = vadd.f32 %v9996, 1.0
    %v10033 = vadd.f32 %v9998, 1.0
    %v10034 = vadd.f32 %v10000, 1.0
    %v10035 = vadd.f32 %v10002, 1.0
    %v10036 = vadd.f32 %v10004, 1.0
    %v10037 = vadd.f32 %v10006, 1.0
    %v10038 = vadd.f32 %v10008, 1.0
    %v10039 = vadd.f32 %v10010, 1.0
    %v10040 = vadd.f32 %v10012, 1.0
    %v10041 = vadd.f32 %v10014, 1.0
    %v10042 = vadd.f32 %v10016, 1.0
    %v10043 = vadd.f32 %v10018, 1.0
    %v10044 = vrcp.pop %v10019
    %v10045 = vmul.f32 %v10019, %v10044
    %v10046 = vsub.f32 1.0, %v10045
    %v10047 = vmul.f32 %v10044, %v10046
    %v10048 = vadd.f32 %v10044, %v10047
    %vm10049 = vweird.f32 %v10019
    %vm10050 = vweird.f32 %v10044
    %vm10051 = vmor %vm10049, %vm10050
    %v10052 = vsel %vm10051, %v10044, %v10048
    %v10053 = vand.u32 2147483647, %v10019
    %vm10054 = vcmp.eq.f32.partialorder %v10053, 8.507059e+37
    %v10055 = vand.u32 %v10019, 2147483648
    %v10056 = vor.u32 1.1754944e-38, %v10055
    %v10057 = vsel %vm10054, %v10056, %v10052
    %v10058 = vmul.f32 1.0, %v10057
    %v10059 = vrcp.pop %v10020
    %v10060 = vmul.f32 %v10020, %v10059
    %v10061 = vsub.f32 1.0, %v10060
    %v10062 = vmul.f32 %v10059, %v10061
    %v10063 = vadd.f32 %v10059, %v10062
    %vm10064 = vweird.f32 %v10020
    %vm10065 = vweird.f32 %v10059
    %vm10066 = vmor %vm10064, %vm10065
    %v10067 = vsel %vm10066, %v10059, %v10063
    %v10068 = vand.u32 2147483647, %v10020
    %vm10069 = vcmp.eq.f32.partialorder %v10068, 8.507059e+37
    %v10070 = vand.u32 %v10020, 2147483648
    %v10071 = vor.u32 1.1754944e-38, %v10070
    %v10072 = vsel %vm10069, %v10071, %v10067
    %v10073 = vmul.f32 1.0, %v10072
    %v10074 = vrcp.pop %v10021
    %v10075 = vmul.f32 %v10021, %v10074
    %v10076 = vsub.f32 1.0, %v10075
    %v10077 = vmul.f32 %v10074, %v10076
    %v10078 = vadd.f32 %v10074, %v10077
    %vm10079 = vweird.f32 %v10021
    %vm10080 = vweird.f32 %v10074
    %vm10081 = vmor %vm10079, %vm10080
    %v10082 = vsel %vm10081, %v10074, %v10078
    %v10083 = vand.u32 2147483647, %v10021
    %vm10084 = vcmp.eq.f32.partialorder %v10083, 8.507059e+37
    %v10085 = vand.u32 %v10021, 2147483648
    %v10086 = vor.u32 1.1754944e-38, %v10085
    %v10087 = vsel %vm10084, %v10086, %v10082
    %v10088 = vmul.f32 1.0, %v10087
    %v10089 = vrcp.pop %v10022
    %v10090 = vmul.f32 %v10022, %v10089
    %v10091 = vsub.f32 1.0, %v10090
    %v10092 = vmul.f32 %v10089, %v10091
    %v10093 = vadd.f32 %v10089, %v10092
    %vm10094 = vweird.f32 %v10022
    %vm10095 = vweird.f32 %v10089
    %vm10096 = vmor %vm10094, %vm10095
    %v10097 = vsel %vm10096, %v10089, %v10093
    %v10098 = vand.u32 2147483647, %v10022
    %vm10099 = vcmp.eq.f32.partialorder %v10098, 8.507059e+37
    %v10100 = vand.u32 %v10022, 2147483648
    %v10101 = vor.u32 1.1754944e-38, %v10100
    %v10102 = vsel %vm10099, %v10101, %v10097
    %v10103 = vmul.f32 1.0, %v10102
    %v10104 = vrcp.pop %v10023
    %v10105 = vmul.f32 %v10023, %v10104
    %v10106 = vsub.f32 1.0, %v10105
    %v10107 = vmul.f32 %v10104, %v10106
    %v10108 = vadd.f32 %v10104, %v10107
    %vm10109 = vweird.f32 %v10023
    %vm10110 = vweird.f32 %v10104
    %vm10111 = vmor %vm10109, %vm10110
    %v10112 = vsel %vm10111, %v10104, %v10108
    %v10113 = vand.u32 2147483647, %v10023
    %vm10114 = vcmp.eq.f32.partialorder %v10113, 8.507059e+37
    %v10115 = vand.u32 %v10023, 2147483648
    %v10116 = vor.u32 1.1754944e-38, %v10115
    %v10117 = vsel %vm10114, %v10116, %v10112
    %v10118 = vmul.f32 1.0, %v10117
    %v10119 = vrcp.pop %v10024
    %v10120 = vmul.f32 %v10024, %v10119
    %v10121 = vsub.f32 1.0, %v10120
    %v10122 = vmul.f32 %v10119, %v10121
    %v10123 = vadd.f32 %v10119, %v10122
    %vm10124 = vweird.f32 %v10024
    %vm10125 = vweird.f32 %v10119
    %vm10126 = vmor %vm10124, %vm10125
    %v10127 = vsel %vm10126, %v10119, %v10123
    %v10128 = vand.u32 2147483647, %v10024
    %vm10129 = vcmp.eq.f32.partialorder %v10128, 8.507059e+37
    %v10130 = vand.u32 %v10024, 2147483648
    %v10131 = vor.u32 1.1754944e-38, %v10130
    %v10132 = vsel %vm10129, %v10131, %v10127
    %v10133 = vmul.f32 1.0, %v10132
    %v10134 = vrcp.pop %v10025
    %v10135 = vmul.f32 %v10025, %v10134
    %v10136 = vsub.f32 1.0, %v10135
    %v10137 = vmul.f32 %v10134, %v10136
    %v10138 = vadd.f32 %v10134, %v10137
    %vm10139 = vweird.f32 %v10025
    %vm10140 = vweird.f32 %v10134
    %vm10141 = vmor %vm10139, %vm10140
    %v10142 = vsel %vm10141, %v10134, %v10138
    %v10143 = vand.u32 2147483647, %v10025
    %vm10144 = vcmp.eq.f32.partialorder %v10143, 8.507059e+37
    %v10145 = vand.u32 %v10025, 2147483648
    %v10146 = vor.u32 1.1754944e-38, %v10145
    %v10147 = vsel %vm10144, %v10146, %v10142
    %v10148 = vmul.f32 1.0, %v10147
    %v10149 = vrcp.pop %v10026
    %v10150 = vmul.f32 %v10026, %v10149
    %v10151 = vsub.f32 1.0, %v10150
    %v10152 = vmul.f32 %v10149, %v10151
    %v10153 = vadd.f32 %v10149, %v10152
    %vm10154 = vweird.f32 %v10026
    %vm10155 = vweird.f32 %v10149
    %vm10156 = vmor %vm10154, %vm10155
    %v10157 = vsel %vm10156, %v10149, %v10153
    %v10158 = vand.u32 2147483647, %v10026
    %vm10159 = vcmp.eq.f32.partialorder %v10158, 8.507059e+37
    %v10160 = vand.u32 %v10026, 2147483648
    %v10161 = vor.u32 1.1754944e-38, %v10160
    %v10162 = vsel %vm10159, %v10161, %v10157
    %v10163 = vmul.f32 1.0, %v10162
    %v10164 = vrcp.pop %v10027
    %v10165 = vmul.f32 %v10027, %v10164
    %v10166 = vsub.f32 1.0, %v10165
    %v10167 = vmul.f32 %v10164, %v10166
    %v10168 = vadd.f32 %v10164, %v10167
    %vm10169 = vweird.f32 %v10027
    %vm10170 = vweird.f32 %v10164
    %vm10171 = vmor %vm10169, %vm10170
    %v10172 = vsel %vm10171, %v10164, %v10168
    %v10173 = vand.u32 2147483647, %v10027
    %vm10174 = vcmp.eq.f32.partialorder %v10173, 8.507059e+37
    %v10175 = vand.u32 %v10027, 2147483648
    %v10176 = vor.u32 1.1754944e-38, %v10175
    %v10177 = vsel %vm10174, %v10176, %v10172
    %v10178 = vmul.f32 1.0, %v10177
    %v10179 = vrcp.pop %v10028
    %v10180 = vmul.f32 %v10028, %v10179
    %v10181 = vsub.f32 1.0, %v10180
    %v10182 = vmul.f32 %v10179, %v10181
    %v10183 = vadd.f32 %v10179, %v10182
    %vm10184 = vweird.f32 %v10028
    %vm10185 = vweird.f32 %v10179
    %vm10186 = vmor %vm10184, %vm10185
    %v10187 = vsel %vm10186, %v10179, %v10183
    %v10188 = vand.u32 2147483647, %v10028
    %vm10189 = vcmp.eq.f32.partialorder %v10188, 8.507059e+37
    %v10190 = vand.u32 %v10028, 2147483648
    %v10191 = vor.u32 1.1754944e-38, %v10190
    %v10192 = vsel %vm10189, %v10191, %v10187
    %v10193 = vmul.f32 1.0, %v10192
    %v10194 = vrcp.pop %v10029
    %v10195 = vmul.f32 %v10029, %v10194
    %v10196 = vsub.f32 1.0, %v10195
    %v10197 = vmul.f32 %v10194, %v10196
    %v10198 = vadd.f32 %v10194, %v10197
    %vm10199 = vweird.f32 %v10029
    %vm10200 = vweird.f32 %v10194
    %vm10201 = vmor %vm10199, %vm10200
    %v10202 = vsel %vm10201, %v10194, %v10198
    %v10203 = vand.u32 2147483647, %v10029
    %vm10204 = vcmp.eq.f32.partialorder %v10203, 8.507059e+37
    %v10205 = vand.u32 %v10029, 2147483648
    %v10206 = vor.u32 1.1754944e-38, %v10205
    %v10207 = vsel %vm10204, %v10206, %v10202
    %v10208 = vmul.f32 1.0, %v10207
    %v10209 = vrcp.pop %v10030
    %v10210 = vmul.f32 %v10030, %v10209
    %v10211 = vsub.f32 1.0, %v10210
    %v10212 = vmul.f32 %v10209, %v10211
    %v10213 = vadd.f32 %v10209, %v10212
    %vm10214 = vweird.f32 %v10030
    %vm10215 = vweird.f32 %v10209
    %vm10216 = vmor %vm10214, %vm10215
    %v10217 = vsel %vm10216, %v10209, %v10213
    %v10218 = vand.u32 2147483647, %v10030
    %vm10219 = vcmp.eq.f32.partialorder %v10218, 8.507059e+37
    %v10220 = vand.u32 %v10030, 2147483648
    %v10221 = vor.u32 1.1754944e-38, %v10220
    %v10222 = vsel %vm10219, %v10221, %v10217
    %v10223 = vmul.f32 1.0, %v10222
    %v10224 = vrcp.pop %v10031
    %v10225 = vmul.f32 %v10031, %v10224
    %v10226 = vsub.f32 1.0, %v10225
    %v10227 = vmul.f32 %v10224, %v10226
    %v10228 = vadd.f32 %v10224, %v10227
    %vm10229 = vweird.f32 %v10031
    %vm10230 = vweird.f32 %v10224
    %vm10231 = vmor %vm10229, %vm10230
    %v10232 = vsel %vm10231, %v10224, %v10228
    %v10233 = vand.u32 2147483647, %v10031
    %vm10234 = vcmp.eq.f32.partialorder %v10233, 8.507059e+37
    %v10235 = vand.u32 %v10031, 2147483648
    %v10236 = vor.u32 1.1754944e-38, %v10235
    %v10237 = vsel %vm10234, %v10236, %v10232
    %v10238 = vmul.f32 1.0, %v10237
    %v10239 = vrcp.pop %v10032
    %v10240 = vmul.f32 %v10032, %v10239
    %v10241 = vsub.f32 1.0, %v10240
    %v10242 = vmul.f32 %v10239, %v10241
    %v10243 = vadd.f32 %v10239, %v10242
    %vm10244 = vweird.f32 %v10032
    %vm10245 = vweird.f32 %v10239
    %vm10246 = vmor %vm10244, %vm10245
    %v10247 = vsel %vm10246, %v10239, %v10243
    %v10248 = vand.u32 2147483647, %v10032
    %vm10249 = vcmp.eq.f32.partialorder %v10248, 8.507059e+37
    %v10250 = vand.u32 %v10032, 2147483648
    %v10251 = vor.u32 1.1754944e-38, %v10250
    %v10252 = vsel %vm10249, %v10251, %v10247
    %v10253 = vmul.f32 1.0, %v10252
    %v10254 = vrcp.pop %v10033
    %v10255 = vmul.f32 %v10033, %v10254
    %v10256 = vsub.f32 1.0, %v10255
    %v10257 = vmul.f32 %v10254, %v10256
    %v10258 = vadd.f32 %v10254, %v10257
    %vm10259 = vweird.f32 %v10033
    %vm10260 = vweird.f32 %v10254
    %vm10261 = vmor %vm10259, %vm10260
    %v10262 = vsel %vm10261, %v10254, %v10258
    %v10263 = vand.u32 2147483647, %v10033
    %vm10264 = vcmp.eq.f32.partialorder %v10263, 8.507059e+37
    %v10265 = vand.u32 %v10033, 2147483648
    %v10266 = vor.u32 1.1754944e-38, %v10265
    %v10267 = vsel %vm10264, %v10266, %v10262
    %v10268 = vmul.f32 1.0, %v10267
    %v10269 = vrcp.pop %v10034
    %v10270 = vmul.f32 %v10034, %v10269
    %v10271 = vsub.f32 1.0, %v10270
    %v10272 = vmul.f32 %v10269, %v10271
    %v10273 = vadd.f32 %v10269, %v10272
    %vm10274 = vweird.f32 %v10034
    %vm10275 = vweird.f32 %v10269
    %vm10276 = vmor %vm10274, %vm10275
    %v10277 = vsel %vm10276, %v10269, %v10273
    %v10278 = vand.u32 2147483647, %v10034
    %vm10279 = vcmp.eq.f32.partialorder %v10278, 8.507059e+37
    %v10280 = vand.u32 %v10034, 2147483648
    %v10281 = vor.u32 1.1754944e-38, %v10280
    %v10282 = vsel %vm10279, %v10281, %v10277
    %v10283 = vmul.f32 1.0, %v10282
    %v10284 = vrcp.pop %v10035
    %v10285 = vmul.f32 %v10035, %v10284
    %v10286 = vsub.f32 1.0, %v10285
    %v10287 = vmul.f32 %v10284, %v10286
    %v10288 = vadd.f32 %v10284, %v10287
    %vm10289 = vweird.f32 %v10035
    %vm10290 = vweird.f32 %v10284
    %vm10291 = vmor %vm10289, %vm10290
    %v10292 = vsel %vm10291, %v10284, %v10288
    %v10293 = vand.u32 2147483647, %v10035
    %vm10294 = vcmp.eq.f32.partialorder %v10293, 8.507059e+37
    %v10295 = vand.u32 %v10035, 2147483648
    %v10296 = vor.u32 1.1754944e-38, %v10295
    %v10297 = vsel %vm10294, %v10296, %v10292
    %v10298 = vmul.f32 1.0, %v10297
    %v10299 = vrcp.pop %v10036
    %v10300 = vmul.f32 %v10036, %v10299
    %v10301 = vsub.f32 1.0, %v10300
    %v10302 = vmul.f32 %v10299, %v10301
    %v10303 = vadd.f32 %v10299, %v10302
    %vm10304 = vweird.f32 %v10036
    %vm10305 = vweird.f32 %v10299
    %vm10306 = vmor %vm10304, %vm10305
    %v10307 = vsel %vm10306, %v10299, %v10303
    %v10308 = vand.u32 2147483647, %v10036
    %vm10309 = vcmp.eq.f32.partialorder %v10308, 8.507059e+37
    %v10310 = vand.u32 %v10036, 2147483648
    %v10311 = vor.u32 1.1754944e-38, %v10310
    %v10312 = vsel %vm10309, %v10311, %v10307
    %v10313 = vmul.f32 1.0, %v10312
    %v10314 = vrcp.pop %v10037
    %v10315 = vmul.f32 %v10037, %v10314
    %v10316 = vsub.f32 1.0, %v10315
    %v10317 = vmul.f32 %v10314, %v10316
    %v10318 = vadd.f32 %v10314, %v10317
    %vm10319 = vweird.f32 %v10037
    %vm10320 = vweird.f32 %v10314
    %vm10321 = vmor %vm10319, %vm10320
    %v10322 = vsel %vm10321, %v10314, %v10318
    %v10323 = vand.u32 2147483647, %v10037
    %vm10324 = vcmp.eq.f32.partialorder %v10323, 8.507059e+37
    %v10325 = vand.u32 %v10037, 2147483648
    %v10326 = vor.u32 1.1754944e-38, %v10325
    %v10327 = vsel %vm10324, %v10326, %v10322
    %v10328 = vmul.f32 1.0, %v10327
    %v10329 = vrcp.pop %v10038
    %v10330 = vmul.f32 %v10038, %v10329
    %v10331 = vsub.f32 1.0, %v10330
    %v10332 = vmul.f32 %v10329, %v10331
    %v10333 = vadd.f32 %v10329, %v10332
    %vm10334 = vweird.f32 %v10038
    %vm10335 = vweird.f32 %v10329
    %vm10336 = vmor %vm10334, %vm10335
    %v10337 = vsel %vm10336, %v10329, %v10333
    %v10338 = vand.u32 2147483647, %v10038
    %vm10339 = vcmp.eq.f32.partialorder %v10338, 8.507059e+37
    %v10340 = vand.u32 %v10038, 2147483648
    %v10341 = vor.u32 1.1754944e-38, %v10340
    %v10342 = vsel %vm10339, %v10341, %v10337
    %v10343 = vmul.f32 1.0, %v10342
    %v10344 = vrcp.pop %v10039
    %v10345 = vmul.f32 %v10039, %v10344
    %v10346 = vsub.f32 1.0, %v10345
    %v10347 = vmul.f32 %v10344, %v10346
    %v10348 = vadd.f32 %v10344, %v10347
    %vm10349 = vweird.f32 %v10039
    %vm10350 = vweird.f32 %v10344
    %vm10351 = vmor %vm10349, %vm10350
    %v10352 = vsel %vm10351, %v10344, %v10348
    %v10353 = vand.u32 2147483647, %v10039
    %vm10354 = vcmp.eq.f32.partialorder %v10353, 8.507059e+37
    %v10355 = vand.u32 %v10039, 2147483648
    %v10356 = vor.u32 1.1754944e-38, %v10355
    %v10357 = vsel %vm10354, %v10356, %v10352
    %v10358 = vmul.f32 1.0, %v10357
    %v10359 = vrcp.pop %v10040
    %v10360 = vmul.f32 %v10040, %v10359
    %v10361 = vsub.f32 1.0, %v10360
    %v10362 = vmul.f32 %v10359, %v10361
    %v10363 = vadd.f32 %v10359, %v10362
    %vm10364 = vweird.f32 %v10040
    %vm10365 = vweird.f32 %v10359
    %vm10366 = vmor %vm10364, %vm10365
    %v10367 = vsel %vm10366, %v10359, %v10363
    %v10368 = vand.u32 2147483647, %v10040
    %vm10369 = vcmp.eq.f32.partialorder %v10368, 8.507059e+37
    %v10370 = vand.u32 %v10040, 2147483648
    %v10371 = vor.u32 1.1754944e-38, %v10370
    %v10372 = vsel %vm10369, %v10371, %v10367
    %v10373 = vmul.f32 1.0, %v10372
    %v10374 = vrcp.pop %v10041
    %v10375 = vmul.f32 %v10041, %v10374
    %v10376 = vsub.f32 1.0, %v10375
    %v10377 = vmul.f32 %v10374, %v10376
    %v10378 = vadd.f32 %v10374, %v10377
    %vm10379 = vweird.f32 %v10041
    %vm10380 = vweird.f32 %v10374
    %vm10381 = vmor %vm10379, %vm10380
    %v10382 = vsel %vm10381, %v10374, %v10378
    %v10383 = vand.u32 2147483647, %v10041
    %vm10384 = vcmp.eq.f32.partialorder %v10383, 8.507059e+37
    %v10385 = vand.u32 %v10041, 2147483648
    %v10386 = vor.u32 1.1754944e-38, %v10385
    %v10387 = vsel %vm10384, %v10386, %v10382
    %v10388 = vmul.f32 1.0, %v10387
    %v10389 = vrcp.pop %v10042
    %v10390 = vmul.f32 %v10042, %v10389
    %v10391 = vsub.f32 1.0, %v10390
    %v10392 = vmul.f32 %v10389, %v10391
    %v10393 = vadd.f32 %v10389, %v10392
    %vm10394 = vweird.f32 %v10042
    %vm10395 = vweird.f32 %v10389
    %vm10396 = vmor %vm10394, %vm10395
    %v10397 = vsel %vm10396, %v10389, %v10393
    %v10398 = vand.u32 2147483647, %v10042
    %vm10399 = vcmp.eq.f32.partialorder %v10398, 8.507059e+37
    %v10400 = vand.u32 %v10042, 2147483648
    %v10401 = vor.u32 1.1754944e-38, %v10400
    %v10402 = vsel %vm10399, %v10401, %v10397
    %v10403 = vmul.f32 1.0, %v10402
    %v10404 = vrcp.pop %v10043
    %v10405 = vmul.f32 %v10043, %v10404
    %v10406 = vsub.f32 1.0, %v10405
    %v10407 = vmul.f32 %v10404, %v10406
    %v10408 = vadd.f32 %v10404, %v10407
    %vm10409 = vweird.f32 %v10043
    %vm10410 = vweird.f32 %v10404
    %vm10411 = vmor %vm10409, %vm10410
    %v10412 = vsel %vm10411, %v10404, %v10408
    %v10413 = vand.u32 2147483647, %v10043
    %vm10414 = vcmp.eq.f32.partialorder %v10413, 8.507059e+37
    %v10415 = vand.u32 %v10043, 2147483648
    %v10416 = vor.u32 1.1754944e-38, %v10415
    %v10417 = vsel %vm10414, %v10416, %v10412
    %v10418 = vmul.f32 1.0, %v10417
    %vm10419 = vcmask 15360
    %10420 = vst.msk [vmem:[%s10] sm:$0xff] %vm10419, %v8183
    %10421 = vst.msk [vmem:[%s10 + $0x8] sm:$0xff] %vm10419, %v8198
    %10422 = vst.msk [vmem:[%s10 + $0x10] sm:$0xff] %vm10419, %v8213
    %10423 = vst.msk [vmem:[%s10 + $0x18] sm:$0xff] %vm10419, %v8228
    %10424 = vst.msk [vmem:[%s10 + $0x20] sm:$0xff] %vm10419, %v8243
    %10425 = vst.msk [vmem:[%s10 + $0x28] sm:$0xff] %vm10419, %v8258
    %10426 = vst.msk [vmem:[%s10 + $0x30] sm:$0xff] %vm10419, %v8273
    %10427 = vst.msk [vmem:[%s10 + $0x38] sm:$0xff] %vm10419, %v8288
    %10428 = vst.msk [vmem:[%s10 + $0x40] sm:$0xff] %vm10419, %v8303
    %10429 = vst.msk [vmem:[%s10 + $0x48] sm:$0xff] %vm10419, %v8318
    %10430 = vst.msk [vmem:[%s10 + $0x50] sm:$0xff] %vm10419, %v8333
    %10431 = vst.msk [vmem:[%s10 + $0x58] sm:$0xff] %vm10419, %v8348
    %10432 = vst.msk [vmem:[%s10 + $0x60] sm:$0xff] %vm10419, %v8363
    %10433 = vst.msk [vmem:[%s10 + $0x68] sm:$0xff] %vm10419, %v8378
    %10434 = vst.msk [vmem:[%s10 + $0x70] sm:$0xff] %vm10419, %v8393
    %10435 = vst.msk [vmem:[%s10 + $0x78] sm:$0xff] %vm10419, %v8408
    %10436 = vst.msk [vmem:[%s10 + $0x80] sm:$0xff] %vm10419, %v8423
    %10437 = vst.msk [vmem:[%s10 + $0x88] sm:$0xff] %vm10419, %v8438
    %10438 = vst.msk [vmem:[%s10 + $0x90] sm:$0xff] %vm10419, %v8453
    %10439 = vst.msk [vmem:[%s10 + $0x98] sm:$0xff] %vm10419, %v8468
    %10440 = vst.msk [vmem:[%s10 + $0xa0] sm:$0xff] %vm10419, %v8483
    %10441 = vst.msk [vmem:[%s10 + $0xa8] sm:$0xff] %vm10419, %v8498
    %10442 = vst.msk [vmem:[%s10 + $0xb0] sm:$0xff] %vm10419, %v8513
    %10443 = vst.msk [vmem:[%s10 + $0xb8] sm:$0xff] %vm10419, %v8528
    %vm10444 = vcmask 11264
    %10445 = vst.msk [vmem:[%s10 + $0xc0] sm:$0xf] %vm10444, %v8543
    %s10446 = scalar_lea.vmem %s10, 200
    %10447 = vst.msk [vmem:[%s10446] sm:$0xff] %vm10419, %v8808
    %10448 = vst.msk [vmem:[%s10446 + $0x8] sm:$0xff] %vm10419, %v8823
    %10449 = vst.msk [vmem:[%s10446 + $0x10] sm:$0xff] %vm10419, %v8838
    %10450 = vst.msk [vmem:[%s10446 + $0x18] sm:$0xff] %vm10419, %v8853
    %10451 = vst.msk [vmem:[%s10446 + $0x20] sm:$0xff] %vm10419, %v8868
    %10452 = vst.msk [vmem:[%s10446 + $0x28] sm:$0xff] %vm10419, %v8883
    %10453 = vst.msk [vmem:[%s10446 + $0x30] sm:$0xff] %vm10419, %v8898
    %10454 = vst.msk [vmem:[%s10446 + $0x38] sm:$0xff] %vm10419, %v8913
    %10455 = vst.msk [vmem:[%s10446 + $0x40] sm:$0xff] %vm10419, %v8928
    %10456 = vst.msk [vmem:[%s10446 + $0x48] sm:$0xff] %vm10419, %v8943
    %10457 = vst.msk [vmem:[%s10446 + $0x50] sm:$0xff] %vm10419, %v8958
    %10458 = vst.msk [vmem:[%s10446 + $0x58] sm:$0xff] %vm10419, %v8973
    %10459 = vst.msk [vmem:[%s10446 + $0x60] sm:$0xff] %vm10419, %v8988
    %10460 = vst.msk [vmem:[%s10446 + $0x68] sm:$0xff] %vm10419, %v9003
    %10461 = vst.msk [vmem:[%s10446 + $0x70] sm:$0xff] %vm10419, %v9018
    %10462 = vst.msk [vmem:[%s10446 + $0x78] sm:$0xff] %vm10419, %v9033
    %10463 = vst.msk [vmem:[%s10446 + $0x80] sm:$0xff] %vm10419, %v9048
    %10464 = vst.msk [vmem:[%s10446 + $0x88] sm:$0xff] %vm10419, %v9063
    %10465 = vst.msk [vmem:[%s10446 + $0x90] sm:$0xff] %vm10419, %v9078
    %10466 = vst.msk [vmem:[%s10446 + $0x98] sm:$0xff] %vm10419, %v9093
    %10467 = vst.msk [vmem:[%s10446 + $0xa0] sm:$0xff] %vm10419, %v9108
    %10468 = vst.msk [vmem:[%s10446 + $0xa8] sm:$0xff] %vm10419, %v9123
    %10469 = vst.msk [vmem:[%s10446 + $0xb0] sm:$0xff] %vm10419, %v9138
    %10470 = vst.msk [vmem:[%s10446 + $0xb8] sm:$0xff] %vm10419, %v9153
    %10471 = vst.msk [vmem:[%s10446 + $0xc0] sm:$0xf] %vm10444, %v9168
    %s10472 = scalar_lea.vmem %s10, 400
    %10473 = vst.msk [vmem:[%s10472] sm:$0xff] %vm10419, %v9433
    %10474 = vst.msk [vmem:[%s10472 + $0x8] sm:$0xff] %vm10419, %v9448
    %10475 = vst.msk [vmem:[%s10472 + $0x10] sm:$0xff] %vm10419, %v9463
    %10476 = vst.msk [vmem:[%s10472 + $0x18] sm:$0xff] %vm10419, %v9478
    %10477 = vst.msk [vmem:[%s10472 + $0x20] sm:$0xff] %vm10419, %v9493
    %10478 = vst.msk [vmem:[%s10472 + $0x28] sm:$0xff] %vm10419, %v9508
    %10479 = vst.msk [vmem:[%s10472 + $0x30] sm:$0xff] %vm10419, %v9523
    %10480 = vst.msk [vmem:[%s10472 + $0x38] sm:$0xff] %vm10419, %v9538
    %10481 = vst.msk [vmem:[%s10472 + $0x40] sm:$0xff] %vm10419, %v9553
    %10482 = vst.msk [vmem:[%s10472 + $0x48] sm:$0xff] %vm10419, %v9568
    %10483 = vst.msk [vmem:[%s10472 + $0x50] sm:$0xff] %vm10419, %v9583
    %10484 = vst.msk [vmem:[%s10472 + $0x58] sm:$0xff] %vm10419, %v9598
    %10485 = vst.msk [vmem:[%s10472 + $0x60] sm:$0xff] %vm10419, %v9613
    %10486 = vst.msk [vmem:[%s10472 + $0x68] sm:$0xff] %vm10419, %v9628
    %10487 = vst.msk [vmem:[%s10472 + $0x70] sm:$0xff] %vm10419, %v9643
    %10488 = vst.msk [vmem:[%s10472 + $0x78] sm:$0xff] %vm10419, %v9658
    %10489 = vst.msk [vmem:[%s10472 + $0x80] sm:$0xff] %vm10419, %v9673
    %10490 = vst.msk [vmem:[%s10472 + $0x88] sm:$0xff] %vm10419, %v9688
    %10491 = vst.msk [vmem:[%s10472 + $0x90] sm:$0xff] %vm10419, %v9703
    %10492 = vst.msk [vmem:[%s10472 + $0x98] sm:$0xff] %vm10419, %v9718
    %10493 = vst.msk [vmem:[%s10472 + $0xa0] sm:$0xff] %vm10419, %v9733
    %10494 = vst.msk [vmem:[%s10472 + $0xa8] sm:$0xff] %vm10419, %v9748
    %10495 = vst.msk [vmem:[%s10472 + $0xb0] sm:$0xff] %vm10419, %v9763
    %10496 = vst.msk [vmem:[%s10472 + $0xb8] sm:$0xff] %vm10419, %v9778
    %10497 = vst.msk [vmem:[%s10472 + $0xc0] sm:$0xf] %vm10444, %v9793
    %s10498 = scalar_lea.vmem %s10, 600
    %10499 = vst.msk [vmem:[%s10498] sm:$0xff] %vm10419, %v10058
    %10500 = vst.msk [vmem:[%s10498 + $0x8] sm:$0xff] %vm10419, %v10073
    %10501 = vst.msk [vmem:[%s10498 + $0x10] sm:$0xff] %vm10419, %v10088
    %10502 = vst.msk [vmem:[%s10498 + $0x18] sm:$0xff] %vm10419, %v10103
    %10503 = vst.msk [vmem:[%s10498 + $0x20] sm:$0xff] %vm10419, %v10118
    %10504 = vst.msk [vmem:[%s10498 + $0x28] sm:$0xff] %vm10419, %v10133
    %10505 = vst.msk [vmem:[%s10498 + $0x30] sm:$0xff] %vm10419, %v10148
    %10506 = vst.msk [vmem:[%s10498 + $0x38] sm:$0xff] %vm10419, %v10163
    %10507 = vst.msk [vmem:[%s10498 + $0x40] sm:$0xff] %vm10419, %v10178
    %10508 = vst.msk [vmem:[%s10498 + $0x48] sm:$0xff] %vm10419, %v10193
    %10509 = vst.msk [vmem:[%s10498 + $0x50] sm:$0xff] %vm10419, %v10208
    %10510 = vst.msk [vmem:[%s10498 + $0x58] sm:$0xff] %vm10419, %v10223
    %10511 = vst.msk [vmem:[%s10498 + $0x60] sm:$0xff] %vm10419, %v10238
    %10512 = vst.msk [vmem:[%s10498 + $0x68] sm:$0xff] %vm10419, %v10253
    %10513 = vst.msk [vmem:[%s10498 + $0x70] sm:$0xff] %vm10419, %v10268
    %10514 = vst.msk [vmem:[%s10498 + $0x78] sm:$0xff] %vm10419, %v10283
    %10515 = vst.msk [vmem:[%s10498 + $0x80] sm:$0xff] %vm10419, %v10298
    %10516 = vst.msk [vmem:[%s10498 + $0x88] sm:$0xff] %vm10419, %v10313
    %10517 = vst.msk [vmem:[%s10498 + $0x90] sm:$0xff] %vm10419, %v10328
    %10518 = vst.msk [vmem:[%s10498 + $0x98] sm:$0xff] %vm10419, %v10343
    %10519 = vst.msk [vmem:[%s10498 + $0xa0] sm:$0xff] %vm10419, %v10358
    %10520 = vst.msk [vmem:[%s10498 + $0xa8] sm:$0xff] %vm10419, %v10373
    %10521 = vst.msk [vmem:[%s10498 + $0xb0] sm:$0xff] %vm10419, %v10388
    %10522 = vst.msk [vmem:[%s10498 + $0xb8] sm:$0xff] %vm10419, %v10403
    %10523 = vst.msk [vmem:[%s10498 + $0xc0] sm:$0xf] %vm10444, %v10418
    // Predicated region
    $region46: #{fmnist_vae_decoder_pallas.1} parent=1 // pred_check
      _
    $region47: #{fmnist_vae_decoder_pallas.1} parent=1 // pred_check_branch
      %10525 = sbr.rel (0) target = $region49
    $region48: #{fmnist_vae_decoder_pallas.1} parent=1 // pred_region
      _
    $region49: #{fmnist_vae_decoder_pallas.1} parent=1 // pred_fallthru
      _
    // Predicated region
    $region50: #{fmnist_vae_decoder_pallas.1} parent=1 // pred_check
      _
    $region51: #{fmnist_vae_decoder_pallas.1} parent=1 // pred_check_branch
      %10527 = sbr.rel (0) target = $region53
    $region52: #{fmnist_vae_decoder_pallas.1} parent=1 // pred_region
      _
    $region53: #{fmnist_vae_decoder_pallas.1} parent=1 // pred_fallthru
      _
    %10528 = vsyncpa [#allocation3], 1

</llo_original>
